<compile_context>
chip_gen: v7x
topology: tpu7x:2x2x1
jax: 0.10.0
libtpu: 0.0.40
codegen_flags: <defaults>
</compile_context>

<pallas_src>
import math

import jax
import jax.numpy as jnp
from jax.experimental import pallas as pl
from jax.experimental.pallas import tpu as pltpu

# ----------------------------- config (small, consistent with the module) ---
SD_C_IN = 4          # input image channels
H = W = 16           # input spatial size
B = 2                # batch
LATENT_C = 4         # AE latent channels
HW_LAT = (H // 2) * (W // 2)          # 64 latent tokens per image
N_T = 3              # num_t_stratification_bins
T_MIN, T_MAX = 1, 999
T_MAX_MODEL = 999
T_INIT = 261.0       # nn.Parameter(timestep)
MAP_WIDTH = 32       # mapping.width
MAP_D_FF = 64        # mapping.d_ff
MAP_DEPTH = 2        # mapping.depth
FEAT_DIMS = {"us6": 32}
FE_HID = 32          # synthetic feature-extractor hidden width
ADAPTER_HID = 64     # adapter MLP hidden width
DTYPE = jnp.float32

NS = B * N_T                          # 6 conditioned samples
NG = NS + B                           # 8 row-groups through the extractor
ROWS_BASE = NS * HW_LAT               # 384 noisy-branch token rows
ROWS_CLEAN = B * HW_LAT               # 128 clean-branch token rows (deduped over N_T)
ROWS_ALL = ROWS_BASE + ROWS_CLEAN     # 512


# ----------------------------- small helpers ---------------------------------
def _bf16(x):
    return x.astype(jnp.bfloat16)


def _gelu(x):
    # TODO(synk): PyTorch nn.GELU defaults to the exact erf form; the tanh
    # approximation is used here to guarantee Mosaic lowering.
    return jax.nn.gelu(x, approximate=True)


def _rmsnorm(x, eps=1e-6):
    return x * jax.lax.rsqrt(jnp.mean(jnp.square(x), axis=-1, keepdims=True) + eps)


def _fullspec(shape):
    n = len(shape)
    return pl.BlockSpec(tuple(shape), lambda i, _n=n: (0,) * _n)


# ----------------------------- kernel 1: encode + noise + feature extractor --
def _encode_fe_kernel(xs2d_ref, eps_ref, coef_ref, emb_ref,
                      ae_w_ref, ae_b_ref, wt_ref, bt_ref,
                      w1_ref, b1_ref, w2_ref, b2_ref,
                      fbase_ref, fclean_ref):
    f32 = jnp.float32
    # --- AE encode: pointwise conv on 2x2 space-to-depth patches -------------
    x0 = jnp.dot(_bf16(xs2d_ref[...]), _bf16(ae_w_ref[...]),
                 preferred_element_type=f32) + ae_b_ref[...]           # (B*HW, C_lat)
    # --- repeat x0 over the N_T stratification bins (in-register) ------------
    x0_rep = jnp.broadcast_to(
        x0.reshape(B, 1, HW_LAT, LATENT_C), (B, N_T, HW_LAT, LATENT_C)
    ).reshape(ROWS_BASE, LATENT_C)                                     # (384, C_lat)
    # --- scheduler.add_noise --------------------------------------------------
    coefs = coef_ref[...]                                              # (NG, 2)
    ca = jnp.broadcast_to(coefs[:NS, None, 0:1],
                          (NS, HW_LAT, 1)).reshape(ROWS_BASE, 1)
    cb = jnp.broadcast_to(coefs[:NS, None, 1:2],
                          (NS, HW_LAT, 1)).reshape(ROWS_BASE, 1)
    x_t = ca * x0_rep + cb * eps_ref[...]                              # (384, C_lat)
    # --- timestep embedding projection (rows 0..NS-1 noisy t, NS.. clean t) --
    temb = _gelu(jnp.dot(_bf16(emb_ref[...]), _bf16(wt_ref[...]),
                         preferred_element_type=f32) + bt_ref[...])    # (NG, FE_HID)
    # --- 2-layer token MLP, both branches in one 512-row slab ----------------
    tok = jnp.concatenate([x_t, x0], axis=0)                           # (512, C_lat)
    h = jnp.dot(_bf16(tok), _bf16(w1_ref[...]),
                preferred_element_type=f32) + b1_ref[...]              # (512, FE_HID)
    h = h.reshape(NG, HW_LAT, FE_HID) + temb[:, None, :]
    h = _gelu(h).reshape(ROWS_ALL, FE_HID)
    feat = jnp.dot(_bf16(h), _bf16(w2_ref[...]),
                   preferred_element_type=f32) + b2_ref[...]           # (512, D)
    fbase_ref[...] = feat[:ROWS_BASE].astype(fbase_ref.dtype)
    fclean_ref[...] = feat[ROWS_BASE:].astype(fclean_ref.dtype)


def encode_and_extract(params, x_s2d, eps, coefs, emb):
    d_feat = FEAT_DIMS["us6"]
    args = [x_s2d, eps, coefs, emb,
            params["ae_w"], params["ae_b"].reshape(1, -1),
            params["fe_w_temb"], params["fe_b_temb"].reshape(1, -1),
            params["fe_w1"], params["fe_b1"].reshape(1, -1),
            params["fe_w2"], params["fe_b2"].reshape(1, -1)]
    out_shape = (jax.ShapeDtypeStruct((ROWS_BASE, d_feat), DTYPE),
                 jax.ShapeDtypeStruct((ROWS_CLEAN, d_feat), DTYPE))
    return pl.pallas_call(
        _encode_fe_kernel,
        out_shape=out_shape,
        grid=(1,),
        in_specs=[_fullspec(a.shape) for a in args],
        out_specs=tuple(_fullspec(s.shape) for s in out_shape),
        compiler_params=pltpu.CompilerParams(dimension_semantics=("arbitrary",)),
    )(*args)


# ----------------------------- kernel 2: mapping + adapter + cossim loss -----
def _cond_adapter_loss_kernel(ff_ref, vclean_ref, vbase_ref, w_tin_ref,
                              mw1_ref, mb1_ref, mw2_ref, mb2_ref,
                              wc_ref, bc_ref, wi_ref, bi_ref, wo_ref, bo_ref,
                              loss_ref):
    f32 = jnp.float32
    d = vbase_ref.shape[-1]
    # --- time conditioning: mapping(time_in_proj(fourier)) -------------------
    m = jnp.dot(_bf16(ff_ref[...]), _bf16(w_tin_ref[...]),
                preferred_element_type=f32)                            # (NG, W)
    for li in range(MAP_DEPTH):
        hn = _rmsnorm(m)
        hh = _gelu(jnp.dot(_bf16(hn), _bf16(mw1_ref[li]),
                           preferred_element_type=f32) + mb1_ref[li])
        m = m + jnp.dot(_bf16(hh), _bf16(mw2_ref[li]),
                        preferred_element_type=f32) + mb2_ref[li]
    cond = _rmsnorm(m)                                                 # (NG, W)
    # --- adapter cond projection -> per-sample FiLM scale / shift ------------
    ss = jnp.dot(_bf16(cond), _bf16(wc_ref[...]),
                 preferred_element_type=f32) + bc_ref[...]             # (NG, 2D)
    scale = jnp.broadcast_to(ss[:NS, None, :d],
                             (NS, HW_LAT, d)).reshape(ROWS_BASE, d)
    shift = jnp.broadcast_to(ss[:NS, None, d:],
                             (NS, HW_LAT, d)).reshape(ROWS_BASE, d)
    # --- repeat clean features over N_T (in-register) ------------------------
    v = jnp.broadcast_to(
        vclean_ref[...].astype(f32).reshape(B, 1, HW_LAT, d),
        (B, N_T, HW_LAT, d)).reshape(ROWS_BASE, d)
    # --- adapter: LayerNorm (no affine; FiLM supplies scale/shift) -> MLP ----
    # TODO(synk): verify the reference adapter's LayerNorm has no learnable gamma/beta.
    mu = jnp.mean(v, axis=-1, keepdims=True)
    var = jnp.mean(jnp.square(v - mu), axis=-1, keepdims=True)
    xn = (v - mu) * jax.lax.rsqrt(var + 1e-6)
    mod = xn * (1.0 + scale) + shift
    h = _gelu(jnp.dot(_bf16(mod), _bf16(wi_ref[...]),
                      preferred_element_type=f32) + bi_ref[...])       # (384, HID)
    out = v + jnp.dot(_bf16(h), _bf16(wo_ref[...]),
                      preferred_element_type=f32) + bo_ref[...]        # (384, D)
    # --- cosine-similarity loss (torch eps semantics), scalar reduction ------
    vb = vbase_ref[...].astype(f32)
    dots = jnp.sum(out * vb, axis=-1, keepdims=True)
    na = jnp.maximum(jnp.sqrt(jnp.sum(out * out, axis=-1, keepdims=True)), 1e-8)
    nb = jnp.maximum(jnp.sqrt(jnp.sum(vb * vb, axis=-1, keepdims=True)), 1e-8)
    cos = dots / (na * nb)
    loss_ref[...] = (-jnp.sum(cos, axis=0, keepdims=True)
                     / ROWS_BASE).astype(loss_ref.dtype)


def cond_adapt_and_loss(params, adapter, ff, feat_clean, feat_base):
    map_w1 = jnp.stack([l["w1"] for l in params["mapping"]])
    map_b1 = jnp.stack([l["b1"].reshape(1, -1) for l in params["mapping"]])
    map_w2 = jnp.stack([l["w2"] for l in params["mapping"]])
    map_b2 = jnp.stack([l["b2"].reshape(1, -1) for l in params["mapping"]])
    args = [ff, feat_clean, feat_base, params["time_in_proj_w"],
            map_w1, map_b1, map_w2, map_b2,
            adapter["w_cond"], adapter["b_cond"].reshape(1, -1),
            adapter["w_in"], adapter["b_in"].reshape(1, -1),
            adapter["w_out"], adapter["b_out"].reshape(1, -1)]
    return pl.pallas_call(
        _cond_adapter_loss_kernel,
        out_shape=jax.ShapeDtypeStruct((1, 1), jnp.float32),
        grid=(1,),
        in_specs=[_fullspec(a.shape) for a in args],
        out_specs=_fullspec((1, 1)),
        compiler_params=pltpu.CompilerParams(dimension_semantics=("arbitrary",)),
    )(*args)


# ----------------------------- JAX glue (tiny scalar / trig / layout math) ---
def sinusoidal_embedding(t, dim):
    half = dim // 2
    freqs = jnp.exp(-math.log(10000.0) * jnp.arange(half, dtype=jnp.float32) / half)
    ang = t.astype(jnp.float32)[:, None] * freqs[None, :]
    return jnp.concatenate([jnp.sin(ang), jnp.cos(ang)], axis=-1).astype(DTYPE)


def fourier_features(x, w):
    # FourierFeatures(1, width): cat(cos(2*pi*x @ W^T), sin(2*pi*x @ W^T))
    f = 2.0 * math.pi * (x @ w.T)
    return jnp.concatenate([jnp.cos(f), jnp.sin(f)], axis=-1).astype(DTYPE)


def space_to_depth(x_nchw):
    b, c, h, w = x_nchw.shape
    x_nhwc = jnp.transpose(x_nchw, (0, 2, 3, 1))
    h2, w2 = h // 2, w // 2
    return (x_nhwc.reshape(b, h2, 2, w2, 2, c)
            .transpose(0, 1, 3, 2, 4, 5)
            .reshape(b * h2 * w2, 4 * c))


# ----------------------------- forward ---------------------------------------
def forward(params, x, key):
    """Mirrors StableFeatureAligner.forward with alignment_loss='cossim'."""
    b = x.shape[0]
    key_t, key_eps = jax.random.split(key)

    # stratified timestep sampling: t in (B, N_T)
    t_range = float(T_MAX - T_MIN)
    t_per_bin = t_range / N_T
    u = jax.random.uniform(key_t, (b, N_T), dtype=jnp.float32)
    t = (T_MIN + u * t_per_bin
         + jnp.arange(N_T, dtype=jnp.float32)[None, :] * t_per_bin).astype(jnp.int32)
    t_flat = t.reshape(b * N_T)

    # TODO(synk): CLIP text-encoder prompt embeddings (encoder_hidden_states) have no
    # in-script equivalent; the synthetic feature extractor is unconditional on text.

    # scheduler.add_noise coefficients (SD scaled-linear DDPM schedule) at sampled t
    betas = jnp.linspace(0.00085 ** 0.5, 0.012 ** 0.5, 1000, dtype=jnp.float32) ** 2
    acp = jnp.cumprod(1.0 - betas)
    coefs = jnp.stack([jnp.sqrt(acp)[t_flat], jnp.sqrt(1.0 - acp)[t_flat]], axis=-1)
    coefs = jnp.concatenate([coefs, jnp.zeros((NG - NS, 2), jnp.float32)], axis=0)

    eps = jax.random.normal(key_eps, (ROWS_BASE, LATENT_C), dtype=DTYPE)

    # sinusoidal timestep embeddings: noisy branch at sampled t (6 rows), clean
    # branch at the learned constant timestep (one row per batch element).
    t_clean = jnp.full((b,), params["timestep"], dtype=jnp.float32)
    emb = jnp.concatenate([sinusoidal_embedding(t_flat.astype(jnp.float32), FE_HID),
                           sinusoidal_embedding(t_clean, FE_HID)], axis=0)   # (NG, FE_HID)

    # kernel 1: AE encode + add_noise + feature extractor (base & clean fused)
    x_s2d = space_to_depth(x)
    feat_base, feat_clean = encode_and_extract(params, x_s2d, eps, coefs, emb)
    feat_base = jax.lax.stop_gradient(feat_base)   # frozen base-extractor branch

    # time-conditioning Fourier features for the adapters (rows padded to NG)
    t_norm = (t_flat.astype(DTYPE) / T_MAX_MODEL)[:, None]
    ff = fourier_features(t_norm, params["fourier_w"])
    ff = jnp.concatenate([ff, jnp.zeros((NG - NS, MAP_WIDTH), DTYPE)], axis=0)

    # kernel 2: mapping MLP + adapter + cosine-similarity loss (per feature key)
    losses = {}
    for k in FEAT_DIMS:
        loss = cond_adapt_and_loss(params, params["adapters"][k], ff,
                                   feat_clean, feat_base)
        losses[f"neg_cossim_{k}"] = loss[0, 0]
    return losses


# ----------------------------- deterministic parameter init ------------------
def init_params(key):
    keys = jax.random.split(key, 16)

    def dense(k, fan_in, fan_out):
        return jax.random.normal(k, (fan_in, fan_out), DTYPE) / math.sqrt(fan_in)

    p = {}
    p["ae_w"] = dense(keys[0], 4 * SD_C_IN, LATENT_C)
    p["ae_b"] = jnp.zeros((LATENT_C,), DTYPE)
    # feature extractor (cleandift is a state-dict copy of base -> shared weights)
    p["fe_w_temb"] = dense(keys[1], FE_HID, FE_HID)
    p["fe_b_temb"] = jnp.zeros((FE_HID,), DTYPE)
    p["fe_w1"] = dense(keys[2], LATENT_C, FE_HID)
    p["fe_b1"] = jnp.zeros((FE_HID,), DTYPE)
    p["fe_w2"] = dense(keys[3], FE_HID, FEAT_DIMS["us6"])
    p["fe_b2"] = jnp.zeros((FEAT_DIMS["us6"],), DTYPE)
    # time conditioning: FourierFeatures(1, width) + Linear(width, width, bias=False) + mapping
    p["fourier_w"] = jax.random.normal(keys[4], (MAP_WIDTH // 2, 1), DTYPE)
    p["time_in_proj_w"] = dense(keys[5], MAP_WIDTH, MAP_WIDTH)
    p["mapping"] = []
    for li in range(MAP_DEPTH):
        k1, k2 = jax.random.split(keys[6 + li])
        p["mapping"].append({
            "w1": dense(k1, MAP_WIDTH, MAP_D_FF), "b1": jnp.zeros((MAP_D_FF,), DTYPE),
            "w2": dense(k2, MAP_D_FF, MAP_WIDTH), "b2": jnp.zeros((MAP_WIDTH,), DTYPE)})
    # per-key adapters (dim=feature_dims[k]), conditioned on map_cond
    p["adapters"] = {}
    for i, (k, dim) in enumerate(FEAT_DIMS.items()):
        ka, kb, kc = jax.random.split(keys[10 + i], 3)
        p["adapters"][k] = {
            "w_cond": dense(ka, MAP_WIDTH, 2 * dim), "b_cond": jnp.zeros((2 * dim,), DTYPE),
            "w_in": dense(kb, dim, ADAPTER_HID), "b_in": jnp.zeros((ADAPTER_HID,), DTYPE),
            "w_out": dense(kc, ADAPTER_HID, dim), "b_out": jnp.zeros((dim,), DTYPE)}
    p["timestep"] = jnp.asarray(T_INIT, DTYPE)
    return p


# ----------------------------- main -------------------------------------------
if __name__ == "__main__":
    root = jax.random.PRNGKey(0)
    kp, kx, kf = jax.random.split(root, 3)
    params = init_params(kp)
    x = jax.random.normal(kx, (B, SD_C_IN, H, W), dtype=DTYPE)   # NCHW, like PyTorch

    losses = jax.jit(forward)(params, x, kf)
    losses = jax.block_until_ready(losses)

    ok = all(bool(jnp.isfinite(v)) for v in losses.values())
    assert ok, f"non-finite loss: {losses}"
    print("KERNEL_OK")
</pallas_src>

<mosaic_0001>
module attributes {stable_mosaic.version = 11 : i64} {
  func.func @_cond_adapter_loss_kernel(%arg0: i32, %arg1: memref<8x32xf32, #tpu.memory_space<vmem>>, %arg2: memref<128x32xf32, #tpu.memory_space<vmem>>, %arg3: memref<384x32xf32, #tpu.memory_space<vmem>>, %arg4: memref<32x32xf32, #tpu.memory_space<vmem>>, %arg5: memref<2x32x64xf32, #tpu.memory_space<vmem>>, %arg6: memref<2x1x64xf32, #tpu.memory_space<vmem>>, %arg7: memref<2x64x32xf32, #tpu.memory_space<vmem>>, %arg8: memref<2x1x32xf32, #tpu.memory_space<vmem>>, %arg9: memref<32x64xf32, #tpu.memory_space<vmem>>, %arg10: memref<1x64xf32, #tpu.memory_space<vmem>>, %arg11: memref<32x64xf32, #tpu.memory_space<vmem>>, %arg12: memref<1x64xf32, #tpu.memory_space<vmem>>, %arg13: memref<64x32xf32, #tpu.memory_space<vmem>>, %arg14: memref<1x32xf32, #tpu.memory_space<vmem>>, %arg15: memref<1x1xf32, #tpu.memory_space<vmem>>) attributes {dimension_semantics = [#tpu.dimension_semantics<arbitrary>], iteration_bounds = array<i64: 1>, scalar_prefetch = 0 : i64, scratch_operands = 0 : i64, tpu.core_type = #tpu.core_type<tc>, window_params = [{pipeline_mode = #tpu.pipeline_mode<synchronous>, transform_indices = @transform_0, window_bounds = array<i64: 8, 32>}, {pipeline_mode = #tpu.pipeline_mode<synchronous>, transform_indices = @transform_1, window_bounds = array<i64: 128, 32>}, {pipeline_mode = #tpu.pipeline_mode<synchronous>, transform_indices = @transform_2, window_bounds = array<i64: 384, 32>}, {pipeline_mode = #tpu.pipeline_mode<synchronous>, transform_indices = @transform_3, window_bounds = array<i64: 32, 32>}, {pipeline_mode = #tpu.pipeline_mode<synchronous>, transform_indices = @transform_4, window_bounds = array<i64: 2, 32, 64>}, {pipeline_mode = #tpu.pipeline_mode<synchronous>, transform_indices = @transform_5, window_bounds = array<i64: 2, 1, 64>}, {pipeline_mode = #tpu.pipeline_mode<synchronous>, transform_indices = @transform_6, window_bounds = array<i64: 2, 64, 32>}, {pipeline_mode = #tpu.pipeline_mode<synchronous>, transform_indices = @transform_7, window_bounds = array<i64: 2, 1, 32>}, {pipeline_mode = #tpu.pipeline_mode<synchronous>, transform_indices = @transform_8, window_bounds = array<i64: 32, 64>}, {pipeline_mode = #tpu.pipeline_mode<synchronous>, transform_indices = @transform_9, window_bounds = array<i64: 1, 64>}, {pipeline_mode = #tpu.pipeline_mode<synchronous>, transform_indices = @transform_10, window_bounds = array<i64: 32, 64>}, {pipeline_mode = #tpu.pipeline_mode<synchronous>, transform_indices = @transform_11, window_bounds = array<i64: 1, 64>}, {pipeline_mode = #tpu.pipeline_mode<synchronous>, transform_indices = @transform_12, window_bounds = array<i64: 64, 32>}, {pipeline_mode = #tpu.pipeline_mode<synchronous>, transform_indices = @transform_13, window_bounds = array<i64: 1, 32>}, {pipeline_mode = #tpu.pipeline_mode<synchronous>, transform_indices = @transform_14, window_bounds = array<i64: 1, 1>}]} {
    %c0 = arith.constant 0 : index
    %c0_0 = arith.constant 0 : index
    %0 = vector.load %arg1[%c0, %c0_0] : memref<8x32xf32, #tpu.memory_space<vmem>>, vector<8x32xf32>
    %1 = arith.truncf %0 : vector<8x32xf32> to vector<8x32xbf16>
    %c0_1 = arith.constant 0 : index
    %c0_2 = arith.constant 0 : index
    %2 = vector.load %arg4[%c0_1, %c0_2] : memref<32x32xf32, #tpu.memory_space<vmem>>, vector<32x32xf32>
    %3 = arith.truncf %2 : vector<32x32xf32> to vector<32x32xbf16>
    %cst = arith.constant dense<0.000000e+00> : vector<8x32xf32>
    %4 = tpu.matmul %1, %3, %cst {dimension_numbers = #tpu.dot_dimension_numbers<[1], [0], [0], [1], [0, 0, 1, 1], [], []>} : vector<8x32xbf16>, vector<32x32xbf16>, vector<8x32xf32> -> vector<8x32xf32>
    %5 = arith.mulf %4, %4 : vector<8x32xf32>
    %cst_3 = arith.constant dense<0.000000e+00> : vector<8xf32>
    %6 = vector.multi_reduction <add>, %5, %cst_3 [1] : vector<8x32xf32> to vector<8xf32>
    %7 = vector.shape_cast %6 : vector<8xf32> to vector<8x1xf32>
    %cst_4 = arith.constant 3.200000e+01 : f32
    %8 = vector.broadcast %cst_4 : f32 to vector<8x1xf32>
    %9 = arith.divf %7, %8 : vector<8x1xf32>
    %cst_5 = arith.constant 9.99999997E-7 : f32
    %10 = vector.broadcast %cst_5 : f32 to vector<8x1xf32>
    %11 = arith.addf %9, %10 : vector<8x1xf32>
    %12 = math.rsqrt %11 : vector<8x1xf32>
    %13 = vector.broadcast %12 : vector<8x1xf32> to vector<8x32xf32>
    %14 = arith.mulf %4, %13 : vector<8x32xf32>
    %15 = arith.truncf %14 : vector<8x32xf32> to vector<8x32xbf16>
    %c0_6 = arith.constant 0 : index
    %c0_7 = arith.constant 0 : index
    %c0_8 = arith.constant 0 : index
    %16 = vector.load %arg5[%c0_6, %c0_7, %c0_8] : memref<2x32x64xf32, #tpu.memory_space<vmem>>, vector<1x32x64xf32>
    %17 = vector.shape_cast %16 : vector<1x32x64xf32> to vector<32x64xf32>
    %18 = arith.truncf %17 : vector<32x64xf32> to vector<32x64xbf16>
    %cst_9 = arith.constant dense<0.000000e+00> : vector<8x64xf32>
    %19 = tpu.matmul %15, %18, %cst_9 {dimension_numbers = #tpu.dot_dimension_numbers<[1], [0], [0], [1], [0, 0, 1, 1], [], []>} : vector<8x32xbf16>, vector<32x64xbf16>, vector<8x64xf32> -> vector<8x64xf32>
    %c0_10 = arith.constant 0 : index
    %c0_11 = arith.constant 0 : index
    %c0_12 = arith.constant 0 : index
    %20 = vector.load %arg6[%c0_10, %c0_11, %c0_12] : memref<2x1x64xf32, #tpu.memory_space<vmem>>, vector<1x1x64xf32>
    %21 = vector.shape_cast %20 : vector<1x1x64xf32> to vector<1x64xf32>
    %22 = vector.broadcast %21 : vector<1x64xf32> to vector<8x64xf32>
    %23 = arith.addf %19, %22 : vector<8x64xf32>
    %24 = arith.mulf %23, %23 : vector<8x64xf32>
    %25 = arith.mulf %23, %24 : vector<8x64xf32>
    %cst_13 = arith.constant 4.471500e-02 : f32
    %26 = vector.broadcast %cst_13 : f32 to vector<8x64xf32>
    %27 = arith.mulf %26, %25 : vector<8x64xf32>
    %28 = arith.addf %23, %27 : vector<8x64xf32>
    %cst_14 = arith.constant 0.797884583 : f32
    %29 = vector.broadcast %cst_14 : f32 to vector<8x64xf32>
    %30 = arith.mulf %29, %28 : vector<8x64xf32>
    %31 = math.tanh %30 : vector<8x64xf32>
    %cst_15 = arith.constant 1.000000e+00 : f32
    %32 = vector.broadcast %cst_15 : f32 to vector<8x64xf32>
    %33 = arith.addf %32, %31 : vector<8x64xf32>
    %cst_16 = arith.constant 5.000000e-01 : f32
    %34 = vector.broadcast %cst_16 : f32 to vector<8x64xf32>
    %35 = arith.mulf %34, %33 : vector<8x64xf32>
    %36 = arith.mulf %23, %35 : vector<8x64xf32>
    %37 = arith.truncf %36 : vector<8x64xf32> to vector<8x64xbf16>
    %c0_17 = arith.constant 0 : index
    %c0_18 = arith.constant 0 : index
    %c0_19 = arith.constant 0 : index
    %38 = vector.load %arg7[%c0_17, %c0_18, %c0_19] : memref<2x64x32xf32, #tpu.memory_space<vmem>>, vector<1x64x32xf32>
    %39 = vector.shape_cast %38 : vector<1x64x32xf32> to vector<64x32xf32>
    %40 = arith.truncf %39 : vector<64x32xf32> to vector<64x32xbf16>
    %cst_20 = arith.constant dense<0.000000e+00> : vector<8x32xf32>
    %41 = tpu.matmul %37, %40, %cst_20 {dimension_numbers = #tpu.dot_dimension_numbers<[1], [0], [0], [1], [0, 0, 1, 1], [], []>} : vector<8x64xbf16>, vector<64x32xbf16>, vector<8x32xf32> -> vector<8x32xf32>
    %42 = arith.addf %4, %41 : vector<8x32xf32>
    %c0_21 = arith.constant 0 : index
    %c0_22 = arith.constant 0 : index
    %c0_23 = arith.constant 0 : index
    %43 = vector.load %arg8[%c0_21, %c0_22, %c0_23] : memref<2x1x32xf32, #tpu.memory_space<vmem>>, vector<1x1x32xf32>
    %44 = vector.shape_cast %43 : vector<1x1x32xf32> to vector<1x32xf32>
    %45 = vector.broadcast %44 : vector<1x32xf32> to vector<8x32xf32>
    %46 = arith.addf %42, %45 : vector<8x32xf32>
    %47 = arith.mulf %46, %46 : vector<8x32xf32>
    %cst_24 = arith.constant dense<0.000000e+00> : vector<8xf32>
    %48 = vector.multi_reduction <add>, %47, %cst_24 [1] : vector<8x32xf32> to vector<8xf32>
    %49 = vector.shape_cast %48 : vector<8xf32> to vector<8x1xf32>
    %cst_25 = arith.constant 3.200000e+01 : f32
    %50 = vector.broadcast %cst_25 : f32 to vector<8x1xf32>
    %51 = arith.divf %49, %50 : vector<8x1xf32>
    %cst_26 = arith.constant 9.99999997E-7 : f32
    %52 = vector.broadcast %cst_26 : f32 to vector<8x1xf32>
    %53 = arith.addf %51, %52 : vector<8x1xf32>
    %54 = math.rsqrt %53 : vector<8x1xf32>
    %55 = vector.broadcast %54 : vector<8x1xf32> to vector<8x32xf32>
    %56 = arith.mulf %46, %55 : vector<8x32xf32>
    %57 = arith.truncf %56 : vector<8x32xf32> to vector<8x32xbf16>
    %c1 = arith.constant 1 : index
    %c0_27 = arith.constant 0 : index
    %c0_28 = arith.constant 0 : index
    %58 = vector.load %arg5[%c1, %c0_27, %c0_28] : memref<2x32x64xf32, #tpu.memory_space<vmem>>, vector<1x32x64xf32>
    %59 = vector.shape_cast %58 : vector<1x32x64xf32> to vector<32x64xf32>
    %60 = arith.truncf %59 : vector<32x64xf32> to vector<32x64xbf16>
    %cst_29 = arith.constant dense<0.000000e+00> : vector<8x64xf32>
    %61 = tpu.matmul %57, %60, %cst_29 {dimension_numbers = #tpu.dot_dimension_numbers<[1], [0], [0], [1], [0, 0, 1, 1], [], []>} : vector<8x32xbf16>, vector<32x64xbf16>, vector<8x64xf32> -> vector<8x64xf32>
    %c1_30 = arith.constant 1 : index
    %c0_31 = arith.constant 0 : index
    %c0_32 = arith.constant 0 : index
    %62 = vector.load %arg6[%c1_30, %c0_31, %c0_32] : memref<2x1x64xf32, #tpu.memory_space<vmem>>, vector<1x1x64xf32>
    %63 = vector.shape_cast %62 : vector<1x1x64xf32> to vector<1x64xf32>
    %64 = vector.broadcast %63 : vector<1x64xf32> to vector<8x64xf32>
    %65 = arith.addf %61, %64 : vector<8x64xf32>
    %66 = arith.mulf %65, %65 : vector<8x64xf32>
    %67 = arith.mulf %65, %66 : vector<8x64xf32>
    %cst_33 = arith.constant 4.471500e-02 : f32
    %68 = vector.broadcast %cst_33 : f32 to vector<8x64xf32>
    %69 = arith.mulf %68, %67 : vector<8x64xf32>
    %70 = arith.addf %65, %69 : vector<8x64xf32>
    %cst_34 = arith.constant 0.797884583 : f32
    %71 = vector.broadcast %cst_34 : f32 to vector<8x64xf32>
    %72 = arith.mulf %71, %70 : vector<8x64xf32>
    %73 = math.tanh %72 : vector<8x64xf32>
    %cst_35 = arith.constant 1.000000e+00 : f32
    %74 = vector.broadcast %cst_35 : f32 to vector<8x64xf32>
    %75 = arith.addf %74, %73 : vector<8x64xf32>
    %cst_36 = arith.constant 5.000000e-01 : f32
    %76 = vector.broadcast %cst_36 : f32 to vector<8x64xf32>
    %77 = arith.mulf %76, %75 : vector<8x64xf32>
    %78 = arith.mulf %65, %77 : vector<8x64xf32>
    %79 = arith.truncf %78 : vector<8x64xf32> to vector<8x64xbf16>
    %c1_37 = arith.constant 1 : index
    %c0_38 = arith.constant 0 : index
    %c0_39 = arith.constant 0 : index
    %80 = vector.load %arg7[%c1_37, %c0_38, %c0_39] : memref<2x64x32xf32, #tpu.memory_space<vmem>>, vector<1x64x32xf32>
    %81 = vector.shape_cast %80 : vector<1x64x32xf32> to vector<64x32xf32>
    %82 = arith.truncf %81 : vector<64x32xf32> to vector<64x32xbf16>
    %cst_40 = arith.constant dense<0.000000e+00> : vector<8x32xf32>
    %83 = tpu.matmul %79, %82, %cst_40 {dimension_numbers = #tpu.dot_dimension_numbers<[1], [0], [0], [1], [0, 0, 1, 1], [], []>} : vector<8x64xbf16>, vector<64x32xbf16>, vector<8x32xf32> -> vector<8x32xf32>
    %84 = arith.addf %46, %83 : vector<8x32xf32>
    %c1_41 = arith.constant 1 : index
    %c0_42 = arith.constant 0 : index
    %c0_43 = arith.constant 0 : index
    %85 = vector.load %arg8[%c1_41, %c0_42, %c0_43] : memref<2x1x32xf32, #tpu.memory_space<vmem>>, vector<1x1x32xf32>
    %86 = vector.shape_cast %85 : vector<1x1x32xf32> to vector<1x32xf32>
    %87 = vector.broadcast %86 : vector<1x32xf32> to vector<8x32xf32>
    %88 = arith.addf %84, %87 : vector<8x32xf32>
    %89 = arith.mulf %88, %88 : vector<8x32xf32>
    %cst_44 = arith.constant dense<0.000000e+00> : vector<8xf32>
    %90 = vector.multi_reduction <add>, %89, %cst_44 [1] : vector<8x32xf32> to vector<8xf32>
    %91 = vector.shape_cast %90 : vector<8xf32> to vector<8x1xf32>
    %cst_45 = arith.constant 3.200000e+01 : f32
    %92 = vector.broadcast %cst_45 : f32 to vector<8x1xf32>
    %93 = arith.divf %91, %92 : vector<8x1xf32>
    %cst_46 = arith.constant 9.99999997E-7 : f32
    %94 = vector.broadcast %cst_46 : f32 to vector<8x1xf32>
    %95 = arith.addf %93, %94 : vector<8x1xf32>
    %96 = math.rsqrt %95 : vector<8x1xf32>
    %97 = vector.broadcast %96 : vector<8x1xf32> to vector<8x32xf32>
    %98 = arith.mulf %88, %97 : vector<8x32xf32>
    %99 = arith.truncf %98 : vector<8x32xf32> to vector<8x32xbf16>
    %c0_47 = arith.constant 0 : index
    %c0_48 = arith.constant 0 : index
    %100 = vector.load %arg9[%c0_47, %c0_48] : memref<32x64xf32, #tpu.memory_space<vmem>>, vector<32x64xf32>
    %101 = arith.truncf %100 : vector<32x64xf32> to vector<32x64xbf16>
    %cst_49 = arith.constant dense<0.000000e+00> : vector<8x64xf32>
    %102 = tpu.matmul %99, %101, %cst_49 {dimension_numbers = #tpu.dot_dimension_numbers<[1], [0], [0], [1], [0, 0, 1, 1], [], []>} : vector<8x32xbf16>, vector<32x64xbf16>, vector<8x64xf32> -> vector<8x64xf32>
    %c0_50 = arith.constant 0 : index
    %c0_51 = arith.constant 0 : index
    %103 = vector.load %arg10[%c0_50, %c0_51] : memref<1x64xf32, #tpu.memory_space<vmem>>, vector<1x64xf32>
    %104 = vector.broadcast %103 : vector<1x64xf32> to vector<8x64xf32>
    %105 = arith.addf %102, %104 : vector<8x64xf32>
    %106 = vector.extract_strided_slice %105 {offsets = [0, 0], sizes = [6, 32], strides = [1, 1]} : vector<8x64xf32> to vector<6x32xf32>
    %107 = vector.shape_cast %106 : vector<6x32xf32> to vector<6x1x32xf32>
    %108 = vector.shape_cast %107 : vector<6x1x32xf32> to vector<6x1x32xf32>
    %109 = vector.broadcast %108 : vector<6x1x32xf32> to vector<6x64x32xf32>
    %110 = vector.shape_cast %109 : vector<6x64x32xf32> to vector<384x32xf32>
    %111 = vector.extract_strided_slice %105 {offsets = [0, 32], sizes = [6, 32], strides = [1, 1]} : vector<8x64xf32> to vector<6x32xf32>
    %112 = vector.shape_cast %111 : vector<6x32xf32> to vector<6x1x32xf32>
    %113 = vector.shape_cast %112 : vector<6x1x32xf32> to vector<6x1x32xf32>
    %114 = vector.broadcast %113 : vector<6x1x32xf32> to vector<6x64x32xf32>
    %115 = vector.shape_cast %114 : vector<6x64x32xf32> to vector<384x32xf32>
    %c0_52 = arith.constant 0 : index
    %c0_53 = arith.constant 0 : index
    %116 = vector.load %arg2[%c0_52, %c0_53] : memref<128x32xf32, #tpu.memory_space<vmem>>, vector<128x32xf32>
    %117 = vector.shape_cast %116 : vector<128x32xf32> to vector<2x1x64x32xf32>
    %118 = vector.shape_cast %117 : vector<2x1x64x32xf32> to vector<2x1x64x32xf32>
    %119 = vector.broadcast %118 : vector<2x1x64x32xf32> to vector<2x3x64x32xf32>
    %120 = vector.shape_cast %119 : vector<2x3x64x32xf32> to vector<384x32xf32>
    %cst_54 = arith.constant dense<0.000000e+00> : vector<384xf32>
    %121 = vector.multi_reduction <add>, %120, %cst_54 [1] : vector<384x32xf32> to vector<384xf32>
    %122 = vector.shape_cast %121 : vector<384xf32> to vector<384x1xf32>
    %cst_55 = arith.constant 3.200000e+01 : f32
    %123 = vector.broadcast %cst_55 : f32 to vector<384x1xf32>
    %124 = arith.divf %122, %123 : vector<384x1xf32>
    %125 = vector.broadcast %124 : vector<384x1xf32> to vector<384x32xf32>
    %126 = arith.subf %120, %125 : vector<384x32xf32>
    %127 = arith.mulf %126, %126 : vector<384x32xf32>
    %cst_56 = arith.constant dense<0.000000e+00> : vector<384xf32>
    %128 = vector.multi_reduction <add>, %127, %cst_56 [1] : vector<384x32xf32> to vector<384xf32>
    %129 = vector.shape_cast %128 : vector<384xf32> to vector<384x1xf32>
    %cst_57 = arith.constant 3.200000e+01 : f32
    %130 = vector.broadcast %cst_57 : f32 to vector<384x1xf32>
    %131 = arith.divf %129, %130 : vector<384x1xf32>
    %132 = vector.broadcast %124 : vector<384x1xf32> to vector<384x32xf32>
    %133 = arith.subf %120, %132 : vector<384x32xf32>
    %cst_58 = arith.constant 9.99999997E-7 : f32
    %134 = vector.broadcast %cst_58 : f32 to vector<384x1xf32>
    %135 = arith.addf %131, %134 : vector<384x1xf32>
    %136 = math.rsqrt %135 : vector<384x1xf32>
    %137 = vector.broadcast %136 : vector<384x1xf32> to vector<384x32xf32>
    %138 = arith.mulf %133, %137 : vector<384x32xf32>
    %cst_59 = arith.constant 1.000000e+00 : f32
    %139 = vector.broadcast %cst_59 : f32 to vector<384x32xf32>
    %140 = arith.addf %139, %110 : vector<384x32xf32>
    %141 = arith.mulf %138, %140 : vector<384x32xf32>
    %142 = arith.addf %141, %115 : vector<384x32xf32>
    %143 = arith.truncf %142 : vector<384x32xf32> to vector<384x32xbf16>
    %c0_60 = arith.constant 0 : index
    %c0_61 = arith.constant 0 : index
    %144 = vector.load %arg11[%c0_60, %c0_61] : memref<32x64xf32, #tpu.memory_space<vmem>>, vector<32x64xf32>
    %145 = arith.truncf %144 : vector<32x64xf32> to vector<32x64xbf16>
    %cst_62 = arith.constant dense<0.000000e+00> : vector<384x64xf32>
    %146 = tpu.matmul %143, %145, %cst_62 {dimension_numbers = #tpu.dot_dimension_numbers<[1], [0], [0], [1], [0, 0, 1, 1], [], []>} : vector<384x32xbf16>, vector<32x64xbf16>, vector<384x64xf32> -> vector<384x64xf32>
    %c0_63 = arith.constant 0 : index
    %c0_64 = arith.constant 0 : index
    %147 = vector.load %arg12[%c0_63, %c0_64] : memref<1x64xf32, #tpu.memory_space<vmem>>, vector<1x64xf32>
    %148 = vector.broadcast %147 : vector<1x64xf32> to vector<384x64xf32>
    %149 = arith.addf %146, %148 : vector<384x64xf32>
    %150 = arith.mulf %149, %149 : vector<384x64xf32>
    %151 = arith.mulf %149, %150 : vector<384x64xf32>
    %cst_65 = arith.constant 4.471500e-02 : f32
    %152 = vector.broadcast %cst_65 : f32 to vector<384x64xf32>
    %153 = arith.mulf %152, %151 : vector<384x64xf32>
    %154 = arith.addf %149, %153 : vector<384x64xf32>
    %cst_66 = arith.constant 0.797884583 : f32
    %155 = vector.broadcast %cst_66 : f32 to vector<384x64xf32>
    %156 = arith.mulf %155, %154 : vector<384x64xf32>
    %157 = math.tanh %156 : vector<384x64xf32>
    %cst_67 = arith.constant 1.000000e+00 : f32
    %158 = vector.broadcast %cst_67 : f32 to vector<384x64xf32>
    %159 = arith.addf %158, %157 : vector<384x64xf32>
    %cst_68 = arith.constant 5.000000e-01 : f32
    %160 = vector.broadcast %cst_68 : f32 to vector<384x64xf32>
    %161 = arith.mulf %160, %159 : vector<384x64xf32>
    %162 = arith.mulf %149, %161 : vector<384x64xf32>
    %163 = arith.truncf %162 : vector<384x64xf32> to vector<384x64xbf16>
    %c0_69 = arith.constant 0 : index
    %c0_70 = arith.constant 0 : index
    %164 = vector.load %arg13[%c0_69, %c0_70] : memref<64x32xf32, #tpu.memory_space<vmem>>, vector<64x32xf32>
    %165 = arith.truncf %164 : vector<64x32xf32> to vector<64x32xbf16>
    %cst_71 = arith.constant dense<0.000000e+00> : vector<384x32xf32>
    %166 = tpu.matmul %163, %165, %cst_71 {dimension_numbers = #tpu.dot_dimension_numbers<[1], [0], [0], [1], [0, 0, 1, 1], [], []>} : vector<384x64xbf16>, vector<64x32xbf16>, vector<384x32xf32> -> vector<384x32xf32>
    %167 = arith.addf %120, %166 : vector<384x32xf32>
    %c0_72 = arith.constant 0 : index
    %c0_73 = arith.constant 0 : index
    %168 = vector.load %arg14[%c0_72, %c0_73] : memref<1x32xf32, #tpu.memory_space<vmem>>, vector<1x32xf32>
    %169 = vector.broadcast %168 : vector<1x32xf32> to vector<384x32xf32>
    %170 = arith.addf %167, %169 : vector<384x32xf32>
    %c0_74 = arith.constant 0 : index
    %c0_75 = arith.constant 0 : index
    %171 = vector.load %arg3[%c0_74, %c0_75] : memref<384x32xf32, #tpu.memory_space<vmem>>, vector<384x32xf32>
    %172 = arith.mulf %170, %171 : vector<384x32xf32>
    %cst_76 = arith.constant dense<0.000000e+00> : vector<384xf32>
    %173 = vector.multi_reduction <add>, %172, %cst_76 [1] : vector<384x32xf32> to vector<384xf32>
    %174 = vector.shape_cast %173 : vector<384xf32> to vector<384x1xf32>
    %175 = arith.mulf %170, %170 : vector<384x32xf32>
    %cst_77 = arith.constant dense<0.000000e+00> : vector<384xf32>
    %176 = vector.multi_reduction <add>, %175, %cst_77 [1] : vector<384x32xf32> to vector<384xf32>
    %177 = vector.shape_cast %176 : vector<384xf32> to vector<384x1xf32>
    %178 = math.sqrt %177 : vector<384x1xf32>
    %cst_78 = arith.constant 9.99999993E-9 : f32
    %179 = vector.broadcast %cst_78 : f32 to vector<384x1xf32>
    %180 = arith.maximumf %178, %179 : vector<384x1xf32>
    %181 = arith.mulf %171, %171 : vector<384x32xf32>
    %cst_79 = arith.constant dense<0.000000e+00> : vector<384xf32>
    %182 = vector.multi_reduction <add>, %181, %cst_79 [1] : vector<384x32xf32> to vector<384xf32>
    %183 = vector.shape_cast %182 : vector<384xf32> to vector<384x1xf32>
    %184 = math.sqrt %183 : vector<384x1xf32>
    %cst_80 = arith.constant 9.99999993E-9 : f32
    %185 = vector.broadcast %cst_80 : f32 to vector<384x1xf32>
    %186 = arith.maximumf %184, %185 : vector<384x1xf32>
    %187 = arith.mulf %180, %186 : vector<384x1xf32>
    %188 = arith.divf %174, %187 : vector<384x1xf32>
    %cst_81 = arith.constant dense<0.000000e+00> : vector<1xf32>
    %189 = vector.multi_reduction <add>, %188, %cst_81 [0] : vector<384x1xf32> to vector<1xf32>
    %190 = vector.shape_cast %189 : vector<1xf32> to vector<1x1xf32>
    %cst_82 = arith.constant 0.000000e+00 : f32
    %191 = vector.broadcast %cst_82 : f32 to vector<1x1xf32>
    %192 = arith.subf %191, %190 : vector<1x1xf32>
    %cst_83 = arith.constant 3.840000e+02 : f32
    %193 = vector.broadcast %cst_83 : f32 to vector<1x1xf32>
    %194 = arith.divf %192, %193 : vector<1x1xf32>
    %c0_84 = arith.constant 0 : index
    %c0_85 = arith.constant 0 : index
    %195 = vector.load %arg15[%c0_84, %c0_85] : memref<1x1xf32, #tpu.memory_space<vmem>>, vector<1x1xf32>
    tpu.vector_store %arg15[%c0_84, %c0_85], %194 {strides = array<i32>} : memref<1x1xf32, #tpu.memory_space<vmem>>, vector<1x1xf32>,
    return
  }
  func.func @transform_0(%arg0: i32) -> (i32, i32) {
    %c0_i32 = arith.constant 0 : i32
    %c0_i32_0 = arith.constant 0 : i32
    %c0_i32_1 = arith.constant 0 : i32
    return %c0_i32, %c0_i32_0 : i32, i32
  }
  func.func @transform_1(%arg0: i32) -> (i32, i32) {
    %c0_i32 = arith.constant 0 : i32
    %c0_i32_0 = arith.constant 0 : i32
    %c0_i32_1 = arith.constant 0 : i32
    return %c0_i32, %c0_i32_0 : i32, i32
  }
  func.func @transform_2(%arg0: i32) -> (i32, i32) {
    %c0_i32 = arith.constant 0 : i32
    %c0_i32_0 = arith.constant 0 : i32
    %c0_i32_1 = arith.constant 0 : i32
    return %c0_i32, %c0_i32_0 : i32, i32
  }
  func.func @transform_3(%arg0: i32) -> (i32, i32) {
    %c0_i32 = arith.constant 0 : i32
    %c0_i32_0 = arith.constant 0 : i32
    %c0_i32_1 = arith.constant 0 : i32
    return %c0_i32, %c0_i32_0 : i32, i32
  }
  func.func @transform_4(%arg0: i32) -> (i32, i32, i32) {
    %c0_i32 = arith.constant 0 : i32
    %c0_i32_0 = arith.constant 0 : i32
    %c0_i32_1 = arith.constant 0 : i32
    %c0_i32_2 = arith.constant 0 : i32
    return %c0_i32, %c0_i32_0, %c0_i32_1 : i32, i32, i32
  }
  func.func @transform_5(%arg0: i32) -> (i32, i32, i32) {
    %c0_i32 = arith.constant 0 : i32
    %c0_i32_0 = arith.constant 0 : i32
    %c0_i32_1 = arith.constant 0 : i32
    %c0_i32_2 = arith.constant 0 : i32
    return %c0_i32, %c0_i32_0, %c0_i32_1 : i32, i32, i32
  }
  func.func @transform_6(%arg0: i32) -> (i32, i32, i32) {
    %c0_i32 = arith.constant 0 : i32
    %c0_i32_0 = arith.constant 0 : i32
    %c0_i32_1 = arith.constant 0 : i32
    %c0_i32_2 = arith.constant 0 : i32
    return %c0_i32, %c0_i32_0, %c0_i32_1 : i32, i32, i32
  }
  func.func @transform_7(%arg0: i32) -> (i32, i32, i32) {
    %c0_i32 = arith.constant 0 : i32
    %c0_i32_0 = arith.constant 0 : i32
    %c0_i32_1 = arith.constant 0 : i32
    %c0_i32_2 = arith.constant 0 : i32
    return %c0_i32, %c0_i32_0, %c0_i32_1 : i32, i32, i32
  }
  func.func @transform_8(%arg0: i32) -> (i32, i32) {
    %c0_i32 = arith.constant 0 : i32
    %c0_i32_0 = arith.constant 0 : i32
    %c0_i32_1 = arith.constant 0 : i32
    return %c0_i32, %c0_i32_0 : i32, i32
  }
  func.func @transform_9(%arg0: i32) -> (i32, i32) {
    %c0_i32 = arith.constant 0 : i32
    %c0_i32_0 = arith.constant 0 : i32
    %c0_i32_1 = arith.constant 0 : i32
    return %c0_i32, %c0_i32_0 : i32, i32
  }
  func.func @transform_10(%arg0: i32) -> (i32, i32) {
    %c0_i32 = arith.constant 0 : i32
    %c0_i32_0 = arith.constant 0 : i32
    %c0_i32_1 = arith.constant 0 : i32
    return %c0_i32, %c0_i32_0 : i32, i32
  }
  func.func @transform_11(%arg0: i32) -> (i32, i32) {
    %c0_i32 = arith.constant 0 : i32
    %c0_i32_0 = arith.constant 0 : i32
    %c0_i32_1 = arith.constant 0 : i32
    return %c0_i32, %c0_i32_0 : i32, i32
  }
  func.func @transform_12(%arg0: i32) -> (i32, i32) {
    %c0_i32 = arith.constant 0 : i32
    %c0_i32_0 = arith.constant 0 : i32
    %c0_i32_1 = arith.constant 0 : i32
    return %c0_i32, %c0_i32_0 : i32, i32
  }
  func.func @transform_13(%arg0: i32) -> (i32, i32) {
    %c0_i32 = arith.constant 0 : i32
    %c0_i32_0 = arith.constant 0 : i32
    %c0_i32_1 = arith.constant 0 : i32
    return %c0_i32, %c0_i32_0 : i32, i32
  }
  func.func @transform_14(%arg0: i32) -> (i32, i32) {
    %c0_i32 = arith.constant 0 : i32
    %c0_i32_0 = arith.constant 0 : i32
    %c0_i32_1 = arith.constant 0 : i32
    return %c0_i32, %c0_i32_0 : i32, i32
  }
}

module attributes {stable_mosaic.version = 11 : i64} {
  func.func @_encode_fe_kernel(%arg0: i32, %arg1: memref<128x16xf32, #tpu.memory_space<vmem>>, %arg2: memref<384x4xf32, #tpu.memory_space<vmem>>, %arg3: memref<8x2xf32, #tpu.memory_space<vmem>>, %arg4: memref<8x32xf32, #tpu.memory_space<vmem>>, %arg5: memref<16x4xf32, #tpu.memory_space<vmem>>, %arg6: memref<1x4xf32, #tpu.memory_space<vmem>>, %arg7: memref<32x32xf32, #tpu.memory_space<vmem>>, %arg8: memref<1x32xf32, #tpu.memory_space<vmem>>, %arg9: memref<4x32xf32, #tpu.memory_space<vmem>>, %arg10: memref<1x32xf32, #tpu.memory_space<vmem>>, %arg11: memref<32x32xf32, #tpu.memory_space<vmem>>, %arg12: memref<1x32xf32, #tpu.memory_space<vmem>>, %arg13: memref<384x32xf32, #tpu.memory_space<vmem>>, %arg14: memref<128x32xf32, #tpu.memory_space<vmem>>) attributes {dimension_semantics = [#tpu.dimension_semantics<arbitrary>], iteration_bounds = array<i64: 1>, scalar_prefetch = 0 : i64, scratch_operands = 0 : i64, tpu.core_type = #tpu.core_type<tc>, window_params = [{pipeline_mode = #tpu.pipeline_mode<synchronous>, transform_indices = @transform_0, window_bounds = array<i64: 128, 16>}, {pipeline_mode = #tpu.pipeline_mode<synchronous>, transform_indices = @transform_1, window_bounds = array<i64: 384, 4>}, {pipeline_mode = #tpu.pipeline_mode<synchronous>, transform_indices = @transform_2, window_bounds = array<i64: 8, 2>}, {pipeline_mode = #tpu.pipeline_mode<synchronous>, transform_indices = @transform_3, window_bounds = array<i64: 8, 32>}, {pipeline_mode = #tpu.pipeline_mode<synchronous>, transform_indices = @transform_4, window_bounds = array<i64: 16, 4>}, {pipeline_mode = #tpu.pipeline_mode<synchronous>, transform_indices = @transform_5, window_bounds = array<i64: 1, 4>}, {pipeline_mode = #tpu.pipeline_mode<synchronous>, transform_indices = @transform_6, window_bounds = array<i64: 32, 32>}, {pipeline_mode = #tpu.pipeline_mode<synchronous>, transform_indices = @transform_7, window_bounds = array<i64: 1, 32>}, {pipeline_mode = #tpu.pipeline_mode<synchronous>, transform_indices = @transform_8, window_bounds = array<i64: 4, 32>}, {pipeline_mode = #tpu.pipeline_mode<synchronous>, transform_indices = @transform_9, window_bounds = array<i64: 1, 32>}, {pipeline_mode = #tpu.pipeline_mode<synchronous>, transform_indices = @transform_10, window_bounds = array<i64: 32, 32>}, {pipeline_mode = #tpu.pipeline_mode<synchronous>, transform_indices = @transform_11, window_bounds = array<i64: 1, 32>}, {pipeline_mode = #tpu.pipeline_mode<synchronous>, transform_indices = @transform_12, window_bounds = array<i64: 384, 32>}, {pipeline_mode = #tpu.pipeline_mode<synchronous>, transform_indices = @transform_13, window_bounds = array<i64: 128, 32>}]} {
    %c0 = arith.constant 0 : index
    %c0_0 = arith.constant 0 : index
    %0 = vector.load %arg1[%c0, %c0_0] : memref<128x16xf32, #tpu.memory_space<vmem>>, vector<128x16xf32>
    %1 = arith.truncf %0 : vector<128x16xf32> to vector<128x16xbf16>
    %c0_1 = arith.constant 0 : index
    %c0_2 = arith.constant 0 : index
    %2 = vector.load %arg5[%c0_1, %c0_2] : memref<16x4xf32, #tpu.memory_space<vmem>>, vector<16x4xf32>
    %3 = arith.truncf %2 : vector<16x4xf32> to vector<16x4xbf16>
    %cst = arith.constant dense<0.000000e+00> : vector<128x4xf32>
    %4 = tpu.matmul %1, %3, %cst {dimension_numbers = #tpu.dot_dimension_numbers<[1], [0], [0], [1], [0, 0, 1, 1], [], []>} : vector<128x16xbf16>, vector<16x4xbf16>, vector<128x4xf32> -> vector<128x4xf32>
    %c0_3 = arith.constant 0 : index
    %c0_4 = arith.constant 0 : index
    %5 = vector.load %arg6[%c0_3, %c0_4] : memref<1x4xf32, #tpu.memory_space<vmem>>, vector<1x4xf32>
    %6 = vector.broadcast %5 : vector<1x4xf32> to vector<128x4xf32>
    %7 = arith.addf %4, %6 : vector<128x4xf32>
    %8 = vector.shape_cast %7 : vector<128x4xf32> to vector<2x1x64x4xf32>
    %9 = vector.shape_cast %8 : vector<2x1x64x4xf32> to vector<2x1x64x4xf32>
    %10 = vector.broadcast %9 : vector<2x1x64x4xf32> to vector<2x3x64x4xf32>
    %11 = vector.shape_cast %10 : vector<2x3x64x4xf32> to vector<384x4xf32>
    %c0_5 = arith.constant 0 : index
    %c0_6 = arith.constant 0 : index
    %12 = vector.load %arg3[%c0_5, %c0_6] : memref<8x2xf32, #tpu.memory_space<vmem>>, vector<8x2xf32>
    %13 = vector.extract_strided_slice %12 {offsets = [0, 0], sizes = [6, 1], strides = [1, 1]} : vector<8x2xf32> to vector<6x1xf32>
    %14 = vector.shape_cast %13 : vector<6x1xf32> to vector<6x1x1xf32>
    %15 = vector.shape_cast %14 : vector<6x1x1xf32> to vector<6x1x1xf32>
    %16 = vector.broadcast %15 : vector<6x1x1xf32> to vector<6x64x1xf32>
    %17 = vector.shape_cast %16 : vector<6x64x1xf32> to vector<384x1xf32>
    %18 = vector.extract_strided_slice %12 {offsets = [0, 1], sizes = [6, 1], strides = [1, 1]} : vector<8x2xf32> to vector<6x1xf32>
    %19 = vector.shape_cast %18 : vector<6x1xf32> to vector<6x1x1xf32>
    %20 = vector.shape_cast %19 : vector<6x1x1xf32> to vector<6x1x1xf32>
    %21 = vector.broadcast %20 : vector<6x1x1xf32> to vector<6x64x1xf32>
    %22 = vector.shape_cast %21 : vector<6x64x1xf32> to vector<384x1xf32>
    %23 = vector.broadcast %17 : vector<384x1xf32> to vector<384x4xf32>
    %24 = arith.mulf %23, %11 : vector<384x4xf32>
    %c0_7 = arith.constant 0 : index
    %c0_8 = arith.constant 0 : index
    %25 = vector.load %arg2[%c0_7, %c0_8] : memref<384x4xf32, #tpu.memory_space<vmem>>, vector<384x4xf32>
    %26 = vector.broadcast %22 : vector<384x1xf32> to vector<384x4xf32>
    %27 = arith.mulf %26, %25 : vector<384x4xf32>
    %28 = arith.addf %24, %27 : vector<384x4xf32>
    %c0_9 = arith.constant 0 : index
    %c0_10 = arith.constant 0 : index
    %29 = vector.load %arg4[%c0_9, %c0_10] : memref<8x32xf32, #tpu.memory_space<vmem>>, vector<8x32xf32>
    %30 = arith.truncf %29 : vector<8x32xf32> to vector<8x32xbf16>
    %c0_11 = arith.constant 0 : index
    %c0_12 = arith.constant 0 : index
    %31 = vector.load %arg7[%c0_11, %c0_12] : memref<32x32xf32, #tpu.memory_space<vmem>>, vector<32x32xf32>
    %32 = arith.truncf %31 : vector<32x32xf32> to vector<32x32xbf16>
    %cst_13 = arith.constant dense<0.000000e+00> : vector<8x32xf32>
    %33 = tpu.matmul %30, %32, %cst_13 {dimension_numbers = #tpu.dot_dimension_numbers<[1], [0], [0], [1], [0, 0, 1, 1], [], []>} : vector<8x32xbf16>, vector<32x32xbf16>, vector<8x32xf32> -> vector<8x32xf32>
    %c0_14 = arith.constant 0 : index
    %c0_15 = arith.constant 0 : index
    %34 = vector.load %arg8[%c0_14, %c0_15] : memref<1x32xf32, #tpu.memory_space<vmem>>, vector<1x32xf32>
    %35 = vector.broadcast %34 : vector<1x32xf32> to vector<8x32xf32>
    %36 = arith.addf %33, %35 : vector<8x32xf32>
    %37 = arith.mulf %36, %36 : vector<8x32xf32>
    %38 = arith.mulf %36, %37 : vector<8x32xf32>
    %cst_16 = arith.constant 4.471500e-02 : f32
    %39 = vector.broadcast %cst_16 : f32 to vector<8x32xf32>
    %40 = arith.mulf %39, %38 : vector<8x32xf32>
    %41 = arith.addf %36, %40 : vector<8x32xf32>
    %cst_17 = arith.constant 0.797884583 : f32
    %42 = vector.broadcast %cst_17 : f32 to vector<8x32xf32>
    %43 = arith.mulf %42, %41 : vector<8x32xf32>
    %44 = math.tanh %43 : vector<8x32xf32>
    %cst_18 = arith.constant 1.000000e+00 : f32
    %45 = vector.broadcast %cst_18 : f32 to vector<8x32xf32>
    %46 = arith.addf %45, %44 : vector<8x32xf32>
    %cst_19 = arith.constant 5.000000e-01 : f32
    %47 = vector.broadcast %cst_19 : f32 to vector<8x32xf32>
    %48 = arith.mulf %47, %46 : vector<8x32xf32>
    %49 = arith.mulf %36, %48 : vector<8x32xf32>
    %50 = tpu.concatenate %28, %7 in 0 : vector<384x4xf32>, vector<128x4xf32> -> vector<512x4xf32>
    %51 = arith.truncf %50 : vector<512x4xf32> to vector<512x4xbf16>
    %c0_20 = arith.constant 0 : index
    %c0_21 = arith.constant 0 : index
    %52 = vector.load %arg9[%c0_20, %c0_21] : memref<4x32xf32, #tpu.memory_space<vmem>>, vector<4x32xf32>
    %53 = arith.truncf %52 : vector<4x32xf32> to vector<4x32xbf16>
    %cst_22 = arith.constant dense<0.000000e+00> : vector<512x32xf32>
    %54 = tpu.matmul %51, %53, %cst_22 {dimension_numbers = #tpu.dot_dimension_numbers<[1], [0], [0], [1], [0, 0, 1, 1], [], []>} : vector<512x4xbf16>, vector<4x32xbf16>, vector<512x32xf32> -> vector<512x32xf32>
    %c0_23 = arith.constant 0 : index
    %c0_24 = arith.constant 0 : index
    %55 = vector.load %arg10[%c0_23, %c0_24] : memref<1x32xf32, #tpu.memory_space<vmem>>, vector<1x32xf32>
    %56 = vector.broadcast %55 : vector<1x32xf32> to vector<512x32xf32>
    %57 = arith.addf %54, %56 : vector<512x32xf32>
    %58 = vector.shape_cast %57 : vector<512x32xf32> to vector<8x64x32xf32>
    %59 = vector.shape_cast %49 : vector<8x32xf32> to vector<8x1x32xf32>
    %60 = vector.broadcast %59 : vector<8x1x32xf32> to vector<8x64x32xf32>
    %61 = arith.addf %58, %60 : vector<8x64x32xf32>
    %62 = arith.mulf %61, %61 : vector<8x64x32xf32>
    %63 = arith.mulf %61, %62 : vector<8x64x32xf32>
    %cst_25 = arith.constant 4.471500e-02 : f32
    %64 = vector.broadcast %cst_25 : f32 to vector<8x64x32xf32>
    %65 = arith.mulf %64, %63 : vector<8x64x32xf32>
    %66 = arith.addf %61, %65 : vector<8x64x32xf32>
    %cst_26 = arith.constant 0.797884583 : f32
    %67 = vector.broadcast %cst_26 : f32 to vector<8x64x32xf32>
    %68 = arith.mulf %67, %66 : vector<8x64x32xf32>
    %69 = math.tanh %68 : vector<8x64x32xf32>
    %cst_27 = arith.constant 1.000000e+00 : f32
    %70 = vector.broadcast %cst_27 : f32 to vector<8x64x32xf32>
    %71 = arith.addf %70, %69 : vector<8x64x32xf32>
    %cst_28 = arith.constant 5.000000e-01 : f32
    %72 = vector.broadcast %cst_28 : f32 to vector<8x64x32xf32>
    %73 = arith.mulf %72, %71 : vector<8x64x32xf32>
    %74 = arith.mulf %61, %73 : vector<8x64x32xf32>
    %75 = vector.shape_cast %74 : vector<8x64x32xf32> to vector<512x32xf32>
    %76 = arith.truncf %75 : vector<512x32xf32> to vector<512x32xbf16>
    %c0_29 = arith.constant 0 : index
    %c0_30 = arith.constant 0 : index
    %77 = vector.load %arg11[%c0_29, %c0_30] : memref<32x32xf32, #tpu.memory_space<vmem>>, vector<32x32xf32>
    %78 = arith.truncf %77 : vector<32x32xf32> to vector<32x32xbf16>
    %cst_31 = arith.constant dense<0.000000e+00> : vector<512x32xf32>
    %79 = tpu.matmul %76, %78, %cst_31 {dimension_numbers = #tpu.dot_dimension_numbers<[1], [0], [0], [1], [0, 0, 1, 1], [], []>} : vector<512x32xbf16>, vector<32x32xbf16>, vector<512x32xf32> -> vector<512x32xf32>
    %c0_32 = arith.constant 0 : index
    %c0_33 = arith.constant 0 : index
    %80 = vector.load %arg12[%c0_32, %c0_33] : memref<1x32xf32, #tpu.memory_space<vmem>>, vector<1x32xf32>
    %81 = vector.broadcast %80 : vector<1x32xf32> to vector<512x32xf32>
    %82 = arith.addf %79, %81 : vector<512x32xf32>
    %83 = vector.extract_strided_slice %82 {offsets = [0, 0], sizes = [384, 32], strides = [1, 1]} : vector<512x32xf32> to vector<384x32xf32>
    %c0_34 = arith.constant 0 : index
    %c0_35 = arith.constant 0 : index
    %84 = vector.load %arg13[%c0_34, %c0_35] : memref<384x32xf32, #tpu.memory_space<vmem>>, vector<384x32xf32>
    tpu.vector_store %arg13[%c0_34, %c0_35], %83 {strides = array<i32>} : memref<384x32xf32, #tpu.memory_space<vmem>>, vector<384x32xf32>,
    %85 = vector.extract_strided_slice %82 {offsets = [384, 0], sizes = [128, 32], strides = [1, 1]} : vector<512x32xf32> to vector<128x32xf32>
    %c0_36 = arith.constant 0 : index
    %c0_37 = arith.constant 0 : index
    %86 = vector.load %arg14[%c0_36, %c0_37] : memref<128x32xf32, #tpu.memory_space<vmem>>, vector<128x32xf32>
    tpu.vector_store %arg14[%c0_36, %c0_37], %85 {strides = array<i32>} : memref<128x32xf32, #tpu.memory_space<vmem>>, vector<128x32xf32>,
    return
  }
  func.func @transform_0(%arg0: i32) -> (i32, i32) {
    %c0_i32 = arith.constant 0 : i32
    %c0_i32_0 = arith.constant 0 : i32
    %c0_i32_1 = arith.constant 0 : i32
    return %c0_i32, %c0_i32_0 : i32, i32
  }
  func.func @transform_1(%arg0: i32) -> (i32, i32) {
    %c0_i32 = arith.constant 0 : i32
    %c0_i32_0 = arith.constant 0 : i32
    %c0_i32_1 = arith.constant 0 : i32
    return %c0_i32, %c0_i32_0 : i32, i32
  }
  func.func @transform_2(%arg0: i32) -> (i32, i32) {
    %c0_i32 = arith.constant 0 : i32
    %c0_i32_0 = arith.constant 0 : i32
    %c0_i32_1 = arith.constant 0 : i32
    return %c0_i32, %c0_i32_0 : i32, i32
  }
  func.func @transform_3(%arg0: i32) -> (i32, i32) {
    %c0_i32 = arith.constant 0 : i32
    %c0_i32_0 = arith.constant 0 : i32
    %c0_i32_1 = arith.constant 0 : i32
    return %c0_i32, %c0_i32_0 : i32, i32
  }
  func.func @transform_4(%arg0: i32) -> (i32, i32) {
    %c0_i32 = arith.constant 0 : i32
    %c0_i32_0 = arith.constant 0 : i32
    %c0_i32_1 = arith.constant 0 : i32
    return %c0_i32, %c0_i32_0 : i32, i32
  }
  func.func @transform_5(%arg0: i32) -> (i32, i32) {
    %c0_i32 = arith.constant 0 : i32
    %c0_i32_0 = arith.constant 0 : i32
    %c0_i32_1 = arith.constant 0 : i32
    return %c0_i32, %c0_i32_0 : i32, i32
  }
  func.func @transform_6(%arg0: i32) -> (i32, i32) {
    %c0_i32 = arith.constant 0 : i32
    %c0_i32_0 = arith.constant 0 : i32
    %c0_i32_1 = arith.constant 0 : i32
    return %c0_i32, %c0_i32_0 : i32, i32
  }
  func.func @transform_7(%arg0: i32) -> (i32, i32) {
    %c0_i32 = arith.constant 0 : i32
    %c0_i32_0 = arith.constant 0 : i32
    %c0_i32_1 = arith.constant 0 : i32
    return %c0_i32, %c0_i32_0 : i32, i32
  }
  func.func @transform_8(%arg0: i32) -> (i32, i32) {
    %c0_i32 = arith.constant 0 : i32
    %c0_i32_0 = arith.constant 0 : i32
    %c0_i32_1 = arith.constant 0 : i32
    return %c0_i32, %c0_i32_0 : i32, i32
  }
  func.func @transform_9(%arg0: i32) -> (i32, i32) {
    %c0_i32 = arith.constant 0 : i32
    %c0_i32_0 = arith.constant 0 : i32
    %c0_i32_1 = arith.constant 0 : i32
    return %c0_i32, %c0_i32_0 : i32, i32
  }
  func.func @transform_10(%arg0: i32) -> (i32, i32) {
    %c0_i32 = arith.constant 0 : i32
    %c0_i32_0 = arith.constant 0 : i32
    %c0_i32_1 = arith.constant 0 : i32
    return %c0_i32, %c0_i32_0 : i32, i32
  }
  func.func @transform_11(%arg0: i32) -> (i32, i32) {
    %c0_i32 = arith.constant 0 : i32
    %c0_i32_0 = arith.constant 0 : i32
    %c0_i32_1 = arith.constant 0 : i32
    return %c0_i32, %c0_i32_0 : i32, i32
  }
  func.func @transform_12(%arg0: i32) -> (i32, i32) {
    %c0_i32 = arith.constant 0 : i32
    %c0_i32_0 = arith.constant 0 : i32
    %c0_i32_1 = arith.constant 0 : i32
    return %c0_i32, %c0_i32_0 : i32, i32
  }
  func.func @transform_13(%arg0: i32) -> (i32, i32) {
    %c0_i32 = arith.constant 0 : i32
    %c0_i32_0 = arith.constant 0 : i32
    %c0_i32_1 = arith.constant 0 : i32
    return %c0_i32, %c0_i32_0 : i32, i32
  }
}

</mosaic_0001>

<llo_original>
// kernel: forward.4
$region0: #{forward.4}
  #allocation0 [shape = 'u32[]', space=smem, size = 0x4, offset = 0x4, fixed_abs, tag = 'smem constant byte address 0x4 - core index']
  #allocation1 [shape = 'u32[144,128]{1,0:T(1,128)}', space=vmem, size = 0x12000, scoped, tag = 'internal scratch']
  %s0 = inlined_call_operand.vmem [shape: f32[128,16], index: 0, kind: input, shape index: {}]
  %s1 = inlined_call_operand.vmem [shape: f32[384,4], index: 1, kind: input, shape index: {}]
  %s2 = inlined_call_operand.vmem [shape: f32[8,2], index: 2, kind: input, shape index: {}]
  %s3 = inlined_call_operand.vmem [shape: f32[8,32], index: 3, kind: input, shape index: {}]
  %s4 = inlined_call_operand.vmem [shape: f32[16,4], index: 4, kind: input, shape index: {}]
  %s5 = inlined_call_operand.vmem [shape: f32[1,4], index: 5, kind: input, shape index: {}]
  %s6 = inlined_call_operand.vmem [shape: f32[32,32], index: 6, kind: input, shape index: {}]
  %s7 = inlined_call_operand.vmem [shape: f32[1,32], index: 7, kind: input, shape index: {}]
  %s8 = inlined_call_operand.vmem [shape: f32[4,32], index: 8, kind: input, shape index: {}]
  %s9 = inlined_call_operand.vmem [shape: f32[1,32], index: 9, kind: input, shape index: {}]
  %s10 = inlined_call_operand.vmem [shape: f32[32,32], index: 10, kind: input, shape index: {}]
  %s11 = inlined_call_operand.vmem [shape: f32[1,32], index: 11, kind: input, shape index: {}]
  %s12 = inlined_call_operand.vmem [shape: f32[384,32], index: 12, kind: output, shape index: {0}]
  %s13 = inlined_call_operand.vmem [shape: f32[128,32], index: 13, kind: output, shape index: {1}]
  %14 = xla_tuple %s12, %s13
  %s15 = sld [smem:[#allocation0]]
  $region66: #{forward.4} parent=0
    _
  %s17 = ssub.s32 1, %s15
  %s18 = scalar_select 0, %s17, %s15
  // Predicated region
  $region2: #{forward.4} parent=0 // pred_check
    _
  $region3: #{forward.4} parent=0 // pred_check_branch
    %20 = sbr.rel (0) target = $region5
  $region4: #{forward.4} parent=0 // pred_region
    _
  $region5: #{forward.4} parent=0 // pred_fallthru
    _
  // Predicated region
  $region6: #{forward.4} parent=0 // pred_check
    _
  $region7: #{forward.4} parent=0 // pred_check_branch
    %22 = sbr.rel (0) target = $region9
  $region8: #{forward.4} parent=0 // pred_region
    _
  $region9: #{forward.4} parent=0 // pred_fallthru
    _
  // Predicated region
  $region10: #{forward.4} parent=0 // pred_check
    _
  $region11: #{forward.4} parent=0 // pred_check_branch
    %24 = sbr.rel (0) target = $region13
  $region12: #{forward.4} parent=0 // pred_region
    _
  $region13: #{forward.4} parent=0 // pred_fallthru
    _
  // Predicated region
  $region14: #{forward.4} parent=0 // pred_check
    _
  $region15: #{forward.4} parent=0 // pred_check_branch
    %26 = sbr.rel (0) target = $region17
  $region16: #{forward.4} parent=0 // pred_region
    _
  $region17: #{forward.4} parent=0 // pred_fallthru
    _
  // Predicated region
  $region18: #{forward.4} parent=0 // pred_check
    _
  $region19: #{forward.4} parent=0 // pred_check_branch
    %28 = sbr.rel (0) target = $region21
  $region20: #{forward.4} parent=0 // pred_region
    _
  $region21: #{forward.4} parent=0 // pred_fallthru
    _
  // Predicated region
  $region22: #{forward.4} parent=0 // pred_check
    _
  $region23: #{forward.4} parent=0 // pred_check_branch
    %30 = sbr.rel (0) target = $region25
  $region24: #{forward.4} parent=0 // pred_region
    _
  $region25: #{forward.4} parent=0 // pred_fallthru
    _
  // Predicated region
  $region26: #{forward.4} parent=0 // pred_check
    _
  $region27: #{forward.4} parent=0 // pred_check_branch
    %32 = sbr.rel (0) target = $region29
  $region28: #{forward.4} parent=0 // pred_region
    _
  $region29: #{forward.4} parent=0 // pred_fallthru
    _
  // Predicated region
  $region30: #{forward.4} parent=0 // pred_check
    _
  $region31: #{forward.4} parent=0 // pred_check_branch
    %34 = sbr.rel (0) target = $region33
  $region32: #{forward.4} parent=0 // pred_region
    _
  $region33: #{forward.4} parent=0 // pred_fallthru
    _
  // Predicated region
  $region34: #{forward.4} parent=0 // pred_check
    _
  $region35: #{forward.4} parent=0 // pred_check_branch
    %36 = sbr.rel (0) target = $region37
  $region36: #{forward.4} parent=0 // pred_region
    _
  $region37: #{forward.4} parent=0 // pred_fallthru
    _
  // Predicated region
  $region38: #{forward.4} parent=0 // pred_check
    _
  $region39: #{forward.4} parent=0 // pred_check_branch
    %38 = sbr.rel (0) target = $region41
  $region40: #{forward.4} parent=0 // pred_region
    _
  $region41: #{forward.4} parent=0 // pred_fallthru
    _
  // Predicated region
  $region42: #{forward.4} parent=0 // pred_check
    _
  $region43: #{forward.4} parent=0 // pred_check_branch
    %40 = sbr.rel (0) target = $region45
  $region44: #{forward.4} parent=0 // pred_region
    _
  $region45: #{forward.4} parent=0 // pred_fallthru
    _
  // Predicated region
  $region46: #{forward.4} parent=0 // pred_check
    _
  $region47: #{forward.4} parent=0 // pred_check_branch
    %42 = sbr.rel (0) target = $region49
  $region48: #{forward.4} parent=0 // pred_region
    _
  $region49: #{forward.4} parent=0 // pred_fallthru
    _
  %v44 = vld [vmem:[%s0] sm:$0xff]
  %v45 = vld [vmem:[%s0 + $0x8] sm:$0xff]
  %v46 = vld [vmem:[%s0 + $0x10] sm:$0xff]
  %v47 = vld [vmem:[%s0 + $0x18] sm:$0xff]
  %v48 = vld [vmem:[%s0 + $0x20] sm:$0xff]
  %v49 = vld [vmem:[%s0 + $0x28] sm:$0xff]
  %v50 = vld [vmem:[%s0 + $0x30] sm:$0xff]
  %v51 = vld [vmem:[%s0 + $0x38] sm:$0xff]
  %v52 = vld [vmem:[%s0 + $0x40] sm:$0xff]
  %v53 = vld [vmem:[%s0 + $0x48] sm:$0xff]
  %v54 = vld [vmem:[%s0 + $0x50] sm:$0xff]
  %v55 = vld [vmem:[%s0 + $0x58] sm:$0xff]
  %v56 = vld [vmem:[%s0 + $0x60] sm:$0xff]
  %v57 = vld [vmem:[%s0 + $0x68] sm:$0xff]
  %v58 = vld [vmem:[%s0 + $0x70] sm:$0xff]
  %v59 = vld [vmem:[%s0 + $0x78] sm:$0xff]
  %v60 = vpack.c.bf16 %v45, %v44
  %v61 = vpack.c.bf16 %v47, %v46
  %v62 = vpack.c.bf16 %v49, %v48
  %v63 = vpack.c.bf16 %v51, %v50
  %v64 = vpack.c.bf16 %v53, %v52
  %v65 = vpack.c.bf16 %v55, %v54
  %v66 = vpack.c.bf16 %v57, %v56
  %v67 = vpack.c.bf16 %v59, %v58
  %v68 = vld [vmem:[%s4] sm:$0xff]
  %v69 = vld [vmem:[%s4 + $0x8] sm:$0xff]
  %v70 = vpack.c.bf16 %v69, %v68
  %v71 = vld [vmem:[%s5] sm:$0x1]
  %v73 = vlaneseq
  %v74 = vshrl.u32 %v73, 7
  %v75 = vsub.s32 0, %v74
  %v76 = vrot.slane %v71, %v75
  %vm78 = vcmask 130048
  %v80 = vsel %vm78, %v60, 0
  %v83 = vsel %vm78, %v61, 0
  %v86 = vsel %vm78, %v62, 0
  %v89 = vsel %vm78, %v63, 0
  %v92 = vsel %vm78, %v64, 0
  %v95 = vsel %vm78, %v65, 0
  %v98 = vsel %vm78, %v66, 0
  %v101 = vsel %vm78, %v67, 0
  %103 = vmatprep.subr.bf16.mxu0 0
  %104 = vmatpush1.bf16.msra.mxu0 %v70
  %105 = vmatprep.subr.bf16.mxu0 0
  %106 = vmatpush1.bf16.msra.mxu0 0
  %107 = vmatprep.subr.bf16.mxu0 0
  %108 = vmatpush1.bf16.msra.mxu0 0
  %109 = vmatprep.subr.bf16.mxu0 0
  %110 = vmatpush1.bf16.msra.mxu0 0
  %111 = vmatprep.subr.bf16.mxu0 0
  %112 = vmatpush1.bf16.msra.mxu0 0
  %113 = vmatprep.subr.bf16.mxu0 0
  %114 = vmatpush1.bf16.msra.mxu0 0
  %115 = vmatprep.subr.bf16.mxu0 0
  %116 = vmatpush1.bf16.msra.mxu0 0
  %117 = vmatprep.subr.bf16.mxu0 0
  %118 = vmatpush1.bf16.msra.mxu0 0
  %119 = vmatprep.subr.bf16.mxu0 0
  %120 = vmatpush1.bf16.msra.mxu0 0
  %121 = vmatprep.subr.bf16.mxu0 0
  %122 = vmatpush1.bf16.msra.mxu0 0
  %123 = vmatprep.subr.bf16.mxu0 0
  %124 = vmatpush1.bf16.msra.mxu0 0
  %125 = vmatprep.subr.bf16.mxu0 0
  %126 = vmatpush1.bf16.msra.mxu0 0
  %127 = vmatprep.subr.bf16.mxu0 0
  %128 = vmatpush1.bf16.msra.mxu0 0
  %129 = vmatprep.subr.bf16.mxu0 0
  %130 = vmatpush1.bf16.msra.mxu0 0
  %131 = vmatprep.subr.bf16.mxu0 0
  %132 = vmatpush1.bf16.msra.mxu0 0
  %133 = vmatprep.subr.bf16.mxu0 0
  %134 = vmatpush1.bf16.msra.mxu0 0
  %135 = vmatprep.mubr.bf16.mxu0 0
  %136 = vmatmul.mubr.bf16.gmra.mrb[0].mxu0 %v80
  %v137 = vpop.f32.mrb[0].mxu0
  %v138 = vadd.f32 %v76, %v137
  %v139 = vpop.f32.mrb[0].mxu0
  %v140 = vpop.f32.mrb[0].mxu0
  %v141 = vadd.f32 %v76, %v140
  %v142 = vpop.f32.mrb[0].mxu0
  %143 = vmatprep.mubr.bf16.mxu0 0
  %144 = vmatmul.mubr.bf16.gmra.mrb[0].mxu0 %v83
  %v145 = vpop.f32.mrb[0].mxu0
  %v146 = vadd.f32 %v76, %v145
  %v147 = vpop.f32.mrb[0].mxu0
  %v148 = vpop.f32.mrb[0].mxu0
  %v149 = vadd.f32 %v76, %v148
  %v150 = vpop.f32.mrb[0].mxu0
  %151 = vmatprep.mubr.bf16.mxu0 0
  %152 = vmatmul.mubr.bf16.gmra.mrb[0].mxu0 %v86
  %v153 = vpop.f32.mrb[0].mxu0
  %v154 = vadd.f32 %v76, %v153
  %v155 = vpop.f32.mrb[0].mxu0
  %v156 = vpop.f32.mrb[0].mxu0
  %v157 = vadd.f32 %v76, %v156
  %v158 = vpop.f32.mrb[0].mxu0
  %159 = vmatprep.mubr.bf16.mxu0 0
  %160 = vmatmul.mubr.bf16.gmra.mrb[0].mxu0 %v89
  %v161 = vpop.f32.mrb[0].mxu0
  %v162 = vadd.f32 %v76, %v161
  %v163 = vpop.f32.mrb[0].mxu0
  %v164 = vpop.f32.mrb[0].mxu0
  %v165 = vadd.f32 %v76, %v164
  %v166 = vpop.f32.mrb[0].mxu0
  %167 = vmatprep.mubr.bf16.mxu0 0
  %168 = vmatmul.mubr.bf16.gmra.mrb[0].mxu0 %v92
  %v169 = vpop.f32.mrb[0].mxu0
  %v170 = vadd.f32 %v76, %v169
  %v171 = vpop.f32.mrb[0].mxu0
  %v172 = vpop.f32.mrb[0].mxu0
  %v173 = vadd.f32 %v76, %v172
  %v174 = vpop.f32.mrb[0].mxu0
  %175 = vmatprep.mubr.bf16.mxu0 0
  %176 = vmatmul.mubr.bf16.gmra.mrb[0].mxu0 %v95
  %v177 = vpop.f32.mrb[0].mxu0
  %v178 = vadd.f32 %v76, %v177
  %v179 = vpop.f32.mrb[0].mxu0
  %v180 = vpop.f32.mrb[0].mxu0
  %v181 = vadd.f32 %v76, %v180
  %v182 = vpop.f32.mrb[0].mxu0
  %183 = vmatprep.mubr.bf16.mxu0 0
  %184 = vmatmul.mubr.bf16.gmra.mrb[0].mxu0 %v98
  %v185 = vpop.f32.mrb[0].mxu0
  %v186 = vadd.f32 %v76, %v185
  %v187 = vpop.f32.mrb[0].mxu0
  %v188 = vpop.f32.mrb[0].mxu0
  %v189 = vadd.f32 %v76, %v188
  %v190 = vpop.f32.mrb[0].mxu0
  %191 = vmatprep.mubr.bf16.mxu0 0
  %192 = vmatmul.mubr.bf16.gmra.mrb[0].mxu0 %v101
  %v193 = vpop.f32.mrb[0].mxu0
  %v194 = vadd.f32 %v76, %v193
  %v195 = vpop.f32.mrb[0].mxu0
  %v196 = vpop.f32.mrb[0].mxu0
  %v197 = vadd.f32 %v76, %v196
  %v198 = vpop.f32.mrb[0].mxu0
  %199 = vdwg.mxu0
  %v200 = vld [vmem:[%s2] sm:$0xff]
  %v202 = vcombine.high %v200, %v200
  %v204 = vunpack.c.l.s4 1966171168
  %v205 = vunpack.c.0.s8 %v204
  %v206 = vlaneseq
  %v207 = vshrl.u32 %v206, 7
  %v208 = vsub.s32 %v205, %v207
  %v209 = vrot.slane %v200, %v208
  %v211 = vunpack.c.l.s4 1966171168
  %v212 = vunpack.c.0.s8 %v211
  %v213 = vlaneseq
  %v214 = vshrl.u32 %v213, 7
  %v215 = vsub.s32 %v212, %v214
  %v216 = vrot.slane %v202, %v215
  %v217 = vcombine.high %v209, %v209
  %v218 = vcombine.high %v216, %v216
  %v220 = vunpack.c.l.s4 1966171168
  %v221 = vunpack.c.0.s8 %v220
  %v222 = vlaneseq
  %v223 = vshrl.u32 %v222, 7
  %v224 = vsub.s32 %v221, %v223
  %v225 = vrot.slane %v209, %v224
  %v227 = vunpack.c.l.s4 1966171168
  %v228 = vunpack.c.0.s8 %v227
  %v229 = vlaneseq
  %v230 = vshrl.u32 %v229, 7
  %v231 = vsub.s32 %v228, %v230
  %v232 = vrot.slane %v216, %v231
  %v234 = vunpack.c.l.s4 1966171168
  %v235 = vunpack.c.0.s8 %v234
  %v236 = vlaneseq
  %v237 = vshrl.u32 %v236, 7
  %v238 = vsub.s32 %v235, %v237
  %v239 = vrot.slane %v217, %v238
  %v241 = vunpack.c.l.s4 1966171168
  %v242 = vunpack.c.0.s8 %v241
  %v243 = vlaneseq
  %v244 = vshrl.u32 %v243, 7
  %v245 = vsub.s32 %v242, %v244
  %v246 = vrot.slane %v218, %v245
  %v247 = vcombine.high %v225, %v225
  %v248 = vcombine.high %v239, %v239
  %v249 = vlaneseq
  %v250 = vshrl.u32 %v249, 7
  %v251 = vsub.s32 0, %v250
  %v252 = vrot.slane %v225, %v251
  %v253 = vlaneseq
  %v254 = vshrl.u32 %v253, 7
  %v255 = vsub.s32 0, %v254
  %v256 = vrot.slane %v239, %v255
  %v257 = vlaneseq
  %v258 = vshrl.u32 %v257, 7
  %v259 = vsub.s32 0, %v258
  %v260 = vrot.slane %v247, %v259
  %v261 = vlaneseq
  %v262 = vshrl.u32 %v261, 7
  %v263 = vsub.s32 0, %v262
  %v264 = vrot.slane %v248, %v263
  %v265 = vlaneseq
  %v266 = vshrl.u32 %v265, 7
  %v267 = vsub.s32 0, %v266
  %v268 = vrot.slane %v232, %v267
  %v269 = vlaneseq
  %v270 = vshrl.u32 %v269, 7
  %v271 = vsub.s32 0, %v270
  %v272 = vrot.slane %v246, %v271
  %273 = vset.pattern.permute.xlu0 0
  %274 = vperm.xlu0 %273, %v252
  %v275 = vpop.permute.xlu0 %274
  %277 = vset.pattern.permute.xlu0 0
  %278 = vperm.xlu0 %277, %v256
  %v279 = vpop.permute.xlu0 %278
  %281 = vset.pattern.permute.xlu0 0
  %282 = vperm.xlu0 %281, %v260
  %v283 = vpop.permute.xlu0 %282
  %285 = vset.pattern.permute.xlu0 0
  %286 = vperm.xlu0 %285, %v264
  %v287 = vpop.permute.xlu0 %286
  %289 = vset.pattern.permute.xlu0 0
  %290 = vperm.xlu0 %289, %v268
  %v291 = vpop.permute.xlu0 %290
  %293 = vset.pattern.permute.xlu0 0
  %294 = vperm.xlu0 %293, %v272
  %v295 = vpop.permute.xlu0 %294
  %v297 = vmul.f32 %v275, %v138
  %v298 = vmul.f32 %v275, %v141
  %v299 = vmul.f32 %v275, %v146
  %v300 = vmul.f32 %v275, %v149
  %v301 = vmul.f32 %v275, %v154
  %v302 = vmul.f32 %v275, %v157
  %v303 = vmul.f32 %v275, %v162
  %v304 = vmul.f32 %v275, %v165
  %v305 = vmul.f32 %v279, %v138
  %v306 = vmul.f32 %v279, %v141
  %v307 = vmul.f32 %v279, %v146
  %v308 = vmul.f32 %v279, %v149
  %v309 = vmul.f32 %v279, %v154
  %v310 = vmul.f32 %v279, %v157
  %v311 = vmul.f32 %v279, %v162
  %v312 = vmul.f32 %v279, %v165
  %v313 = vmul.f32 %v283, %v138
  %v314 = vmul.f32 %v283, %v141
  %v315 = vmul.f32 %v283, %v146
  %v316 = vmul.f32 %v283, %v149
  %v317 = vmul.f32 %v283, %v154
  %v318 = vmul.f32 %v283, %v157
  %v319 = vmul.f32 %v283, %v162
  %v320 = vmul.f32 %v283, %v165
  %v321 = vmul.f32 %v287, %v170
  %v322 = vmul.f32 %v287, %v173
  %v323 = vmul.f32 %v287, %v178
  %v324 = vmul.f32 %v287, %v181
  %v325 = vmul.f32 %v287, %v186
  %v326 = vmul.f32 %v287, %v189
  %v327 = vmul.f32 %v287, %v194
  %v328 = vmul.f32 %v287, %v197
  %v329 = vmul.f32 %v291, %v170
  %v330 = vmul.f32 %v291, %v173
  %v331 = vmul.f32 %v291, %v178
  %v332 = vmul.f32 %v291, %v181
  %v333 = vmul.f32 %v291, %v186
  %v334 = vmul.f32 %v291, %v189
  %v335 = vmul.f32 %v291, %v194
  %v336 = vmul.f32 %v291, %v197
  %v337 = vmul.f32 %v295, %v170
  %v338 = vmul.f32 %v295, %v173
  %v339 = vmul.f32 %v295, %v178
  %v340 = vmul.f32 %v295, %v181
  %v341 = vmul.f32 %v295, %v186
  %v342 = vmul.f32 %v295, %v189
  %v343 = vmul.f32 %v295, %v194
  %v344 = vmul.f32 %v295, %v197
  %v345 = vld [vmem:[%s1] sm:$0xff]
  %v346 = vld [vmem:[%s1 + $0x8] sm:$0xff]
  %v347 = vld [vmem:[%s1 + $0x10] sm:$0xff]
  %v348 = vld [vmem:[%s1 + $0x18] sm:$0xff]
  %v349 = vld [vmem:[%s1 + $0x20] sm:$0xff]
  %v350 = vld [vmem:[%s1 + $0x28] sm:$0xff]
  %v351 = vld [vmem:[%s1 + $0x30] sm:$0xff]
  %v352 = vld [vmem:[%s1 + $0x38] sm:$0xff]
  %v353 = vld [vmem:[%s1 + $0x40] sm:$0xff]
  %v354 = vld [vmem:[%s1 + $0x48] sm:$0xff]
  %v355 = vld [vmem:[%s1 + $0x50] sm:$0xff]
  %v356 = vld [vmem:[%s1 + $0x58] sm:$0xff]
  %v357 = vld [vmem:[%s1 + $0x60] sm:$0xff]
  %v358 = vld [vmem:[%s1 + $0x68] sm:$0xff]
  %v359 = vld [vmem:[%s1 + $0x70] sm:$0xff]
  %v360 = vld [vmem:[%s1 + $0x78] sm:$0xff]
  %v361 = vld [vmem:[%s1 + $0x80] sm:$0xff]
  %v362 = vld [vmem:[%s1 + $0x88] sm:$0xff]
  %v363 = vld [vmem:[%s1 + $0x90] sm:$0xff]
  %v364 = vld [vmem:[%s1 + $0x98] sm:$0xff]
  %v365 = vld [vmem:[%s1 + $0xa0] sm:$0xff]
  %v366 = vld [vmem:[%s1 + $0xa8] sm:$0xff]
  %v367 = vld [vmem:[%s1 + $0xb0] sm:$0xff]
  %v368 = vld [vmem:[%s1 + $0xb8] sm:$0xff]
  %v369 = vld [vmem:[%s1 + $0xc0] sm:$0xff]
  %v370 = vld [vmem:[%s1 + $0xc8] sm:$0xff]
  %v371 = vld [vmem:[%s1 + $0xd0] sm:$0xff]
  %v372 = vld [vmem:[%s1 + $0xd8] sm:$0xff]
  %v373 = vld [vmem:[%s1 + $0xe0] sm:$0xff]
  %v374 = vld [vmem:[%s1 + $0xe8] sm:$0xff]
  %v375 = vld [vmem:[%s1 + $0xf0] sm:$0xff]
  %v376 = vld [vmem:[%s1 + $0xf8] sm:$0xff]
  %v377 = vld [vmem:[%s1 + $0x100] sm:$0xff]
  %v378 = vld [vmem:[%s1 + $0x108] sm:$0xff]
  %v379 = vld [vmem:[%s1 + $0x110] sm:$0xff]
  %v380 = vld [vmem:[%s1 + $0x118] sm:$0xff]
  %v381 = vld [vmem:[%s1 + $0x120] sm:$0xff]
  %v382 = vld [vmem:[%s1 + $0x128] sm:$0xff]
  %v383 = vld [vmem:[%s1 + $0x130] sm:$0xff]
  %v384 = vld [vmem:[%s1 + $0x138] sm:$0xff]
  %v385 = vld [vmem:[%s1 + $0x140] sm:$0xff]
  %v386 = vld [vmem:[%s1 + $0x148] sm:$0xff]
  %v387 = vld [vmem:[%s1 + $0x150] sm:$0xff]
  %v388 = vld [vmem:[%s1 + $0x158] sm:$0xff]
  %v389 = vld [vmem:[%s1 + $0x160] sm:$0xff]
  %v390 = vld [vmem:[%s1 + $0x168] sm:$0xff]
  %v391 = vld [vmem:[%s1 + $0x170] sm:$0xff]
  %v392 = vld [vmem:[%s1 + $0x178] sm:$0xff]
  %393 = vset.pattern.permute.xlu0 1
  %394 = vperm.xlu0 %393, %v252
  %v395 = vpop.permute.xlu0 %394
  %397 = vset.pattern.permute.xlu0 1
  %398 = vperm.xlu0 %397, %v256
  %v399 = vpop.permute.xlu0 %398
  %401 = vset.pattern.permute.xlu0 1
  %402 = vperm.xlu0 %401, %v260
  %v403 = vpop.permute.xlu0 %402
  %405 = vset.pattern.permute.xlu0 1
  %406 = vperm.xlu0 %405, %v264
  %v407 = vpop.permute.xlu0 %406
  %409 = vset.pattern.permute.xlu0 1
  %410 = vperm.xlu0 %409, %v268
  %v411 = vpop.permute.xlu0 %410
  %413 = vset.pattern.permute.xlu0 1
  %414 = vperm.xlu0 %413, %v272
  %v415 = vpop.permute.xlu0 %414
  %v417 = vmul.f32 %v395, %v345
  %v418 = vmul.f32 %v395, %v346
  %v419 = vmul.f32 %v395, %v347
  %v420 = vmul.f32 %v395, %v348
  %v421 = vmul.f32 %v395, %v349
  %v422 = vmul.f32 %v395, %v350
  %v423 = vmul.f32 %v395, %v351
  %v424 = vmul.f32 %v395, %v352
  %v425 = vmul.f32 %v399, %v353
  %v426 = vmul.f32 %v399, %v354
  %v427 = vmul.f32 %v399, %v355
  %v428 = vmul.f32 %v399, %v356
  %v429 = vmul.f32 %v399, %v357
  %v430 = vmul.f32 %v399, %v358
  %v431 = vmul.f32 %v399, %v359
  %v432 = vmul.f32 %v399, %v360
  %v433 = vmul.f32 %v403, %v361
  %v434 = vmul.f32 %v403, %v362
  %v435 = vmul.f32 %v403, %v363
  %v436 = vmul.f32 %v403, %v364
  %v437 = vmul.f32 %v403, %v365
  %v438 = vmul.f32 %v403, %v366
  %v439 = vmul.f32 %v403, %v367
  %v440 = vmul.f32 %v403, %v368
  %v441 = vmul.f32 %v407, %v369
  %v442 = vmul.f32 %v407, %v370
  %v443 = vmul.f32 %v407, %v371
  %v444 = vmul.f32 %v407, %v372
  %v445 = vmul.f32 %v407, %v373
  %v446 = vmul.f32 %v407, %v374
  %v447 = vmul.f32 %v407, %v375
  %v448 = vmul.f32 %v407, %v376
  %v449 = vmul.f32 %v411, %v377
  %v450 = vmul.f32 %v411, %v378
  %v451 = vmul.f32 %v411, %v379
  %v452 = vmul.f32 %v411, %v380
  %v453 = vmul.f32 %v411, %v381
  %v454 = vmul.f32 %v411, %v382
  %v455 = vmul.f32 %v411, %v383
  %v456 = vmul.f32 %v411, %v384
  %v457 = vmul.f32 %v415, %v385
  %v458 = vmul.f32 %v415, %v386
  %v459 = vmul.f32 %v415, %v387
  %v460 = vmul.f32 %v415, %v388
  %v461 = vmul.f32 %v415, %v389
  %v462 = vmul.f32 %v415, %v390
  %v463 = vmul.f32 %v415, %v391
  %v464 = vmul.f32 %v415, %v392
  %v465 = vadd.f32 %v297, %v417
  %v466 = vadd.f32 %v298, %v418
  %v467 = vadd.f32 %v299, %v419
  %v468 = vadd.f32 %v300, %v420
  %v469 = vadd.f32 %v301, %v421
  %v470 = vadd.f32 %v302, %v422
  %v471 = vadd.f32 %v303, %v423
  %v472 = vadd.f32 %v304, %v424
  %v473 = vadd.f32 %v305, %v425
  %v474 = vadd.f32 %v306, %v426
  %v475 = vadd.f32 %v307, %v427
  %v476 = vadd.f32 %v308, %v428
  %v477 = vadd.f32 %v309, %v429
  %v478 = vadd.f32 %v310, %v430
  %v479 = vadd.f32 %v311, %v431
  %v480 = vadd.f32 %v312, %v432
  %v481 = vadd.f32 %v313, %v433
  %v482 = vadd.f32 %v314, %v434
  %v483 = vadd.f32 %v315, %v435
  %v484 = vadd.f32 %v316, %v436
  %v485 = vadd.f32 %v317, %v437
  %v486 = vadd.f32 %v318, %v438
  %v487 = vadd.f32 %v319, %v439
  %v488 = vadd.f32 %v320, %v440
  %v489 = vadd.f32 %v321, %v441
  %v490 = vadd.f32 %v322, %v442
  %v491 = vadd.f32 %v323, %v443
  %v492 = vadd.f32 %v324, %v444
  %v493 = vadd.f32 %v325, %v445
  %v494 = vadd.f32 %v326, %v446
  %v495 = vadd.f32 %v327, %v447
  %v496 = vadd.f32 %v328, %v448
  %v497 = vadd.f32 %v329, %v449
  %v498 = vadd.f32 %v330, %v450
  %v499 = vadd.f32 %v331, %v451
  %v500 = vadd.f32 %v332, %v452
  %v501 = vadd.f32 %v333, %v453
  %v502 = vadd.f32 %v334, %v454
  %v503 = vadd.f32 %v335, %v455
  %v504 = vadd.f32 %v336, %v456
  %v505 = vadd.f32 %v337, %v457
  %v506 = vadd.f32 %v338, %v458
  %v507 = vadd.f32 %v339, %v459
  %v508 = vadd.f32 %v340, %v460
  %v509 = vadd.f32 %v341, %v461
  %v510 = vadd.f32 %v342, %v462
  %v511 = vadd.f32 %v343, %v463
  %v512 = vadd.f32 %v344, %v464
  %v513 = vld [vmem:[%s3] sm:$0xff]
  %v514 = vpack.c.bf16 %v513, %v513
  %v515 = vld [vmem:[%s6] sm:$0xff]
  %v516 = vld [vmem:[%s6 + $0x8] sm:$0xff]
  %v517 = vld [vmem:[%s6 + $0x10] sm:$0xff]
  %v518 = vld [vmem:[%s6 + $0x18] sm:$0xff]
  %v519 = vpack.c.bf16 %v516, %v515
  %v520 = vpack.c.bf16 %v518, %v517
  %v521 = vld [vmem:[%s7] sm:$0x1]
  %v523 = vlaneseq
  %v524 = vshrl.u32 %v523, 7
  %v525 = vsub.s32 0, %v524
  %v526 = vrot.slane %v521, %v525
  %vm528 = vcmask 261120
  %v530 = vsel %vm528, %v514, 0
  %532 = vmatprep.subr.bf16.mxu0 0
  %533 = vmatpush1.bf16.msra.mxu0 %v519
  %534 = vmatprep.subr.bf16.mxu0 0
  %535 = vmatpush1.bf16.msra.mxu0 %v520
  %536 = vmatprep.subr.bf16.mxu0 0
  %537 = vmatpush1.bf16.msra.mxu0 0
  %538 = vmatprep.subr.bf16.mxu0 0
  %539 = vmatpush1.bf16.msra.mxu0 0
  %540 = vmatprep.subr.bf16.mxu0 0
  %541 = vmatpush1.bf16.msra.mxu0 0
  %542 = vmatprep.subr.bf16.mxu0 0
  %543 = vmatpush1.bf16.msra.mxu0 0
  %544 = vmatprep.subr.bf16.mxu0 0
  %545 = vmatpush1.bf16.msra.mxu0 0
  %546 = vmatprep.subr.bf16.mxu0 0
  %547 = vmatpush1.bf16.msra.mxu0 0
  %548 = vmatprep.subr.bf16.mxu0 0
  %549 = vmatpush1.bf16.msra.mxu0 0
  %550 = vmatprep.subr.bf16.mxu0 0
  %551 = vmatpush1.bf16.msra.mxu0 0
  %552 = vmatprep.subr.bf16.mxu0 0
  %553 = vmatpush1.bf16.msra.mxu0 0
  %554 = vmatprep.subr.bf16.mxu0 0
  %555 = vmatpush1.bf16.msra.mxu0 0
  %556 = vmatprep.subr.bf16.mxu0 0
  %557 = vmatpush1.bf16.msra.mxu0 0
  %558 = vmatprep.subr.bf16.mxu0 0
  %559 = vmatpush1.bf16.msra.mxu0 0
  %560 = vmatprep.subr.bf16.mxu0 0
  %561 = vmatpush1.bf16.msra.mxu0 0
  %562 = vmatprep.subr.bf16.mxu0 0
  %563 = vmatpush1.bf16.msra.mxu0 0
  %564 = vmatprep.mubr.bf16.mxu0 0
  %565 = vmatmul.mubr.bf16.gmra.mrb[0].mxu0 %v530
  %v566 = vpop.f32.mrb[0].mxu0
  %v567 = vadd.f32 %v526, %v566
  %v568 = vpop.f32.mrb[0].mxu0
  %v569 = vpop.f32.mrb[0].mxu0
  %v570 = vpop.f32.mrb[0].mxu0
  %571 = vdwg.mxu0
  %v572 = vmul.f32 %v567, %v567
  %v573 = vmul.f32 %v567, %v572
  %v574 = vmul.f32 %v573, 0.044715
  %v575 = vadd.f32 %v567, %v574
  %v576 = vmul.f32 %v575, 0.7978846
  %v577 = vtanh.pop %v576
  %v578 = vadd.f32 %v577, 1.0
  %v579 = vmul.f32 %v578, 0.5
  %v580 = vmul.f32 %v567, %v579
  %v581 = vpack.c.bf16 %v466, %v465
  %v582 = vpack.c.bf16 %v468, %v467
  %v583 = vpack.c.bf16 %v470, %v469
  %v584 = vpack.c.bf16 %v472, %v471
  %v585 = vpack.c.bf16 %v474, %v473
  %v586 = vpack.c.bf16 %v476, %v475
  %v587 = vpack.c.bf16 %v478, %v477
  %v588 = vpack.c.bf16 %v480, %v479
  %v589 = vpack.c.bf16 %v482, %v481
  %v590 = vpack.c.bf16 %v484, %v483
  %v591 = vpack.c.bf16 %v486, %v485
  %v592 = vpack.c.bf16 %v488, %v487
  %v593 = vpack.c.bf16 %v490, %v489
  %v594 = vpack.c.bf16 %v492, %v491
  %v595 = vpack.c.bf16 %v494, %v493
  %v596 = vpack.c.bf16 %v496, %v495
  %v597 = vpack.c.bf16 %v498, %v497
  %v598 = vpack.c.bf16 %v500, %v499
  %v599 = vpack.c.bf16 %v502, %v501
  %v600 = vpack.c.bf16 %v504, %v503
  %v601 = vpack.c.bf16 %v506, %v505
  %v602 = vpack.c.bf16 %v508, %v507
  %v603 = vpack.c.bf16 %v510, %v509
  %v604 = vpack.c.bf16 %v512, %v511
  %v605 = vpack.c.bf16 %v141, %v138
  %v606 = vpack.c.bf16 %v149, %v146
  %v607 = vpack.c.bf16 %v157, %v154
  %v608 = vpack.c.bf16 %v165, %v162
  %v609 = vpack.c.bf16 %v173, %v170
  %v610 = vpack.c.bf16 %v181, %v178
  %v611 = vpack.c.bf16 %v189, %v186
  %v612 = vpack.c.bf16 %v197, %v194
  %v613 = vld [vmem:[%s8] sm:$0xf]
  %v614 = vpack.c.bf16 %v613, %v613
  %v615 = vld [vmem:[%s9] sm:$0x1]
  %v617 = vlaneseq
  %v618 = vshrl.u32 %v617, 7
  %v619 = vsub.s32 0, %v618
  %v620 = vrot.slane %v615, %v619
  %vm622 = vcmask 31744
  %v624 = vsel %vm622, %v581, 0
  %v627 = vsel %vm622, %v582, 0
  %v630 = vsel %vm622, %v583, 0
  %v633 = vsel %vm622, %v584, 0
  %v636 = vsel %vm622, %v585, 0
  %v639 = vsel %vm622, %v586, 0
  %v642 = vsel %vm622, %v587, 0
  %v645 = vsel %vm622, %v588, 0
  %v648 = vsel %vm622, %v589, 0
  %v651 = vsel %vm622, %v590, 0
  %v654 = vsel %vm622, %v591, 0
  %v657 = vsel %vm622, %v592, 0
  %v660 = vsel %vm622, %v593, 0
  %v663 = vsel %vm622, %v594, 0
  %v666 = vsel %vm622, %v595, 0
  %v669 = vsel %vm622, %v596, 0
  %v672 = vsel %vm622, %v597, 0
  %v675 = vsel %vm622, %v598, 0
  %v678 = vsel %vm622, %v599, 0
  %v681 = vsel %vm622, %v600, 0
  %v684 = vsel %vm622, %v601, 0
  %v687 = vsel %vm622, %v602, 0
  %v690 = vsel %vm622, %v603, 0
  %v693 = vsel %vm622, %v604, 0
  %v696 = vsel %vm622, %v605, 0
  %v699 = vsel %vm622, %v606, 0
  %v702 = vsel %vm622, %v607, 0
  %v705 = vsel %vm622, %v608, 0
  %v708 = vsel %vm622, %v609, 0
  %v711 = vsel %vm622, %v610, 0
  %v714 = vsel %vm622, %v611, 0
  %v717 = vsel %vm622, %v612, 0
  %vm719 = vcmask 1041408
  %v721 = vsel %vm719, %v614, 0
  %723 = vmatprep.subr.bf16.mxu0 0
  %724 = vmatpush1.bf16.msra.mxu0 %v721
  %725 = vmatprep.subr.bf16.mxu0 0
  %726 = vmatpush1.bf16.msra.mxu0 0
  %727 = vmatprep.subr.bf16.mxu0 0
  %728 = vmatpush1.bf16.msra.mxu0 0
  %729 = vmatprep.subr.bf16.mxu0 0
  %730 = vmatpush1.bf16.msra.mxu0 0
  %731 = vmatprep.subr.bf16.mxu0 0
  %732 = vmatpush1.bf16.msra.mxu0 0
  %733 = vmatprep.subr.bf16.mxu0 0
  %734 = vmatpush1.bf16.msra.mxu0 0
  %735 = vmatprep.subr.bf16.mxu0 0
  %736 = vmatpush1.bf16.msra.mxu0 0
  %737 = vmatprep.subr.bf16.mxu0 0
  %738 = vmatpush1.bf16.msra.mxu0 0
  %739 = vmatprep.subr.bf16.mxu0 0
  %740 = vmatpush1.bf16.msra.mxu0 0
  %741 = vmatprep.subr.bf16.mxu0 0
  %742 = vmatpush1.bf16.msra.mxu0 0
  %743 = vmatprep.subr.bf16.mxu0 0
  %744 = vmatpush1.bf16.msra.mxu0 0
  %745 = vmatprep.subr.bf16.mxu0 0
  %746 = vmatpush1.bf16.msra.mxu0 0
  %747 = vmatprep.subr.bf16.mxu0 0
  %748 = vmatpush1.bf16.msra.mxu0 0
  %749 = vmatprep.subr.bf16.mxu0 0
  %750 = vmatpush1.bf16.msra.mxu0 0
  %751 = vmatprep.subr.bf16.mxu0 0
  %752 = vmatpush1.bf16.msra.mxu0 0
  %753 = vmatprep.subr.bf16.mxu0 0
  %754 = vmatpush1.bf16.msra.mxu0 0
  %755 = vmatprep.mubr.bf16.mxu0 0
  %756 = vmatmul.mubr.bf16.gmra.mrb[0].mxu0 %v624
  %v757 = vpop.f32.mrb[0].mxu0
  %v758 = vadd.f32 %v620, %v757
  %v759 = vpop.f32.mrb[0].mxu0
  %v760 = vpop.f32.mrb[0].mxu0
  %v761 = vadd.f32 %v620, %v760
  %v762 = vpop.f32.mrb[0].mxu0
  %763 = vmatprep.mubr.bf16.mxu0 0
  %764 = vmatmul.mubr.bf16.gmra.mrb[0].mxu0 %v627
  %v765 = vpop.f32.mrb[0].mxu0
  %v766 = vadd.f32 %v620, %v765
  %v767 = vpop.f32.mrb[0].mxu0
  %v768 = vpop.f32.mrb[0].mxu0
  %v769 = vadd.f32 %v620, %v768
  %v770 = vpop.f32.mrb[0].mxu0
  %771 = vmatprep.mubr.bf16.mxu0 0
  %772 = vmatmul.mubr.bf16.gmra.mrb[0].mxu0 %v630
  %v773 = vpop.f32.mrb[0].mxu0
  %v774 = vadd.f32 %v620, %v773
  %v775 = vpop.f32.mrb[0].mxu0
  %v776 = vpop.f32.mrb[0].mxu0
  %v777 = vadd.f32 %v620, %v776
  %v778 = vpop.f32.mrb[0].mxu0
  %779 = vmatprep.mubr.bf16.mxu0 0
  %780 = vmatmul.mubr.bf16.gmra.mrb[0].mxu0 %v633
  %v781 = vpop.f32.mrb[0].mxu0
  %v782 = vadd.f32 %v620, %v781
  %v783 = vpop.f32.mrb[0].mxu0
  %v784 = vpop.f32.mrb[0].mxu0
  %v785 = vadd.f32 %v620, %v784
  %v786 = vpop.f32.mrb[0].mxu0
  %787 = vmatprep.mubr.bf16.mxu0 0
  %788 = vmatmul.mubr.bf16.gmra.mrb[0].mxu0 %v636
  %v789 = vpop.f32.mrb[0].mxu0
  %v790 = vadd.f32 %v620, %v789
  %v791 = vpop.f32.mrb[0].mxu0
  %v792 = vpop.f32.mrb[0].mxu0
  %v793 = vadd.f32 %v620, %v792
  %v794 = vpop.f32.mrb[0].mxu0
  %795 = vmatprep.mubr.bf16.mxu0 0
  %796 = vmatmul.mubr.bf16.gmra.mrb[0].mxu0 %v639
  %v797 = vpop.f32.mrb[0].mxu0
  %v798 = vadd.f32 %v620, %v797
  %v799 = vpop.f32.mrb[0].mxu0
  %v800 = vpop.f32.mrb[0].mxu0
  %v801 = vadd.f32 %v620, %v800
  %v802 = vpop.f32.mrb[0].mxu0
  %803 = vmatprep.mubr.bf16.mxu0 0
  %804 = vmatmul.mubr.bf16.gmra.mrb[0].mxu0 %v642
  %v805 = vpop.f32.mrb[0].mxu0
  %v806 = vadd.f32 %v620, %v805
  %v807 = vpop.f32.mrb[0].mxu0
  %v808 = vpop.f32.mrb[0].mxu0
  %v809 = vadd.f32 %v620, %v808
  %v810 = vpop.f32.mrb[0].mxu0
  %811 = vmatprep.mubr.bf16.mxu0 0
  %812 = vmatmul.mubr.bf16.gmra.mrb[0].mxu0 %v645
  %v813 = vpop.f32.mrb[0].mxu0
  %v814 = vadd.f32 %v620, %v813
  %v815 = vpop.f32.mrb[0].mxu0
  %v816 = vpop.f32.mrb[0].mxu0
  %v817 = vadd.f32 %v620, %v816
  %v818 = vpop.f32.mrb[0].mxu0
  %819 = vmatprep.mubr.bf16.mxu0 0
  %820 = vmatmul.mubr.bf16.gmra.mrb[0].mxu0 %v648
  %v821 = vpop.f32.mrb[0].mxu0
  %v822 = vadd.f32 %v620, %v821
  %v823 = vpop.f32.mrb[0].mxu0
  %v824 = vpop.f32.mrb[0].mxu0
  %v825 = vadd.f32 %v620, %v824
  %v826 = vpop.f32.mrb[0].mxu0
  %827 = vmatprep.mubr.bf16.mxu0 0
  %828 = vmatmul.mubr.bf16.gmra.mrb[0].mxu0 %v651
  %v829 = vpop.f32.mrb[0].mxu0
  %v830 = vadd.f32 %v620, %v829
  %v831 = vpop.f32.mrb[0].mxu0
  %v832 = vpop.f32.mrb[0].mxu0
  %v833 = vadd.f32 %v620, %v832
  %v834 = vpop.f32.mrb[0].mxu0
  %835 = vmatprep.mubr.bf16.mxu0 0
  %836 = vmatmul.mubr.bf16.gmra.mrb[0].mxu0 %v654
  %v837 = vpop.f32.mrb[0].mxu0
  %v838 = vadd.f32 %v620, %v837
  %v839 = vpop.f32.mrb[0].mxu0
  %v840 = vpop.f32.mrb[0].mxu0
  %v841 = vadd.f32 %v620, %v840
  %v842 = vpop.f32.mrb[0].mxu0
  %843 = vmatprep.mubr.bf16.mxu0 0
  %844 = vmatmul.mubr.bf16.gmra.mrb[0].mxu0 %v657
  %v845 = vpop.f32.mrb[0].mxu0
  %v846 = vadd.f32 %v620, %v845
  %v847 = vpop.f32.mrb[0].mxu0
  %v848 = vpop.f32.mrb[0].mxu0
  %v849 = vadd.f32 %v620, %v848
  %v850 = vpop.f32.mrb[0].mxu0
  %851 = vmatprep.mubr.bf16.mxu0 0
  %852 = vmatmul.mubr.bf16.gmra.mrb[0].mxu0 %v660
  %v853 = vpop.f32.mrb[0].mxu0
  %v854 = vadd.f32 %v620, %v853
  %v855 = vpop.f32.mrb[0].mxu0
  %v856 = vpop.f32.mrb[0].mxu0
  %v857 = vadd.f32 %v620, %v856
  %v858 = vpop.f32.mrb[0].mxu0
  %859 = vmatprep.mubr.bf16.mxu0 0
  %860 = vmatmul.mubr.bf16.gmra.mrb[0].mxu0 %v663
  %v861 = vpop.f32.mrb[0].mxu0
  %v862 = vadd.f32 %v620, %v861
  %v863 = vpop.f32.mrb[0].mxu0
  %v864 = vpop.f32.mrb[0].mxu0
  %v865 = vadd.f32 %v620, %v864
  %v866 = vpop.f32.mrb[0].mxu0
  %867 = vmatprep.mubr.bf16.mxu0 0
  %868 = vmatmul.mubr.bf16.gmra.mrb[0].mxu0 %v666
  %v869 = vpop.f32.mrb[0].mxu0
  %v870 = vadd.f32 %v620, %v869
  %v871 = vpop.f32.mrb[0].mxu0
  %v872 = vpop.f32.mrb[0].mxu0
  %v873 = vadd.f32 %v620, %v872
  %v874 = vpop.f32.mrb[0].mxu0
  %875 = vmatprep.mubr.bf16.mxu0 0
  %876 = vmatmul.mubr.bf16.gmra.mrb[0].mxu0 %v669
  %v877 = vpop.f32.mrb[0].mxu0
  %v878 = vadd.f32 %v620, %v877
  %v879 = vpop.f32.mrb[0].mxu0
  %v880 = vpop.f32.mrb[0].mxu0
  %v881 = vadd.f32 %v620, %v880
  %v882 = vpop.f32.mrb[0].mxu0
  %883 = vmatprep.mubr.bf16.mxu0 0
  %884 = vmatmul.mubr.bf16.gmra.mrb[0].mxu0 %v672
  %v885 = vpop.f32.mrb[0].mxu0
  %v886 = vadd.f32 %v620, %v885
  %v887 = vpop.f32.mrb[0].mxu0
  %v888 = vpop.f32.mrb[0].mxu0
  %v889 = vadd.f32 %v620, %v888
  %v890 = vpop.f32.mrb[0].mxu0
  %891 = vmatprep.mubr.bf16.mxu0 0
  %892 = vmatmul.mubr.bf16.gmra.mrb[0].mxu0 %v675
  %v893 = vpop.f32.mrb[0].mxu0
  %v894 = vadd.f32 %v620, %v893
  %v895 = vpop.f32.mrb[0].mxu0
  %v896 = vpop.f32.mrb[0].mxu0
  %v897 = vadd.f32 %v620, %v896
  %v898 = vpop.f32.mrb[0].mxu0
  %899 = vmatprep.mubr.bf16.mxu0 0
  %900 = vmatmul.mubr.bf16.gmra.mrb[0].mxu0 %v678
  %v901 = vpop.f32.mrb[0].mxu0
  %v902 = vadd.f32 %v620, %v901
  %v903 = vpop.f32.mrb[0].mxu0
  %v904 = vpop.f32.mrb[0].mxu0
  %v905 = vadd.f32 %v620, %v904
  %v906 = vpop.f32.mrb[0].mxu0
  %907 = vmatprep.mubr.bf16.mxu0 0
  %908 = vmatmul.mubr.bf16.gmra.mrb[0].mxu0 %v681
  %v909 = vpop.f32.mrb[0].mxu0
  %v910 = vadd.f32 %v620, %v909
  %v911 = vpop.f32.mrb[0].mxu0
  %v912 = vpop.f32.mrb[0].mxu0
  %v913 = vadd.f32 %v620, %v912
  %v914 = vpop.f32.mrb[0].mxu0
  %915 = vmatprep.mubr.bf16.mxu0 0
  %916 = vmatmul.mubr.bf16.gmra.mrb[0].mxu0 %v684
  %v917 = vpop.f32.mrb[0].mxu0
  %v918 = vadd.f32 %v620, %v917
  %v919 = vpop.f32.mrb[0].mxu0
  %v920 = vpop.f32.mrb[0].mxu0
  %v921 = vadd.f32 %v620, %v920
  %v922 = vpop.f32.mrb[0].mxu0
  %923 = vmatprep.mubr.bf16.mxu0 0
  %924 = vmatmul.mubr.bf16.gmra.mrb[0].mxu0 %v687
  %v925 = vpop.f32.mrb[0].mxu0
  %v926 = vadd.f32 %v620, %v925
  %v927 = vpop.f32.mrb[0].mxu0
  %v928 = vpop.f32.mrb[0].mxu0
  %v929 = vadd.f32 %v620, %v928
  %v930 = vpop.f32.mrb[0].mxu0
  %931 = vmatprep.mubr.bf16.mxu0 0
  %932 = vmatmul.mubr.bf16.gmra.mrb[0].mxu0 %v690
  %v933 = vpop.f32.mrb[0].mxu0
  %v934 = vadd.f32 %v620, %v933
  %v935 = vpop.f32.mrb[0].mxu0
  %v936 = vpop.f32.mrb[0].mxu0
  %v937 = vadd.f32 %v620, %v936
  %v938 = vpop.f32.mrb[0].mxu0
  %939 = vmatprep.mubr.bf16.mxu0 0
  %940 = vmatmul.mubr.bf16.gmra.mrb[0].mxu0 %v693
  %v941 = vpop.f32.mrb[0].mxu0
  %v942 = vadd.f32 %v620, %v941
  %v943 = vpop.f32.mrb[0].mxu0
  %v944 = vpop.f32.mrb[0].mxu0
  %v945 = vadd.f32 %v620, %v944
  %v946 = vpop.f32.mrb[0].mxu0
  %947 = vmatprep.mubr.bf16.mxu0 0
  %948 = vmatmul.mubr.bf16.gmra.mrb[0].mxu0 %v696
  %v949 = vpop.f32.mrb[0].mxu0
  %v950 = vadd.f32 %v620, %v949
  %v951 = vpop.f32.mrb[0].mxu0
  %v952 = vpop.f32.mrb[0].mxu0
  %v953 = vadd.f32 %v620, %v952
  %v954 = vpop.f32.mrb[0].mxu0
  %955 = vmatprep.mubr.bf16.mxu0 0
  %956 = vmatmul.mubr.bf16.gmra.mrb[0].mxu0 %v699
  %v957 = vpop.f32.mrb[0].mxu0
  %v958 = vadd.f32 %v620, %v957
  %v959 = vpop.f32.mrb[0].mxu0
  %v960 = vpop.f32.mrb[0].mxu0
  %v961 = vadd.f32 %v620, %v960
  %v962 = vpop.f32.mrb[0].mxu0
  %963 = vmatprep.mubr.bf16.mxu0 0
  %964 = vmatmul.mubr.bf16.gmra.mrb[0].mxu0 %v702
  %v965 = vpop.f32.mrb[0].mxu0
  %v966 = vadd.f32 %v620, %v965
  %v967 = vpop.f32.mrb[0].mxu0
  %v968 = vpop.f32.mrb[0].mxu0
  %v969 = vadd.f32 %v620, %v968
  %v970 = vpop.f32.mrb[0].mxu0
  %971 = vmatprep.mubr.bf16.mxu0 0
  %972 = vmatmul.mubr.bf16.gmra.mrb[0].mxu0 %v705
  %v973 = vpop.f32.mrb[0].mxu0
  %v974 = vadd.f32 %v620, %v973
  %v975 = vpop.f32.mrb[0].mxu0
  %v976 = vpop.f32.mrb[0].mxu0
  %v977 = vadd.f32 %v620, %v976
  %v978 = vpop.f32.mrb[0].mxu0
  %979 = vmatprep.mubr.bf16.mxu0 0
  %980 = vmatmul.mubr.bf16.gmra.mrb[0].mxu0 %v708
  %v981 = vpop.f32.mrb[0].mxu0
  %v982 = vadd.f32 %v620, %v981
  %v983 = vpop.f32.mrb[0].mxu0
  %v984 = vpop.f32.mrb[0].mxu0
  %v985 = vadd.f32 %v620, %v984
  %v986 = vpop.f32.mrb[0].mxu0
  %987 = vmatprep.mubr.bf16.mxu0 0
  %988 = vmatmul.mubr.bf16.gmra.mrb[0].mxu0 %v711
  %v989 = vpop.f32.mrb[0].mxu0
  %v990 = vadd.f32 %v620, %v989
  %v991 = vpop.f32.mrb[0].mxu0
  %v992 = vpop.f32.mrb[0].mxu0
  %v993 = vadd.f32 %v620, %v992
  %v994 = vpop.f32.mrb[0].mxu0
  %995 = vmatprep.mubr.bf16.mxu0 0
  %996 = vmatmul.mubr.bf16.gmra.mrb[0].mxu0 %v714
  %v997 = vpop.f32.mrb[0].mxu0
  %v998 = vadd.f32 %v620, %v997
  %v999 = vpop.f32.mrb[0].mxu0
  %v1000 = vpop.f32.mrb[0].mxu0
  %v1001 = vadd.f32 %v620, %v1000
  %v1002 = vpop.f32.mrb[0].mxu0
  %1003 = vmatprep.mubr.bf16.mxu0 0
  %1004 = vmatmul.mubr.bf16.gmra.mrb[0].mxu0 %v717
  %v1005 = vpop.f32.mrb[0].mxu0
  %v1006 = vadd.f32 %v620, %v1005
  %v1007 = vpop.f32.mrb[0].mxu0
  %v1008 = vpop.f32.mrb[0].mxu0
  %v1009 = vadd.f32 %v620, %v1008
  %v1010 = vpop.f32.mrb[0].mxu0
  %1011 = vdwg.mxu0
  %v1013 = vcombine.high %v580, %v580
  %v1015 = vunpack.c.l.s4 1966171168
  %v1016 = vunpack.c.0.s8 %v1015
  %v1017 = vlaneseq
  %v1018 = vshrl.u32 %v1017, 7
  %v1019 = vsub.s32 %v1016, %v1018
  %v1020 = vrot.slane %v580, %v1019
  %v1022 = vunpack.c.l.s4 1966171168
  %v1023 = vunpack.c.0.s8 %v1022
  %v1024 = vlaneseq
  %v1025 = vshrl.u32 %v1024, 7
  %v1026 = vsub.s32 %v1023, %v1025
  %v1027 = vrot.slane %v1013, %v1026
  %v1028 = vcombine.high %v1020, %v1020
  %v1029 = vcombine.high %v1027, %v1027
  %v1031 = vunpack.c.l.s4 1966171168
  %v1032 = vunpack.c.0.s8 %v1031
  %v1033 = vlaneseq
  %v1034 = vshrl.u32 %v1033, 7
  %v1035 = vsub.s32 %v1032, %v1034
  %v1036 = vrot.slane %v1020, %v1035
  %v1038 = vunpack.c.l.s4 1966171168
  %v1039 = vunpack.c.0.s8 %v1038
  %v1040 = vlaneseq
  %v1041 = vshrl.u32 %v1040, 7
  %v1042 = vsub.s32 %v1039, %v1041
  %v1043 = vrot.slane %v1027, %v1042
  %v1045 = vunpack.c.l.s4 1966171168
  %v1046 = vunpack.c.0.s8 %v1045
  %v1047 = vlaneseq
  %v1048 = vshrl.u32 %v1047, 7
  %v1049 = vsub.s32 %v1046, %v1048
  %v1050 = vrot.slane %v1028, %v1049
  %v1052 = vunpack.c.l.s4 1966171168
  %v1053 = vunpack.c.0.s8 %v1052
  %v1054 = vlaneseq
  %v1055 = vshrl.u32 %v1054, 7
  %v1056 = vsub.s32 %v1053, %v1055
  %v1057 = vrot.slane %v1029, %v1056
  %v1058 = vcombine.high %v1036, %v1036
  %v1059 = vcombine.high %v1043, %v1043
  %v1060 = vcombine.high %v1050, %v1050
  %v1061 = vcombine.high %v1057, %v1057
  %v1062 = vlaneseq
  %v1063 = vshrl.u32 %v1062, 7
  %v1064 = vsub.s32 0, %v1063
  %v1065 = vrot.slane %v1036, %v1064
  %v1066 = vlaneseq
  %v1067 = vshrl.u32 %v1066, 7
  %v1068 = vsub.s32 0, %v1067
  %v1069 = vrot.slane %v1050, %v1068
  %v1070 = vlaneseq
  %v1071 = vshrl.u32 %v1070, 7
  %v1072 = vsub.s32 0, %v1071
  %v1073 = vrot.slane %v1058, %v1072
  %v1074 = vlaneseq
  %v1075 = vshrl.u32 %v1074, 7
  %v1076 = vsub.s32 0, %v1075
  %v1077 = vrot.slane %v1060, %v1076
  %v1078 = vlaneseq
  %v1079 = vshrl.u32 %v1078, 7
  %v1080 = vsub.s32 0, %v1079
  %v1081 = vrot.slane %v1043, %v1080
  %v1082 = vlaneseq
  %v1083 = vshrl.u32 %v1082, 7
  %v1084 = vsub.s32 0, %v1083
  %v1085 = vrot.slane %v1057, %v1084
  %v1086 = vlaneseq
  %v1087 = vshrl.u32 %v1086, 7
  %v1088 = vsub.s32 0, %v1087
  %v1089 = vrot.slane %v1059, %v1088
  %v1090 = vlaneseq
  %v1091 = vshrl.u32 %v1090, 7
  %v1092 = vsub.s32 0, %v1091
  %v1093 = vrot.slane %v1061, %v1092
  %v1102 = vadd.f32 %v758, %v1065
  %v1103 = vadd.f32 %v761, %v1065
  %v1104 = vadd.f32 %v766, %v1065
  %v1105 = vadd.f32 %v769, %v1065
  %v1106 = vadd.f32 %v774, %v1065
  %v1107 = vadd.f32 %v777, %v1065
  %v1108 = vadd.f32 %v782, %v1065
  %v1109 = vadd.f32 %v785, %v1065
  %v1110 = vadd.f32 %v790, %v1069
  %v1111 = vadd.f32 %v793, %v1069
  %v1112 = vadd.f32 %v798, %v1069
  %v1113 = vadd.f32 %v801, %v1069
  %v1114 = vadd.f32 %v806, %v1069
  %v1115 = vadd.f32 %v809, %v1069
  %v1116 = vadd.f32 %v814, %v1069
  %v1117 = vadd.f32 %v817, %v1069
  %v1118 = vadd.f32 %v822, %v1073
  %v1119 = vadd.f32 %v825, %v1073
  %v1120 = vadd.f32 %v830, %v1073
  %v1121 = vadd.f32 %v833, %v1073
  %v1122 = vadd.f32 %v838, %v1073
  %v1123 = vadd.f32 %v841, %v1073
  %v1124 = vadd.f32 %v846, %v1073
  %v1125 = vadd.f32 %v849, %v1073
  %v1126 = vadd.f32 %v854, %v1077
  %v1127 = vadd.f32 %v857, %v1077
  %v1128 = vadd.f32 %v862, %v1077
  %v1129 = vadd.f32 %v865, %v1077
  %v1130 = vadd.f32 %v870, %v1077
  %v1131 = vadd.f32 %v873, %v1077
  %v1132 = vadd.f32 %v878, %v1077
  %v1133 = vadd.f32 %v881, %v1077
  %v1134 = vadd.f32 %v886, %v1081
  %v1135 = vadd.f32 %v889, %v1081
  %v1136 = vadd.f32 %v894, %v1081
  %v1137 = vadd.f32 %v897, %v1081
  %v1138 = vadd.f32 %v902, %v1081
  %v1139 = vadd.f32 %v905, %v1081
  %v1140 = vadd.f32 %v910, %v1081
  %v1141 = vadd.f32 %v913, %v1081
  %v1142 = vadd.f32 %v918, %v1085
  %v1143 = vadd.f32 %v921, %v1085
  %v1144 = vadd.f32 %v926, %v1085
  %v1145 = vadd.f32 %v929, %v1085
  %v1146 = vadd.f32 %v934, %v1085
  %v1147 = vadd.f32 %v937, %v1085
  %v1148 = vadd.f32 %v942, %v1085
  %v1149 = vadd.f32 %v945, %v1085
  %v1150 = vadd.f32 %v950, %v1089
  %v1151 = vadd.f32 %v953, %v1089
  %v1152 = vadd.f32 %v958, %v1089
  %v1153 = vadd.f32 %v961, %v1089
  %v1154 = vadd.f32 %v966, %v1089
  %v1155 = vadd.f32 %v969, %v1089
  %v1156 = vadd.f32 %v974, %v1089
  %v1157 = vadd.f32 %v977, %v1089
  %v1158 = vadd.f32 %v982, %v1093
  %v1159 = vadd.f32 %v985, %v1093
  %v1160 = vadd.f32 %v990, %v1093
  %v1161 = vadd.f32 %v993, %v1093
  %v1162 = vadd.f32 %v998, %v1093
  %v1163 = vadd.f32 %v1001, %v1093
  %v1164 = vadd.f32 %v1006, %v1093
  %v1165 = vadd.f32 %v1009, %v1093
  %v1166 = vmul.f32 %v1102, %v1102
  %v1167 = vmul.f32 %v1103, %v1103
  %v1168 = vmul.f32 %v1104, %v1104
  %v1169 = vmul.f32 %v1105, %v1105
  %v1170 = vmul.f32 %v1106, %v1106
  %v1171 = vmul.f32 %v1107, %v1107
  %v1172 = vmul.f32 %v1108, %v1108
  %v1173 = vmul.f32 %v1109, %v1109
  %v1174 = vmul.f32 %v1110, %v1110
  %v1175 = vmul.f32 %v1111, %v1111
  %v1176 = vmul.f32 %v1112, %v1112
  %v1177 = vmul.f32 %v1113, %v1113
  %v1178 = vmul.f32 %v1114, %v1114
  %v1179 = vmul.f32 %v1115, %v1115
  %v1180 = vmul.f32 %v1116, %v1116
  %v1181 = vmul.f32 %v1117, %v1117
  %v1182 = vmul.f32 %v1118, %v1118
  %v1183 = vmul.f32 %v1119, %v1119
  %v1184 = vmul.f32 %v1120, %v1120
  %v1185 = vmul.f32 %v1121, %v1121
  %v1186 = vmul.f32 %v1122, %v1122
  %v1187 = vmul.f32 %v1123, %v1123
  %v1188 = vmul.f32 %v1124, %v1124
  %v1189 = vmul.f32 %v1125, %v1125
  %v1190 = vmul.f32 %v1126, %v1126
  %v1191 = vmul.f32 %v1127, %v1127
  %v1192 = vmul.f32 %v1128, %v1128
  %v1193 = vmul.f32 %v1129, %v1129
  %v1194 = vmul.f32 %v1130, %v1130
  %v1195 = vmul.f32 %v1131, %v1131
  %v1196 = vmul.f32 %v1132, %v1132
  %v1197 = vmul.f32 %v1133, %v1133
  %v1198 = vmul.f32 %v1134, %v1134
  %v1199 = vmul.f32 %v1135, %v1135
  %v1200 = vmul.f32 %v1136, %v1136
  %v1201 = vmul.f32 %v1137, %v1137
  %v1202 = vmul.f32 %v1138, %v1138
  %v1203 = vmul.f32 %v1139, %v1139
  %v1204 = vmul.f32 %v1140, %v1140
  %v1205 = vmul.f32 %v1141, %v1141
  %v1206 = vmul.f32 %v1142, %v1142
  %v1207 = vmul.f32 %v1143, %v1143
  %v1208 = vmul.f32 %v1144, %v1144
  %v1209 = vmul.f32 %v1145, %v1145
  %v1210 = vmul.f32 %v1146, %v1146
  %v1211 = vmul.f32 %v1147, %v1147
  %v1212 = vmul.f32 %v1148, %v1148
  %v1213 = vmul.f32 %v1149, %v1149
  %v1214 = vmul.f32 %v1150, %v1150
  %v1215 = vmul.f32 %v1151, %v1151
  %v1216 = vmul.f32 %v1152, %v1152
  %v1217 = vmul.f32 %v1153, %v1153
  %v1218 = vmul.f32 %v1154, %v1154
  %v1219 = vmul.f32 %v1155, %v1155
  %v1220 = vmul.f32 %v1156, %v1156
  %v1221 = vmul.f32 %v1157, %v1157
  %v1222 = vmul.f32 %v1158, %v1158
  %v1223 = vmul.f32 %v1159, %v1159
  %v1224 = vmul.f32 %v1160, %v1160
  %v1225 = vmul.f32 %v1161, %v1161
  %v1226 = vmul.f32 %v1162, %v1162
  %v1227 = vmul.f32 %v1163, %v1163
  %v1228 = vmul.f32 %v1164, %v1164
  %v1229 = vmul.f32 %v1165, %v1165
  %v1230 = vmul.f32 %v1102, %v1166
  %v1231 = vmul.f32 %v1103, %v1167
  %v1232 = vmul.f32 %v1104, %v1168
  %v1233 = vmul.f32 %v1105, %v1169
  %v1234 = vmul.f32 %v1106, %v1170
  %v1235 = vmul.f32 %v1107, %v1171
  %v1236 = vmul.f32 %v1108, %v1172
  %v1237 = vmul.f32 %v1109, %v1173
  %v1238 = vmul.f32 %v1110, %v1174
  %v1239 = vmul.f32 %v1111, %v1175
  %v1240 = vmul.f32 %v1112, %v1176
  %v1241 = vmul.f32 %v1113, %v1177
  %v1242 = vmul.f32 %v1114, %v1178
  %v1243 = vmul.f32 %v1115, %v1179
  %v1244 = vmul.f32 %v1116, %v1180
  %v1245 = vmul.f32 %v1117, %v1181
  %v1246 = vmul.f32 %v1118, %v1182
  %v1247 = vmul.f32 %v1119, %v1183
  %v1248 = vmul.f32 %v1120, %v1184
  %v1249 = vmul.f32 %v1121, %v1185
  %v1250 = vmul.f32 %v1122, %v1186
  %v1251 = vmul.f32 %v1123, %v1187
  %v1252 = vmul.f32 %v1124, %v1188
  %v1253 = vmul.f32 %v1125, %v1189
  %v1254 = vmul.f32 %v1126, %v1190
  %v1255 = vmul.f32 %v1127, %v1191
  %v1256 = vmul.f32 %v1128, %v1192
  %v1257 = vmul.f32 %v1129, %v1193
  %v1258 = vmul.f32 %v1130, %v1194
  %v1259 = vmul.f32 %v1131, %v1195
  %v1260 = vmul.f32 %v1132, %v1196
  %v1261 = vmul.f32 %v1133, %v1197
  %v1262 = vmul.f32 %v1134, %v1198
  %v1263 = vmul.f32 %v1135, %v1199
  %v1264 = vmul.f32 %v1136, %v1200
  %v1265 = vmul.f32 %v1137, %v1201
  %v1266 = vmul.f32 %v1138, %v1202
  %v1267 = vmul.f32 %v1139, %v1203
  %v1268 = vmul.f32 %v1140, %v1204
  %v1269 = vmul.f32 %v1141, %v1205
  %v1270 = vmul.f32 %v1142, %v1206
  %v1271 = vmul.f32 %v1143, %v1207
  %v1272 = vmul.f32 %v1144, %v1208
  %v1273 = vmul.f32 %v1145, %v1209
  %v1274 = vmul.f32 %v1146, %v1210
  %v1275 = vmul.f32 %v1147, %v1211
  %v1276 = vmul.f32 %v1148, %v1212
  %v1277 = vmul.f32 %v1149, %v1213
  %v1278 = vmul.f32 %v1150, %v1214
  %v1279 = vmul.f32 %v1151, %v1215
  %v1280 = vmul.f32 %v1152, %v1216
  %v1281 = vmul.f32 %v1153, %v1217
  %v1282 = vmul.f32 %v1154, %v1218
  %v1283 = vmul.f32 %v1155, %v1219
  %v1284 = vmul.f32 %v1156, %v1220
  %v1285 = vmul.f32 %v1157, %v1221
  %v1286 = vmul.f32 %v1158, %v1222
  %v1287 = vmul.f32 %v1159, %v1223
  %v1288 = vmul.f32 %v1160, %v1224
  %v1289 = vmul.f32 %v1161, %v1225
  %v1290 = vmul.f32 %v1162, %v1226
  %v1291 = vmul.f32 %v1163, %v1227
  %v1292 = vmul.f32 %v1164, %v1228
  %v1293 = vmul.f32 %v1165, %v1229
  %v1294 = vmul.f32 %v1230, 0.044715
  %v1295 = vmul.f32 %v1231, 0.044715
  %v1296 = vmul.f32 %v1232, 0.044715
  %v1297 = vmul.f32 %v1233, 0.044715
  %v1298 = vmul.f32 %v1234, 0.044715
  %v1299 = vmul.f32 %v1235, 0.044715
  %v1300 = vmul.f32 %v1236, 0.044715
  %v1301 = vmul.f32 %v1237, 0.044715
  %v1302 = vmul.f32 %v1238, 0.044715
  %v1303 = vmul.f32 %v1239, 0.044715
  %v1304 = vmul.f32 %v1240, 0.044715
  %v1305 = vmul.f32 %v1241, 0.044715
  %v1306 = vmul.f32 %v1242, 0.044715
  %v1307 = vmul.f32 %v1243, 0.044715
  %v1308 = vmul.f32 %v1244, 0.044715
  %v1309 = vmul.f32 %v1245, 0.044715
  %v1310 = vmul.f32 %v1246, 0.044715
  %v1311 = vmul.f32 %v1247, 0.044715
  %v1312 = vmul.f32 %v1248, 0.044715
  %v1313 = vmul.f32 %v1249, 0.044715
  %v1314 = vmul.f32 %v1250, 0.044715
  %v1315 = vmul.f32 %v1251, 0.044715
  %v1316 = vmul.f32 %v1252, 0.044715
  %v1317 = vmul.f32 %v1253, 0.044715
  %v1318 = vmul.f32 %v1254, 0.044715
  %v1319 = vmul.f32 %v1255, 0.044715
  %v1320 = vmul.f32 %v1256, 0.044715
  %v1321 = vmul.f32 %v1257, 0.044715
  %v1322 = vmul.f32 %v1258, 0.044715
  %v1323 = vmul.f32 %v1259, 0.044715
  %v1324 = vmul.f32 %v1260, 0.044715
  %v1325 = vmul.f32 %v1261, 0.044715
  %v1326 = vmul.f32 %v1262, 0.044715
  %v1327 = vmul.f32 %v1263, 0.044715
  %v1328 = vmul.f32 %v1264, 0.044715
  %v1329 = vmul.f32 %v1265, 0.044715
  %v1330 = vmul.f32 %v1266, 0.044715
  %v1331 = vmul.f32 %v1267, 0.044715
  %v1332 = vmul.f32 %v1268, 0.044715
  %v1333 = vmul.f32 %v1269, 0.044715
  %v1334 = vmul.f32 %v1270, 0.044715
  %v1335 = vmul.f32 %v1271, 0.044715
  %v1336 = vmul.f32 %v1272, 0.044715
  %v1337 = vmul.f32 %v1273, 0.044715
  %v1338 = vmul.f32 %v1274, 0.044715
  %v1339 = vmul.f32 %v1275, 0.044715
  %v1340 = vmul.f32 %v1276, 0.044715
  %v1341 = vmul.f32 %v1277, 0.044715
  %v1342 = vmul.f32 %v1278, 0.044715
  %v1343 = vmul.f32 %v1279, 0.044715
  %v1344 = vmul.f32 %v1280, 0.044715
  %v1345 = vmul.f32 %v1281, 0.044715
  %v1346 = vmul.f32 %v1282, 0.044715
  %v1347 = vmul.f32 %v1283, 0.044715
  %v1348 = vmul.f32 %v1284, 0.044715
  %v1349 = vmul.f32 %v1285, 0.044715
  %v1350 = vmul.f32 %v1286, 0.044715
  %v1351 = vmul.f32 %v1287, 0.044715
  %v1352 = vmul.f32 %v1288, 0.044715
  %v1353 = vmul.f32 %v1289, 0.044715
  %v1354 = vmul.f32 %v1290, 0.044715
  %v1355 = vmul.f32 %v1291, 0.044715
  %v1356 = vmul.f32 %v1292, 0.044715
  %v1357 = vmul.f32 %v1293, 0.044715
  %v1358 = vadd.f32 %v1102, %v1294
  %v1359 = vadd.f32 %v1103, %v1295
  %v1360 = vadd.f32 %v1104, %v1296
  %v1361 = vadd.f32 %v1105, %v1297
  %v1362 = vadd.f32 %v1106, %v1298
  %v1363 = vadd.f32 %v1107, %v1299
  %v1364 = vadd.f32 %v1108, %v1300
  %v1365 = vadd.f32 %v1109, %v1301
  %v1366 = vadd.f32 %v1110, %v1302
  %v1367 = vadd.f32 %v1111, %v1303
  %v1368 = vadd.f32 %v1112, %v1304
  %v1369 = vadd.f32 %v1113, %v1305
  %v1370 = vadd.f32 %v1114, %v1306
  %v1371 = vadd.f32 %v1115, %v1307
  %v1372 = vadd.f32 %v1116, %v1308
  %v1373 = vadd.f32 %v1117, %v1309
  %v1374 = vadd.f32 %v1118, %v1310
  %v1375 = vadd.f32 %v1119, %v1311
  %v1376 = vadd.f32 %v1120, %v1312
  %v1377 = vadd.f32 %v1121, %v1313
  %v1378 = vadd.f32 %v1122, %v1314
  %v1379 = vadd.f32 %v1123, %v1315
  %v1380 = vadd.f32 %v1124, %v1316
  %v1381 = vadd.f32 %v1125, %v1317
  %v1382 = vadd.f32 %v1126, %v1318
  %v1383 = vadd.f32 %v1127, %v1319
  %v1384 = vadd.f32 %v1128, %v1320
  %v1385 = vadd.f32 %v1129, %v1321
  %v1386 = vadd.f32 %v1130, %v1322
  %v1387 = vadd.f32 %v1131, %v1323
  %v1388 = vadd.f32 %v1132, %v1324
  %v1389 = vadd.f32 %v1133, %v1325
  %v1390 = vadd.f32 %v1134, %v1326
  %v1391 = vadd.f32 %v1135, %v1327
  %v1392 = vadd.f32 %v1136, %v1328
  %v1393 = vadd.f32 %v1137, %v1329
  %v1394 = vadd.f32 %v1138, %v1330
  %v1395 = vadd.f32 %v1139, %v1331
  %v1396 = vadd.f32 %v1140, %v1332
  %v1397 = vadd.f32 %v1141, %v1333
  %v1398 = vadd.f32 %v1142, %v1334
  %v1399 = vadd.f32 %v1143, %v1335
  %v1400 = vadd.f32 %v1144, %v1336
  %v1401 = vadd.f32 %v1145, %v1337
  %v1402 = vadd.f32 %v1146, %v1338
  %v1403 = vadd.f32 %v1147, %v1339
  %v1404 = vadd.f32 %v1148, %v1340
  %v1405 = vadd.f32 %v1149, %v1341
  %v1406 = vadd.f32 %v1150, %v1342
  %v1407 = vadd.f32 %v1151, %v1343
  %v1408 = vadd.f32 %v1152, %v1344
  %v1409 = vadd.f32 %v1153, %v1345
  %v1410 = vadd.f32 %v1154, %v1346
  %v1411 = vadd.f32 %v1155, %v1347
  %v1412 = vadd.f32 %v1156, %v1348
  %v1413 = vadd.f32 %v1157, %v1349
  %v1414 = vadd.f32 %v1158, %v1350
  %v1415 = vadd.f32 %v1159, %v1351
  %v1416 = vadd.f32 %v1160, %v1352
  %v1417 = vadd.f32 %v1161, %v1353
  %v1418 = vadd.f32 %v1162, %v1354
  %v1419 = vadd.f32 %v1163, %v1355
  %v1420 = vadd.f32 %v1164, %v1356
  %v1421 = vadd.f32 %v1165, %v1357
  %v1422 = vmul.f32 %v1358, 0.7978846
  %v1423 = vmul.f32 %v1359, 0.7978846
  %v1424 = vmul.f32 %v1360, 0.7978846
  %v1425 = vmul.f32 %v1361, 0.7978846
  %v1426 = vmul.f32 %v1362, 0.7978846
  %v1427 = vmul.f32 %v1363, 0.7978846
  %v1428 = vmul.f32 %v1364, 0.7978846
  %v1429 = vmul.f32 %v1365, 0.7978846
  %v1430 = vmul.f32 %v1366, 0.7978846
  %v1431 = vmul.f32 %v1367, 0.7978846
  %v1432 = vmul.f32 %v1368, 0.7978846
  %v1433 = vmul.f32 %v1369, 0.7978846
  %v1434 = vmul.f32 %v1370, 0.7978846
  %v1435 = vmul.f32 %v1371, 0.7978846
  %v1436 = vmul.f32 %v1372, 0.7978846
  %v1437 = vmul.f32 %v1373, 0.7978846
  %v1438 = vmul.f32 %v1374, 0.7978846
  %v1439 = vmul.f32 %v1375, 0.7978846
  %v1440 = vmul.f32 %v1376, 0.7978846
  %v1441 = vmul.f32 %v1377, 0.7978846
  %v1442 = vmul.f32 %v1378, 0.7978846
  %v1443 = vmul.f32 %v1379, 0.7978846
  %v1444 = vmul.f32 %v1380, 0.7978846
  %v1445 = vmul.f32 %v1381, 0.7978846
  %v1446 = vmul.f32 %v1382, 0.7978846
  %v1447 = vmul.f32 %v1383, 0.7978846
  %v1448 = vmul.f32 %v1384, 0.7978846
  %v1449 = vmul.f32 %v1385, 0.7978846
  %v1450 = vmul.f32 %v1386, 0.7978846
  %v1451 = vmul.f32 %v1387, 0.7978846
  %v1452 = vmul.f32 %v1388, 0.7978846
  %v1453 = vmul.f32 %v1389, 0.7978846
  %v1454 = vmul.f32 %v1390, 0.7978846
  %v1455 = vmul.f32 %v1391, 0.7978846
  %v1456 = vmul.f32 %v1392, 0.7978846
  %v1457 = vmul.f32 %v1393, 0.7978846
  %v1458 = vmul.f32 %v1394, 0.7978846
  %v1459 = vmul.f32 %v1395, 0.7978846
  %v1460 = vmul.f32 %v1396, 0.7978846
  %v1461 = vmul.f32 %v1397, 0.7978846
  %v1462 = vmul.f32 %v1398, 0.7978846
  %v1463 = vmul.f32 %v1399, 0.7978846
  %v1464 = vmul.f32 %v1400, 0.7978846
  %v1465 = vmul.f32 %v1401, 0.7978846
  %v1466 = vmul.f32 %v1402, 0.7978846
  %v1467 = vmul.f32 %v1403, 0.7978846
  %v1468 = vmul.f32 %v1404, 0.7978846
  %v1469 = vmul.f32 %v1405, 0.7978846
  %v1470 = vmul.f32 %v1406, 0.7978846
  %v1471 = vmul.f32 %v1407, 0.7978846
  %v1472 = vmul.f32 %v1408, 0.7978846
  %v1473 = vmul.f32 %v1409, 0.7978846
  %v1474 = vmul.f32 %v1410, 0.7978846
  %v1475 = vmul.f32 %v1411, 0.7978846
  %v1476 = vmul.f32 %v1412, 0.7978846
  %v1477 = vmul.f32 %v1413, 0.7978846
  %v1478 = vmul.f32 %v1414, 0.7978846
  %v1479 = vmul.f32 %v1415, 0.7978846
  %v1480 = vmul.f32 %v1416, 0.7978846
  %v1481 = vmul.f32 %v1417, 0.7978846
  %v1482 = vmul.f32 %v1418, 0.7978846
  %v1483 = vmul.f32 %v1419, 0.7978846
  %v1484 = vmul.f32 %v1420, 0.7978846
  %v1485 = vmul.f32 %v1421, 0.7978846
  %v1486 = vtanh.pop %v1422
  %v1487 = vtanh.pop %v1423
  %v1488 = vtanh.pop %v1424
  %v1489 = vtanh.pop %v1425
  %v1490 = vtanh.pop %v1426
  %v1491 = vtanh.pop %v1427
  %v1492 = vtanh.pop %v1428
  %v1493 = vtanh.pop %v1429
  %v1494 = vtanh.pop %v1430
  %v1495 = vtanh.pop %v1431
  %v1496 = vtanh.pop %v1432
  %v1497 = vtanh.pop %v1433
  %v1498 = vtanh.pop %v1434
  %v1499 = vtanh.pop %v1435
  %v1500 = vtanh.pop %v1436
  %v1501 = vtanh.pop %v1437
  %v1502 = vtanh.pop %v1438
  %v1503 = vtanh.pop %v1439
  %v1504 = vtanh.pop %v1440
  %v1505 = vtanh.pop %v1441
  %v1506 = vtanh.pop %v1442
  %v1507 = vtanh.pop %v1443
  %v1508 = vtanh.pop %v1444
  %v1509 = vtanh.pop %v1445
  %v1510 = vtanh.pop %v1446
  %v1511 = vtanh.pop %v1447
  %v1512 = vtanh.pop %v1448
  %v1513 = vtanh.pop %v1449
  %v1514 = vtanh.pop %v1450
  %v1515 = vtanh.pop %v1451
  %v1516 = vtanh.pop %v1452
  %v1517 = vtanh.pop %v1453
  %v1518 = vtanh.pop %v1454
  %v1519 = vtanh.pop %v1455
  %v1520 = vtanh.pop %v1456
  %v1521 = vtanh.pop %v1457
  %v1522 = vtanh.pop %v1458
  %v1523 = vtanh.pop %v1459
  %v1524 = vtanh.pop %v1460
  %v1525 = vtanh.pop %v1461
  %v1526 = vtanh.pop %v1462
  %v1527 = vtanh.pop %v1463
  %v1528 = vtanh.pop %v1464
  %v1529 = vtanh.pop %v1465
  %v1530 = vtanh.pop %v1466
  %v1531 = vtanh.pop %v1467
  %v1532 = vtanh.pop %v1468
  %v1533 = vtanh.pop %v1469
  %v1534 = vtanh.pop %v1470
  %v1535 = vtanh.pop %v1471
  %v1536 = vtanh.pop %v1472
  %v1537 = vtanh.pop %v1473
  %v1538 = vtanh.pop %v1474
  %v1539 = vtanh.pop %v1475
  %v1540 = vtanh.pop %v1476
  %v1541 = vtanh.pop %v1477
  %v1542 = vtanh.pop %v1478
  %v1543 = vtanh.pop %v1479
  %v1544 = vtanh.pop %v1480
  %v1545 = vtanh.pop %v1481
  %v1546 = vtanh.pop %v1482
  %v1547 = vtanh.pop %v1483
  %v1548 = vtanh.pop %v1484
  %v1549 = vtanh.pop %v1485
  %v1550 = vadd.f32 %v1486, 1.0
  %v1551 = vadd.f32 %v1487, 1.0
  %v1552 = vadd.f32 %v1488, 1.0
  %v1553 = vadd.f32 %v1489, 1.0
  %v1554 = vadd.f32 %v1490, 1.0
  %v1555 = vadd.f32 %v1491, 1.0
  %v1556 = vadd.f32 %v1492, 1.0
  %v1557 = vadd.f32 %v1493, 1.0
  %v1558 = vadd.f32 %v1494, 1.0
  %v1559 = vadd.f32 %v1495, 1.0
  %v1560 = vadd.f32 %v1496, 1.0
  %v1561 = vadd.f32 %v1497, 1.0
  %v1562 = vadd.f32 %v1498, 1.0
  %v1563 = vadd.f32 %v1499, 1.0
  %v1564 = vadd.f32 %v1500, 1.0
  %v1565 = vadd.f32 %v1501, 1.0
  %v1566 = vadd.f32 %v1502, 1.0
  %v1567 = vadd.f32 %v1503, 1.0
  %v1568 = vadd.f32 %v1504, 1.0
  %v1569 = vadd.f32 %v1505, 1.0
  %v1570 = vadd.f32 %v1506, 1.0
  %v1571 = vadd.f32 %v1507, 1.0
  %v1572 = vadd.f32 %v1508, 1.0
  %v1573 = vadd.f32 %v1509, 1.0
  %v1574 = vadd.f32 %v1510, 1.0
  %v1575 = vadd.f32 %v1511, 1.0
  %v1576 = vadd.f32 %v1512, 1.0
  %v1577 = vadd.f32 %v1513, 1.0
  %v1578 = vadd.f32 %v1514, 1.0
  %v1579 = vadd.f32 %v1515, 1.0
  %v1580 = vadd.f32 %v1516, 1.0
  %v1581 = vadd.f32 %v1517, 1.0
  %v1582 = vadd.f32 %v1518, 1.0
  %v1583 = vadd.f32 %v1519, 1.0
  %v1584 = vadd.f32 %v1520, 1.0
  %v1585 = vadd.f32 %v1521, 1.0
  %v1586 = vadd.f32 %v1522, 1.0
  %v1587 = vadd.f32 %v1523, 1.0
  %v1588 = vadd.f32 %v1524, 1.0
  %v1589 = vadd.f32 %v1525, 1.0
  %v1590 = vadd.f32 %v1526, 1.0
  %v1591 = vadd.f32 %v1527, 1.0
  %v1592 = vadd.f32 %v1528, 1.0
  %v1593 = vadd.f32 %v1529, 1.0
  %v1594 = vadd.f32 %v1530, 1.0
  %v1595 = vadd.f32 %v1531, 1.0
  %v1596 = vadd.f32 %v1532, 1.0
  %v1597 = vadd.f32 %v1533, 1.0
  %v1598 = vadd.f32 %v1534, 1.0
  %v1599 = vadd.f32 %v1535, 1.0
  %v1600 = vadd.f32 %v1536, 1.0
  %v1601 = vadd.f32 %v1537, 1.0
  %v1602 = vadd.f32 %v1538, 1.0
  %v1603 = vadd.f32 %v1539, 1.0
  %v1604 = vadd.f32 %v1540, 1.0
  %v1605 = vadd.f32 %v1541, 1.0
  %v1606 = vadd.f32 %v1542, 1.0
  %v1607 = vadd.f32 %v1543, 1.0
  %v1608 = vadd.f32 %v1544, 1.0
  %v1609 = vadd.f32 %v1545, 1.0
  %v1610 = vadd.f32 %v1546, 1.0
  %v1611 = vadd.f32 %v1547, 1.0
  %v1612 = vadd.f32 %v1548, 1.0
  %v1613 = vadd.f32 %v1549, 1.0
  %v1614 = vmul.f32 %v1550, 0.5
  %v1615 = vmul.f32 %v1551, 0.5
  %v1616 = vmul.f32 %v1552, 0.5
  %v1617 = vmul.f32 %v1553, 0.5
  %v1618 = vmul.f32 %v1554, 0.5
  %v1619 = vmul.f32 %v1555, 0.5
  %v1620 = vmul.f32 %v1556, 0.5
  %v1621 = vmul.f32 %v1557, 0.5
  %v1622 = vmul.f32 %v1558, 0.5
  %v1623 = vmul.f32 %v1559, 0.5
  %v1624 = vmul.f32 %v1560, 0.5
  %v1625 = vmul.f32 %v1561, 0.5
  %v1626 = vmul.f32 %v1562, 0.5
  %v1627 = vmul.f32 %v1563, 0.5
  %v1628 = vmul.f32 %v1564, 0.5
  %v1629 = vmul.f32 %v1565, 0.5
  %v1630 = vmul.f32 %v1566, 0.5
  %v1631 = vmul.f32 %v1567, 0.5
  %v1632 = vmul.f32 %v1568, 0.5
  %v1633 = vmul.f32 %v1569, 0.5
  %v1634 = vmul.f32 %v1570, 0.5
  %v1635 = vmul.f32 %v1571, 0.5
  %v1636 = vmul.f32 %v1572, 0.5
  %v1637 = vmul.f32 %v1573, 0.5
  %v1638 = vmul.f32 %v1574, 0.5
  %v1639 = vmul.f32 %v1575, 0.5
  %v1640 = vmul.f32 %v1576, 0.5
  %v1641 = vmul.f32 %v1577, 0.5
  %v1642 = vmul.f32 %v1578, 0.5
  %v1643 = vmul.f32 %v1579, 0.5
  %v1644 = vmul.f32 %v1580, 0.5
  %v1645 = vmul.f32 %v1581, 0.5
  %v1646 = vmul.f32 %v1582, 0.5
  %v1647 = vmul.f32 %v1583, 0.5
  %v1648 = vmul.f32 %v1584, 0.5
  %v1649 = vmul.f32 %v1585, 0.5
  %v1650 = vmul.f32 %v1586, 0.5
  %v1651 = vmul.f32 %v1587, 0.5
  %v1652 = vmul.f32 %v1588, 0.5
  %v1653 = vmul.f32 %v1589, 0.5
  %v1654 = vmul.f32 %v1590, 0.5
  %v1655 = vmul.f32 %v1591, 0.5
  %v1656 = vmul.f32 %v1592, 0.5
  %v1657 = vmul.f32 %v1593, 0.5
  %v1658 = vmul.f32 %v1594, 0.5
  %v1659 = vmul.f32 %v1595, 0.5
  %v1660 = vmul.f32 %v1596, 0.5
  %v1661 = vmul.f32 %v1597, 0.5
  %v1662 = vmul.f32 %v1598, 0.5
  %v1663 = vmul.f32 %v1599, 0.5
  %v1664 = vmul.f32 %v1600, 0.5
  %v1665 = vmul.f32 %v1601, 0.5
  %v1666 = vmul.f32 %v1602, 0.5
  %v1667 = vmul.f32 %v1603, 0.5
  %v1668 = vmul.f32 %v1604, 0.5
  %v1669 = vmul.f32 %v1605, 0.5
  %v1670 = vmul.f32 %v1606, 0.5
  %v1671 = vmul.f32 %v1607, 0.5
  %v1672 = vmul.f32 %v1608, 0.5
  %v1673 = vmul.f32 %v1609, 0.5
  %v1674 = vmul.f32 %v1610, 0.5
  %v1675 = vmul.f32 %v1611, 0.5
  %v1676 = vmul.f32 %v1612, 0.5
  %v1677 = vmul.f32 %v1613, 0.5
  %v1678 = vmul.f32 %v1102, %v1614
  %v1679 = vmul.f32 %v1103, %v1615
  %v1680 = vmul.f32 %v1104, %v1616
  %v1681 = vmul.f32 %v1105, %v1617
  %v1682 = vmul.f32 %v1106, %v1618
  %v1683 = vmul.f32 %v1107, %v1619
  %v1684 = vmul.f32 %v1108, %v1620
  %v1685 = vmul.f32 %v1109, %v1621
  %v1686 = vmul.f32 %v1110, %v1622
  %v1687 = vmul.f32 %v1111, %v1623
  %v1688 = vmul.f32 %v1112, %v1624
  %v1689 = vmul.f32 %v1113, %v1625
  %v1690 = vmul.f32 %v1114, %v1626
  %v1691 = vmul.f32 %v1115, %v1627
  %v1692 = vmul.f32 %v1116, %v1628
  %v1693 = vmul.f32 %v1117, %v1629
  %v1694 = vmul.f32 %v1118, %v1630
  %v1695 = vmul.f32 %v1119, %v1631
  %v1696 = vmul.f32 %v1120, %v1632
  %v1697 = vmul.f32 %v1121, %v1633
  %v1698 = vmul.f32 %v1122, %v1634
  %v1699 = vmul.f32 %v1123, %v1635
  %v1700 = vmul.f32 %v1124, %v1636
  %v1701 = vmul.f32 %v1125, %v1637
  %v1702 = vmul.f32 %v1126, %v1638
  %v1703 = vmul.f32 %v1127, %v1639
  %v1704 = vmul.f32 %v1128, %v1640
  %v1705 = vmul.f32 %v1129, %v1641
  %v1706 = vmul.f32 %v1130, %v1642
  %v1707 = vmul.f32 %v1131, %v1643
  %v1708 = vmul.f32 %v1132, %v1644
  %v1709 = vmul.f32 %v1133, %v1645
  %v1710 = vmul.f32 %v1134, %v1646
  %v1711 = vmul.f32 %v1135, %v1647
  %v1712 = vmul.f32 %v1136, %v1648
  %v1713 = vmul.f32 %v1137, %v1649
  %v1714 = vmul.f32 %v1138, %v1650
  %v1715 = vmul.f32 %v1139, %v1651
  %v1716 = vmul.f32 %v1140, %v1652
  %v1717 = vmul.f32 %v1141, %v1653
  %v1718 = vmul.f32 %v1142, %v1654
  %v1719 = vmul.f32 %v1143, %v1655
  %v1720 = vmul.f32 %v1144, %v1656
  %v1721 = vmul.f32 %v1145, %v1657
  %v1722 = vmul.f32 %v1146, %v1658
  %v1723 = vmul.f32 %v1147, %v1659
  %v1724 = vmul.f32 %v1148, %v1660
  %v1725 = vmul.f32 %v1149, %v1661
  %v1726 = vmul.f32 %v1150, %v1662
  %v1727 = vmul.f32 %v1151, %v1663
  %v1728 = vmul.f32 %v1152, %v1664
  %v1729 = vmul.f32 %v1153, %v1665
  %v1730 = vmul.f32 %v1154, %v1666
  %v1731 = vmul.f32 %v1155, %v1667
  %v1732 = vmul.f32 %v1156, %v1668
  %v1733 = vmul.f32 %v1157, %v1669
  %v1734 = vmul.f32 %v1158, %v1670
  %v1735 = vmul.f32 %v1159, %v1671
  %v1736 = vmul.f32 %v1160, %v1672
  %v1737 = vmul.f32 %v1161, %v1673
  %v1738 = vmul.f32 %v1162, %v1674
  %v1739 = vmul.f32 %v1163, %v1675
  %v1740 = vmul.f32 %v1164, %v1676
  %v1741 = vmul.f32 %v1165, %v1677
  %v1742 = vpack.c.bf16 %v1679, %v1678
  %v1743 = vpack.c.bf16 %v1681, %v1680
  %v1744 = vpack.c.bf16 %v1683, %v1682
  %v1745 = vpack.c.bf16 %v1685, %v1684
  %v1746 = vpack.c.bf16 %v1687, %v1686
  %v1747 = vpack.c.bf16 %v1689, %v1688
  %v1748 = vpack.c.bf16 %v1691, %v1690
  %v1749 = vpack.c.bf16 %v1693, %v1692
  %v1750 = vpack.c.bf16 %v1695, %v1694
  %v1751 = vpack.c.bf16 %v1697, %v1696
  %v1752 = vpack.c.bf16 %v1699, %v1698
  %v1753 = vpack.c.bf16 %v1701, %v1700
  %v1754 = vpack.c.bf16 %v1703, %v1702
  %v1755 = vpack.c.bf16 %v1705, %v1704
  %v1756 = vpack.c.bf16 %v1707, %v1706
  %v1757 = vpack.c.bf16 %v1709, %v1708
  %v1758 = vpack.c.bf16 %v1711, %v1710
  %v1759 = vpack.c.bf16 %v1713, %v1712
  %v1760 = vpack.c.bf16 %v1715, %v1714
  %v1761 = vpack.c.bf16 %v1717, %v1716
  %v1762 = vpack.c.bf16 %v1719, %v1718
  %v1763 = vpack.c.bf16 %v1721, %v1720
  %v1764 = vpack.c.bf16 %v1723, %v1722
  %v1765 = vpack.c.bf16 %v1725, %v1724
  %v1766 = vpack.c.bf16 %v1727, %v1726
  %v1767 = vpack.c.bf16 %v1729, %v1728
  %v1768 = vpack.c.bf16 %v1731, %v1730
  %v1769 = vpack.c.bf16 %v1733, %v1732
  %v1770 = vpack.c.bf16 %v1735, %v1734
  %v1771 = vpack.c.bf16 %v1737, %v1736
  %v1772 = vpack.c.bf16 %v1739, %v1738
  %v1773 = vpack.c.bf16 %v1741, %v1740
  %v1774 = vld [vmem:[%s10] sm:$0xff]
  %v1775 = vld [vmem:[%s10 + $0x8] sm:$0xff]
  %v1776 = vld [vmem:[%s10 + $0x10] sm:$0xff]
  %v1777 = vld [vmem:[%s10 + $0x18] sm:$0xff]
  %v1778 = vpack.c.bf16 %v1775, %v1774
  %v1779 = vpack.c.bf16 %v1777, %v1776
  %v1780 = vld [vmem:[%s11] sm:$0x1]
  %v1782 = vlaneseq
  %v1783 = vshrl.u32 %v1782, 7
  %v1784 = vsub.s32 0, %v1783
  %v1785 = vrot.slane %v1780, %v1784
  %v1788 = vsel %vm528, %v1742, 0
  %v1791 = vsel %vm528, %v1743, 0
  %v1794 = vsel %vm528, %v1744, 0
  %v1797 = vsel %vm528, %v1745, 0
  %v1800 = vsel %vm528, %v1746, 0
  %v1803 = vsel %vm528, %v1747, 0
  %v1806 = vsel %vm528, %v1748, 0
  %v1809 = vsel %vm528, %v1749, 0
  %v1812 = vsel %vm528, %v1750, 0
  %v1815 = vsel %vm528, %v1751, 0
  %v1818 = vsel %vm528, %v1752, 0
  %v1821 = vsel %vm528, %v1753, 0
  %v1824 = vsel %vm528, %v1754, 0
  %v1827 = vsel %vm528, %v1755, 0
  %v1830 = vsel %vm528, %v1756, 0
  %v1833 = vsel %vm528, %v1757, 0
  %v1836 = vsel %vm528, %v1758, 0
  %v1839 = vsel %vm528, %v1759, 0
  %v1842 = vsel %vm528, %v1760, 0
  %v1845 = vsel %vm528, %v1761, 0
  %v1848 = vsel %vm528, %v1762, 0
  %v1851 = vsel %vm528, %v1763, 0
  %v1854 = vsel %vm528, %v1764, 0
  %v1857 = vsel %vm528, %v1765, 0
  %v1860 = vsel %vm528, %v1766, 0
  %v1863 = vsel %vm528, %v1767, 0
  %v1866 = vsel %vm528, %v1768, 0
  %v1869 = vsel %vm528, %v1769, 0
  %v1872 = vsel %vm528, %v1770, 0
  %v1875 = vsel %vm528, %v1771, 0
  %v1878 = vsel %vm528, %v1772, 0
  %v1881 = vsel %vm528, %v1773, 0
  %1883 = vmatprep.subr.bf16.mxu0 0
  %1884 = vmatpush1.bf16.msra.mxu0 %v1778
  %1885 = vmatprep.subr.bf16.mxu0 0
  %1886 = vmatpush1.bf16.msra.mxu0 %v1779
  %1887 = vmatprep.subr.bf16.mxu0 0
  %1888 = vmatpush1.bf16.msra.mxu0 0
  %1889 = vmatprep.subr.bf16.mxu0 0
  %1890 = vmatpush1.bf16.msra.mxu0 0
  %1891 = vmatprep.subr.bf16.mxu0 0
  %1892 = vmatpush1.bf16.msra.mxu0 0
  %1893 = vmatprep.subr.bf16.mxu0 0
  %1894 = vmatpush1.bf16.msra.mxu0 0
  %1895 = vmatprep.subr.bf16.mxu0 0
  %1896 = vmatpush1.bf16.msra.mxu0 0
  %1897 = vmatprep.subr.bf16.mxu0 0
  %1898 = vmatpush1.bf16.msra.mxu0 0
  %1899 = vmatprep.subr.bf16.mxu0 0
  %1900 = vmatpush1.bf16.msra.mxu0 0
  %1901 = vmatprep.subr.bf16.mxu0 0
  %1902 = vmatpush1.bf16.msra.mxu0 0
  %1903 = vmatprep.subr.bf16.mxu0 0
  %1904 = vmatpush1.bf16.msra.mxu0 0
  %1905 = vmatprep.subr.bf16.mxu0 0
  %1906 = vmatpush1.bf16.msra.mxu0 0
  %1907 = vmatprep.subr.bf16.mxu0 0
  %1908 = vmatpush1.bf16.msra.mxu0 0
  %1909 = vmatprep.subr.bf16.mxu0 0
  %1910 = vmatpush1.bf16.msra.mxu0 0
  %1911 = vmatprep.subr.bf16.mxu0 0
  %1912 = vmatpush1.bf16.msra.mxu0 0
  %1913 = vmatprep.subr.bf16.mxu0 0
  %1914 = vmatpush1.bf16.msra.mxu0 0
  %1915 = vmatprep.mubr.bf16.mxu0 0
  %1916 = vmatmul.mubr.bf16.gmra.mrb[0].mxu0 %v1788
  %v1917 = vpop.f32.mrb[0].mxu0
  %v1918 = vadd.f32 %v1785, %v1917
  %v1919 = vpop.f32.mrb[0].mxu0
  %v1920 = vpop.f32.mrb[0].mxu0
  %v1921 = vadd.f32 %v1785, %v1920
  %v1922 = vpop.f32.mrb[0].mxu0
  %1923 = vmatprep.mubr.bf16.mxu0 0
  %1924 = vmatmul.mubr.bf16.gmra.mrb[0].mxu0 %v1791
  %v1925 = vpop.f32.mrb[0].mxu0
  %v1926 = vadd.f32 %v1785, %v1925
  %v1927 = vpop.f32.mrb[0].mxu0
  %v1928 = vpop.f32.mrb[0].mxu0
  %v1929 = vadd.f32 %v1785, %v1928
  %v1930 = vpop.f32.mrb[0].mxu0
  %1931 = vmatprep.mubr.bf16.mxu0 0
  %1932 = vmatmul.mubr.bf16.gmra.mrb[0].mxu0 %v1794
  %v1933 = vpop.f32.mrb[0].mxu0
  %v1934 = vadd.f32 %v1785, %v1933
  %v1935 = vpop.f32.mrb[0].mxu0
  %v1936 = vpop.f32.mrb[0].mxu0
  %v1937 = vadd.f32 %v1785, %v1936
  %v1938 = vpop.f32.mrb[0].mxu0
  %1939 = vmatprep.mubr.bf16.mxu0 0
  %1940 = vmatmul.mubr.bf16.gmra.mrb[0].mxu0 %v1797
  %v1941 = vpop.f32.mrb[0].mxu0
  %v1942 = vadd.f32 %v1785, %v1941
  %v1943 = vpop.f32.mrb[0].mxu0
  %v1944 = vpop.f32.mrb[0].mxu0
  %v1945 = vadd.f32 %v1785, %v1944
  %v1946 = vpop.f32.mrb[0].mxu0
  %1947 = vmatprep.mubr.bf16.mxu0 0
  %1948 = vmatmul.mubr.bf16.gmra.mrb[0].mxu0 %v1800
  %v1949 = vpop.f32.mrb[0].mxu0
  %v1950 = vadd.f32 %v1785, %v1949
  %v1951 = vpop.f32.mrb[0].mxu0
  %v1952 = vpop.f32.mrb[0].mxu0
  %v1953 = vadd.f32 %v1785, %v1952
  %v1954 = vpop.f32.mrb[0].mxu0
  %1955 = vmatprep.mubr.bf16.mxu0 0
  %1956 = vmatmul.mubr.bf16.gmra.mrb[0].mxu0 %v1803
  %v1957 = vpop.f32.mrb[0].mxu0
  %v1958 = vadd.f32 %v1785, %v1957
  %v1959 = vpop.f32.mrb[0].mxu0
  %v1960 = vpop.f32.mrb[0].mxu0
  %v1961 = vadd.f32 %v1785, %v1960
  %v1962 = vpop.f32.mrb[0].mxu0
  %1963 = vmatprep.mubr.bf16.mxu0 0
  %1964 = vmatmul.mubr.bf16.gmra.mrb[0].mxu0 %v1806
  %v1965 = vpop.f32.mrb[0].mxu0
  %v1966 = vadd.f32 %v1785, %v1965
  %v1967 = vpop.f32.mrb[0].mxu0
  %v1968 = vpop.f32.mrb[0].mxu0
  %v1969 = vadd.f32 %v1785, %v1968
  %v1970 = vpop.f32.mrb[0].mxu0
  %1971 = vmatprep.mubr.bf16.mxu0 0
  %1972 = vmatmul.mubr.bf16.gmra.mrb[0].mxu0 %v1809
  %v1973 = vpop.f32.mrb[0].mxu0
  %v1974 = vadd.f32 %v1785, %v1973
  %v1975 = vpop.f32.mrb[0].mxu0
  %v1976 = vpop.f32.mrb[0].mxu0
  %v1977 = vadd.f32 %v1785, %v1976
  %v1978 = vpop.f32.mrb[0].mxu0
  %1979 = vmatprep.mubr.bf16.mxu0 0
  %1980 = vmatmul.mubr.bf16.gmra.mrb[0].mxu0 %v1812
  %v1981 = vpop.f32.mrb[0].mxu0
  %v1982 = vadd.f32 %v1785, %v1981
  %v1983 = vpop.f32.mrb[0].mxu0
  %v1984 = vpop.f32.mrb[0].mxu0
  %v1985 = vadd.f32 %v1785, %v1984
  %v1986 = vpop.f32.mrb[0].mxu0
  %1987 = vmatprep.mubr.bf16.mxu0 0
  %1988 = vmatmul.mubr.bf16.gmra.mrb[0].mxu0 %v1815
  %v1989 = vpop.f32.mrb[0].mxu0
  %v1990 = vadd.f32 %v1785, %v1989
  %v1991 = vpop.f32.mrb[0].mxu0
  %v1992 = vpop.f32.mrb[0].mxu0
  %v1993 = vadd.f32 %v1785, %v1992
  %v1994 = vpop.f32.mrb[0].mxu0
  %1995 = vmatprep.mubr.bf16.mxu0 0
  %1996 = vmatmul.mubr.bf16.gmra.mrb[0].mxu0 %v1818
  %v1997 = vpop.f32.mrb[0].mxu0
  %v1998 = vadd.f32 %v1785, %v1997
  %v1999 = vpop.f32.mrb[0].mxu0
  %v2000 = vpop.f32.mrb[0].mxu0
  %v2001 = vadd.f32 %v1785, %v2000
  %v2002 = vpop.f32.mrb[0].mxu0
  %2003 = vmatprep.mubr.bf16.mxu0 0
  %2004 = vmatmul.mubr.bf16.gmra.mrb[0].mxu0 %v1821
  %v2005 = vpop.f32.mrb[0].mxu0
  %v2006 = vadd.f32 %v1785, %v2005
  %v2007 = vpop.f32.mrb[0].mxu0
  %v2008 = vpop.f32.mrb[0].mxu0
  %v2009 = vadd.f32 %v1785, %v2008
  %v2010 = vpop.f32.mrb[0].mxu0
  %2011 = vmatprep.mubr.bf16.mxu0 0
  %2012 = vmatmul.mubr.bf16.gmra.mrb[0].mxu0 %v1824
  %v2013 = vpop.f32.mrb[0].mxu0
  %v2014 = vadd.f32 %v1785, %v2013
  %v2015 = vpop.f32.mrb[0].mxu0
  %v2016 = vpop.f32.mrb[0].mxu0
  %v2017 = vadd.f32 %v1785, %v2016
  %v2018 = vpop.f32.mrb[0].mxu0
  %2019 = vmatprep.mubr.bf16.mxu0 0
  %2020 = vmatmul.mubr.bf16.gmra.mrb[0].mxu0 %v1827
  %v2021 = vpop.f32.mrb[0].mxu0
  %v2022 = vadd.f32 %v1785, %v2021
  %v2023 = vpop.f32.mrb[0].mxu0
  %v2024 = vpop.f32.mrb[0].mxu0
  %v2025 = vadd.f32 %v1785, %v2024
  %v2026 = vpop.f32.mrb[0].mxu0
  %2027 = vmatprep.mubr.bf16.mxu0 0
  %2028 = vmatmul.mubr.bf16.gmra.mrb[0].mxu0 %v1830
  %v2029 = vpop.f32.mrb[0].mxu0
  %v2030 = vadd.f32 %v1785, %v2029
  %v2031 = vpop.f32.mrb[0].mxu0
  %v2032 = vpop.f32.mrb[0].mxu0
  %v2033 = vadd.f32 %v1785, %v2032
  %v2034 = vpop.f32.mrb[0].mxu0
  %2035 = vmatprep.mubr.bf16.mxu0 0
  %2036 = vmatmul.mubr.bf16.gmra.mrb[0].mxu0 %v1833
  %v2037 = vpop.f32.mrb[0].mxu0
  %v2038 = vadd.f32 %v1785, %v2037
  %v2039 = vpop.f32.mrb[0].mxu0
  %v2040 = vpop.f32.mrb[0].mxu0
  %v2041 = vadd.f32 %v1785, %v2040
  %v2042 = vpop.f32.mrb[0].mxu0
  %2043 = vmatprep.mubr.bf16.mxu0 0
  %2044 = vmatmul.mubr.bf16.gmra.mrb[0].mxu0 %v1836
  %v2045 = vpop.f32.mrb[0].mxu0
  %v2046 = vadd.f32 %v1785, %v2045
  %v2047 = vpop.f32.mrb[0].mxu0
  %v2048 = vpop.f32.mrb[0].mxu0
  %v2049 = vadd.f32 %v1785, %v2048
  %v2050 = vpop.f32.mrb[0].mxu0
  %2051 = vmatprep.mubr.bf16.mxu0 0
  %2052 = vmatmul.mubr.bf16.gmra.mrb[0].mxu0 %v1839
  %v2053 = vpop.f32.mrb[0].mxu0
  %v2054 = vadd.f32 %v1785, %v2053
  %v2055 = vpop.f32.mrb[0].mxu0
  %v2056 = vpop.f32.mrb[0].mxu0
  %v2057 = vadd.f32 %v1785, %v2056
  %v2058 = vpop.f32.mrb[0].mxu0
  %2059 = vmatprep.mubr.bf16.mxu0 0
  %2060 = vmatmul.mubr.bf16.gmra.mrb[0].mxu0 %v1842
  %v2061 = vpop.f32.mrb[0].mxu0
  %v2062 = vadd.f32 %v1785, %v2061
  %v2063 = vpop.f32.mrb[0].mxu0
  %v2064 = vpop.f32.mrb[0].mxu0
  %v2065 = vadd.f32 %v1785, %v2064
  %v2066 = vpop.f32.mrb[0].mxu0
  %2067 = vmatprep.mubr.bf16.mxu0 0
  %2068 = vmatmul.mubr.bf16.gmra.mrb[0].mxu0 %v1845
  %v2069 = vpop.f32.mrb[0].mxu0
  %v2070 = vadd.f32 %v1785, %v2069
  %v2071 = vpop.f32.mrb[0].mxu0
  %v2072 = vpop.f32.mrb[0].mxu0
  %v2073 = vadd.f32 %v1785, %v2072
  %v2074 = vpop.f32.mrb[0].mxu0
  %2075 = vmatprep.mubr.bf16.mxu0 0
  %2076 = vmatmul.mubr.bf16.gmra.mrb[0].mxu0 %v1848
  %v2077 = vpop.f32.mrb[0].mxu0
  %v2078 = vadd.f32 %v1785, %v2077
  %v2079 = vpop.f32.mrb[0].mxu0
  %v2080 = vpop.f32.mrb[0].mxu0
  %v2081 = vadd.f32 %v1785, %v2080
  %v2082 = vpop.f32.mrb[0].mxu0
  %2083 = vmatprep.mubr.bf16.mxu0 0
  %2084 = vmatmul.mubr.bf16.gmra.mrb[0].mxu0 %v1851
  %v2085 = vpop.f32.mrb[0].mxu0
  %v2086 = vadd.f32 %v1785, %v2085
  %v2087 = vpop.f32.mrb[0].mxu0
  %v2088 = vpop.f32.mrb[0].mxu0
  %v2089 = vadd.f32 %v1785, %v2088
  %v2090 = vpop.f32.mrb[0].mxu0
  %2091 = vmatprep.mubr.bf16.mxu0 0
  %2092 = vmatmul.mubr.bf16.gmra.mrb[0].mxu0 %v1854
  %v2093 = vpop.f32.mrb[0].mxu0
  %v2094 = vadd.f32 %v1785, %v2093
  %v2095 = vpop.f32.mrb[0].mxu0
  %v2096 = vpop.f32.mrb[0].mxu0
  %v2097 = vadd.f32 %v1785, %v2096
  %v2098 = vpop.f32.mrb[0].mxu0
  %2099 = vmatprep.mubr.bf16.mxu0 0
  %2100 = vmatmul.mubr.bf16.gmra.mrb[0].mxu0 %v1857
  %v2101 = vpop.f32.mrb[0].mxu0
  %v2102 = vadd.f32 %v1785, %v2101
  %v2103 = vpop.f32.mrb[0].mxu0
  %v2104 = vpop.f32.mrb[0].mxu0
  %v2105 = vadd.f32 %v1785, %v2104
  %v2106 = vpop.f32.mrb[0].mxu0
  %2107 = vmatprep.mubr.bf16.mxu0 0
  %2108 = vmatmul.mubr.bf16.gmra.mrb[0].mxu0 %v1860
  %v2109 = vpop.f32.mrb[0].mxu0
  %v2110 = vadd.f32 %v1785, %v2109
  %v2111 = vpop.f32.mrb[0].mxu0
  %v2112 = vpop.f32.mrb[0].mxu0
  %v2113 = vadd.f32 %v1785, %v2112
  %v2114 = vpop.f32.mrb[0].mxu0
  %2115 = vmatprep.mubr.bf16.mxu0 0
  %2116 = vmatmul.mubr.bf16.gmra.mrb[0].mxu0 %v1863
  %v2117 = vpop.f32.mrb[0].mxu0
  %v2118 = vadd.f32 %v1785, %v2117
  %v2119 = vpop.f32.mrb[0].mxu0
  %v2120 = vpop.f32.mrb[0].mxu0
  %v2121 = vadd.f32 %v1785, %v2120
  %v2122 = vpop.f32.mrb[0].mxu0
  %2123 = vmatprep.mubr.bf16.mxu0 0
  %2124 = vmatmul.mubr.bf16.gmra.mrb[0].mxu0 %v1866
  %v2125 = vpop.f32.mrb[0].mxu0
  %v2126 = vadd.f32 %v1785, %v2125
  %v2127 = vpop.f32.mrb[0].mxu0
  %v2128 = vpop.f32.mrb[0].mxu0
  %v2129 = vadd.f32 %v1785, %v2128
  %v2130 = vpop.f32.mrb[0].mxu0
  %2131 = vmatprep.mubr.bf16.mxu0 0
  %2132 = vmatmul.mubr.bf16.gmra.mrb[0].mxu0 %v1869
  %v2133 = vpop.f32.mrb[0].mxu0
  %v2134 = vadd.f32 %v1785, %v2133
  %v2135 = vpop.f32.mrb[0].mxu0
  %v2136 = vpop.f32.mrb[0].mxu0
  %v2137 = vadd.f32 %v1785, %v2136
  %v2138 = vpop.f32.mrb[0].mxu0
  %2139 = vmatprep.mubr.bf16.mxu0 0
  %2140 = vmatmul.mubr.bf16.gmra.mrb[0].mxu0 %v1872
  %v2141 = vpop.f32.mrb[0].mxu0
  %v2142 = vadd.f32 %v1785, %v2141
  %v2143 = vpop.f32.mrb[0].mxu0
  %v2144 = vpop.f32.mrb[0].mxu0
  %v2145 = vadd.f32 %v1785, %v2144
  %v2146 = vpop.f32.mrb[0].mxu0
  %2147 = vmatprep.mubr.bf16.mxu0 0
  %2148 = vmatmul.mubr.bf16.gmra.mrb[0].mxu0 %v1875
  %v2149 = vpop.f32.mrb[0].mxu0
  %v2150 = vadd.f32 %v1785, %v2149
  %v2151 = vpop.f32.mrb[0].mxu0
  %v2152 = vpop.f32.mrb[0].mxu0
  %v2153 = vadd.f32 %v1785, %v2152
  %v2154 = vpop.f32.mrb[0].mxu0
  %2155 = vmatprep.mubr.bf16.mxu0 0
  %2156 = vmatmul.mubr.bf16.gmra.mrb[0].mxu0 %v1878
  %v2157 = vpop.f32.mrb[0].mxu0
  %v2158 = vadd.f32 %v1785, %v2157
  %v2159 = vpop.f32.mrb[0].mxu0
  %v2160 = vpop.f32.mrb[0].mxu0
  %v2161 = vadd.f32 %v1785, %v2160
  %v2162 = vpop.f32.mrb[0].mxu0
  %2163 = vmatprep.mubr.bf16.mxu0 0
  %2164 = vmatmul.mubr.bf16.gmra.mrb[0].mxu0 %v1881
  %v2165 = vpop.f32.mrb[0].mxu0
  %v2166 = vadd.f32 %v1785, %v2165
  %v2167 = vpop.f32.mrb[0].mxu0
  %v2168 = vpop.f32.mrb[0].mxu0
  %v2169 = vadd.f32 %v1785, %v2168
  %v2170 = vpop.f32.mrb[0].mxu0
  %2171 = vdwg.mxu0
  %2172 = vst.msk [vmem:[%s12] sm:$0xff] %vm528, %v1918
  %2173 = vst.msk [vmem:[%s12 + $0x8] sm:$0xff] %vm528, %v1921
  %2174 = vst.msk [vmem:[%s12 + $0x10] sm:$0xff] %vm528, %v1926
  %2175 = vst.msk [vmem:[%s12 + $0x18] sm:$0xff] %vm528, %v1929
  %2176 = vst.msk [vmem:[%s12 + $0x20] sm:$0xff] %vm528, %v1934
  %2177 = vst.msk [vmem:[%s12 + $0x28] sm:$0xff] %vm528, %v1937
  %2178 = vst.msk [vmem:[%s12 + $0x30] sm:$0xff] %vm528, %v1942
  %2179 = vst.msk [vmem:[%s12 + $0x38] sm:$0xff] %vm528, %v1945
  %2180 = vst.msk [vmem:[%s12 + $0x40] sm:$0xff] %vm528, %v1950
  %2181 = vst.msk [vmem:[%s12 + $0x48] sm:$0xff] %vm528, %v1953
  %2182 = vst.msk [vmem:[%s12 + $0x50] sm:$0xff] %vm528, %v1958
  %2183 = vst.msk [vmem:[%s12 + $0x58] sm:$0xff] %vm528, %v1961
  %2184 = vst.msk [vmem:[%s12 + $0x60] sm:$0xff] %vm528, %v1966
  %2185 = vst.msk [vmem:[%s12 + $0x68] sm:$0xff] %vm528, %v1969
  %2186 = vst.msk [vmem:[%s12 + $0x70] sm:$0xff] %vm528, %v1974
  %2187 = vst.msk [vmem:[%s12 + $0x78] sm:$0xff] %vm528, %v1977
  %2188 = vst.msk [vmem:[%s12 + $0x80] sm:$0xff] %vm528, %v1982
  %2189 = vst.msk [vmem:[%s12 + $0x88] sm:$0xff] %vm528, %v1985
  %2190 = vst.msk [vmem:[%s12 + $0x90] sm:$0xff] %vm528, %v1990
  %2191 = vst.msk [vmem:[%s12 + $0x98] sm:$0xff] %vm528, %v1993
  %2192 = vst.msk [vmem:[%s12 + $0xa0] sm:$0xff] %vm528, %v1998
  %2193 = vst.msk [vmem:[%s12 + $0xa8] sm:$0xff] %vm528, %v2001
  %2194 = vst.msk [vmem:[%s12 + $0xb0] sm:$0xff] %vm528, %v2006
  %2195 = vst.msk [vmem:[%s12 + $0xb8] sm:$0xff] %vm528, %v2009
  %2196 = vst.msk [vmem:[%s12 + $0xc0] sm:$0xff] %vm528, %v2014
  %2197 = vst.msk [vmem:[%s12 + $0xc8] sm:$0xff] %vm528, %v2017
  %2198 = vst.msk [vmem:[%s12 + $0xd0] sm:$0xff] %vm528, %v2022
  %2199 = vst.msk [vmem:[%s12 + $0xd8] sm:$0xff] %vm528, %v2025
  %2200 = vst.msk [vmem:[%s12 + $0xe0] sm:$0xff] %vm528, %v2030
  %2201 = vst.msk [vmem:[%s12 + $0xe8] sm:$0xff] %vm528, %v2033
  %2202 = vst.msk [vmem:[%s12 + $0xf0] sm:$0xff] %vm528, %v2038
  %2203 = vst.msk [vmem:[%s12 + $0xf8] sm:$0xff] %vm528, %v2041
  %2204 = vst.msk [vmem:[%s12 + $0x100] sm:$0xff] %vm528, %v2046
  %2205 = vst.msk [vmem:[%s12 + $0x108] sm:$0xff] %vm528, %v2049
  %2206 = vst.msk [vmem:[%s12 + $0x110] sm:$0xff] %vm528, %v2054
  %2207 = vst.msk [vmem:[%s12 + $0x118] sm:$0xff] %vm528, %v2057
  %2208 = vst.msk [vmem:[%s12 + $0x120] sm:$0xff] %vm528, %v2062
  %2209 = vst.msk [vmem:[%s12 + $0x128] sm:$0xff] %vm528, %v2065
  %2210 = vst.msk [vmem:[%s12 + $0x130] sm:$0xff] %vm528, %v2070
  %2211 = vst.msk [vmem:[%s12 + $0x138] sm:$0xff] %vm528, %v2073
  %2212 = vst.msk [vmem:[%s12 + $0x140] sm:$0xff] %vm528, %v2078
  %2213 = vst.msk [vmem:[%s12 + $0x148] sm:$0xff] %vm528, %v2081
  %2214 = vst.msk [vmem:[%s12 + $0x150] sm:$0xff] %vm528, %v2086
  %2215 = vst.msk [vmem:[%s12 + $0x158] sm:$0xff] %vm528, %v2089
  %2216 = vst.msk [vmem:[%s12 + $0x160] sm:$0xff] %vm528, %v2094
  %2217 = vst.msk [vmem:[%s12 + $0x168] sm:$0xff] %vm528, %v2097
  %2218 = vst.msk [vmem:[%s12 + $0x170] sm:$0xff] %vm528, %v2102
  %2219 = vst.msk [vmem:[%s12 + $0x178] sm:$0xff] %vm528, %v2105
  %2220 = vst.msk [vmem:[%s13] sm:$0xff] %vm528, %v2110
  %2221 = vst.msk [vmem:[%s13 + $0x8] sm:$0xff] %vm528, %v2113
  %2222 = vst.msk [vmem:[%s13 + $0x10] sm:$0xff] %vm528, %v2118
  %2223 = vst.msk [vmem:[%s13 + $0x18] sm:$0xff] %vm528, %v2121
  %2224 = vst.msk [vmem:[%s13 + $0x20] sm:$0xff] %vm528, %v2126
  %2225 = vst.msk [vmem:[%s13 + $0x28] sm:$0xff] %vm528, %v2129
  %2226 = vst.msk [vmem:[%s13 + $0x30] sm:$0xff] %vm528, %v2134
  %2227 = vst.msk [vmem:[%s13 + $0x38] sm:$0xff] %vm528, %v2137
  %2228 = vst.msk [vmem:[%s13 + $0x40] sm:$0xff] %vm528, %v2142
  %2229 = vst.msk [vmem:[%s13 + $0x48] sm:$0xff] %vm528, %v2145
  %2230 = vst.msk [vmem:[%s13 + $0x50] sm:$0xff] %vm528, %v2150
  %2231 = vst.msk [vmem:[%s13 + $0x58] sm:$0xff] %vm528, %v2153
  %2232 = vst.msk [vmem:[%s13 + $0x60] sm:$0xff] %vm528, %v2158
  %2233 = vst.msk [vmem:[%s13 + $0x68] sm:$0xff] %vm528, %v2161
  %2234 = vst.msk [vmem:[%s13 + $0x70] sm:$0xff] %vm528, %v2166
  %2235 = vst.msk [vmem:[%s13 + $0x78] sm:$0xff] %vm528, %v2169
  // Predicated region
  $region50: #{forward.4} parent=0 // pred_check
    _
  $region51: #{forward.4} parent=0 // pred_check_branch
    %2237 = sbr.rel (0) target = $region53
  $region52: #{forward.4} parent=0 // pred_region
    _
  $region53: #{forward.4} parent=0 // pred_fallthru
    _
  // Predicated region
  $region54: #{forward.4} parent=0 // pred_check
    _
  $region55: #{forward.4} parent=0 // pred_check_branch
    %2239 = sbr.rel (0) target = $region57
  $region56: #{forward.4} parent=0 // pred_region
    _
  $region57: #{forward.4} parent=0 // pred_fallthru
    _
  // Predicated region
  $region58: #{forward.4} parent=0 // pred_check
    _
  $region59: #{forward.4} parent=0 // pred_check_branch
    %2241 = sbr.rel (0) target = $region61
  $region60: #{forward.4} parent=0 // pred_region
    _
  $region61: #{forward.4} parent=0 // pred_fallthru
    _
  // Predicated region
  $region62: #{forward.4} parent=0 // pred_check
    _
  $region63: #{forward.4} parent=0 // pred_check_branch
    %2243 = sbr.rel (0) target = $region65
  $region64: #{forward.4} parent=0 // pred_region
    _
  $region65: #{forward.4} parent=0 // pred_fallthru
    _

// kernel: forward.5
$region0: #{forward.5}
  #allocation0 [shape = 'u32[]', space=smem, size = 0x4, offset = 0x4, fixed_abs, tag = 'smem constant byte address 0x4 - core index']
  #allocation1 [shape = 'u32[144,128]{1,0:T(1,128)}', space=vmem, size = 0x12000, scoped, tag = 'internal scratch']
  %s0 = inlined_call_operand.vmem [shape: f32[8,32], index: 0, kind: input, shape index: {}]
  %s1 = inlined_call_operand.vmem [shape: f32[128,32], index: 1, kind: input, shape index: {}]
  %s2 = inlined_call_operand.vmem [shape: f32[384,32], index: 2, kind: input, shape index: {}]
  %s3 = inlined_call_operand.vmem [shape: f32[32,32], index: 3, kind: input, shape index: {}]
  %s4 = inlined_call_operand.vmem [shape: f32[2,32,64], index: 4, kind: input, shape index: {}]
  %s5 = inlined_call_operand.vmem [shape: f32[2,1,64], index: 5, kind: input, shape index: {}]
  %s6 = inlined_call_operand.vmem [shape: f32[2,64,32], index: 6, kind: input, shape index: {}]
  %s7 = inlined_call_operand.vmem [shape: f32[2,1,32], index: 7, kind: input, shape index: {}]
  %s8 = inlined_call_operand.vmem [shape: f32[32,64], index: 8, kind: input, shape index: {}]
  %s9 = inlined_call_operand.vmem [shape: f32[1,64], index: 9, kind: input, shape index: {}]
  %s10 = inlined_call_operand.vmem [shape: f32[32,64], index: 10, kind: input, shape index: {}]
  %s11 = inlined_call_operand.vmem [shape: f32[1,64], index: 11, kind: input, shape index: {}]
  %s12 = inlined_call_operand.vmem [shape: f32[64,32], index: 12, kind: input, shape index: {}]
  %s13 = inlined_call_operand.vmem [shape: f32[1,32], index: 13, kind: input, shape index: {}]
  %s14 = inlined_call_operand.hbm [shape: f32[1,1], index: 14, kind: output, shape index: {}]
  %s15 = sld [smem:[#allocation0]]
  $region66: #{forward.5} parent=0
    _
  %s17 = ssub.s32 1, %s15
  %s18 = scalar_select 0, %s17, %s15
  $region1: #{forward.5} parent=0
    #allocation2 [shape = 'u8[512]{0}', space=vmem, size = 0x400, scoped, tag = 'output window, operand 0, single buffered']
    #allocation3 [shape = 's32[1]{0}', space=sflag, size = 0x4, scoped, tag = 'scoped memory for forward.5']
    %19 = vsyncpa [#allocation3], 0
    // Predicated region
    $region2: #{forward.5} parent=1 // pred_check
      _
    $region3: #{forward.5} parent=1 // pred_check_branch
      %21 = sbr.rel (0) target = $region5
    $region4: #{forward.5} parent=1 // pred_region
      _
    $region5: #{forward.5} parent=1 // pred_fallthru
      _
    // Predicated region
    $region6: #{forward.5} parent=1 // pred_check
      _
    $region7: #{forward.5} parent=1 // pred_check_branch
      %23 = sbr.rel (0) target = $region9
    $region8: #{forward.5} parent=1 // pred_region
      _
    $region9: #{forward.5} parent=1 // pred_fallthru
      _
    // Predicated region
    $region10: #{forward.5} parent=1 // pred_check
      _
    $region11: #{forward.5} parent=1 // pred_check_branch
      %25 = sbr.rel (0) target = $region13
    $region12: #{forward.5} parent=1 // pred_region
      _
    $region13: #{forward.5} parent=1 // pred_fallthru
      _
    // Predicated region
    $region14: #{forward.5} parent=1 // pred_check
      _
    $region15: #{forward.5} parent=1 // pred_check_branch
      %27 = sbr.rel (0) target = $region17
    $region16: #{forward.5} parent=1 // pred_region
      _
    $region17: #{forward.5} parent=1 // pred_fallthru
      _
    // Predicated region
    $region18: #{forward.5} parent=1 // pred_check
      _
    $region19: #{forward.5} parent=1 // pred_check_branch
      %29 = sbr.rel (0) target = $region21
    $region20: #{forward.5} parent=1 // pred_region
      _
    $region21: #{forward.5} parent=1 // pred_fallthru
      _
    // Predicated region
    $region22: #{forward.5} parent=1 // pred_check
      _
    $region23: #{forward.5} parent=1 // pred_check_branch
      %31 = sbr.rel (0) target = $region25
    $region24: #{forward.5} parent=1 // pred_region
      _
    $region25: #{forward.5} parent=1 // pred_fallthru
      _
    // Predicated region
    $region26: #{forward.5} parent=1 // pred_check
      _
    $region27: #{forward.5} parent=1 // pred_check_branch
      %33 = sbr.rel (0) target = $region29
    $region28: #{forward.5} parent=1 // pred_region
      _
    $region29: #{forward.5} parent=1 // pred_fallthru
      _
    // Predicated region
    $region30: #{forward.5} parent=1 // pred_check
      _
    $region31: #{forward.5} parent=1 // pred_check_branch
      %35 = sbr.rel (0) target = $region33
    $region32: #{forward.5} parent=1 // pred_region
      _
    $region33: #{forward.5} parent=1 // pred_fallthru
      _
    // Predicated region
    $region34: #{forward.5} parent=1 // pred_check
      _
    $region35: #{forward.5} parent=1 // pred_check_branch
      %37 = sbr.rel (0) target = $region37
    $region36: #{forward.5} parent=1 // pred_region
      _
    $region37: #{forward.5} parent=1 // pred_fallthru
      _
    // Predicated region
    $region38: #{forward.5} parent=1 // pred_check
      _
    $region39: #{forward.5} parent=1 // pred_check_branch
      %39 = sbr.rel (0) target = $region41
    $region40: #{forward.5} parent=1 // pred_region
      _
    $region41: #{forward.5} parent=1 // pred_fallthru
      _
    // Predicated region
    $region42: #{forward.5} parent=1 // pred_check
      _
    $region43: #{forward.5} parent=1 // pred_check_branch
      %41 = sbr.rel (0) target = $region45
    $region44: #{forward.5} parent=1 // pred_region
      _
    $region45: #{forward.5} parent=1 // pred_fallthru
      _
    // Predicated region
    $region46: #{forward.5} parent=1 // pred_check
      _
    $region47: #{forward.5} parent=1 // pred_check_branch
      %43 = sbr.rel (0) target = $region49
    $region48: #{forward.5} parent=1 // pred_region
      _
    $region49: #{forward.5} parent=1 // pred_fallthru
      _
    // Predicated region
    $region50: #{forward.5} parent=1 // pred_check
      _
    $region51: #{forward.5} parent=1 // pred_check_branch
      %45 = sbr.rel (0) target = $region53
    $region52: #{forward.5} parent=1 // pred_region
      _
    $region53: #{forward.5} parent=1 // pred_fallthru
      _
    // Predicated region
    $region54: #{forward.5} parent=1 // pred_check
      _
    $region55: #{forward.5} parent=1 // pred_check_branch
      %47 = sbr.rel (0) target = $region57
    $region56: #{forward.5} parent=1 // pred_region
      _
    $region57: #{forward.5} parent=1 // pred_fallthru
      _
    %v49 = vld [vmem:[%s0] sm:$0xff]
    %v50 = vpack.c.bf16 %v49, %v49
    %v51 = vld [vmem:[%s3] sm:$0xff]
    %v52 = vld [vmem:[%s3 + $0x8] sm:$0xff]
    %v53 = vld [vmem:[%s3 + $0x10] sm:$0xff]
    %v54 = vld [vmem:[%s3 + $0x18] sm:$0xff]
    %v55 = vpack.c.bf16 %v52, %v51
    %v56 = vpack.c.bf16 %v54, %v53
    %vm57 = vcmask 261120
    %v59 = vsel %vm57, %v50, 0
    %61 = vmatprep.subr.bf16.mxu0 0
    %62 = vmatpush1.bf16.msra.mxu0 %v55
    %63 = vmatprep.subr.bf16.mxu0 0
    %64 = vmatpush1.bf16.msra.mxu0 %v56
    %65 = vmatprep.subr.bf16.mxu0 0
    %66 = vmatpush1.bf16.msra.mxu0 0
    %67 = vmatprep.subr.bf16.mxu0 0
    %68 = vmatpush1.bf16.msra.mxu0 0
    %69 = vmatprep.subr.bf16.mxu0 0
    %70 = vmatpush1.bf16.msra.mxu0 0
    %71 = vmatprep.subr.bf16.mxu0 0
    %72 = vmatpush1.bf16.msra.mxu0 0
    %73 = vmatprep.subr.bf16.mxu0 0
    %74 = vmatpush1.bf16.msra.mxu0 0
    %75 = vmatprep.subr.bf16.mxu0 0
    %76 = vmatpush1.bf16.msra.mxu0 0
    %77 = vmatprep.subr.bf16.mxu0 0
    %78 = vmatpush1.bf16.msra.mxu0 0
    %79 = vmatprep.subr.bf16.mxu0 0
    %80 = vmatpush1.bf16.msra.mxu0 0
    %81 = vmatprep.subr.bf16.mxu0 0
    %82 = vmatpush1.bf16.msra.mxu0 0
    %83 = vmatprep.subr.bf16.mxu0 0
    %84 = vmatpush1.bf16.msra.mxu0 0
    %85 = vmatprep.subr.bf16.mxu0 0
    %86 = vmatpush1.bf16.msra.mxu0 0
    %87 = vmatprep.subr.bf16.mxu0 0
    %88 = vmatpush1.bf16.msra.mxu0 0
    %89 = vmatprep.subr.bf16.mxu0 0
    %90 = vmatpush1.bf16.msra.mxu0 0
    %91 = vmatprep.subr.bf16.mxu0 0
    %92 = vmatpush1.bf16.msra.mxu0 0
    %93 = vmatprep.mubr.bf16.mxu0 0
    %94 = vmatmul.mubr.bf16.gmra.mrb[0].mxu0 %v59
    %v95 = vpop.f32.mrb[0].mxu0
    %v96 = vadd.f32 0.0, %v95
    %v97 = vpop.f32.mrb[0].mxu0
    %v98 = vpop.f32.mrb[0].mxu0
    %v99 = vpop.f32.mrb[0].mxu0
    %100 = vdwg.mxu0
    %v101 = vmul.f32 %v96, %v96
    %v102 = vsel %vm57, %v101, 0.0
    %103 = vadd.xlane.f32.xlu0 %v102
    %v104 = vpop.xlane.xlu0 %103
    %v105 = vrcp.pop 32.0
    %v106 = vmul.f32 %v104, %v105
    %v107 = vadd.f32 %v106, 1e-06
    %v108 = vrsqrt.pop %v107
    %v109 = vmul.f32 %v96, %v108
    %v110 = vpack.c.bf16 %v109, %v109
    %v111 = vld [vmem:[%s4] sm:$0xff]
    %v112 = vld [vmem:[%s4 + $0x8] sm:$0xff]
    %v113 = vld [vmem:[%s4 + $0x10] sm:$0xff]
    %v114 = vld [vmem:[%s4 + $0x18] sm:$0xff]
    %v115 = vpack.c.bf16 %v112, %v111
    %v116 = vpack.c.bf16 %v114, %v113
    %v117 = vld [vmem:[%s5] sm:$0x1]
    %v119 = vlaneseq
    %v120 = vshrl.u32 %v119, 7
    %v121 = vsub.s32 0, %v120
    %v122 = vrot.slane %v117, %v121
    %v125 = vsel %vm57, %v110, 0
    %127 = vmatprep.subr.bf16.mxu0 0
    %128 = vmatpush1.bf16.msra.mxu0 %v115
    %129 = vmatprep.subr.bf16.mxu0 0
    %130 = vmatpush1.bf16.msra.mxu0 %v116
    %131 = vmatprep.subr.bf16.mxu0 0
    %132 = vmatpush1.bf16.msra.mxu0 0
    %133 = vmatprep.subr.bf16.mxu0 0
    %134 = vmatpush1.bf16.msra.mxu0 0
    %135 = vmatprep.subr.bf16.mxu0 0
    %136 = vmatpush1.bf16.msra.mxu0 0
    %137 = vmatprep.subr.bf16.mxu0 0
    %138 = vmatpush1.bf16.msra.mxu0 0
    %139 = vmatprep.subr.bf16.mxu0 0
    %140 = vmatpush1.bf16.msra.mxu0 0
    %141 = vmatprep.subr.bf16.mxu0 0
    %142 = vmatpush1.bf16.msra.mxu0 0
    %143 = vmatprep.subr.bf16.mxu0 0
    %144 = vmatpush1.bf16.msra.mxu0 0
    %145 = vmatprep.subr.bf16.mxu0 0
    %146 = vmatpush1.bf16.msra.mxu0 0
    %147 = vmatprep.subr.bf16.mxu0 0
    %148 = vmatpush1.bf16.msra.mxu0 0
    %149 = vmatprep.subr.bf16.mxu0 0
    %150 = vmatpush1.bf16.msra.mxu0 0
    %151 = vmatprep.subr.bf16.mxu0 0
    %152 = vmatpush1.bf16.msra.mxu0 0
    %153 = vmatprep.subr.bf16.mxu0 0
    %154 = vmatpush1.bf16.msra.mxu0 0
    %155 = vmatprep.subr.bf16.mxu0 0
    %156 = vmatpush1.bf16.msra.mxu0 0
    %157 = vmatprep.subr.bf16.mxu0 0
    %158 = vmatpush1.bf16.msra.mxu0 0
    %159 = vmatprep.mubr.bf16.mxu0 0
    %160 = vmatmul.mubr.bf16.gmra.mrb[0].mxu0 %v125
    %v161 = vpop.f32.mrb[0].mxu0
    %v162 = vadd.f32 %v122, %v161
    %v163 = vpop.f32.mrb[0].mxu0
    %v164 = vpop.f32.mrb[0].mxu0
    %v165 = vpop.f32.mrb[0].mxu0
    %166 = vdwg.mxu0
    %v167 = vmul.f32 %v162, %v162
    %v168 = vmul.f32 %v162, %v167
    %v169 = vmul.f32 %v168, 0.044715
    %v170 = vadd.f32 %v162, %v169
    %v171 = vmul.f32 %v170, 0.7978846
    %v172 = vtanh.pop %v171
    %v173 = vadd.f32 %v172, 1.0
    %v174 = vmul.f32 %v173, 0.5
    %v175 = vmul.f32 %v162, %v174
    %v176 = vpack.c.bf16 %v175, %v175
    %v177 = vld [vmem:[%s6] sm:$0xff]
    %v178 = vld [vmem:[%s6 + $0x8] sm:$0xff]
    %v179 = vld [vmem:[%s6 + $0x10] sm:$0xff]
    %v180 = vld [vmem:[%s6 + $0x18] sm:$0xff]
    %v181 = vld [vmem:[%s6 + $0x20] sm:$0xff]
    %v182 = vld [vmem:[%s6 + $0x28] sm:$0xff]
    %v183 = vld [vmem:[%s6 + $0x30] sm:$0xff]
    %v184 = vld [vmem:[%s6 + $0x38] sm:$0xff]
    %v185 = vpack.c.bf16 %v178, %v177
    %v186 = vpack.c.bf16 %v180, %v179
    %v187 = vpack.c.bf16 %v182, %v181
    %v188 = vpack.c.bf16 %v184, %v183
    %vm189 = vcmask 523264
    %v191 = vsel %vm189, %v176, 0
    %193 = vmatprep.subr.bf16.mxu0 0
    %194 = vmatpush1.bf16.msra.mxu0 %v185
    %195 = vmatprep.subr.bf16.mxu0 0
    %196 = vmatpush1.bf16.msra.mxu0 %v186
    %197 = vmatprep.subr.bf16.mxu0 0
    %198 = vmatpush1.bf16.msra.mxu0 %v187
    %199 = vmatprep.subr.bf16.mxu0 0
    %200 = vmatpush1.bf16.msra.mxu0 %v188
    %201 = vmatprep.subr.bf16.mxu0 0
    %202 = vmatpush1.bf16.msra.mxu0 0
    %203 = vmatprep.subr.bf16.mxu0 0
    %204 = vmatpush1.bf16.msra.mxu0 0
    %205 = vmatprep.subr.bf16.mxu0 0
    %206 = vmatpush1.bf16.msra.mxu0 0
    %207 = vmatprep.subr.bf16.mxu0 0
    %208 = vmatpush1.bf16.msra.mxu0 0
    %209 = vmatprep.subr.bf16.mxu0 0
    %210 = vmatpush1.bf16.msra.mxu0 0
    %211 = vmatprep.subr.bf16.mxu0 0
    %212 = vmatpush1.bf16.msra.mxu0 0
    %213 = vmatprep.subr.bf16.mxu0 0
    %214 = vmatpush1.bf16.msra.mxu0 0
    %215 = vmatprep.subr.bf16.mxu0 0
    %216 = vmatpush1.bf16.msra.mxu0 0
    %217 = vmatprep.subr.bf16.mxu0 0
    %218 = vmatpush1.bf16.msra.mxu0 0
    %219 = vmatprep.subr.bf16.mxu0 0
    %220 = vmatpush1.bf16.msra.mxu0 0
    %221 = vmatprep.subr.bf16.mxu0 0
    %222 = vmatpush1.bf16.msra.mxu0 0
    %223 = vmatprep.subr.bf16.mxu0 0
    %224 = vmatpush1.bf16.msra.mxu0 0
    %225 = vmatprep.mubr.bf16.mxu0 0
    %226 = vmatmul.mubr.bf16.gmra.mrb[0].mxu0 %v191
    %v227 = vpop.f32.mrb[0].mxu0
    %v228 = vadd.f32 0.0, %v227
    %v229 = vpop.f32.mrb[0].mxu0
    %v230 = vpop.f32.mrb[0].mxu0
    %v231 = vpop.f32.mrb[0].mxu0
    %232 = vdwg.mxu0
    %v233 = vadd.f32 %v96, %v228
    %v234 = vld [vmem:[%s7] sm:$0x1]
    %v236 = vlaneseq
    %v237 = vshrl.u32 %v236, 7
    %v238 = vsub.s32 0, %v237
    %v239 = vrot.slane %v234, %v238
    %v241 = vadd.f32 %v233, %v239
    %v242 = vmul.f32 %v241, %v241
    %v243 = vsel %vm57, %v242, 0.0
    %244 = vadd.xlane.f32.xlu0 %v243
    %v245 = vpop.xlane.xlu0 %244
    %v246 = vmul.f32 %v245, %v105
    %v247 = vadd.f32 %v246, 1e-06
    %v248 = vrsqrt.pop %v247
    %v249 = vmul.f32 %v241, %v248
    %v250 = vpack.c.bf16 %v249, %v249
    %s251 = scalar_lea.vmem %s4, 32
    %v252 = vld [vmem:[%s251] sm:$0xff]
    %v253 = vld [vmem:[%s251 + $0x8] sm:$0xff]
    %v254 = vld [vmem:[%s251 + $0x10] sm:$0xff]
    %v255 = vld [vmem:[%s251 + $0x18] sm:$0xff]
    %v256 = vpack.c.bf16 %v253, %v252
    %v257 = vpack.c.bf16 %v255, %v254
    %s258 = scalar_lea.vmem %s5, 1
    %v259 = vld [vmem:[%s258] sm:$0x1]
    %v261 = vlaneseq
    %v262 = vshrl.u32 %v261, 7
    %v263 = vsub.s32 0, %v262
    %v264 = vrot.slane %v259, %v263
    %v267 = vsel %vm57, %v250, 0
    %269 = vmatprep.subr.bf16.mxu0 0
    %270 = vmatpush1.bf16.msra.mxu0 %v256
    %271 = vmatprep.subr.bf16.mxu0 0
    %272 = vmatpush1.bf16.msra.mxu0 %v257
    %273 = vmatprep.subr.bf16.mxu0 0
    %274 = vmatpush1.bf16.msra.mxu0 0
    %275 = vmatprep.subr.bf16.mxu0 0
    %276 = vmatpush1.bf16.msra.mxu0 0
    %277 = vmatprep.subr.bf16.mxu0 0
    %278 = vmatpush1.bf16.msra.mxu0 0
    %279 = vmatprep.subr.bf16.mxu0 0
    %280 = vmatpush1.bf16.msra.mxu0 0
    %281 = vmatprep.subr.bf16.mxu0 0
    %282 = vmatpush1.bf16.msra.mxu0 0
    %283 = vmatprep.subr.bf16.mxu0 0
    %284 = vmatpush1.bf16.msra.mxu0 0
    %285 = vmatprep.subr.bf16.mxu0 0
    %286 = vmatpush1.bf16.msra.mxu0 0
    %287 = vmatprep.subr.bf16.mxu0 0
    %288 = vmatpush1.bf16.msra.mxu0 0
    %289 = vmatprep.subr.bf16.mxu0 0
    %290 = vmatpush1.bf16.msra.mxu0 0
    %291 = vmatprep.subr.bf16.mxu0 0
    %292 = vmatpush1.bf16.msra.mxu0 0
    %293 = vmatprep.subr.bf16.mxu0 0
    %294 = vmatpush1.bf16.msra.mxu0 0
    %295 = vmatprep.subr.bf16.mxu0 0
    %296 = vmatpush1.bf16.msra.mxu0 0
    %297 = vmatprep.subr.bf16.mxu0 0
    %298 = vmatpush1.bf16.msra.mxu0 0
    %299 = vmatprep.subr.bf16.mxu0 0
    %300 = vmatpush1.bf16.msra.mxu0 0
    %301 = vmatprep.mubr.bf16.mxu0 0
    %302 = vmatmul.mubr.bf16.gmra.mrb[0].mxu0 %v267
    %v303 = vpop.f32.mrb[0].mxu0
    %v304 = vadd.f32 %v264, %v303
    %v305 = vpop.f32.mrb[0].mxu0
    %v306 = vpop.f32.mrb[0].mxu0
    %v307 = vpop.f32.mrb[0].mxu0
    %308 = vdwg.mxu0
    %v309 = vmul.f32 %v304, %v304
    %v310 = vmul.f32 %v304, %v309
    %v311 = vmul.f32 %v310, 0.044715
    %v312 = vadd.f32 %v304, %v311
    %v313 = vmul.f32 %v312, 0.7978846
    %v314 = vtanh.pop %v313
    %v315 = vadd.f32 %v314, 1.0
    %v316 = vmul.f32 %v315, 0.5
    %v317 = vmul.f32 %v304, %v316
    %v318 = vpack.c.bf16 %v317, %v317
    %s319 = scalar_lea.vmem %s6, 64
    %v320 = vld [vmem:[%s319] sm:$0xff]
    %v321 = vld [vmem:[%s319 + $0x8] sm:$0xff]
    %v322 = vld [vmem:[%s319 + $0x10] sm:$0xff]
    %v323 = vld [vmem:[%s319 + $0x18] sm:$0xff]
    %v324 = vld [vmem:[%s319 + $0x20] sm:$0xff]
    %v325 = vld [vmem:[%s319 + $0x28] sm:$0xff]
    %v326 = vld [vmem:[%s319 + $0x30] sm:$0xff]
    %v327 = vld [vmem:[%s319 + $0x38] sm:$0xff]
    %v328 = vpack.c.bf16 %v321, %v320
    %v329 = vpack.c.bf16 %v323, %v322
    %v330 = vpack.c.bf16 %v325, %v324
    %v331 = vpack.c.bf16 %v327, %v326
    %v333 = vsel %vm189, %v318, 0
    %335 = vmatprep.subr.bf16.mxu0 0
    %336 = vmatpush1.bf16.msra.mxu0 %v328
    %337 = vmatprep.subr.bf16.mxu0 0
    %338 = vmatpush1.bf16.msra.mxu0 %v329
    %339 = vmatprep.subr.bf16.mxu0 0
    %340 = vmatpush1.bf16.msra.mxu0 %v330
    %341 = vmatprep.subr.bf16.mxu0 0
    %342 = vmatpush1.bf16.msra.mxu0 %v331
    %343 = vmatprep.subr.bf16.mxu0 0
    %344 = vmatpush1.bf16.msra.mxu0 0
    %345 = vmatprep.subr.bf16.mxu0 0
    %346 = vmatpush1.bf16.msra.mxu0 0
    %347 = vmatprep.subr.bf16.mxu0 0
    %348 = vmatpush1.bf16.msra.mxu0 0
    %349 = vmatprep.subr.bf16.mxu0 0
    %350 = vmatpush1.bf16.msra.mxu0 0
    %351 = vmatprep.subr.bf16.mxu0 0
    %352 = vmatpush1.bf16.msra.mxu0 0
    %353 = vmatprep.subr.bf16.mxu0 0
    %354 = vmatpush1.bf16.msra.mxu0 0
    %355 = vmatprep.subr.bf16.mxu0 0
    %356 = vmatpush1.bf16.msra.mxu0 0
    %357 = vmatprep.subr.bf16.mxu0 0
    %358 = vmatpush1.bf16.msra.mxu0 0
    %359 = vmatprep.subr.bf16.mxu0 0
    %360 = vmatpush1.bf16.msra.mxu0 0
    %361 = vmatprep.subr.bf16.mxu0 0
    %362 = vmatpush1.bf16.msra.mxu0 0
    %363 = vmatprep.subr.bf16.mxu0 0
    %364 = vmatpush1.bf16.msra.mxu0 0
    %365 = vmatprep.subr.bf16.mxu0 0
    %366 = vmatpush1.bf16.msra.mxu0 0
    %367 = vmatprep.mubr.bf16.mxu0 0
    %368 = vmatmul.mubr.bf16.gmra.mrb[0].mxu0 %v333
    %v369 = vpop.f32.mrb[0].mxu0
    %v370 = vadd.f32 0.0, %v369
    %v371 = vpop.f32.mrb[0].mxu0
    %v372 = vpop.f32.mrb[0].mxu0
    %v373 = vpop.f32.mrb[0].mxu0
    %374 = vdwg.mxu0
    %v375 = vadd.f32 %v241, %v370
    %s376 = scalar_lea.vmem %s7, 1
    %v377 = vld [vmem:[%s376] sm:$0x1]
    %v379 = vlaneseq
    %v380 = vshrl.u32 %v379, 7
    %v381 = vsub.s32 0, %v380
    %v382 = vrot.slane %v377, %v381
    %v384 = vadd.f32 %v375, %v382
    %v385 = vmul.f32 %v384, %v384
    %v386 = vsel %vm57, %v385, 0.0
    %387 = vadd.xlane.f32.xlu0 %v386
    %v388 = vpop.xlane.xlu0 %387
    %v389 = vmul.f32 %v388, %v105
    %v390 = vadd.f32 %v389, 1e-06
    %v391 = vrsqrt.pop %v390
    %v392 = vmul.f32 %v384, %v391
    %v393 = vpack.c.bf16 %v392, %v392
    %v394 = vld [vmem:[%s8] sm:$0xff]
    %v395 = vld [vmem:[%s8 + $0x8] sm:$0xff]
    %v396 = vld [vmem:[%s8 + $0x10] sm:$0xff]
    %v397 = vld [vmem:[%s8 + $0x18] sm:$0xff]
    %v398 = vpack.c.bf16 %v395, %v394
    %v399 = vpack.c.bf16 %v397, %v396
    %v400 = vld [vmem:[%s9] sm:$0x1]
    %v402 = vlaneseq
    %v403 = vshrl.u32 %v402, 7
    %v404 = vsub.s32 0, %v403
    %v405 = vrot.slane %v400, %v404
    %v408 = vsel %vm57, %v393, 0
    %410 = vmatprep.subr.bf16.mxu0 0
    %411 = vmatpush1.bf16.msra.mxu0 %v398
    %412 = vmatprep.subr.bf16.mxu0 0
    %413 = vmatpush1.bf16.msra.mxu0 %v399
    %414 = vmatprep.subr.bf16.mxu0 0
    %415 = vmatpush1.bf16.msra.mxu0 0
    %416 = vmatprep.subr.bf16.mxu0 0
    %417 = vmatpush1.bf16.msra.mxu0 0
    %418 = vmatprep.subr.bf16.mxu0 0
    %419 = vmatpush1.bf16.msra.mxu0 0
    %420 = vmatprep.subr.bf16.mxu0 0
    %421 = vmatpush1.bf16.msra.mxu0 0
    %422 = vmatprep.subr.bf16.mxu0 0
    %423 = vmatpush1.bf16.msra.mxu0 0
    %424 = vmatprep.subr.bf16.mxu0 0
    %425 = vmatpush1.bf16.msra.mxu0 0
    %426 = vmatprep.subr.bf16.mxu0 0
    %427 = vmatpush1.bf16.msra.mxu0 0
    %428 = vmatprep.subr.bf16.mxu0 0
    %429 = vmatpush1.bf16.msra.mxu0 0
    %430 = vmatprep.subr.bf16.mxu0 0
    %431 = vmatpush1.bf16.msra.mxu0 0
    %432 = vmatprep.subr.bf16.mxu0 0
    %433 = vmatpush1.bf16.msra.mxu0 0
    %434 = vmatprep.subr.bf16.mxu0 0
    %435 = vmatpush1.bf16.msra.mxu0 0
    %436 = vmatprep.subr.bf16.mxu0 0
    %437 = vmatpush1.bf16.msra.mxu0 0
    %438 = vmatprep.subr.bf16.mxu0 0
    %439 = vmatpush1.bf16.msra.mxu0 0
    %440 = vmatprep.subr.bf16.mxu0 0
    %441 = vmatpush1.bf16.msra.mxu0 0
    %442 = vmatprep.mubr.bf16.mxu0 0
    %443 = vmatmul.mubr.bf16.gmra.mrb[0].mxu0 %v408
    %v444 = vpop.f32.mrb[0].mxu0
    %v445 = vadd.f32 %v405, %v444
    %v446 = vpop.f32.mrb[0].mxu0
    %v447 = vpop.f32.mrb[0].mxu0
    %v448 = vpop.f32.mrb[0].mxu0
    %449 = vdwg.mxu0
    %v451 = vcombine.high %v445, %v445
    %v453 = vunpack.c.l.s4 1966171168
    %v454 = vunpack.c.0.s8 %v453
    %v455 = vlaneseq
    %v456 = vshrl.u32 %v455, 7
    %v457 = vsub.s32 %v454, %v456
    %v458 = vrot.slane %v445, %v457
    %v460 = vunpack.c.l.s4 1966171168
    %v461 = vunpack.c.0.s8 %v460
    %v462 = vlaneseq
    %v463 = vshrl.u32 %v462, 7
    %v464 = vsub.s32 %v461, %v463
    %v465 = vrot.slane %v451, %v464
    %v466 = vcombine.high %v458, %v458
    %v467 = vcombine.high %v465, %v465
    %v469 = vunpack.c.l.s4 1966171168
    %v470 = vunpack.c.0.s8 %v469
    %v471 = vlaneseq
    %v472 = vshrl.u32 %v471, 7
    %v473 = vsub.s32 %v470, %v472
    %v474 = vrot.slane %v458, %v473
    %v476 = vunpack.c.l.s4 1966171168
    %v477 = vunpack.c.0.s8 %v476
    %v478 = vlaneseq
    %v479 = vshrl.u32 %v478, 7
    %v480 = vsub.s32 %v477, %v479
    %v481 = vrot.slane %v465, %v480
    %v483 = vunpack.c.l.s4 1966171168
    %v484 = vunpack.c.0.s8 %v483
    %v485 = vlaneseq
    %v486 = vshrl.u32 %v485, 7
    %v487 = vsub.s32 %v484, %v486
    %v488 = vrot.slane %v466, %v487
    %v490 = vunpack.c.l.s4 1966171168
    %v491 = vunpack.c.0.s8 %v490
    %v492 = vlaneseq
    %v493 = vshrl.u32 %v492, 7
    %v494 = vsub.s32 %v491, %v493
    %v495 = vrot.slane %v467, %v494
    %v496 = vcombine.high %v474, %v474
    %v497 = vcombine.high %v488, %v488
    %v498 = vlaneseq
    %v499 = vshrl.u32 %v498, 7
    %v500 = vsub.s32 0, %v499
    %v501 = vrot.slane %v474, %v500
    %v502 = vlaneseq
    %v503 = vshrl.u32 %v502, 7
    %v504 = vsub.s32 0, %v503
    %v505 = vrot.slane %v488, %v504
    %v506 = vlaneseq
    %v507 = vshrl.u32 %v506, 7
    %v508 = vsub.s32 0, %v507
    %v509 = vrot.slane %v496, %v508
    %v510 = vlaneseq
    %v511 = vshrl.u32 %v510, 7
    %v512 = vsub.s32 0, %v511
    %v513 = vrot.slane %v497, %v512
    %v514 = vlaneseq
    %v515 = vshrl.u32 %v514, 7
    %v516 = vsub.s32 0, %v515
    %v517 = vrot.slane %v481, %v516
    %v518 = vlaneseq
    %v519 = vshrl.u32 %v518, 7
    %v520 = vsub.s32 0, %v519
    %v521 = vrot.slane %v495, %v520
    %v528 = vld [vmem:[%s1] sm:$0xff]
    %v529 = vld [vmem:[%s1 + $0x8] sm:$0xff]
    %v530 = vld [vmem:[%s1 + $0x10] sm:$0xff]
    %v531 = vld [vmem:[%s1 + $0x18] sm:$0xff]
    %v532 = vld [vmem:[%s1 + $0x20] sm:$0xff]
    %v533 = vld [vmem:[%s1 + $0x28] sm:$0xff]
    %v534 = vld [vmem:[%s1 + $0x30] sm:$0xff]
    %v535 = vld [vmem:[%s1 + $0x38] sm:$0xff]
    %v536 = vld [vmem:[%s1 + $0x40] sm:$0xff]
    %v537 = vld [vmem:[%s1 + $0x48] sm:$0xff]
    %v538 = vld [vmem:[%s1 + $0x50] sm:$0xff]
    %v539 = vld [vmem:[%s1 + $0x58] sm:$0xff]
    %v540 = vld [vmem:[%s1 + $0x60] sm:$0xff]
    %v541 = vld [vmem:[%s1 + $0x68] sm:$0xff]
    %v542 = vld [vmem:[%s1 + $0x70] sm:$0xff]
    %v543 = vld [vmem:[%s1 + $0x78] sm:$0xff]
    %v544 = vsel %vm57, %v528, 0.0
    %545 = vadd.xlane.f32.xlu0 %v544
    %v546 = vpop.xlane.xlu0 %545
    %v547 = vsel %vm57, %v529, 0.0
    %548 = vadd.xlane.f32.xlu0 %v547
    %v549 = vpop.xlane.xlu0 %548
    %v550 = vsel %vm57, %v530, 0.0
    %551 = vadd.xlane.f32.xlu0 %v550
    %v552 = vpop.xlane.xlu0 %551
    %v553 = vsel %vm57, %v531, 0.0
    %554 = vadd.xlane.f32.xlu0 %v553
    %v555 = vpop.xlane.xlu0 %554
    %v556 = vsel %vm57, %v532, 0.0
    %557 = vadd.xlane.f32.xlu0 %v556
    %v558 = vpop.xlane.xlu0 %557
    %v559 = vsel %vm57, %v533, 0.0
    %560 = vadd.xlane.f32.xlu0 %v559
    %v561 = vpop.xlane.xlu0 %560
    %v562 = vsel %vm57, %v534, 0.0
    %563 = vadd.xlane.f32.xlu0 %v562
    %v564 = vpop.xlane.xlu0 %563
    %v565 = vsel %vm57, %v535, 0.0
    %566 = vadd.xlane.f32.xlu0 %v565
    %v567 = vpop.xlane.xlu0 %566
    %v568 = vsel %vm57, %v536, 0.0
    %569 = vadd.xlane.f32.xlu0 %v568
    %v570 = vpop.xlane.xlu0 %569
    %v571 = vsel %vm57, %v537, 0.0
    %572 = vadd.xlane.f32.xlu0 %v571
    %v573 = vpop.xlane.xlu0 %572
    %v574 = vsel %vm57, %v538, 0.0
    %575 = vadd.xlane.f32.xlu0 %v574
    %v576 = vpop.xlane.xlu0 %575
    %v577 = vsel %vm57, %v539, 0.0
    %578 = vadd.xlane.f32.xlu0 %v577
    %v579 = vpop.xlane.xlu0 %578
    %v580 = vsel %vm57, %v540, 0.0
    %581 = vadd.xlane.f32.xlu0 %v580
    %v582 = vpop.xlane.xlu0 %581
    %v583 = vsel %vm57, %v541, 0.0
    %584 = vadd.xlane.f32.xlu0 %v583
    %v585 = vpop.xlane.xlu0 %584
    %v586 = vsel %vm57, %v542, 0.0
    %587 = vadd.xlane.f32.xlu0 %v586
    %v588 = vpop.xlane.xlu0 %587
    %v589 = vsel %vm57, %v543, 0.0
    %590 = vadd.xlane.f32.xlu0 %v589
    %v591 = vpop.xlane.xlu0 %590
    %v592 = vmul.f32 %v546, %v105
    %v593 = vmul.f32 %v549, %v105
    %v594 = vmul.f32 %v552, %v105
    %v595 = vmul.f32 %v555, %v105
    %v596 = vmul.f32 %v558, %v105
    %v597 = vmul.f32 %v561, %v105
    %v598 = vmul.f32 %v564, %v105
    %v599 = vmul.f32 %v567, %v105
    %v600 = vmul.f32 %v570, %v105
    %v601 = vmul.f32 %v573, %v105
    %v602 = vmul.f32 %v576, %v105
    %v603 = vmul.f32 %v579, %v105
    %v604 = vmul.f32 %v582, %v105
    %v605 = vmul.f32 %v585, %v105
    %v606 = vmul.f32 %v588, %v105
    %v607 = vmul.f32 %v591, %v105
    %v608 = vsub.f32 %v528, %v592
    %v609 = vsub.f32 %v529, %v593
    %v610 = vsub.f32 %v530, %v594
    %v611 = vsub.f32 %v531, %v595
    %v612 = vsub.f32 %v532, %v596
    %v613 = vsub.f32 %v533, %v597
    %v614 = vsub.f32 %v534, %v598
    %v615 = vsub.f32 %v535, %v599
    %v616 = vsub.f32 %v536, %v600
    %v617 = vsub.f32 %v537, %v601
    %v618 = vsub.f32 %v538, %v602
    %v619 = vsub.f32 %v539, %v603
    %v620 = vsub.f32 %v540, %v604
    %v621 = vsub.f32 %v541, %v605
    %v622 = vsub.f32 %v542, %v606
    %v623 = vsub.f32 %v543, %v607
    %v624 = vmul.f32 %v608, %v608
    %v625 = vmul.f32 %v609, %v609
    %v626 = vmul.f32 %v610, %v610
    %v627 = vmul.f32 %v611, %v611
    %v628 = vmul.f32 %v612, %v612
    %v629 = vmul.f32 %v613, %v613
    %v630 = vmul.f32 %v614, %v614
    %v631 = vmul.f32 %v615, %v615
    %v632 = vmul.f32 %v616, %v616
    %v633 = vmul.f32 %v617, %v617
    %v634 = vmul.f32 %v618, %v618
    %v635 = vmul.f32 %v619, %v619
    %v636 = vmul.f32 %v620, %v620
    %v637 = vmul.f32 %v621, %v621
    %v638 = vmul.f32 %v622, %v622
    %v639 = vmul.f32 %v623, %v623
    %v640 = vsel %vm57, %v624, 0.0
    %641 = vadd.xlane.f32.xlu0 %v640
    %v642 = vpop.xlane.xlu0 %641
    %v643 = vsel %vm57, %v625, 0.0
    %644 = vadd.xlane.f32.xlu0 %v643
    %v645 = vpop.xlane.xlu0 %644
    %v646 = vsel %vm57, %v626, 0.0
    %647 = vadd.xlane.f32.xlu0 %v646
    %v648 = vpop.xlane.xlu0 %647
    %v649 = vsel %vm57, %v627, 0.0
    %650 = vadd.xlane.f32.xlu0 %v649
    %v651 = vpop.xlane.xlu0 %650
    %v652 = vsel %vm57, %v628, 0.0
    %653 = vadd.xlane.f32.xlu0 %v652
    %v654 = vpop.xlane.xlu0 %653
    %v655 = vsel %vm57, %v629, 0.0
    %656 = vadd.xlane.f32.xlu0 %v655
    %v657 = vpop.xlane.xlu0 %656
    %v658 = vsel %vm57, %v630, 0.0
    %659 = vadd.xlane.f32.xlu0 %v658
    %v660 = vpop.xlane.xlu0 %659
    %v661 = vsel %vm57, %v631, 0.0
    %662 = vadd.xlane.f32.xlu0 %v661
    %v663 = vpop.xlane.xlu0 %662
    %v664 = vsel %vm57, %v632, 0.0
    %665 = vadd.xlane.f32.xlu0 %v664
    %v666 = vpop.xlane.xlu0 %665
    %v667 = vsel %vm57, %v633, 0.0
    %668 = vadd.xlane.f32.xlu0 %v667
    %v669 = vpop.xlane.xlu0 %668
    %v670 = vsel %vm57, %v634, 0.0
    %671 = vadd.xlane.f32.xlu0 %v670
    %v672 = vpop.xlane.xlu0 %671
    %v673 = vsel %vm57, %v635, 0.0
    %674 = vadd.xlane.f32.xlu0 %v673
    %v675 = vpop.xlane.xlu0 %674
    %v676 = vsel %vm57, %v636, 0.0
    %677 = vadd.xlane.f32.xlu0 %v676
    %v678 = vpop.xlane.xlu0 %677
    %v679 = vsel %vm57, %v637, 0.0
    %680 = vadd.xlane.f32.xlu0 %v679
    %v681 = vpop.xlane.xlu0 %680
    %v682 = vsel %vm57, %v638, 0.0
    %683 = vadd.xlane.f32.xlu0 %v682
    %v684 = vpop.xlane.xlu0 %683
    %v685 = vsel %vm57, %v639, 0.0
    %686 = vadd.xlane.f32.xlu0 %v685
    %v687 = vpop.xlane.xlu0 %686
    %v688 = vmul.f32 %v642, %v105
    %v689 = vmul.f32 %v645, %v105
    %v690 = vmul.f32 %v648, %v105
    %v691 = vmul.f32 %v651, %v105
    %v692 = vmul.f32 %v654, %v105
    %v693 = vmul.f32 %v657, %v105
    %v694 = vmul.f32 %v660, %v105
    %v695 = vmul.f32 %v663, %v105
    %v696 = vmul.f32 %v666, %v105
    %v697 = vmul.f32 %v669, %v105
    %v698 = vmul.f32 %v672, %v105
    %v699 = vmul.f32 %v675, %v105
    %v700 = vmul.f32 %v678, %v105
    %v701 = vmul.f32 %v681, %v105
    %v702 = vmul.f32 %v684, %v105
    %v703 = vmul.f32 %v687, %v105
    %v704 = vadd.f32 %v688, 1e-06
    %v705 = vadd.f32 %v689, 1e-06
    %v706 = vadd.f32 %v690, 1e-06
    %v707 = vadd.f32 %v691, 1e-06
    %v708 = vadd.f32 %v692, 1e-06
    %v709 = vadd.f32 %v693, 1e-06
    %v710 = vadd.f32 %v694, 1e-06
    %v711 = vadd.f32 %v695, 1e-06
    %v712 = vadd.f32 %v696, 1e-06
    %v713 = vadd.f32 %v697, 1e-06
    %v714 = vadd.f32 %v698, 1e-06
    %v715 = vadd.f32 %v699, 1e-06
    %v716 = vadd.f32 %v700, 1e-06
    %v717 = vadd.f32 %v701, 1e-06
    %v718 = vadd.f32 %v702, 1e-06
    %v719 = vadd.f32 %v703, 1e-06
    %v720 = vrsqrt.pop %v704
    %v721 = vrsqrt.pop %v705
    %v722 = vrsqrt.pop %v706
    %v723 = vrsqrt.pop %v707
    %v724 = vrsqrt.pop %v708
    %v725 = vrsqrt.pop %v709
    %v726 = vrsqrt.pop %v710
    %v727 = vrsqrt.pop %v711
    %v728 = vrsqrt.pop %v712
    %v729 = vrsqrt.pop %v713
    %v730 = vrsqrt.pop %v714
    %v731 = vrsqrt.pop %v715
    %v732 = vrsqrt.pop %v716
    %v733 = vrsqrt.pop %v717
    %v734 = vrsqrt.pop %v718
    %v735 = vrsqrt.pop %v719
    %v736 = vmul.f32 %v608, %v720
    %v737 = vmul.f32 %v609, %v721
    %v738 = vmul.f32 %v610, %v722
    %v739 = vmul.f32 %v611, %v723
    %v740 = vmul.f32 %v612, %v724
    %v741 = vmul.f32 %v613, %v725
    %v742 = vmul.f32 %v614, %v726
    %v743 = vmul.f32 %v615, %v727
    %v744 = vmul.f32 %v616, %v728
    %v745 = vmul.f32 %v617, %v729
    %v746 = vmul.f32 %v618, %v730
    %v747 = vmul.f32 %v619, %v731
    %v748 = vmul.f32 %v620, %v732
    %v749 = vmul.f32 %v621, %v733
    %v750 = vmul.f32 %v622, %v734
    %v751 = vmul.f32 %v623, %v735
    %v752 = vadd.f32 %v501, 1.0
    %v753 = vadd.f32 %v505, 1.0
    %v754 = vadd.f32 %v509, 1.0
    %v755 = vadd.f32 %v513, 1.0
    %v756 = vadd.f32 %v517, 1.0
    %v757 = vadd.f32 %v521, 1.0
    %v758 = vmul.f32 %v736, %v752
    %v759 = vmul.f32 %v737, %v752
    %v760 = vmul.f32 %v738, %v752
    %v761 = vmul.f32 %v739, %v752
    %v762 = vmul.f32 %v740, %v752
    %v763 = vmul.f32 %v741, %v752
    %v764 = vmul.f32 %v742, %v752
    %v765 = vmul.f32 %v743, %v752
    %v766 = vmul.f32 %v736, %v753
    %v767 = vmul.f32 %v737, %v753
    %v768 = vmul.f32 %v738, %v753
    %v769 = vmul.f32 %v739, %v753
    %v770 = vmul.f32 %v740, %v753
    %v771 = vmul.f32 %v741, %v753
    %v772 = vmul.f32 %v742, %v753
    %v773 = vmul.f32 %v743, %v753
    %v774 = vmul.f32 %v736, %v754
    %v775 = vmul.f32 %v737, %v754
    %v776 = vmul.f32 %v738, %v754
    %v777 = vmul.f32 %v739, %v754
    %v778 = vmul.f32 %v740, %v754
    %v779 = vmul.f32 %v741, %v754
    %v780 = vmul.f32 %v742, %v754
    %v781 = vmul.f32 %v743, %v754
    %v782 = vmul.f32 %v744, %v755
    %v783 = vmul.f32 %v745, %v755
    %v784 = vmul.f32 %v746, %v755
    %v785 = vmul.f32 %v747, %v755
    %v786 = vmul.f32 %v748, %v755
    %v787 = vmul.f32 %v749, %v755
    %v788 = vmul.f32 %v750, %v755
    %v789 = vmul.f32 %v751, %v755
    %v790 = vmul.f32 %v744, %v756
    %v791 = vmul.f32 %v745, %v756
    %v792 = vmul.f32 %v746, %v756
    %v793 = vmul.f32 %v747, %v756
    %v794 = vmul.f32 %v748, %v756
    %v795 = vmul.f32 %v749, %v756
    %v796 = vmul.f32 %v750, %v756
    %v797 = vmul.f32 %v751, %v756
    %v798 = vmul.f32 %v744, %v757
    %v799 = vmul.f32 %v745, %v757
    %v800 = vmul.f32 %v746, %v757
    %v801 = vmul.f32 %v747, %v757
    %v802 = vmul.f32 %v748, %v757
    %v803 = vmul.f32 %v749, %v757
    %v804 = vmul.f32 %v750, %v757
    %v805 = vmul.f32 %v751, %v757
    %806 = vrot.lane.b32.xlu0 %v501, 96
    %v807 = vpop.permute.xlu0 %806
    %808 = vrot.lane.b32.xlu0 %v505, 96
    %v809 = vpop.permute.xlu0 %808
    %810 = vrot.lane.b32.xlu0 %v509, 96
    %v811 = vpop.permute.xlu0 %810
    %812 = vrot.lane.b32.xlu0 %v513, 96
    %v813 = vpop.permute.xlu0 %812
    %814 = vrot.lane.b32.xlu0 %v517, 96
    %v815 = vpop.permute.xlu0 %814
    %816 = vrot.lane.b32.xlu0 %v521, 96
    %v817 = vpop.permute.xlu0 %816
    %v824 = vadd.f32 %v758, %v807
    %v825 = vadd.f32 %v759, %v807
    %v826 = vadd.f32 %v760, %v807
    %v827 = vadd.f32 %v761, %v807
    %v828 = vadd.f32 %v762, %v807
    %v829 = vadd.f32 %v763, %v807
    %v830 = vadd.f32 %v764, %v807
    %v831 = vadd.f32 %v765, %v807
    %v832 = vadd.f32 %v766, %v809
    %v833 = vadd.f32 %v767, %v809
    %v834 = vadd.f32 %v768, %v809
    %v835 = vadd.f32 %v769, %v809
    %v836 = vadd.f32 %v770, %v809
    %v837 = vadd.f32 %v771, %v809
    %v838 = vadd.f32 %v772, %v809
    %v839 = vadd.f32 %v773, %v809
    %v840 = vadd.f32 %v774, %v811
    %v841 = vadd.f32 %v775, %v811
    %v842 = vadd.f32 %v776, %v811
    %v843 = vadd.f32 %v777, %v811
    %v844 = vadd.f32 %v778, %v811
    %v845 = vadd.f32 %v779, %v811
    %v846 = vadd.f32 %v780, %v811
    %v847 = vadd.f32 %v781, %v811
    %v848 = vadd.f32 %v782, %v813
    %v849 = vadd.f32 %v783, %v813
    %v850 = vadd.f32 %v784, %v813
    %v851 = vadd.f32 %v785, %v813
    %v852 = vadd.f32 %v786, %v813
    %v853 = vadd.f32 %v787, %v813
    %v854 = vadd.f32 %v788, %v813
    %v855 = vadd.f32 %v789, %v813
    %v856 = vadd.f32 %v790, %v815
    %v857 = vadd.f32 %v791, %v815
    %v858 = vadd.f32 %v792, %v815
    %v859 = vadd.f32 %v793, %v815
    %v860 = vadd.f32 %v794, %v815
    %v861 = vadd.f32 %v795, %v815
    %v862 = vadd.f32 %v796, %v815
    %v863 = vadd.f32 %v797, %v815
    %v864 = vadd.f32 %v798, %v817
    %v865 = vadd.f32 %v799, %v817
    %v866 = vadd.f32 %v800, %v817
    %v867 = vadd.f32 %v801, %v817
    %v868 = vadd.f32 %v802, %v817
    %v869 = vadd.f32 %v803, %v817
    %v870 = vadd.f32 %v804, %v817
    %v871 = vadd.f32 %v805, %v817
    %v872 = vpack.c.bf16 %v825, %v824
    %v873 = vpack.c.bf16 %v827, %v826
    %v874 = vpack.c.bf16 %v829, %v828
    %v875 = vpack.c.bf16 %v831, %v830
    %v876 = vpack.c.bf16 %v833, %v832
    %v877 = vpack.c.bf16 %v835, %v834
    %v878 = vpack.c.bf16 %v837, %v836
    %v879 = vpack.c.bf16 %v839, %v838
    %v880 = vpack.c.bf16 %v841, %v840
    %v881 = vpack.c.bf16 %v843, %v842
    %v882 = vpack.c.bf16 %v845, %v844
    %v883 = vpack.c.bf16 %v847, %v846
    %v884 = vpack.c.bf16 %v849, %v848
    %v885 = vpack.c.bf16 %v851, %v850
    %v886 = vpack.c.bf16 %v853, %v852
    %v887 = vpack.c.bf16 %v855, %v854
    %v888 = vpack.c.bf16 %v857, %v856
    %v889 = vpack.c.bf16 %v859, %v858
    %v890 = vpack.c.bf16 %v861, %v860
    %v891 = vpack.c.bf16 %v863, %v862
    %v892 = vpack.c.bf16 %v865, %v864
    %v893 = vpack.c.bf16 %v867, %v866
    %v894 = vpack.c.bf16 %v869, %v868
    %v895 = vpack.c.bf16 %v871, %v870
    %v896 = vld [vmem:[%s10] sm:$0xff]
    %v897 = vld [vmem:[%s10 + $0x8] sm:$0xff]
    %v898 = vld [vmem:[%s10 + $0x10] sm:$0xff]
    %v899 = vld [vmem:[%s10 + $0x18] sm:$0xff]
    %v900 = vpack.c.bf16 %v897, %v896
    %v901 = vpack.c.bf16 %v899, %v898
    %v902 = vld [vmem:[%s11] sm:$0x1]
    %v904 = vlaneseq
    %v905 = vshrl.u32 %v904, 7
    %v906 = vsub.s32 0, %v905
    %v907 = vrot.slane %v902, %v906
    %v910 = vsel %vm57, %v872, 0
    %v913 = vsel %vm57, %v873, 0
    %v916 = vsel %vm57, %v874, 0
    %v919 = vsel %vm57, %v875, 0
    %v922 = vsel %vm57, %v876, 0
    %v925 = vsel %vm57, %v877, 0
    %v928 = vsel %vm57, %v878, 0
    %v931 = vsel %vm57, %v879, 0
    %v934 = vsel %vm57, %v880, 0
    %v937 = vsel %vm57, %v881, 0
    %v940 = vsel %vm57, %v882, 0
    %v943 = vsel %vm57, %v883, 0
    %v946 = vsel %vm57, %v884, 0
    %v949 = vsel %vm57, %v885, 0
    %v952 = vsel %vm57, %v886, 0
    %v955 = vsel %vm57, %v887, 0
    %v958 = vsel %vm57, %v888, 0
    %v961 = vsel %vm57, %v889, 0
    %v964 = vsel %vm57, %v890, 0
    %v967 = vsel %vm57, %v891, 0
    %v970 = vsel %vm57, %v892, 0
    %v973 = vsel %vm57, %v893, 0
    %v976 = vsel %vm57, %v894, 0
    %v979 = vsel %vm57, %v895, 0
    %981 = vmatprep.subr.bf16.mxu0 0
    %982 = vmatpush1.bf16.msra.mxu0 %v900
    %983 = vmatprep.subr.bf16.mxu0 0
    %984 = vmatpush1.bf16.msra.mxu0 %v901
    %985 = vmatprep.subr.bf16.mxu0 0
    %986 = vmatpush1.bf16.msra.mxu0 0
    %987 = vmatprep.subr.bf16.mxu0 0
    %988 = vmatpush1.bf16.msra.mxu0 0
    %989 = vmatprep.subr.bf16.mxu0 0
    %990 = vmatpush1.bf16.msra.mxu0 0
    %991 = vmatprep.subr.bf16.mxu0 0
    %992 = vmatpush1.bf16.msra.mxu0 0
    %993 = vmatprep.subr.bf16.mxu0 0
    %994 = vmatpush1.bf16.msra.mxu0 0
    %995 = vmatprep.subr.bf16.mxu0 0
    %996 = vmatpush1.bf16.msra.mxu0 0
    %997 = vmatprep.subr.bf16.mxu0 0
    %998 = vmatpush1.bf16.msra.mxu0 0
    %999 = vmatprep.subr.bf16.mxu0 0
    %1000 = vmatpush1.bf16.msra.mxu0 0
    %1001 = vmatprep.subr.bf16.mxu0 0
    %1002 = vmatpush1.bf16.msra.mxu0 0
    %1003 = vmatprep.subr.bf16.mxu0 0
    %1004 = vmatpush1.bf16.msra.mxu0 0
    %1005 = vmatprep.subr.bf16.mxu0 0
    %1006 = vmatpush1.bf16.msra.mxu0 0
    %1007 = vmatprep.subr.bf16.mxu0 0
    %1008 = vmatpush1.bf16.msra.mxu0 0
    %1009 = vmatprep.subr.bf16.mxu0 0
    %1010 = vmatpush1.bf16.msra.mxu0 0
    %1011 = vmatprep.subr.bf16.mxu0 0
    %1012 = vmatpush1.bf16.msra.mxu0 0
    %1013 = vmatprep.mubr.bf16.mxu0 0
    %1014 = vmatmul.mubr.bf16.gmra.mrb[0].mxu0 %v910
    %v1015 = vpop.f32.mrb[0].mxu0
    %v1016 = vadd.f32 %v907, %v1015
    %v1017 = vpop.f32.mrb[0].mxu0
    %v1018 = vpop.f32.mrb[0].mxu0
    %v1019 = vadd.f32 %v907, %v1018
    %v1020 = vpop.f32.mrb[0].mxu0
    %1021 = vmatprep.mubr.bf16.mxu0 0
    %1022 = vmatmul.mubr.bf16.gmra.mrb[0].mxu0 %v913
    %v1023 = vpop.f32.mrb[0].mxu0
    %v1024 = vadd.f32 %v907, %v1023
    %v1025 = vpop.f32.mrb[0].mxu0
    %v1026 = vpop.f32.mrb[0].mxu0
    %v1027 = vadd.f32 %v907, %v1026
    %v1028 = vpop.f32.mrb[0].mxu0
    %1029 = vmatprep.mubr.bf16.mxu0 0
    %1030 = vmatmul.mubr.bf16.gmra.mrb[0].mxu0 %v916
    %v1031 = vpop.f32.mrb[0].mxu0
    %v1032 = vadd.f32 %v907, %v1031
    %v1033 = vpop.f32.mrb[0].mxu0
    %v1034 = vpop.f32.mrb[0].mxu0
    %v1035 = vadd.f32 %v907, %v1034
    %v1036 = vpop.f32.mrb[0].mxu0
    %1037 = vmatprep.mubr.bf16.mxu0 0
    %1038 = vmatmul.mubr.bf16.gmra.mrb[0].mxu0 %v919
    %v1039 = vpop.f32.mrb[0].mxu0
    %v1040 = vadd.f32 %v907, %v1039
    %v1041 = vpop.f32.mrb[0].mxu0
    %v1042 = vpop.f32.mrb[0].mxu0
    %v1043 = vadd.f32 %v907, %v1042
    %v1044 = vpop.f32.mrb[0].mxu0
    %1045 = vmatprep.mubr.bf16.mxu0 0
    %1046 = vmatmul.mubr.bf16.gmra.mrb[0].mxu0 %v922
    %v1047 = vpop.f32.mrb[0].mxu0
    %v1048 = vadd.f32 %v907, %v1047
    %v1049 = vpop.f32.mrb[0].mxu0
    %v1050 = vpop.f32.mrb[0].mxu0
    %v1051 = vadd.f32 %v907, %v1050
    %v1052 = vpop.f32.mrb[0].mxu0
    %1053 = vmatprep.mubr.bf16.mxu0 0
    %1054 = vmatmul.mubr.bf16.gmra.mrb[0].mxu0 %v925
    %v1055 = vpop.f32.mrb[0].mxu0
    %v1056 = vadd.f32 %v907, %v1055
    %v1057 = vpop.f32.mrb[0].mxu0
    %v1058 = vpop.f32.mrb[0].mxu0
    %v1059 = vadd.f32 %v907, %v1058
    %v1060 = vpop.f32.mrb[0].mxu0
    %1061 = vmatprep.mubr.bf16.mxu0 0
    %1062 = vmatmul.mubr.bf16.gmra.mrb[0].mxu0 %v928
    %v1063 = vpop.f32.mrb[0].mxu0
    %v1064 = vadd.f32 %v907, %v1063
    %v1065 = vpop.f32.mrb[0].mxu0
    %v1066 = vpop.f32.mrb[0].mxu0
    %v1067 = vadd.f32 %v907, %v1066
    %v1068 = vpop.f32.mrb[0].mxu0
    %1069 = vmatprep.mubr.bf16.mxu0 0
    %1070 = vmatmul.mubr.bf16.gmra.mrb[0].mxu0 %v931
    %v1071 = vpop.f32.mrb[0].mxu0
    %v1072 = vadd.f32 %v907, %v1071
    %v1073 = vpop.f32.mrb[0].mxu0
    %v1074 = vpop.f32.mrb[0].mxu0
    %v1075 = vadd.f32 %v907, %v1074
    %v1076 = vpop.f32.mrb[0].mxu0
    %1077 = vmatprep.mubr.bf16.mxu0 0
    %1078 = vmatmul.mubr.bf16.gmra.mrb[0].mxu0 %v934
    %v1079 = vpop.f32.mrb[0].mxu0
    %v1080 = vadd.f32 %v907, %v1079
    %v1081 = vpop.f32.mrb[0].mxu0
    %v1082 = vpop.f32.mrb[0].mxu0
    %v1083 = vadd.f32 %v907, %v1082
    %v1084 = vpop.f32.mrb[0].mxu0
    %1085 = vmatprep.mubr.bf16.mxu0 0
    %1086 = vmatmul.mubr.bf16.gmra.mrb[0].mxu0 %v937
    %v1087 = vpop.f32.mrb[0].mxu0
    %v1088 = vadd.f32 %v907, %v1087
    %v1089 = vpop.f32.mrb[0].mxu0
    %v1090 = vpop.f32.mrb[0].mxu0
    %v1091 = vadd.f32 %v907, %v1090
    %v1092 = vpop.f32.mrb[0].mxu0
    %1093 = vmatprep.mubr.bf16.mxu0 0
    %1094 = vmatmul.mubr.bf16.gmra.mrb[0].mxu0 %v940
    %v1095 = vpop.f32.mrb[0].mxu0
    %v1096 = vadd.f32 %v907, %v1095
    %v1097 = vpop.f32.mrb[0].mxu0
    %v1098 = vpop.f32.mrb[0].mxu0
    %v1099 = vadd.f32 %v907, %v1098
    %v1100 = vpop.f32.mrb[0].mxu0
    %1101 = vmatprep.mubr.bf16.mxu0 0
    %1102 = vmatmul.mubr.bf16.gmra.mrb[0].mxu0 %v943
    %v1103 = vpop.f32.mrb[0].mxu0
    %v1104 = vadd.f32 %v907, %v1103
    %v1105 = vpop.f32.mrb[0].mxu0
    %v1106 = vpop.f32.mrb[0].mxu0
    %v1107 = vadd.f32 %v907, %v1106
    %v1108 = vpop.f32.mrb[0].mxu0
    %1109 = vmatprep.mubr.bf16.mxu0 0
    %1110 = vmatmul.mubr.bf16.gmra.mrb[0].mxu0 %v946
    %v1111 = vpop.f32.mrb[0].mxu0
    %v1112 = vadd.f32 %v907, %v1111
    %v1113 = vpop.f32.mrb[0].mxu0
    %v1114 = vpop.f32.mrb[0].mxu0
    %v1115 = vadd.f32 %v907, %v1114
    %v1116 = vpop.f32.mrb[0].mxu0
    %1117 = vmatprep.mubr.bf16.mxu0 0
    %1118 = vmatmul.mubr.bf16.gmra.mrb[0].mxu0 %v949
    %v1119 = vpop.f32.mrb[0].mxu0
    %v1120 = vadd.f32 %v907, %v1119
    %v1121 = vpop.f32.mrb[0].mxu0
    %v1122 = vpop.f32.mrb[0].mxu0
    %v1123 = vadd.f32 %v907, %v1122
    %v1124 = vpop.f32.mrb[0].mxu0
    %1125 = vmatprep.mubr.bf16.mxu0 0
    %1126 = vmatmul.mubr.bf16.gmra.mrb[0].mxu0 %v952
    %v1127 = vpop.f32.mrb[0].mxu0
    %v1128 = vadd.f32 %v907, %v1127
    %v1129 = vpop.f32.mrb[0].mxu0
    %v1130 = vpop.f32.mrb[0].mxu0
    %v1131 = vadd.f32 %v907, %v1130
    %v1132 = vpop.f32.mrb[0].mxu0
    %1133 = vmatprep.mubr.bf16.mxu0 0
    %1134 = vmatmul.mubr.bf16.gmra.mrb[0].mxu0 %v955
    %v1135 = vpop.f32.mrb[0].mxu0
    %v1136 = vadd.f32 %v907, %v1135
    %v1137 = vpop.f32.mrb[0].mxu0
    %v1138 = vpop.f32.mrb[0].mxu0
    %v1139 = vadd.f32 %v907, %v1138
    %v1140 = vpop.f32.mrb[0].mxu0
    %1141 = vmatprep.mubr.bf16.mxu0 0
    %1142 = vmatmul.mubr.bf16.gmra.mrb[0].mxu0 %v958
    %v1143 = vpop.f32.mrb[0].mxu0
    %v1144 = vadd.f32 %v907, %v1143
    %v1145 = vpop.f32.mrb[0].mxu0
    %v1146 = vpop.f32.mrb[0].mxu0
    %v1147 = vadd.f32 %v907, %v1146
    %v1148 = vpop.f32.mrb[0].mxu0
    %1149 = vmatprep.mubr.bf16.mxu0 0
    %1150 = vmatmul.mubr.bf16.gmra.mrb[0].mxu0 %v961
    %v1151 = vpop.f32.mrb[0].mxu0
    %v1152 = vadd.f32 %v907, %v1151
    %v1153 = vpop.f32.mrb[0].mxu0
    %v1154 = vpop.f32.mrb[0].mxu0
    %v1155 = vadd.f32 %v907, %v1154
    %v1156 = vpop.f32.mrb[0].mxu0
    %1157 = vmatprep.mubr.bf16.mxu0 0
    %1158 = vmatmul.mubr.bf16.gmra.mrb[0].mxu0 %v964
    %v1159 = vpop.f32.mrb[0].mxu0
    %v1160 = vadd.f32 %v907, %v1159
    %v1161 = vpop.f32.mrb[0].mxu0
    %v1162 = vpop.f32.mrb[0].mxu0
    %v1163 = vadd.f32 %v907, %v1162
    %v1164 = vpop.f32.mrb[0].mxu0
    %1165 = vmatprep.mubr.bf16.mxu0 0
    %1166 = vmatmul.mubr.bf16.gmra.mrb[0].mxu0 %v967
    %v1167 = vpop.f32.mrb[0].mxu0
    %v1168 = vadd.f32 %v907, %v1167
    %v1169 = vpop.f32.mrb[0].mxu0
    %v1170 = vpop.f32.mrb[0].mxu0
    %v1171 = vadd.f32 %v907, %v1170
    %v1172 = vpop.f32.mrb[0].mxu0
    %1173 = vmatprep.mubr.bf16.mxu0 0
    %1174 = vmatmul.mubr.bf16.gmra.mrb[0].mxu0 %v970
    %v1175 = vpop.f32.mrb[0].mxu0
    %v1176 = vadd.f32 %v907, %v1175
    %v1177 = vpop.f32.mrb[0].mxu0
    %v1178 = vpop.f32.mrb[0].mxu0
    %v1179 = vadd.f32 %v907, %v1178
    %v1180 = vpop.f32.mrb[0].mxu0
    %1181 = vmatprep.mubr.bf16.mxu0 0
    %1182 = vmatmul.mubr.bf16.gmra.mrb[0].mxu0 %v973
    %v1183 = vpop.f32.mrb[0].mxu0
    %v1184 = vadd.f32 %v907, %v1183
    %v1185 = vpop.f32.mrb[0].mxu0
    %v1186 = vpop.f32.mrb[0].mxu0
    %v1187 = vadd.f32 %v907, %v1186
    %v1188 = vpop.f32.mrb[0].mxu0
    %1189 = vmatprep.mubr.bf16.mxu0 0
    %1190 = vmatmul.mubr.bf16.gmra.mrb[0].mxu0 %v976
    %v1191 = vpop.f32.mrb[0].mxu0
    %v1192 = vadd.f32 %v907, %v1191
    %v1193 = vpop.f32.mrb[0].mxu0
    %v1194 = vpop.f32.mrb[0].mxu0
    %v1195 = vadd.f32 %v907, %v1194
    %v1196 = vpop.f32.mrb[0].mxu0
    %1197 = vmatprep.mubr.bf16.mxu0 0
    %1198 = vmatmul.mubr.bf16.gmra.mrb[0].mxu0 %v979
    %v1199 = vpop.f32.mrb[0].mxu0
    %v1200 = vadd.f32 %v907, %v1199
    %v1201 = vpop.f32.mrb[0].mxu0
    %v1202 = vpop.f32.mrb[0].mxu0
    %v1203 = vadd.f32 %v907, %v1202
    %v1204 = vpop.f32.mrb[0].mxu0
    %1205 = vdwg.mxu0
    %v1206 = vmul.f32 %v1016, %v1016
    %v1207 = vmul.f32 %v1019, %v1019
    %v1208 = vmul.f32 %v1024, %v1024
    %v1209 = vmul.f32 %v1027, %v1027
    %v1210 = vmul.f32 %v1032, %v1032
    %v1211 = vmul.f32 %v1035, %v1035
    %v1212 = vmul.f32 %v1040, %v1040
    %v1213 = vmul.f32 %v1043, %v1043
    %v1214 = vmul.f32 %v1048, %v1048
    %v1215 = vmul.f32 %v1051, %v1051
    %v1216 = vmul.f32 %v1056, %v1056
    %v1217 = vmul.f32 %v1059, %v1059
    %v1218 = vmul.f32 %v1064, %v1064
    %v1219 = vmul.f32 %v1067, %v1067
    %v1220 = vmul.f32 %v1072, %v1072
    %v1221 = vmul.f32 %v1075, %v1075
    %v1222 = vmul.f32 %v1080, %v1080
    %v1223 = vmul.f32 %v1083, %v1083
    %v1224 = vmul.f32 %v1088, %v1088
    %v1225 = vmul.f32 %v1091, %v1091
    %v1226 = vmul.f32 %v1096, %v1096
    %v1227 = vmul.f32 %v1099, %v1099
    %v1228 = vmul.f32 %v1104, %v1104
    %v1229 = vmul.f32 %v1107, %v1107
    %v1230 = vmul.f32 %v1112, %v1112
    %v1231 = vmul.f32 %v1115, %v1115
    %v1232 = vmul.f32 %v1120, %v1120
    %v1233 = vmul.f32 %v1123, %v1123
    %v1234 = vmul.f32 %v1128, %v1128
    %v1235 = vmul.f32 %v1131, %v1131
    %v1236 = vmul.f32 %v1136, %v1136
    %v1237 = vmul.f32 %v1139, %v1139
    %v1238 = vmul.f32 %v1144, %v1144
    %v1239 = vmul.f32 %v1147, %v1147
    %v1240 = vmul.f32 %v1152, %v1152
    %v1241 = vmul.f32 %v1155, %v1155
    %v1242 = vmul.f32 %v1160, %v1160
    %v1243 = vmul.f32 %v1163, %v1163
    %v1244 = vmul.f32 %v1168, %v1168
    %v1245 = vmul.f32 %v1171, %v1171
    %v1246 = vmul.f32 %v1176, %v1176
    %v1247 = vmul.f32 %v1179, %v1179
    %v1248 = vmul.f32 %v1184, %v1184
    %v1249 = vmul.f32 %v1187, %v1187
    %v1250 = vmul.f32 %v1192, %v1192
    %v1251 = vmul.f32 %v1195, %v1195
    %v1252 = vmul.f32 %v1200, %v1200
    %v1253 = vmul.f32 %v1203, %v1203
    %v1254 = vmul.f32 %v1016, %v1206
    %v1255 = vmul.f32 %v1019, %v1207
    %v1256 = vmul.f32 %v1024, %v1208
    %v1257 = vmul.f32 %v1027, %v1209
    %v1258 = vmul.f32 %v1032, %v1210
    %v1259 = vmul.f32 %v1035, %v1211
    %v1260 = vmul.f32 %v1040, %v1212
    %v1261 = vmul.f32 %v1043, %v1213
    %v1262 = vmul.f32 %v1048, %v1214
    %v1263 = vmul.f32 %v1051, %v1215
    %v1264 = vmul.f32 %v1056, %v1216
    %v1265 = vmul.f32 %v1059, %v1217
    %v1266 = vmul.f32 %v1064, %v1218
    %v1267 = vmul.f32 %v1067, %v1219
    %v1268 = vmul.f32 %v1072, %v1220
    %v1269 = vmul.f32 %v1075, %v1221
    %v1270 = vmul.f32 %v1080, %v1222
    %v1271 = vmul.f32 %v1083, %v1223
    %v1272 = vmul.f32 %v1088, %v1224
    %v1273 = vmul.f32 %v1091, %v1225
    %v1274 = vmul.f32 %v1096, %v1226
    %v1275 = vmul.f32 %v1099, %v1227
    %v1276 = vmul.f32 %v1104, %v1228
    %v1277 = vmul.f32 %v1107, %v1229
    %v1278 = vmul.f32 %v1112, %v1230
    %v1279 = vmul.f32 %v1115, %v1231
    %v1280 = vmul.f32 %v1120, %v1232
    %v1281 = vmul.f32 %v1123, %v1233
    %v1282 = vmul.f32 %v1128, %v1234
    %v1283 = vmul.f32 %v1131, %v1235
    %v1284 = vmul.f32 %v1136, %v1236
    %v1285 = vmul.f32 %v1139, %v1237
    %v1286 = vmul.f32 %v1144, %v1238
    %v1287 = vmul.f32 %v1147, %v1239
    %v1288 = vmul.f32 %v1152, %v1240
    %v1289 = vmul.f32 %v1155, %v1241
    %v1290 = vmul.f32 %v1160, %v1242
    %v1291 = vmul.f32 %v1163, %v1243
    %v1292 = vmul.f32 %v1168, %v1244
    %v1293 = vmul.f32 %v1171, %v1245
    %v1294 = vmul.f32 %v1176, %v1246
    %v1295 = vmul.f32 %v1179, %v1247
    %v1296 = vmul.f32 %v1184, %v1248
    %v1297 = vmul.f32 %v1187, %v1249
    %v1298 = vmul.f32 %v1192, %v1250
    %v1299 = vmul.f32 %v1195, %v1251
    %v1300 = vmul.f32 %v1200, %v1252
    %v1301 = vmul.f32 %v1203, %v1253
    %v1302 = vmul.f32 %v1254, 0.044715
    %v1303 = vmul.f32 %v1255, 0.044715
    %v1304 = vmul.f32 %v1256, 0.044715
    %v1305 = vmul.f32 %v1257, 0.044715
    %v1306 = vmul.f32 %v1258, 0.044715
    %v1307 = vmul.f32 %v1259, 0.044715
    %v1308 = vmul.f32 %v1260, 0.044715
    %v1309 = vmul.f32 %v1261, 0.044715
    %v1310 = vmul.f32 %v1262, 0.044715
    %v1311 = vmul.f32 %v1263, 0.044715
    %v1312 = vmul.f32 %v1264, 0.044715
    %v1313 = vmul.f32 %v1265, 0.044715
    %v1314 = vmul.f32 %v1266, 0.044715
    %v1315 = vmul.f32 %v1267, 0.044715
    %v1316 = vmul.f32 %v1268, 0.044715
    %v1317 = vmul.f32 %v1269, 0.044715
    %v1318 = vmul.f32 %v1270, 0.044715
    %v1319 = vmul.f32 %v1271, 0.044715
    %v1320 = vmul.f32 %v1272, 0.044715
    %v1321 = vmul.f32 %v1273, 0.044715
    %v1322 = vmul.f32 %v1274, 0.044715
    %v1323 = vmul.f32 %v1275, 0.044715
    %v1324 = vmul.f32 %v1276, 0.044715
    %v1325 = vmul.f32 %v1277, 0.044715
    %v1326 = vmul.f32 %v1278, 0.044715
    %v1327 = vmul.f32 %v1279, 0.044715
    %v1328 = vmul.f32 %v1280, 0.044715
    %v1329 = vmul.f32 %v1281, 0.044715
    %v1330 = vmul.f32 %v1282, 0.044715
    %v1331 = vmul.f32 %v1283, 0.044715
    %v1332 = vmul.f32 %v1284, 0.044715
    %v1333 = vmul.f32 %v1285, 0.044715
    %v1334 = vmul.f32 %v1286, 0.044715
    %v1335 = vmul.f32 %v1287, 0.044715
    %v1336 = vmul.f32 %v1288, 0.044715
    %v1337 = vmul.f32 %v1289, 0.044715
    %v1338 = vmul.f32 %v1290, 0.044715
    %v1339 = vmul.f32 %v1291, 0.044715
    %v1340 = vmul.f32 %v1292, 0.044715
    %v1341 = vmul.f32 %v1293, 0.044715
    %v1342 = vmul.f32 %v1294, 0.044715
    %v1343 = vmul.f32 %v1295, 0.044715
    %v1344 = vmul.f32 %v1296, 0.044715
    %v1345 = vmul.f32 %v1297, 0.044715
    %v1346 = vmul.f32 %v1298, 0.044715
    %v1347 = vmul.f32 %v1299, 0.044715
    %v1348 = vmul.f32 %v1300, 0.044715
    %v1349 = vmul.f32 %v1301, 0.044715
    %v1350 = vadd.f32 %v1016, %v1302
    %v1351 = vadd.f32 %v1019, %v1303
    %v1352 = vadd.f32 %v1024, %v1304
    %v1353 = vadd.f32 %v1027, %v1305
    %v1354 = vadd.f32 %v1032, %v1306
    %v1355 = vadd.f32 %v1035, %v1307
    %v1356 = vadd.f32 %v1040, %v1308
    %v1357 = vadd.f32 %v1043, %v1309
    %v1358 = vadd.f32 %v1048, %v1310
    %v1359 = vadd.f32 %v1051, %v1311
    %v1360 = vadd.f32 %v1056, %v1312
    %v1361 = vadd.f32 %v1059, %v1313
    %v1362 = vadd.f32 %v1064, %v1314
    %v1363 = vadd.f32 %v1067, %v1315
    %v1364 = vadd.f32 %v1072, %v1316
    %v1365 = vadd.f32 %v1075, %v1317
    %v1366 = vadd.f32 %v1080, %v1318
    %v1367 = vadd.f32 %v1083, %v1319
    %v1368 = vadd.f32 %v1088, %v1320
    %v1369 = vadd.f32 %v1091, %v1321
    %v1370 = vadd.f32 %v1096, %v1322
    %v1371 = vadd.f32 %v1099, %v1323
    %v1372 = vadd.f32 %v1104, %v1324
    %v1373 = vadd.f32 %v1107, %v1325
    %v1374 = vadd.f32 %v1112, %v1326
    %v1375 = vadd.f32 %v1115, %v1327
    %v1376 = vadd.f32 %v1120, %v1328
    %v1377 = vadd.f32 %v1123, %v1329
    %v1378 = vadd.f32 %v1128, %v1330
    %v1379 = vadd.f32 %v1131, %v1331
    %v1380 = vadd.f32 %v1136, %v1332
    %v1381 = vadd.f32 %v1139, %v1333
    %v1382 = vadd.f32 %v1144, %v1334
    %v1383 = vadd.f32 %v1147, %v1335
    %v1384 = vadd.f32 %v1152, %v1336
    %v1385 = vadd.f32 %v1155, %v1337
    %v1386 = vadd.f32 %v1160, %v1338
    %v1387 = vadd.f32 %v1163, %v1339
    %v1388 = vadd.f32 %v1168, %v1340
    %v1389 = vadd.f32 %v1171, %v1341
    %v1390 = vadd.f32 %v1176, %v1342
    %v1391 = vadd.f32 %v1179, %v1343
    %v1392 = vadd.f32 %v1184, %v1344
    %v1393 = vadd.f32 %v1187, %v1345
    %v1394 = vadd.f32 %v1192, %v1346
    %v1395 = vadd.f32 %v1195, %v1347
    %v1396 = vadd.f32 %v1200, %v1348
    %v1397 = vadd.f32 %v1203, %v1349
    %v1398 = vmul.f32 %v1350, 0.7978846
    %v1399 = vmul.f32 %v1351, 0.7978846
    %v1400 = vmul.f32 %v1352, 0.7978846
    %v1401 = vmul.f32 %v1353, 0.7978846
    %v1402 = vmul.f32 %v1354, 0.7978846
    %v1403 = vmul.f32 %v1355, 0.7978846
    %v1404 = vmul.f32 %v1356, 0.7978846
    %v1405 = vmul.f32 %v1357, 0.7978846
    %v1406 = vmul.f32 %v1358, 0.7978846
    %v1407 = vmul.f32 %v1359, 0.7978846
    %v1408 = vmul.f32 %v1360, 0.7978846
    %v1409 = vmul.f32 %v1361, 0.7978846
    %v1410 = vmul.f32 %v1362, 0.7978846
    %v1411 = vmul.f32 %v1363, 0.7978846
    %v1412 = vmul.f32 %v1364, 0.7978846
    %v1413 = vmul.f32 %v1365, 0.7978846
    %v1414 = vmul.f32 %v1366, 0.7978846
    %v1415 = vmul.f32 %v1367, 0.7978846
    %v1416 = vmul.f32 %v1368, 0.7978846
    %v1417 = vmul.f32 %v1369, 0.7978846
    %v1418 = vmul.f32 %v1370, 0.7978846
    %v1419 = vmul.f32 %v1371, 0.7978846
    %v1420 = vmul.f32 %v1372, 0.7978846
    %v1421 = vmul.f32 %v1373, 0.7978846
    %v1422 = vmul.f32 %v1374, 0.7978846
    %v1423 = vmul.f32 %v1375, 0.7978846
    %v1424 = vmul.f32 %v1376, 0.7978846
    %v1425 = vmul.f32 %v1377, 0.7978846
    %v1426 = vmul.f32 %v1378, 0.7978846
    %v1427 = vmul.f32 %v1379, 0.7978846
    %v1428 = vmul.f32 %v1380, 0.7978846
    %v1429 = vmul.f32 %v1381, 0.7978846
    %v1430 = vmul.f32 %v1382, 0.7978846
    %v1431 = vmul.f32 %v1383, 0.7978846
    %v1432 = vmul.f32 %v1384, 0.7978846
    %v1433 = vmul.f32 %v1385, 0.7978846
    %v1434 = vmul.f32 %v1386, 0.7978846
    %v1435 = vmul.f32 %v1387, 0.7978846
    %v1436 = vmul.f32 %v1388, 0.7978846
    %v1437 = vmul.f32 %v1389, 0.7978846
    %v1438 = vmul.f32 %v1390, 0.7978846
    %v1439 = vmul.f32 %v1391, 0.7978846
    %v1440 = vmul.f32 %v1392, 0.7978846
    %v1441 = vmul.f32 %v1393, 0.7978846
    %v1442 = vmul.f32 %v1394, 0.7978846
    %v1443 = vmul.f32 %v1395, 0.7978846
    %v1444 = vmul.f32 %v1396, 0.7978846
    %v1445 = vmul.f32 %v1397, 0.7978846
    %v1446 = vtanh.pop %v1398
    %v1447 = vtanh.pop %v1399
    %v1448 = vtanh.pop %v1400
    %v1449 = vtanh.pop %v1401
    %v1450 = vtanh.pop %v1402
    %v1451 = vtanh.pop %v1403
    %v1452 = vtanh.pop %v1404
    %v1453 = vtanh.pop %v1405
    %v1454 = vtanh.pop %v1406
    %v1455 = vtanh.pop %v1407
    %v1456 = vtanh.pop %v1408
    %v1457 = vtanh.pop %v1409
    %v1458 = vtanh.pop %v1410
    %v1459 = vtanh.pop %v1411
    %v1460 = vtanh.pop %v1412
    %v1461 = vtanh.pop %v1413
    %v1462 = vtanh.pop %v1414
    %v1463 = vtanh.pop %v1415
    %v1464 = vtanh.pop %v1416
    %v1465 = vtanh.pop %v1417
    %v1466 = vtanh.pop %v1418
    %v1467 = vtanh.pop %v1419
    %v1468 = vtanh.pop %v1420
    %v1469 = vtanh.pop %v1421
    %v1470 = vtanh.pop %v1422
    %v1471 = vtanh.pop %v1423
    %v1472 = vtanh.pop %v1424
    %v1473 = vtanh.pop %v1425
    %v1474 = vtanh.pop %v1426
    %v1475 = vtanh.pop %v1427
    %v1476 = vtanh.pop %v1428
    %v1477 = vtanh.pop %v1429
    %v1478 = vtanh.pop %v1430
    %v1479 = vtanh.pop %v1431
    %v1480 = vtanh.pop %v1432
    %v1481 = vtanh.pop %v1433
    %v1482 = vtanh.pop %v1434
    %v1483 = vtanh.pop %v1435
    %v1484 = vtanh.pop %v1436
    %v1485 = vtanh.pop %v1437
    %v1486 = vtanh.pop %v1438
    %v1487 = vtanh.pop %v1439
    %v1488 = vtanh.pop %v1440
    %v1489 = vtanh.pop %v1441
    %v1490 = vtanh.pop %v1442
    %v1491 = vtanh.pop %v1443
    %v1492 = vtanh.pop %v1444
    %v1493 = vtanh.pop %v1445
    %v1494 = vadd.f32 %v1446, 1.0
    %v1495 = vadd.f32 %v1447, 1.0
    %v1496 = vadd.f32 %v1448, 1.0
    %v1497 = vadd.f32 %v1449, 1.0
    %v1498 = vadd.f32 %v1450, 1.0
    %v1499 = vadd.f32 %v1451, 1.0
    %v1500 = vadd.f32 %v1452, 1.0
    %v1501 = vadd.f32 %v1453, 1.0
    %v1502 = vadd.f32 %v1454, 1.0
    %v1503 = vadd.f32 %v1455, 1.0
    %v1504 = vadd.f32 %v1456, 1.0
    %v1505 = vadd.f32 %v1457, 1.0
    %v1506 = vadd.f32 %v1458, 1.0
    %v1507 = vadd.f32 %v1459, 1.0
    %v1508 = vadd.f32 %v1460, 1.0
    %v1509 = vadd.f32 %v1461, 1.0
    %v1510 = vadd.f32 %v1462, 1.0
    %v1511 = vadd.f32 %v1463, 1.0
    %v1512 = vadd.f32 %v1464, 1.0
    %v1513 = vadd.f32 %v1465, 1.0
    %v1514 = vadd.f32 %v1466, 1.0
    %v1515 = vadd.f32 %v1467, 1.0
    %v1516 = vadd.f32 %v1468, 1.0
    %v1517 = vadd.f32 %v1469, 1.0
    %v1518 = vadd.f32 %v1470, 1.0
    %v1519 = vadd.f32 %v1471, 1.0
    %v1520 = vadd.f32 %v1472, 1.0
    %v1521 = vadd.f32 %v1473, 1.0
    %v1522 = vadd.f32 %v1474, 1.0
    %v1523 = vadd.f32 %v1475, 1.0
    %v1524 = vadd.f32 %v1476, 1.0
    %v1525 = vadd.f32 %v1477, 1.0
    %v1526 = vadd.f32 %v1478, 1.0
    %v1527 = vadd.f32 %v1479, 1.0
    %v1528 = vadd.f32 %v1480, 1.0
    %v1529 = vadd.f32 %v1481, 1.0
    %v1530 = vadd.f32 %v1482, 1.0
    %v1531 = vadd.f32 %v1483, 1.0
    %v1532 = vadd.f32 %v1484, 1.0
    %v1533 = vadd.f32 %v1485, 1.0
    %v1534 = vadd.f32 %v1486, 1.0
    %v1535 = vadd.f32 %v1487, 1.0
    %v1536 = vadd.f32 %v1488, 1.0
    %v1537 = vadd.f32 %v1489, 1.0
    %v1538 = vadd.f32 %v1490, 1.0
    %v1539 = vadd.f32 %v1491, 1.0
    %v1540 = vadd.f32 %v1492, 1.0
    %v1541 = vadd.f32 %v1493, 1.0
    %v1542 = vmul.f32 %v1494, 0.5
    %v1543 = vmul.f32 %v1495, 0.5
    %v1544 = vmul.f32 %v1496, 0.5
    %v1545 = vmul.f32 %v1497, 0.5
    %v1546 = vmul.f32 %v1498, 0.5
    %v1547 = vmul.f32 %v1499, 0.5
    %v1548 = vmul.f32 %v1500, 0.5
    %v1549 = vmul.f32 %v1501, 0.5
    %v1550 = vmul.f32 %v1502, 0.5
    %v1551 = vmul.f32 %v1503, 0.5
    %v1552 = vmul.f32 %v1504, 0.5
    %v1553 = vmul.f32 %v1505, 0.5
    %v1554 = vmul.f32 %v1506, 0.5
    %v1555 = vmul.f32 %v1507, 0.5
    %v1556 = vmul.f32 %v1508, 0.5
    %v1557 = vmul.f32 %v1509, 0.5
    %v1558 = vmul.f32 %v1510, 0.5
    %v1559 = vmul.f32 %v1511, 0.5
    %v1560 = vmul.f32 %v1512, 0.5
    %v1561 = vmul.f32 %v1513, 0.5
    %v1562 = vmul.f32 %v1514, 0.5
    %v1563 = vmul.f32 %v1515, 0.5
    %v1564 = vmul.f32 %v1516, 0.5
    %v1565 = vmul.f32 %v1517, 0.5
    %v1566 = vmul.f32 %v1518, 0.5
    %v1567 = vmul.f32 %v1519, 0.5
    %v1568 = vmul.f32 %v1520, 0.5
    %v1569 = vmul.f32 %v1521, 0.5
    %v1570 = vmul.f32 %v1522, 0.5
    %v1571 = vmul.f32 %v1523, 0.5
    %v1572 = vmul.f32 %v1524, 0.5
    %v1573 = vmul.f32 %v1525, 0.5
    %v1574 = vmul.f32 %v1526, 0.5
    %v1575 = vmul.f32 %v1527, 0.5
    %v1576 = vmul.f32 %v1528, 0.5
    %v1577 = vmul.f32 %v1529, 0.5
    %v1578 = vmul.f32 %v1530, 0.5
    %v1579 = vmul.f32 %v1531, 0.5
    %v1580 = vmul.f32 %v1532, 0.5
    %v1581 = vmul.f32 %v1533, 0.5
    %v1582 = vmul.f32 %v1534, 0.5
    %v1583 = vmul.f32 %v1535, 0.5
    %v1584 = vmul.f32 %v1536, 0.5
    %v1585 = vmul.f32 %v1537, 0.5
    %v1586 = vmul.f32 %v1538, 0.5
    %v1587 = vmul.f32 %v1539, 0.5
    %v1588 = vmul.f32 %v1540, 0.5
    %v1589 = vmul.f32 %v1541, 0.5
    %v1590 = vmul.f32 %v1016, %v1542
    %v1591 = vmul.f32 %v1019, %v1543
    %v1592 = vmul.f32 %v1024, %v1544
    %v1593 = vmul.f32 %v1027, %v1545
    %v1594 = vmul.f32 %v1032, %v1546
    %v1595 = vmul.f32 %v1035, %v1547
    %v1596 = vmul.f32 %v1040, %v1548
    %v1597 = vmul.f32 %v1043, %v1549
    %v1598 = vmul.f32 %v1048, %v1550
    %v1599 = vmul.f32 %v1051, %v1551
    %v1600 = vmul.f32 %v1056, %v1552
    %v1601 = vmul.f32 %v1059, %v1553
    %v1602 = vmul.f32 %v1064, %v1554
    %v1603 = vmul.f32 %v1067, %v1555
    %v1604 = vmul.f32 %v1072, %v1556
    %v1605 = vmul.f32 %v1075, %v1557
    %v1606 = vmul.f32 %v1080, %v1558
    %v1607 = vmul.f32 %v1083, %v1559
    %v1608 = vmul.f32 %v1088, %v1560
    %v1609 = vmul.f32 %v1091, %v1561
    %v1610 = vmul.f32 %v1096, %v1562
    %v1611 = vmul.f32 %v1099, %v1563
    %v1612 = vmul.f32 %v1104, %v1564
    %v1613 = vmul.f32 %v1107, %v1565
    %v1614 = vmul.f32 %v1112, %v1566
    %v1615 = vmul.f32 %v1115, %v1567
    %v1616 = vmul.f32 %v1120, %v1568
    %v1617 = vmul.f32 %v1123, %v1569
    %v1618 = vmul.f32 %v1128, %v1570
    %v1619 = vmul.f32 %v1131, %v1571
    %v1620 = vmul.f32 %v1136, %v1572
    %v1621 = vmul.f32 %v1139, %v1573
    %v1622 = vmul.f32 %v1144, %v1574
    %v1623 = vmul.f32 %v1147, %v1575
    %v1624 = vmul.f32 %v1152, %v1576
    %v1625 = vmul.f32 %v1155, %v1577
    %v1626 = vmul.f32 %v1160, %v1578
    %v1627 = vmul.f32 %v1163, %v1579
    %v1628 = vmul.f32 %v1168, %v1580
    %v1629 = vmul.f32 %v1171, %v1581
    %v1630 = vmul.f32 %v1176, %v1582
    %v1631 = vmul.f32 %v1179, %v1583
    %v1632 = vmul.f32 %v1184, %v1584
    %v1633 = vmul.f32 %v1187, %v1585
    %v1634 = vmul.f32 %v1192, %v1586
    %v1635 = vmul.f32 %v1195, %v1587
    %v1636 = vmul.f32 %v1200, %v1588
    %v1637 = vmul.f32 %v1203, %v1589
    %v1638 = vpack.c.bf16 %v1591, %v1590
    %v1639 = vpack.c.bf16 %v1593, %v1592
    %v1640 = vpack.c.bf16 %v1595, %v1594
    %v1641 = vpack.c.bf16 %v1597, %v1596
    %v1642 = vpack.c.bf16 %v1599, %v1598
    %v1643 = vpack.c.bf16 %v1601, %v1600
    %v1644 = vpack.c.bf16 %v1603, %v1602
    %v1645 = vpack.c.bf16 %v1605, %v1604
    %v1646 = vpack.c.bf16 %v1607, %v1606
    %v1647 = vpack.c.bf16 %v1609, %v1608
    %v1648 = vpack.c.bf16 %v1611, %v1610
    %v1649 = vpack.c.bf16 %v1613, %v1612
    %v1650 = vpack.c.bf16 %v1615, %v1614
    %v1651 = vpack.c.bf16 %v1617, %v1616
    %v1652 = vpack.c.bf16 %v1619, %v1618
    %v1653 = vpack.c.bf16 %v1621, %v1620
    %v1654 = vpack.c.bf16 %v1623, %v1622
    %v1655 = vpack.c.bf16 %v1625, %v1624
    %v1656 = vpack.c.bf16 %v1627, %v1626
    %v1657 = vpack.c.bf16 %v1629, %v1628
    %v1658 = vpack.c.bf16 %v1631, %v1630
    %v1659 = vpack.c.bf16 %v1633, %v1632
    %v1660 = vpack.c.bf16 %v1635, %v1634
    %v1661 = vpack.c.bf16 %v1637, %v1636
    %v1662 = vld [vmem:[%s12] sm:$0xff]
    %v1663 = vld [vmem:[%s12 + $0x8] sm:$0xff]
    %v1664 = vld [vmem:[%s12 + $0x10] sm:$0xff]
    %v1665 = vld [vmem:[%s12 + $0x18] sm:$0xff]
    %v1666 = vld [vmem:[%s12 + $0x20] sm:$0xff]
    %v1667 = vld [vmem:[%s12 + $0x28] sm:$0xff]
    %v1668 = vld [vmem:[%s12 + $0x30] sm:$0xff]
    %v1669 = vld [vmem:[%s12 + $0x38] sm:$0xff]
    %v1670 = vpack.c.bf16 %v1663, %v1662
    %v1671 = vpack.c.bf16 %v1665, %v1664
    %v1672 = vpack.c.bf16 %v1667, %v1666
    %v1673 = vpack.c.bf16 %v1669, %v1668
    %v1675 = vsel %vm189, %v1638, 0
    %v1678 = vsel %vm189, %v1639, 0
    %v1681 = vsel %vm189, %v1640, 0
    %v1684 = vsel %vm189, %v1641, 0
    %v1687 = vsel %vm189, %v1642, 0
    %v1690 = vsel %vm189, %v1643, 0
    %v1693 = vsel %vm189, %v1644, 0
    %v1696 = vsel %vm189, %v1645, 0
    %v1699 = vsel %vm189, %v1646, 0
    %v1702 = vsel %vm189, %v1647, 0
    %v1705 = vsel %vm189, %v1648, 0
    %v1708 = vsel %vm189, %v1649, 0
    %v1711 = vsel %vm189, %v1650, 0
    %v1714 = vsel %vm189, %v1651, 0
    %v1717 = vsel %vm189, %v1652, 0
    %v1720 = vsel %vm189, %v1653, 0
    %v1723 = vsel %vm189, %v1654, 0
    %v1726 = vsel %vm189, %v1655, 0
    %v1729 = vsel %vm189, %v1656, 0
    %v1732 = vsel %vm189, %v1657, 0
    %v1735 = vsel %vm189, %v1658, 0
    %v1738 = vsel %vm189, %v1659, 0
    %v1741 = vsel %vm189, %v1660, 0
    %v1744 = vsel %vm189, %v1661, 0
    %1746 = vmatprep.subr.bf16.mxu0 0
    %1747 = vmatpush1.bf16.msra.mxu0 %v1670
    %1748 = vmatprep.subr.bf16.mxu0 0
    %1749 = vmatpush1.bf16.msra.mxu0 %v1671
    %1750 = vmatprep.subr.bf16.mxu0 0
    %1751 = vmatpush1.bf16.msra.mxu0 %v1672
    %1752 = vmatprep.subr.bf16.mxu0 0
    %1753 = vmatpush1.bf16.msra.mxu0 %v1673
    %1754 = vmatprep.subr.bf16.mxu0 0
    %1755 = vmatpush1.bf16.msra.mxu0 0
    %1756 = vmatprep.subr.bf16.mxu0 0
    %1757 = vmatpush1.bf16.msra.mxu0 0
    %1758 = vmatprep.subr.bf16.mxu0 0
    %1759 = vmatpush1.bf16.msra.mxu0 0
    %1760 = vmatprep.subr.bf16.mxu0 0
    %1761 = vmatpush1.bf16.msra.mxu0 0
    %1762 = vmatprep.subr.bf16.mxu0 0
    %1763 = vmatpush1.bf16.msra.mxu0 0
    %1764 = vmatprep.subr.bf16.mxu0 0
    %1765 = vmatpush1.bf16.msra.mxu0 0
    %1766 = vmatprep.subr.bf16.mxu0 0
    %1767 = vmatpush1.bf16.msra.mxu0 0
    %1768 = vmatprep.subr.bf16.mxu0 0
    %1769 = vmatpush1.bf16.msra.mxu0 0
    %1770 = vmatprep.subr.bf16.mxu0 0
    %1771 = vmatpush1.bf16.msra.mxu0 0
    %1772 = vmatprep.subr.bf16.mxu0 0
    %1773 = vmatpush1.bf16.msra.mxu0 0
    %1774 = vmatprep.subr.bf16.mxu0 0
    %1775 = vmatpush1.bf16.msra.mxu0 0
    %1776 = vmatprep.subr.bf16.mxu0 0
    %1777 = vmatpush1.bf16.msra.mxu0 0
    %1778 = vmatprep.mubr.bf16.mxu0 0
    %1779 = vmatmul.mubr.bf16.gmra.mrb[0].mxu0 %v1675
    %v1780 = vpop.f32.mrb[0].mxu0
    %v1781 = vadd.f32 0.0, %v1780
    %v1782 = vpop.f32.mrb[0].mxu0
    %v1783 = vpop.f32.mrb[0].mxu0
    %v1784 = vadd.f32 0.0, %v1783
    %v1785 = vpop.f32.mrb[0].mxu0
    %1786 = vmatprep.mubr.bf16.mxu0 0
    %1787 = vmatmul.mubr.bf16.gmra.mrb[0].mxu0 %v1678
    %v1788 = vpop.f32.mrb[0].mxu0
    %v1789 = vadd.f32 0.0, %v1788
    %v1790 = vpop.f32.mrb[0].mxu0
    %v1791 = vpop.f32.mrb[0].mxu0
    %v1792 = vadd.f32 0.0, %v1791
    %v1793 = vpop.f32.mrb[0].mxu0
    %1794 = vmatprep.mubr.bf16.mxu0 0
    %1795 = vmatmul.mubr.bf16.gmra.mrb[0].mxu0 %v1681
    %v1796 = vpop.f32.mrb[0].mxu0
    %v1797 = vadd.f32 0.0, %v1796
    %v1798 = vpop.f32.mrb[0].mxu0
    %v1799 = vpop.f32.mrb[0].mxu0
    %v1800 = vadd.f32 0.0, %v1799
    %v1801 = vpop.f32.mrb[0].mxu0
    %1802 = vmatprep.mubr.bf16.mxu0 0
    %1803 = vmatmul.mubr.bf16.gmra.mrb[0].mxu0 %v1684
    %v1804 = vpop.f32.mrb[0].mxu0
    %v1805 = vadd.f32 0.0, %v1804
    %v1806 = vpop.f32.mrb[0].mxu0
    %v1807 = vpop.f32.mrb[0].mxu0
    %v1808 = vadd.f32 0.0, %v1807
    %v1809 = vpop.f32.mrb[0].mxu0
    %1810 = vmatprep.mubr.bf16.mxu0 0
    %1811 = vmatmul.mubr.bf16.gmra.mrb[0].mxu0 %v1687
    %v1812 = vpop.f32.mrb[0].mxu0
    %v1813 = vadd.f32 0.0, %v1812
    %v1814 = vpop.f32.mrb[0].mxu0
    %v1815 = vpop.f32.mrb[0].mxu0
    %v1816 = vadd.f32 0.0, %v1815
    %v1817 = vpop.f32.mrb[0].mxu0
    %1818 = vmatprep.mubr.bf16.mxu0 0
    %1819 = vmatmul.mubr.bf16.gmra.mrb[0].mxu0 %v1690
    %v1820 = vpop.f32.mrb[0].mxu0
    %v1821 = vadd.f32 0.0, %v1820
    %v1822 = vpop.f32.mrb[0].mxu0
    %v1823 = vpop.f32.mrb[0].mxu0
    %v1824 = vadd.f32 0.0, %v1823
    %v1825 = vpop.f32.mrb[0].mxu0
    %1826 = vmatprep.mubr.bf16.mxu0 0
    %1827 = vmatmul.mubr.bf16.gmra.mrb[0].mxu0 %v1693
    %v1828 = vpop.f32.mrb[0].mxu0
    %v1829 = vadd.f32 0.0, %v1828
    %v1830 = vpop.f32.mrb[0].mxu0
    %v1831 = vpop.f32.mrb[0].mxu0
    %v1832 = vadd.f32 0.0, %v1831
    %v1833 = vpop.f32.mrb[0].mxu0
    %1834 = vmatprep.mubr.bf16.mxu0 0
    %1835 = vmatmul.mubr.bf16.gmra.mrb[0].mxu0 %v1696
    %v1836 = vpop.f32.mrb[0].mxu0
    %v1837 = vadd.f32 0.0, %v1836
    %v1838 = vpop.f32.mrb[0].mxu0
    %v1839 = vpop.f32.mrb[0].mxu0
    %v1840 = vadd.f32 0.0, %v1839
    %v1841 = vpop.f32.mrb[0].mxu0
    %1842 = vmatprep.mubr.bf16.mxu0 0
    %1843 = vmatmul.mubr.bf16.gmra.mrb[0].mxu0 %v1699
    %v1844 = vpop.f32.mrb[0].mxu0
    %v1845 = vadd.f32 0.0, %v1844
    %v1846 = vpop.f32.mrb[0].mxu0
    %v1847 = vpop.f32.mrb[0].mxu0
    %v1848 = vadd.f32 0.0, %v1847
    %v1849 = vpop.f32.mrb[0].mxu0
    %1850 = vmatprep.mubr.bf16.mxu0 0
    %1851 = vmatmul.mubr.bf16.gmra.mrb[0].mxu0 %v1702
    %v1852 = vpop.f32.mrb[0].mxu0
    %v1853 = vadd.f32 0.0, %v1852
    %v1854 = vpop.f32.mrb[0].mxu0
    %v1855 = vpop.f32.mrb[0].mxu0
    %v1856 = vadd.f32 0.0, %v1855
    %v1857 = vpop.f32.mrb[0].mxu0
    %1858 = vmatprep.mubr.bf16.mxu0 0
    %1859 = vmatmul.mubr.bf16.gmra.mrb[0].mxu0 %v1705
    %v1860 = vpop.f32.mrb[0].mxu0
    %v1861 = vadd.f32 0.0, %v1860
    %v1862 = vpop.f32.mrb[0].mxu0
    %v1863 = vpop.f32.mrb[0].mxu0
    %v1864 = vadd.f32 0.0, %v1863
    %v1865 = vpop.f32.mrb[0].mxu0
    %1866 = vmatprep.mubr.bf16.mxu0 0
    %1867 = vmatmul.mubr.bf16.gmra.mrb[0].mxu0 %v1708
    %v1868 = vpop.f32.mrb[0].mxu0
    %v1869 = vadd.f32 0.0, %v1868
    %v1870 = vpop.f32.mrb[0].mxu0
    %v1871 = vpop.f32.mrb[0].mxu0
    %v1872 = vadd.f32 0.0, %v1871
    %v1873 = vpop.f32.mrb[0].mxu0
    %1874 = vmatprep.mubr.bf16.mxu0 0
    %1875 = vmatmul.mubr.bf16.gmra.mrb[0].mxu0 %v1711
    %v1876 = vpop.f32.mrb[0].mxu0
    %v1877 = vadd.f32 0.0, %v1876
    %v1878 = vpop.f32.mrb[0].mxu0
    %v1879 = vpop.f32.mrb[0].mxu0
    %v1880 = vadd.f32 0.0, %v1879
    %v1881 = vpop.f32.mrb[0].mxu0
    %1882 = vmatprep.mubr.bf16.mxu0 0
    %1883 = vmatmul.mubr.bf16.gmra.mrb[0].mxu0 %v1714
    %v1884 = vpop.f32.mrb[0].mxu0
    %v1885 = vadd.f32 0.0, %v1884
    %v1886 = vpop.f32.mrb[0].mxu0
    %v1887 = vpop.f32.mrb[0].mxu0
    %v1888 = vadd.f32 0.0, %v1887
    %v1889 = vpop.f32.mrb[0].mxu0
    %1890 = vmatprep.mubr.bf16.mxu0 0
    %1891 = vmatmul.mubr.bf16.gmra.mrb[0].mxu0 %v1717
    %v1892 = vpop.f32.mrb[0].mxu0
    %v1893 = vadd.f32 0.0, %v1892
    %v1894 = vpop.f32.mrb[0].mxu0
    %v1895 = vpop.f32.mrb[0].mxu0
    %v1896 = vadd.f32 0.0, %v1895
    %v1897 = vpop.f32.mrb[0].mxu0
    %1898 = vmatprep.mubr.bf16.mxu0 0
    %1899 = vmatmul.mubr.bf16.gmra.mrb[0].mxu0 %v1720
    %v1900 = vpop.f32.mrb[0].mxu0
    %v1901 = vadd.f32 0.0, %v1900
    %v1902 = vpop.f32.mrb[0].mxu0
    %v1903 = vpop.f32.mrb[0].mxu0
    %v1904 = vadd.f32 0.0, %v1903
    %v1905 = vpop.f32.mrb[0].mxu0
    %1906 = vmatprep.mubr.bf16.mxu0 0
    %1907 = vmatmul.mubr.bf16.gmra.mrb[0].mxu0 %v1723
    %v1908 = vpop.f32.mrb[0].mxu0
    %v1909 = vadd.f32 0.0, %v1908
    %v1910 = vpop.f32.mrb[0].mxu0
    %v1911 = vpop.f32.mrb[0].mxu0
    %v1912 = vadd.f32 0.0, %v1911
    %v1913 = vpop.f32.mrb[0].mxu0
    %1914 = vmatprep.mubr.bf16.mxu0 0
    %1915 = vmatmul.mubr.bf16.gmra.mrb[0].mxu0 %v1726
    %v1916 = vpop.f32.mrb[0].mxu0
    %v1917 = vadd.f32 0.0, %v1916
    %v1918 = vpop.f32.mrb[0].mxu0
    %v1919 = vpop.f32.mrb[0].mxu0
    %v1920 = vadd.f32 0.0, %v1919
    %v1921 = vpop.f32.mrb[0].mxu0
    %1922 = vmatprep.mubr.bf16.mxu0 0
    %1923 = vmatmul.mubr.bf16.gmra.mrb[0].mxu0 %v1729
    %v1924 = vpop.f32.mrb[0].mxu0
    %v1925 = vadd.f32 0.0, %v1924
    %v1926 = vpop.f32.mrb[0].mxu0
    %v1927 = vpop.f32.mrb[0].mxu0
    %v1928 = vadd.f32 0.0, %v1927
    %v1929 = vpop.f32.mrb[0].mxu0
    %1930 = vmatprep.mubr.bf16.mxu0 0
    %1931 = vmatmul.mubr.bf16.gmra.mrb[0].mxu0 %v1732
    %v1932 = vpop.f32.mrb[0].mxu0
    %v1933 = vadd.f32 0.0, %v1932
    %v1934 = vpop.f32.mrb[0].mxu0
    %v1935 = vpop.f32.mrb[0].mxu0
    %v1936 = vadd.f32 0.0, %v1935
    %v1937 = vpop.f32.mrb[0].mxu0
    %1938 = vmatprep.mubr.bf16.mxu0 0
    %1939 = vmatmul.mubr.bf16.gmra.mrb[0].mxu0 %v1735
    %v1940 = vpop.f32.mrb[0].mxu0
    %v1941 = vadd.f32 0.0, %v1940
    %v1942 = vpop.f32.mrb[0].mxu0
    %v1943 = vpop.f32.mrb[0].mxu0
    %v1944 = vadd.f32 0.0, %v1943
    %v1945 = vpop.f32.mrb[0].mxu0
    %1946 = vmatprep.mubr.bf16.mxu0 0
    %1947 = vmatmul.mubr.bf16.gmra.mrb[0].mxu0 %v1738
    %v1948 = vpop.f32.mrb[0].mxu0
    %v1949 = vadd.f32 0.0, %v1948
    %v1950 = vpop.f32.mrb[0].mxu0
    %v1951 = vpop.f32.mrb[0].mxu0
    %v1952 = vadd.f32 0.0, %v1951
    %v1953 = vpop.f32.mrb[0].mxu0
    %1954 = vmatprep.mubr.bf16.mxu0 0
    %1955 = vmatmul.mubr.bf16.gmra.mrb[0].mxu0 %v1741
    %v1956 = vpop.f32.mrb[0].mxu0
    %v1957 = vadd.f32 0.0, %v1956
    %v1958 = vpop.f32.mrb[0].mxu0
    %v1959 = vpop.f32.mrb[0].mxu0
    %v1960 = vadd.f32 0.0, %v1959
    %v1961 = vpop.f32.mrb[0].mxu0
    %1962 = vmatprep.mubr.bf16.mxu0 0
    %1963 = vmatmul.mubr.bf16.gmra.mrb[0].mxu0 %v1744
    %v1964 = vpop.f32.mrb[0].mxu0
    %v1965 = vadd.f32 0.0, %v1964
    %v1966 = vpop.f32.mrb[0].mxu0
    %v1967 = vpop.f32.mrb[0].mxu0
    %v1968 = vadd.f32 0.0, %v1967
    %v1969 = vpop.f32.mrb[0].mxu0
    %1970 = vdwg.mxu0
    %v1971 = vadd.f32 %v528, %v1781
    %v1972 = vadd.f32 %v529, %v1784
    %v1973 = vadd.f32 %v530, %v1789
    %v1974 = vadd.f32 %v531, %v1792
    %v1975 = vadd.f32 %v532, %v1797
    %v1976 = vadd.f32 %v533, %v1800
    %v1977 = vadd.f32 %v534, %v1805
    %v1978 = vadd.f32 %v535, %v1808
    %v1979 = vadd.f32 %v528, %v1813
    %v1980 = vadd.f32 %v529, %v1816
    %v1981 = vadd.f32 %v530, %v1821
    %v1982 = vadd.f32 %v531, %v1824
    %v1983 = vadd.f32 %v532, %v1829
    %v1984 = vadd.f32 %v533, %v1832
    %v1985 = vadd.f32 %v534, %v1837
    %v1986 = vadd.f32 %v535, %v1840
    %v1987 = vadd.f32 %v528, %v1845
    %v1988 = vadd.f32 %v529, %v1848
    %v1989 = vadd.f32 %v530, %v1853
    %v1990 = vadd.f32 %v531, %v1856
    %v1991 = vadd.f32 %v532, %v1861
    %v1992 = vadd.f32 %v533, %v1864
    %v1993 = vadd.f32 %v534, %v1869
    %v1994 = vadd.f32 %v535, %v1872
    %v1995 = vadd.f32 %v536, %v1877
    %v1996 = vadd.f32 %v537, %v1880
    %v1997 = vadd.f32 %v538, %v1885
    %v1998 = vadd.f32 %v539, %v1888
    %v1999 = vadd.f32 %v540, %v1893
    %v2000 = vadd.f32 %v541, %v1896
    %v2001 = vadd.f32 %v542, %v1901
    %v2002 = vadd.f32 %v543, %v1904
    %v2003 = vadd.f32 %v536, %v1909
    %v2004 = vadd.f32 %v537, %v1912
    %v2005 = vadd.f32 %v538, %v1917
    %v2006 = vadd.f32 %v539, %v1920
    %v2007 = vadd.f32 %v540, %v1925
    %v2008 = vadd.f32 %v541, %v1928
    %v2009 = vadd.f32 %v542, %v1933
    %v2010 = vadd.f32 %v543, %v1936
    %v2011 = vadd.f32 %v536, %v1941
    %v2012 = vadd.f32 %v537, %v1944
    %v2013 = vadd.f32 %v538, %v1949
    %v2014 = vadd.f32 %v539, %v1952
    %v2015 = vadd.f32 %v540, %v1957
    %v2016 = vadd.f32 %v541, %v1960
    %v2017 = vadd.f32 %v542, %v1965
    %v2018 = vadd.f32 %v543, %v1968
    %v2019 = vld [vmem:[%s13] sm:$0x1]
    %v2021 = vlaneseq
    %v2022 = vshrl.u32 %v2021, 7
    %v2023 = vsub.s32 0, %v2022
    %v2024 = vrot.slane %v2019, %v2023
    %v2026 = vadd.f32 %v1971, %v2024
    %v2027 = vadd.f32 %v1972, %v2024
    %v2028 = vadd.f32 %v1973, %v2024
    %v2029 = vadd.f32 %v1974, %v2024
    %v2030 = vadd.f32 %v1975, %v2024
    %v2031 = vadd.f32 %v1976, %v2024
    %v2032 = vadd.f32 %v1977, %v2024
    %v2033 = vadd.f32 %v1978, %v2024
    %v2034 = vadd.f32 %v1979, %v2024
    %v2035 = vadd.f32 %v1980, %v2024
    %v2036 = vadd.f32 %v1981, %v2024
    %v2037 = vadd.f32 %v1982, %v2024
    %v2038 = vadd.f32 %v1983, %v2024
    %v2039 = vadd.f32 %v1984, %v2024
    %v2040 = vadd.f32 %v1985, %v2024
    %v2041 = vadd.f32 %v1986, %v2024
    %v2042 = vadd.f32 %v1987, %v2024
    %v2043 = vadd.f32 %v1988, %v2024
    %v2044 = vadd.f32 %v1989, %v2024
    %v2045 = vadd.f32 %v1990, %v2024
    %v2046 = vadd.f32 %v1991, %v2024
    %v2047 = vadd.f32 %v1992, %v2024
    %v2048 = vadd.f32 %v1993, %v2024
    %v2049 = vadd.f32 %v1994, %v2024
    %v2050 = vadd.f32 %v1995, %v2024
    %v2051 = vadd.f32 %v1996, %v2024
    %v2052 = vadd.f32 %v1997, %v2024
    %v2053 = vadd.f32 %v1998, %v2024
    %v2054 = vadd.f32 %v1999, %v2024
    %v2055 = vadd.f32 %v2000, %v2024
    %v2056 = vadd.f32 %v2001, %v2024
    %v2057 = vadd.f32 %v2002, %v2024
    %v2058 = vadd.f32 %v2003, %v2024
    %v2059 = vadd.f32 %v2004, %v2024
    %v2060 = vadd.f32 %v2005, %v2024
    %v2061 = vadd.f32 %v2006, %v2024
    %v2062 = vadd.f32 %v2007, %v2024
    %v2063 = vadd.f32 %v2008, %v2024
    %v2064 = vadd.f32 %v2009, %v2024
    %v2065 = vadd.f32 %v2010, %v2024
    %v2066 = vadd.f32 %v2011, %v2024
    %v2067 = vadd.f32 %v2012, %v2024
    %v2068 = vadd.f32 %v2013, %v2024
    %v2069 = vadd.f32 %v2014, %v2024
    %v2070 = vadd.f32 %v2015, %v2024
    %v2071 = vadd.f32 %v2016, %v2024
    %v2072 = vadd.f32 %v2017, %v2024
    %v2073 = vadd.f32 %v2018, %v2024
    %v2074 = vld [vmem:[%s2] sm:$0xff]
    %v2075 = vld [vmem:[%s2 + $0x8] sm:$0xff]
    %v2076 = vld [vmem:[%s2 + $0x10] sm:$0xff]
    %v2077 = vld [vmem:[%s2 + $0x18] sm:$0xff]
    %v2078 = vld [vmem:[%s2 + $0x20] sm:$0xff]
    %v2079 = vld [vmem:[%s2 + $0x28] sm:$0xff]
    %v2080 = vld [vmem:[%s2 + $0x30] sm:$0xff]
    %v2081 = vld [vmem:[%s2 + $0x38] sm:$0xff]
    %v2082 = vld [vmem:[%s2 + $0x40] sm:$0xff]
    %v2083 = vld [vmem:[%s2 + $0x48] sm:$0xff]
    %v2084 = vld [vmem:[%s2 + $0x50] sm:$0xff]
    %v2085 = vld [vmem:[%s2 + $0x58] sm:$0xff]
    %v2086 = vld [vmem:[%s2 + $0x60] sm:$0xff]
    %v2087 = vld [vmem:[%s2 + $0x68] sm:$0xff]
    %v2088 = vld [vmem:[%s2 + $0x70] sm:$0xff]
    %v2089 = vld [vmem:[%s2 + $0x78] sm:$0xff]
    %v2090 = vld [vmem:[%s2 + $0x80] sm:$0xff]
    %v2091 = vld [vmem:[%s2 + $0x88] sm:$0xff]
    %v2092 = vld [vmem:[%s2 + $0x90] sm:$0xff]
    %v2093 = vld [vmem:[%s2 + $0x98] sm:$0xff]
    %v2094 = vld [vmem:[%s2 + $0xa0] sm:$0xff]
    %v2095 = vld [vmem:[%s2 + $0xa8] sm:$0xff]
    %v2096 = vld [vmem:[%s2 + $0xb0] sm:$0xff]
    %v2097 = vld [vmem:[%s2 + $0xb8] sm:$0xff]
    %v2098 = vld [vmem:[%s2 + $0xc0] sm:$0xff]
    %v2099 = vld [vmem:[%s2 + $0xc8] sm:$0xff]
    %v2100 = vld [vmem:[%s2 + $0xd0] sm:$0xff]
    %v2101 = vld [vmem:[%s2 + $0xd8] sm:$0xff]
    %v2102 = vld [vmem:[%s2 + $0xe0] sm:$0xff]
    %v2103 = vld [vmem:[%s2 + $0xe8] sm:$0xff]
    %v2104 = vld [vmem:[%s2 + $0xf0] sm:$0xff]
    %v2105 = vld [vmem:[%s2 + $0xf8] sm:$0xff]
    %v2106 = vld [vmem:[%s2 + $0x100] sm:$0xff]
    %v2107 = vld [vmem:[%s2 + $0x108] sm:$0xff]
    %v2108 = vld [vmem:[%s2 + $0x110] sm:$0xff]
    %v2109 = vld [vmem:[%s2 + $0x118] sm:$0xff]
    %v2110 = vld [vmem:[%s2 + $0x120] sm:$0xff]
    %v2111 = vld [vmem:[%s2 + $0x128] sm:$0xff]
    %v2112 = vld [vmem:[%s2 + $0x130] sm:$0xff]
    %v2113 = vld [vmem:[%s2 + $0x138] sm:$0xff]
    %v2114 = vld [vmem:[%s2 + $0x140] sm:$0xff]
    %v2115 = vld [vmem:[%s2 + $0x148] sm:$0xff]
    %v2116 = vld [vmem:[%s2 + $0x150] sm:$0xff]
    %v2117 = vld [vmem:[%s2 + $0x158] sm:$0xff]
    %v2118 = vld [vmem:[%s2 + $0x160] sm:$0xff]
    %v2119 = vld [vmem:[%s2 + $0x168] sm:$0xff]
    %v2120 = vld [vmem:[%s2 + $0x170] sm:$0xff]
    %v2121 = vld [vmem:[%s2 + $0x178] sm:$0xff]
    %v2122 = vmul.f32 %v2026, %v2074
    %v2123 = vmul.f32 %v2027, %v2075
    %v2124 = vmul.f32 %v2028, %v2076
    %v2125 = vmul.f32 %v2029, %v2077
    %v2126 = vmul.f32 %v2030, %v2078
    %v2127 = vmul.f32 %v2031, %v2079
    %v2128 = vmul.f32 %v2032, %v2080
    %v2129 = vmul.f32 %v2033, %v2081
    %v2130 = vmul.f32 %v2034, %v2082
    %v2131 = vmul.f32 %v2035, %v2083
    %v2132 = vmul.f32 %v2036, %v2084
    %v2133 = vmul.f32 %v2037, %v2085
    %v2134 = vmul.f32 %v2038, %v2086
    %v2135 = vmul.f32 %v2039, %v2087
    %v2136 = vmul.f32 %v2040, %v2088
    %v2137 = vmul.f32 %v2041, %v2089
    %v2138 = vmul.f32 %v2042, %v2090
    %v2139 = vmul.f32 %v2043, %v2091
    %v2140 = vmul.f32 %v2044, %v2092
    %v2141 = vmul.f32 %v2045, %v2093
    %v2142 = vmul.f32 %v2046, %v2094
    %v2143 = vmul.f32 %v2047, %v2095
    %v2144 = vmul.f32 %v2048, %v2096
    %v2145 = vmul.f32 %v2049, %v2097
    %v2146 = vmul.f32 %v2050, %v2098
    %v2147 = vmul.f32 %v2051, %v2099
    %v2148 = vmul.f32 %v2052, %v2100
    %v2149 = vmul.f32 %v2053, %v2101
    %v2150 = vmul.f32 %v2054, %v2102
    %v2151 = vmul.f32 %v2055, %v2103
    %v2152 = vmul.f32 %v2056, %v2104
    %v2153 = vmul.f32 %v2057, %v2105
    %v2154 = vmul.f32 %v2058, %v2106
    %v2155 = vmul.f32 %v2059, %v2107
    %v2156 = vmul.f32 %v2060, %v2108
    %v2157 = vmul.f32 %v2061, %v2109
    %v2158 = vmul.f32 %v2062, %v2110
    %v2159 = vmul.f32 %v2063, %v2111
    %v2160 = vmul.f32 %v2064, %v2112
    %v2161 = vmul.f32 %v2065, %v2113
    %v2162 = vmul.f32 %v2066, %v2114
    %v2163 = vmul.f32 %v2067, %v2115
    %v2164 = vmul.f32 %v2068, %v2116
    %v2165 = vmul.f32 %v2069, %v2117
    %v2166 = vmul.f32 %v2070, %v2118
    %v2167 = vmul.f32 %v2071, %v2119
    %v2168 = vmul.f32 %v2072, %v2120
    %v2169 = vmul.f32 %v2073, %v2121
    %v2170 = vsel %vm57, %v2122, 0.0
    %2171 = vadd.xlane.f32.xlu0 %v2170
    %v2172 = vpop.xlane.xlu0 %2171
    %v2173 = vsel %vm57, %v2123, 0.0
    %2174 = vadd.xlane.f32.xlu0 %v2173
    %v2175 = vpop.xlane.xlu0 %2174
    %v2176 = vsel %vm57, %v2124, 0.0
    %2177 = vadd.xlane.f32.xlu0 %v2176
    %v2178 = vpop.xlane.xlu0 %2177
    %v2179 = vsel %vm57, %v2125, 0.0
    %2180 = vadd.xlane.f32.xlu0 %v2179
    %v2181 = vpop.xlane.xlu0 %2180
    %v2182 = vsel %vm57, %v2126, 0.0
    %2183 = vadd.xlane.f32.xlu0 %v2182
    %v2184 = vpop.xlane.xlu0 %2183
    %v2185 = vsel %vm57, %v2127, 0.0
    %2186 = vadd.xlane.f32.xlu0 %v2185
    %v2187 = vpop.xlane.xlu0 %2186
    %v2188 = vsel %vm57, %v2128, 0.0
    %2189 = vadd.xlane.f32.xlu0 %v2188
    %v2190 = vpop.xlane.xlu0 %2189
    %v2191 = vsel %vm57, %v2129, 0.0
    %2192 = vadd.xlane.f32.xlu0 %v2191
    %v2193 = vpop.xlane.xlu0 %2192
    %v2194 = vsel %vm57, %v2130, 0.0
    %2195 = vadd.xlane.f32.xlu0 %v2194
    %v2196 = vpop.xlane.xlu0 %2195
    %v2197 = vsel %vm57, %v2131, 0.0
    %2198 = vadd.xlane.f32.xlu0 %v2197
    %v2199 = vpop.xlane.xlu0 %2198
    %v2200 = vsel %vm57, %v2132, 0.0
    %2201 = vadd.xlane.f32.xlu0 %v2200
    %v2202 = vpop.xlane.xlu0 %2201
    %v2203 = vsel %vm57, %v2133, 0.0
    %2204 = vadd.xlane.f32.xlu0 %v2203
    %v2205 = vpop.xlane.xlu0 %2204
    %v2206 = vsel %vm57, %v2134, 0.0
    %2207 = vadd.xlane.f32.xlu0 %v2206
    %v2208 = vpop.xlane.xlu0 %2207
    %v2209 = vsel %vm57, %v2135, 0.0
    %2210 = vadd.xlane.f32.xlu0 %v2209
    %v2211 = vpop.xlane.xlu0 %2210
    %v2212 = vsel %vm57, %v2136, 0.0
    %2213 = vadd.xlane.f32.xlu0 %v2212
    %v2214 = vpop.xlane.xlu0 %2213
    %v2215 = vsel %vm57, %v2137, 0.0
    %2216 = vadd.xlane.f32.xlu0 %v2215
    %v2217 = vpop.xlane.xlu0 %2216
    %v2218 = vsel %vm57, %v2138, 0.0
    %2219 = vadd.xlane.f32.xlu0 %v2218
    %v2220 = vpop.xlane.xlu0 %2219
    %v2221 = vsel %vm57, %v2139, 0.0
    %2222 = vadd.xlane.f32.xlu0 %v2221
    %v2223 = vpop.xlane.xlu0 %2222
    %v2224 = vsel %vm57, %v2140, 0.0
    %2225 = vadd.xlane.f32.xlu0 %v2224
    %v2226 = vpop.xlane.xlu0 %2225
    %v2227 = vsel %vm57, %v2141, 0.0
    %2228 = vadd.xlane.f32.xlu0 %v2227
    %v2229 = vpop.xlane.xlu0 %2228
    %v2230 = vsel %vm57, %v2142, 0.0
    %2231 = vadd.xlane.f32.xlu0 %v2230
    %v2232 = vpop.xlane.xlu0 %2231
    %v2233 = vsel %vm57, %v2143, 0.0
    %2234 = vadd.xlane.f32.xlu0 %v2233
    %v2235 = vpop.xlane.xlu0 %2234
    %v2236 = vsel %vm57, %v2144, 0.0
    %2237 = vadd.xlane.f32.xlu0 %v2236
    %v2238 = vpop.xlane.xlu0 %2237
    %v2239 = vsel %vm57, %v2145, 0.0
    %2240 = vadd.xlane.f32.xlu0 %v2239
    %v2241 = vpop.xlane.xlu0 %2240
    %v2242 = vsel %vm57, %v2146, 0.0
    %2243 = vadd.xlane.f32.xlu0 %v2242
    %v2244 = vpop.xlane.xlu0 %2243
    %v2245 = vsel %vm57, %v2147, 0.0
    %2246 = vadd.xlane.f32.xlu0 %v2245
    %v2247 = vpop.xlane.xlu0 %2246
    %v2248 = vsel %vm57, %v2148, 0.0
    %2249 = vadd.xlane.f32.xlu0 %v2248
    %v2250 = vpop.xlane.xlu0 %2249
    %v2251 = vsel %vm57, %v2149, 0.0
    %2252 = vadd.xlane.f32.xlu0 %v2251
    %v2253 = vpop.xlane.xlu0 %2252
    %v2254 = vsel %vm57, %v2150, 0.0
    %2255 = vadd.xlane.f32.xlu0 %v2254
    %v2256 = vpop.xlane.xlu0 %2255
    %v2257 = vsel %vm57, %v2151, 0.0
    %2258 = vadd.xlane.f32.xlu0 %v2257
    %v2259 = vpop.xlane.xlu0 %2258
    %v2260 = vsel %vm57, %v2152, 0.0
    %2261 = vadd.xlane.f32.xlu0 %v2260
    %v2262 = vpop.xlane.xlu0 %2261
    %v2263 = vsel %vm57, %v2153, 0.0
    %2264 = vadd.xlane.f32.xlu0 %v2263
    %v2265 = vpop.xlane.xlu0 %2264
    %v2266 = vsel %vm57, %v2154, 0.0
    %2267 = vadd.xlane.f32.xlu0 %v2266
    %v2268 = vpop.xlane.xlu0 %2267
    %v2269 = vsel %vm57, %v2155, 0.0
    %2270 = vadd.xlane.f32.xlu0 %v2269
    %v2271 = vpop.xlane.xlu0 %2270
    %v2272 = vsel %vm57, %v2156, 0.0
    %2273 = vadd.xlane.f32.xlu0 %v2272
    %v2274 = vpop.xlane.xlu0 %2273
    %v2275 = vsel %vm57, %v2157, 0.0
    %2276 = vadd.xlane.f32.xlu0 %v2275
    %v2277 = vpop.xlane.xlu0 %2276
    %v2278 = vsel %vm57, %v2158, 0.0
    %2279 = vadd.xlane.f32.xlu0 %v2278
    %v2280 = vpop.xlane.xlu0 %2279
    %v2281 = vsel %vm57, %v2159, 0.0
    %2282 = vadd.xlane.f32.xlu0 %v2281
    %v2283 = vpop.xlane.xlu0 %2282
    %v2284 = vsel %vm57, %v2160, 0.0
    %2285 = vadd.xlane.f32.xlu0 %v2284
    %v2286 = vpop.xlane.xlu0 %2285
    %v2287 = vsel %vm57, %v2161, 0.0
    %2288 = vadd.xlane.f32.xlu0 %v2287
    %v2289 = vpop.xlane.xlu0 %2288
    %v2290 = vsel %vm57, %v2162, 0.0
    %2291 = vadd.xlane.f32.xlu0 %v2290
    %v2292 = vpop.xlane.xlu0 %2291
    %v2293 = vsel %vm57, %v2163, 0.0
    %2294 = vadd.xlane.f32.xlu0 %v2293
    %v2295 = vpop.xlane.xlu0 %2294
    %v2296 = vsel %vm57, %v2164, 0.0
    %2297 = vadd.xlane.f32.xlu0 %v2296
    %v2298 = vpop.xlane.xlu0 %2297
    %v2299 = vsel %vm57, %v2165, 0.0
    %2300 = vadd.xlane.f32.xlu0 %v2299
    %v2301 = vpop.xlane.xlu0 %2300
    %v2302 = vsel %vm57, %v2166, 0.0
    %2303 = vadd.xlane.f32.xlu0 %v2302
    %v2304 = vpop.xlane.xlu0 %2303
    %v2305 = vsel %vm57, %v2167, 0.0
    %2306 = vadd.xlane.f32.xlu0 %v2305
    %v2307 = vpop.xlane.xlu0 %2306
    %v2308 = vsel %vm57, %v2168, 0.0
    %2309 = vadd.xlane.f32.xlu0 %v2308
    %v2310 = vpop.xlane.xlu0 %2309
    %v2311 = vsel %vm57, %v2169, 0.0
    %2312 = vadd.xlane.f32.xlu0 %v2311
    %v2313 = vpop.xlane.xlu0 %2312
    %v2314 = vmul.f32 %v2026, %v2026
    %v2315 = vmul.f32 %v2027, %v2027
    %v2316 = vmul.f32 %v2028, %v2028
    %v2317 = vmul.f32 %v2029, %v2029
    %v2318 = vmul.f32 %v2030, %v2030
    %v2319 = vmul.f32 %v2031, %v2031
    %v2320 = vmul.f32 %v2032, %v2032
    %v2321 = vmul.f32 %v2033, %v2033
    %v2322 = vmul.f32 %v2034, %v2034
    %v2323 = vmul.f32 %v2035, %v2035
    %v2324 = vmul.f32 %v2036, %v2036
    %v2325 = vmul.f32 %v2037, %v2037
    %v2326 = vmul.f32 %v2038, %v2038
    %v2327 = vmul.f32 %v2039, %v2039
    %v2328 = vmul.f32 %v2040, %v2040
    %v2329 = vmul.f32 %v2041, %v2041
    %v2330 = vmul.f32 %v2042, %v2042
    %v2331 = vmul.f32 %v2043, %v2043
    %v2332 = vmul.f32 %v2044, %v2044
    %v2333 = vmul.f32 %v2045, %v2045
    %v2334 = vmul.f32 %v2046, %v2046
    %v2335 = vmul.f32 %v2047, %v2047
    %v2336 = vmul.f32 %v2048, %v2048
    %v2337 = vmul.f32 %v2049, %v2049
    %v2338 = vmul.f32 %v2050, %v2050
    %v2339 = vmul.f32 %v2051, %v2051
    %v2340 = vmul.f32 %v2052, %v2052
    %v2341 = vmul.f32 %v2053, %v2053
    %v2342 = vmul.f32 %v2054, %v2054
    %v2343 = vmul.f32 %v2055, %v2055
    %v2344 = vmul.f32 %v2056, %v2056
    %v2345 = vmul.f32 %v2057, %v2057
    %v2346 = vmul.f32 %v2058, %v2058
    %v2347 = vmul.f32 %v2059, %v2059
    %v2348 = vmul.f32 %v2060, %v2060
    %v2349 = vmul.f32 %v2061, %v2061
    %v2350 = vmul.f32 %v2062, %v2062
    %v2351 = vmul.f32 %v2063, %v2063
    %v2352 = vmul.f32 %v2064, %v2064
    %v2353 = vmul.f32 %v2065, %v2065
    %v2354 = vmul.f32 %v2066, %v2066
    %v2355 = vmul.f32 %v2067, %v2067
    %v2356 = vmul.f32 %v2068, %v2068
    %v2357 = vmul.f32 %v2069, %v2069
    %v2358 = vmul.f32 %v2070, %v2070
    %v2359 = vmul.f32 %v2071, %v2071
    %v2360 = vmul.f32 %v2072, %v2072
    %v2361 = vmul.f32 %v2073, %v2073
    %v2362 = vsel %vm57, %v2314, 0.0
    %2363 = vadd.xlane.f32.xlu0 %v2362
    %v2364 = vpop.xlane.xlu0 %2363
    %v2365 = vsel %vm57, %v2315, 0.0
    %2366 = vadd.xlane.f32.xlu0 %v2365
    %v2367 = vpop.xlane.xlu0 %2366
    %v2368 = vsel %vm57, %v2316, 0.0
    %2369 = vadd.xlane.f32.xlu0 %v2368
    %v2370 = vpop.xlane.xlu0 %2369
    %v2371 = vsel %vm57, %v2317, 0.0
    %2372 = vadd.xlane.f32.xlu0 %v2371
    %v2373 = vpop.xlane.xlu0 %2372
    %v2374 = vsel %vm57, %v2318, 0.0
    %2375 = vadd.xlane.f32.xlu0 %v2374
    %v2376 = vpop.xlane.xlu0 %2375
    %v2377 = vsel %vm57, %v2319, 0.0
    %2378 = vadd.xlane.f32.xlu0 %v2377
    %v2379 = vpop.xlane.xlu0 %2378
    %v2380 = vsel %vm57, %v2320, 0.0
    %2381 = vadd.xlane.f32.xlu0 %v2380
    %v2382 = vpop.xlane.xlu0 %2381
    %v2383 = vsel %vm57, %v2321, 0.0
    %2384 = vadd.xlane.f32.xlu0 %v2383
    %v2385 = vpop.xlane.xlu0 %2384
    %v2386 = vsel %vm57, %v2322, 0.0
    %2387 = vadd.xlane.f32.xlu0 %v2386
    %v2388 = vpop.xlane.xlu0 %2387
    %v2389 = vsel %vm57, %v2323, 0.0
    %2390 = vadd.xlane.f32.xlu0 %v2389
    %v2391 = vpop.xlane.xlu0 %2390
    %v2392 = vsel %vm57, %v2324, 0.0
    %2393 = vadd.xlane.f32.xlu0 %v2392
    %v2394 = vpop.xlane.xlu0 %2393
    %v2395 = vsel %vm57, %v2325, 0.0
    %2396 = vadd.xlane.f32.xlu0 %v2395
    %v2397 = vpop.xlane.xlu0 %2396
    %v2398 = vsel %vm57, %v2326, 0.0
    %2399 = vadd.xlane.f32.xlu0 %v2398
    %v2400 = vpop.xlane.xlu0 %2399
    %v2401 = vsel %vm57, %v2327, 0.0
    %2402 = vadd.xlane.f32.xlu0 %v2401
    %v2403 = vpop.xlane.xlu0 %2402
    %v2404 = vsel %vm57, %v2328, 0.0
    %2405 = vadd.xlane.f32.xlu0 %v2404
    %v2406 = vpop.xlane.xlu0 %2405
    %v2407 = vsel %vm57, %v2329, 0.0
    %2408 = vadd.xlane.f32.xlu0 %v2407
    %v2409 = vpop.xlane.xlu0 %2408
    %v2410 = vsel %vm57, %v2330, 0.0
    %2411 = vadd.xlane.f32.xlu0 %v2410
    %v2412 = vpop.xlane.xlu0 %2411
    %v2413 = vsel %vm57, %v2331, 0.0
    %2414 = vadd.xlane.f32.xlu0 %v2413
    %v2415 = vpop.xlane.xlu0 %2414
    %v2416 = vsel %vm57, %v2332, 0.0
    %2417 = vadd.xlane.f32.xlu0 %v2416
    %v2418 = vpop.xlane.xlu0 %2417
    %v2419 = vsel %vm57, %v2333, 0.0
    %2420 = vadd.xlane.f32.xlu0 %v2419
    %v2421 = vpop.xlane.xlu0 %2420
    %v2422 = vsel %vm57, %v2334, 0.0
    %2423 = vadd.xlane.f32.xlu0 %v2422
    %v2424 = vpop.xlane.xlu0 %2423
    %v2425 = vsel %vm57, %v2335, 0.0
    %2426 = vadd.xlane.f32.xlu0 %v2425
    %v2427 = vpop.xlane.xlu0 %2426
    %v2428 = vsel %vm57, %v2336, 0.0
    %2429 = vadd.xlane.f32.xlu0 %v2428
    %v2430 = vpop.xlane.xlu0 %2429
    %v2431 = vsel %vm57, %v2337, 0.0
    %2432 = vadd.xlane.f32.xlu0 %v2431
    %v2433 = vpop.xlane.xlu0 %2432
    %v2434 = vsel %vm57, %v2338, 0.0
    %2435 = vadd.xlane.f32.xlu0 %v2434
    %v2436 = vpop.xlane.xlu0 %2435
    %v2437 = vsel %vm57, %v2339, 0.0
    %2438 = vadd.xlane.f32.xlu0 %v2437
    %v2439 = vpop.xlane.xlu0 %2438
    %v2440 = vsel %vm57, %v2340, 0.0
    %2441 = vadd.xlane.f32.xlu0 %v2440
    %v2442 = vpop.xlane.xlu0 %2441
    %v2443 = vsel %vm57, %v2341, 0.0
    %2444 = vadd.xlane.f32.xlu0 %v2443
    %v2445 = vpop.xlane.xlu0 %2444
    %v2446 = vsel %vm57, %v2342, 0.0
    %2447 = vadd.xlane.f32.xlu0 %v2446
    %v2448 = vpop.xlane.xlu0 %2447
    %v2449 = vsel %vm57, %v2343, 0.0
    %2450 = vadd.xlane.f32.xlu0 %v2449
    %v2451 = vpop.xlane.xlu0 %2450
    %v2452 = vsel %vm57, %v2344, 0.0
    %2453 = vadd.xlane.f32.xlu0 %v2452
    %v2454 = vpop.xlane.xlu0 %2453
    %v2455 = vsel %vm57, %v2345, 0.0
    %2456 = vadd.xlane.f32.xlu0 %v2455
    %v2457 = vpop.xlane.xlu0 %2456
    %v2458 = vsel %vm57, %v2346, 0.0
    %2459 = vadd.xlane.f32.xlu0 %v2458
    %v2460 = vpop.xlane.xlu0 %2459
    %v2461 = vsel %vm57, %v2347, 0.0
    %2462 = vadd.xlane.f32.xlu0 %v2461
    %v2463 = vpop.xlane.xlu0 %2462
    %v2464 = vsel %vm57, %v2348, 0.0
    %2465 = vadd.xlane.f32.xlu0 %v2464
    %v2466 = vpop.xlane.xlu0 %2465
    %v2467 = vsel %vm57, %v2349, 0.0
    %2468 = vadd.xlane.f32.xlu0 %v2467
    %v2469 = vpop.xlane.xlu0 %2468
    %v2470 = vsel %vm57, %v2350, 0.0
    %2471 = vadd.xlane.f32.xlu0 %v2470
    %v2472 = vpop.xlane.xlu0 %2471
    %v2473 = vsel %vm57, %v2351, 0.0
    %2474 = vadd.xlane.f32.xlu0 %v2473
    %v2475 = vpop.xlane.xlu0 %2474
    %v2476 = vsel %vm57, %v2352, 0.0
    %2477 = vadd.xlane.f32.xlu0 %v2476
    %v2478 = vpop.xlane.xlu0 %2477
    %v2479 = vsel %vm57, %v2353, 0.0
    %2480 = vadd.xlane.f32.xlu0 %v2479
    %v2481 = vpop.xlane.xlu0 %2480
    %v2482 = vsel %vm57, %v2354, 0.0
    %2483 = vadd.xlane.f32.xlu0 %v2482
    %v2484 = vpop.xlane.xlu0 %2483
    %v2485 = vsel %vm57, %v2355, 0.0
    %2486 = vadd.xlane.f32.xlu0 %v2485
    %v2487 = vpop.xlane.xlu0 %2486
    %v2488 = vsel %vm57, %v2356, 0.0
    %2489 = vadd.xlane.f32.xlu0 %v2488
    %v2490 = vpop.xlane.xlu0 %2489
    %v2491 = vsel %vm57, %v2357, 0.0
    %2492 = vadd.xlane.f32.xlu0 %v2491
    %v2493 = vpop.xlane.xlu0 %2492
    %v2494 = vsel %vm57, %v2358, 0.0
    %2495 = vadd.xlane.f32.xlu0 %v2494
    %v2496 = vpop.xlane.xlu0 %2495
    %v2497 = vsel %vm57, %v2359, 0.0
    %2498 = vadd.xlane.f32.xlu0 %v2497
    %v2499 = vpop.xlane.xlu0 %2498
    %v2500 = vsel %vm57, %v2360, 0.0
    %2501 = vadd.xlane.f32.xlu0 %v2500
    %v2502 = vpop.xlane.xlu0 %2501
    %v2503 = vsel %vm57, %v2361, 0.0
    %2504 = vadd.xlane.f32.xlu0 %v2503
    %v2505 = vpop.xlane.xlu0 %2504
    %v2506 = vrsqrt.pop %v2364
    %v2507 = vmul.f32 %v2364, %v2506
    %vm2508 = vcmp.eq.f32.partialorder %v2364, inf
    %v2509 = vsel %vm2508, %v2364, %v2507
    %vm2510 = vcmp.eq.f32.partialorder %v2364, 0.0
    %v2511 = vand.u32 %v2364, 2147483648
    %v2512 = vsel %vm2510, %v2511, %v2509
    %v2513 = vrsqrt.pop %v2367
    %v2514 = vmul.f32 %v2367, %v2513
    %vm2515 = vcmp.eq.f32.partialorder %v2367, inf
    %v2516 = vsel %vm2515, %v2367, %v2514
    %vm2517 = vcmp.eq.f32.partialorder %v2367, 0.0
    %v2518 = vand.u32 %v2367, 2147483648
    %v2519 = vsel %vm2517, %v2518, %v2516
    %v2520 = vrsqrt.pop %v2370
    %v2521 = vmul.f32 %v2370, %v2520
    %vm2522 = vcmp.eq.f32.partialorder %v2370, inf
    %v2523 = vsel %vm2522, %v2370, %v2521
    %vm2524 = vcmp.eq.f32.partialorder %v2370, 0.0
    %v2525 = vand.u32 %v2370, 2147483648
    %v2526 = vsel %vm2524, %v2525, %v2523
    %v2527 = vrsqrt.pop %v2373
    %v2528 = vmul.f32 %v2373, %v2527
    %vm2529 = vcmp.eq.f32.partialorder %v2373, inf
    %v2530 = vsel %vm2529, %v2373, %v2528
    %vm2531 = vcmp.eq.f32.partialorder %v2373, 0.0
    %v2532 = vand.u32 %v2373, 2147483648
    %v2533 = vsel %vm2531, %v2532, %v2530
    %v2534 = vrsqrt.pop %v2376
    %v2535 = vmul.f32 %v2376, %v2534
    %vm2536 = vcmp.eq.f32.partialorder %v2376, inf
    %v2537 = vsel %vm2536, %v2376, %v2535
    %vm2538 = vcmp.eq.f32.partialorder %v2376, 0.0
    %v2539 = vand.u32 %v2376, 2147483648
    %v2540 = vsel %vm2538, %v2539, %v2537
    %v2541 = vrsqrt.pop %v2379
    %v2542 = vmul.f32 %v2379, %v2541
    %vm2543 = vcmp.eq.f32.partialorder %v2379, inf
    %v2544 = vsel %vm2543, %v2379, %v2542
    %vm2545 = vcmp.eq.f32.partialorder %v2379, 0.0
    %v2546 = vand.u32 %v2379, 2147483648
    %v2547 = vsel %vm2545, %v2546, %v2544
    %v2548 = vrsqrt.pop %v2382
    %v2549 = vmul.f32 %v2382, %v2548
    %vm2550 = vcmp.eq.f32.partialorder %v2382, inf
    %v2551 = vsel %vm2550, %v2382, %v2549
    %vm2552 = vcmp.eq.f32.partialorder %v2382, 0.0
    %v2553 = vand.u32 %v2382, 2147483648
    %v2554 = vsel %vm2552, %v2553, %v2551
    %v2555 = vrsqrt.pop %v2385
    %v2556 = vmul.f32 %v2385, %v2555
    %vm2557 = vcmp.eq.f32.partialorder %v2385, inf
    %v2558 = vsel %vm2557, %v2385, %v2556
    %vm2559 = vcmp.eq.f32.partialorder %v2385, 0.0
    %v2560 = vand.u32 %v2385, 2147483648
    %v2561 = vsel %vm2559, %v2560, %v2558
    %v2562 = vrsqrt.pop %v2388
    %v2563 = vmul.f32 %v2388, %v2562
    %vm2564 = vcmp.eq.f32.partialorder %v2388, inf
    %v2565 = vsel %vm2564, %v2388, %v2563
    %vm2566 = vcmp.eq.f32.partialorder %v2388, 0.0
    %v2567 = vand.u32 %v2388, 2147483648
    %v2568 = vsel %vm2566, %v2567, %v2565
    %v2569 = vrsqrt.pop %v2391
    %v2570 = vmul.f32 %v2391, %v2569
    %vm2571 = vcmp.eq.f32.partialorder %v2391, inf
    %v2572 = vsel %vm2571, %v2391, %v2570
    %vm2573 = vcmp.eq.f32.partialorder %v2391, 0.0
    %v2574 = vand.u32 %v2391, 2147483648
    %v2575 = vsel %vm2573, %v2574, %v2572
    %v2576 = vrsqrt.pop %v2394
    %v2577 = vmul.f32 %v2394, %v2576
    %vm2578 = vcmp.eq.f32.partialorder %v2394, inf
    %v2579 = vsel %vm2578, %v2394, %v2577
    %vm2580 = vcmp.eq.f32.partialorder %v2394, 0.0
    %v2581 = vand.u32 %v2394, 2147483648
    %v2582 = vsel %vm2580, %v2581, %v2579
    %v2583 = vrsqrt.pop %v2397
    %v2584 = vmul.f32 %v2397, %v2583
    %vm2585 = vcmp.eq.f32.partialorder %v2397, inf
    %v2586 = vsel %vm2585, %v2397, %v2584
    %vm2587 = vcmp.eq.f32.partialorder %v2397, 0.0
    %v2588 = vand.u32 %v2397, 2147483648
    %v2589 = vsel %vm2587, %v2588, %v2586
    %v2590 = vrsqrt.pop %v2400
    %v2591 = vmul.f32 %v2400, %v2590
    %vm2592 = vcmp.eq.f32.partialorder %v2400, inf
    %v2593 = vsel %vm2592, %v2400, %v2591
    %vm2594 = vcmp.eq.f32.partialorder %v2400, 0.0
    %v2595 = vand.u32 %v2400, 2147483648
    %v2596 = vsel %vm2594, %v2595, %v2593
    %v2597 = vrsqrt.pop %v2403
    %v2598 = vmul.f32 %v2403, %v2597
    %vm2599 = vcmp.eq.f32.partialorder %v2403, inf
    %v2600 = vsel %vm2599, %v2403, %v2598
    %vm2601 = vcmp.eq.f32.partialorder %v2403, 0.0
    %v2602 = vand.u32 %v2403, 2147483648
    %v2603 = vsel %vm2601, %v2602, %v2600
    %v2604 = vrsqrt.pop %v2406
    %v2605 = vmul.f32 %v2406, %v2604
    %vm2606 = vcmp.eq.f32.partialorder %v2406, inf
    %v2607 = vsel %vm2606, %v2406, %v2605
    %vm2608 = vcmp.eq.f32.partialorder %v2406, 0.0
    %v2609 = vand.u32 %v2406, 2147483648
    %v2610 = vsel %vm2608, %v2609, %v2607
    %v2611 = vrsqrt.pop %v2409
    %v2612 = vmul.f32 %v2409, %v2611
    %vm2613 = vcmp.eq.f32.partialorder %v2409, inf
    %v2614 = vsel %vm2613, %v2409, %v2612
    %vm2615 = vcmp.eq.f32.partialorder %v2409, 0.0
    %v2616 = vand.u32 %v2409, 2147483648
    %v2617 = vsel %vm2615, %v2616, %v2614
    %v2618 = vrsqrt.pop %v2412
    %v2619 = vmul.f32 %v2412, %v2618
    %vm2620 = vcmp.eq.f32.partialorder %v2412, inf
    %v2621 = vsel %vm2620, %v2412, %v2619
    %vm2622 = vcmp.eq.f32.partialorder %v2412, 0.0
    %v2623 = vand.u32 %v2412, 2147483648
    %v2624 = vsel %vm2622, %v2623, %v2621
    %v2625 = vrsqrt.pop %v2415
    %v2626 = vmul.f32 %v2415, %v2625
    %vm2627 = vcmp.eq.f32.partialorder %v2415, inf
    %v2628 = vsel %vm2627, %v2415, %v2626
    %vm2629 = vcmp.eq.f32.partialorder %v2415, 0.0
    %v2630 = vand.u32 %v2415, 2147483648
    %v2631 = vsel %vm2629, %v2630, %v2628
    %v2632 = vrsqrt.pop %v2418
    %v2633 = vmul.f32 %v2418, %v2632
    %vm2634 = vcmp.eq.f32.partialorder %v2418, inf
    %v2635 = vsel %vm2634, %v2418, %v2633
    %vm2636 = vcmp.eq.f32.partialorder %v2418, 0.0
    %v2637 = vand.u32 %v2418, 2147483648
    %v2638 = vsel %vm2636, %v2637, %v2635
    %v2639 = vrsqrt.pop %v2421
    %v2640 = vmul.f32 %v2421, %v2639
    %vm2641 = vcmp.eq.f32.partialorder %v2421, inf
    %v2642 = vsel %vm2641, %v2421, %v2640
    %vm2643 = vcmp.eq.f32.partialorder %v2421, 0.0
    %v2644 = vand.u32 %v2421, 2147483648
    %v2645 = vsel %vm2643, %v2644, %v2642
    %v2646 = vrsqrt.pop %v2424
    %v2647 = vmul.f32 %v2424, %v2646
    %vm2648 = vcmp.eq.f32.partialorder %v2424, inf
    %v2649 = vsel %vm2648, %v2424, %v2647
    %vm2650 = vcmp.eq.f32.partialorder %v2424, 0.0
    %v2651 = vand.u32 %v2424, 2147483648
    %v2652 = vsel %vm2650, %v2651, %v2649
    %v2653 = vrsqrt.pop %v2427
    %v2654 = vmul.f32 %v2427, %v2653
    %vm2655 = vcmp.eq.f32.partialorder %v2427, inf
    %v2656 = vsel %vm2655, %v2427, %v2654
    %vm2657 = vcmp.eq.f32.partialorder %v2427, 0.0
    %v2658 = vand.u32 %v2427, 2147483648
    %v2659 = vsel %vm2657, %v2658, %v2656
    %v2660 = vrsqrt.pop %v2430
    %v2661 = vmul.f32 %v2430, %v2660
    %vm2662 = vcmp.eq.f32.partialorder %v2430, inf
    %v2663 = vsel %vm2662, %v2430, %v2661
    %vm2664 = vcmp.eq.f32.partialorder %v2430, 0.0
    %v2665 = vand.u32 %v2430, 2147483648
    %v2666 = vsel %vm2664, %v2665, %v2663
    %v2667 = vrsqrt.pop %v2433
    %v2668 = vmul.f32 %v2433, %v2667
    %vm2669 = vcmp.eq.f32.partialorder %v2433, inf
    %v2670 = vsel %vm2669, %v2433, %v2668
    %vm2671 = vcmp.eq.f32.partialorder %v2433, 0.0
    %v2672 = vand.u32 %v2433, 2147483648
    %v2673 = vsel %vm2671, %v2672, %v2670
    %v2674 = vrsqrt.pop %v2436
    %v2675 = vmul.f32 %v2436, %v2674
    %vm2676 = vcmp.eq.f32.partialorder %v2436, inf
    %v2677 = vsel %vm2676, %v2436, %v2675
    %vm2678 = vcmp.eq.f32.partialorder %v2436, 0.0
    %v2679 = vand.u32 %v2436, 2147483648
    %v2680 = vsel %vm2678, %v2679, %v2677
    %v2681 = vrsqrt.pop %v2439
    %v2682 = vmul.f32 %v2439, %v2681
    %vm2683 = vcmp.eq.f32.partialorder %v2439, inf
    %v2684 = vsel %vm2683, %v2439, %v2682
    %vm2685 = vcmp.eq.f32.partialorder %v2439, 0.0
    %v2686 = vand.u32 %v2439, 2147483648
    %v2687 = vsel %vm2685, %v2686, %v2684
    %v2688 = vrsqrt.pop %v2442
    %v2689 = vmul.f32 %v2442, %v2688
    %vm2690 = vcmp.eq.f32.partialorder %v2442, inf
    %v2691 = vsel %vm2690, %v2442, %v2689
    %vm2692 = vcmp.eq.f32.partialorder %v2442, 0.0
    %v2693 = vand.u32 %v2442, 2147483648
    %v2694 = vsel %vm2692, %v2693, %v2691
    %v2695 = vrsqrt.pop %v2445
    %v2696 = vmul.f32 %v2445, %v2695
    %vm2697 = vcmp.eq.f32.partialorder %v2445, inf
    %v2698 = vsel %vm2697, %v2445, %v2696
    %vm2699 = vcmp.eq.f32.partialorder %v2445, 0.0
    %v2700 = vand.u32 %v2445, 2147483648
    %v2701 = vsel %vm2699, %v2700, %v2698
    %v2702 = vrsqrt.pop %v2448
    %v2703 = vmul.f32 %v2448, %v2702
    %vm2704 = vcmp.eq.f32.partialorder %v2448, inf
    %v2705 = vsel %vm2704, %v2448, %v2703
    %vm2706 = vcmp.eq.f32.partialorder %v2448, 0.0
    %v2707 = vand.u32 %v2448, 2147483648
    %v2708 = vsel %vm2706, %v2707, %v2705
    %v2709 = vrsqrt.pop %v2451
    %v2710 = vmul.f32 %v2451, %v2709
    %vm2711 = vcmp.eq.f32.partialorder %v2451, inf
    %v2712 = vsel %vm2711, %v2451, %v2710
    %vm2713 = vcmp.eq.f32.partialorder %v2451, 0.0
    %v2714 = vand.u32 %v2451, 2147483648
    %v2715 = vsel %vm2713, %v2714, %v2712
    %v2716 = vrsqrt.pop %v2454
    %v2717 = vmul.f32 %v2454, %v2716
    %vm2718 = vcmp.eq.f32.partialorder %v2454, inf
    %v2719 = vsel %vm2718, %v2454, %v2717
    %vm2720 = vcmp.eq.f32.partialorder %v2454, 0.0
    %v2721 = vand.u32 %v2454, 2147483648
    %v2722 = vsel %vm2720, %v2721, %v2719
    %v2723 = vrsqrt.pop %v2457
    %v2724 = vmul.f32 %v2457, %v2723
    %vm2725 = vcmp.eq.f32.partialorder %v2457, inf
    %v2726 = vsel %vm2725, %v2457, %v2724
    %vm2727 = vcmp.eq.f32.partialorder %v2457, 0.0
    %v2728 = vand.u32 %v2457, 2147483648
    %v2729 = vsel %vm2727, %v2728, %v2726
    %v2730 = vrsqrt.pop %v2460
    %v2731 = vmul.f32 %v2460, %v2730
    %vm2732 = vcmp.eq.f32.partialorder %v2460, inf
    %v2733 = vsel %vm2732, %v2460, %v2731
    %vm2734 = vcmp.eq.f32.partialorder %v2460, 0.0
    %v2735 = vand.u32 %v2460, 2147483648
    %v2736 = vsel %vm2734, %v2735, %v2733
    %v2737 = vrsqrt.pop %v2463
    %v2738 = vmul.f32 %v2463, %v2737
    %vm2739 = vcmp.eq.f32.partialorder %v2463, inf
    %v2740 = vsel %vm2739, %v2463, %v2738
    %vm2741 = vcmp.eq.f32.partialorder %v2463, 0.0
    %v2742 = vand.u32 %v2463, 2147483648
    %v2743 = vsel %vm2741, %v2742, %v2740
    %v2744 = vrsqrt.pop %v2466
    %v2745 = vmul.f32 %v2466, %v2744
    %vm2746 = vcmp.eq.f32.partialorder %v2466, inf
    %v2747 = vsel %vm2746, %v2466, %v2745
    %vm2748 = vcmp.eq.f32.partialorder %v2466, 0.0
    %v2749 = vand.u32 %v2466, 2147483648
    %v2750 = vsel %vm2748, %v2749, %v2747
    %v2751 = vrsqrt.pop %v2469
    %v2752 = vmul.f32 %v2469, %v2751
    %vm2753 = vcmp.eq.f32.partialorder %v2469, inf
    %v2754 = vsel %vm2753, %v2469, %v2752
    %vm2755 = vcmp.eq.f32.partialorder %v2469, 0.0
    %v2756 = vand.u32 %v2469, 2147483648
    %v2757 = vsel %vm2755, %v2756, %v2754
    %v2758 = vrsqrt.pop %v2472
    %v2759 = vmul.f32 %v2472, %v2758
    %vm2760 = vcmp.eq.f32.partialorder %v2472, inf
    %v2761 = vsel %vm2760, %v2472, %v2759
    %vm2762 = vcmp.eq.f32.partialorder %v2472, 0.0
    %v2763 = vand.u32 %v2472, 2147483648
    %v2764 = vsel %vm2762, %v2763, %v2761
    %v2765 = vrsqrt.pop %v2475
    %v2766 = vmul.f32 %v2475, %v2765
    %vm2767 = vcmp.eq.f32.partialorder %v2475, inf
    %v2768 = vsel %vm2767, %v2475, %v2766
    %vm2769 = vcmp.eq.f32.partialorder %v2475, 0.0
    %v2770 = vand.u32 %v2475, 2147483648
    %v2771 = vsel %vm2769, %v2770, %v2768
    %v2772 = vrsqrt.pop %v2478
    %v2773 = vmul.f32 %v2478, %v2772
    %vm2774 = vcmp.eq.f32.partialorder %v2478, inf
    %v2775 = vsel %vm2774, %v2478, %v2773
    %vm2776 = vcmp.eq.f32.partialorder %v2478, 0.0
    %v2777 = vand.u32 %v2478, 2147483648
    %v2778 = vsel %vm2776, %v2777, %v2775
    %v2779 = vrsqrt.pop %v2481
    %v2780 = vmul.f32 %v2481, %v2779
    %vm2781 = vcmp.eq.f32.partialorder %v2481, inf
    %v2782 = vsel %vm2781, %v2481, %v2780
    %vm2783 = vcmp.eq.f32.partialorder %v2481, 0.0
    %v2784 = vand.u32 %v2481, 2147483648
    %v2785 = vsel %vm2783, %v2784, %v2782
    %v2786 = vrsqrt.pop %v2484
    %v2787 = vmul.f32 %v2484, %v2786
    %vm2788 = vcmp.eq.f32.partialorder %v2484, inf
    %v2789 = vsel %vm2788, %v2484, %v2787
    %vm2790 = vcmp.eq.f32.partialorder %v2484, 0.0
    %v2791 = vand.u32 %v2484, 2147483648
    %v2792 = vsel %vm2790, %v2791, %v2789
    %v2793 = vrsqrt.pop %v2487
    %v2794 = vmul.f32 %v2487, %v2793
    %vm2795 = vcmp.eq.f32.partialorder %v2487, inf
    %v2796 = vsel %vm2795, %v2487, %v2794
    %vm2797 = vcmp.eq.f32.partialorder %v2487, 0.0
    %v2798 = vand.u32 %v2487, 2147483648
    %v2799 = vsel %vm2797, %v2798, %v2796
    %v2800 = vrsqrt.pop %v2490
    %v2801 = vmul.f32 %v2490, %v2800
    %vm2802 = vcmp.eq.f32.partialorder %v2490, inf
    %v2803 = vsel %vm2802, %v2490, %v2801
    %vm2804 = vcmp.eq.f32.partialorder %v2490, 0.0
    %v2805 = vand.u32 %v2490, 2147483648
    %v2806 = vsel %vm2804, %v2805, %v2803
    %v2807 = vrsqrt.pop %v2493
    %v2808 = vmul.f32 %v2493, %v2807
    %vm2809 = vcmp.eq.f32.partialorder %v2493, inf
    %v2810 = vsel %vm2809, %v2493, %v2808
    %vm2811 = vcmp.eq.f32.partialorder %v2493, 0.0
    %v2812 = vand.u32 %v2493, 2147483648
    %v2813 = vsel %vm2811, %v2812, %v2810
    %v2814 = vrsqrt.pop %v2496
    %v2815 = vmul.f32 %v2496, %v2814
    %vm2816 = vcmp.eq.f32.partialorder %v2496, inf
    %v2817 = vsel %vm2816, %v2496, %v2815
    %vm2818 = vcmp.eq.f32.partialorder %v2496, 0.0
    %v2819 = vand.u32 %v2496, 2147483648
    %v2820 = vsel %vm2818, %v2819, %v2817
    %v2821 = vrsqrt.pop %v2499
    %v2822 = vmul.f32 %v2499, %v2821
    %vm2823 = vcmp.eq.f32.partialorder %v2499, inf
    %v2824 = vsel %vm2823, %v2499, %v2822
    %vm2825 = vcmp.eq.f32.partialorder %v2499, 0.0
    %v2826 = vand.u32 %v2499, 2147483648
    %v2827 = vsel %vm2825, %v2826, %v2824
    %v2828 = vrsqrt.pop %v2502
    %v2829 = vmul.f32 %v2502, %v2828
    %vm2830 = vcmp.eq.f32.partialorder %v2502, inf
    %v2831 = vsel %vm2830, %v2502, %v2829
    %vm2832 = vcmp.eq.f32.partialorder %v2502, 0.0
    %v2833 = vand.u32 %v2502, 2147483648
    %v2834 = vsel %vm2832, %v2833, %v2831
    %v2835 = vrsqrt.pop %v2505
    %v2836 = vmul.f32 %v2505, %v2835
    %vm2837 = vcmp.eq.f32.partialorder %v2505, inf
    %v2838 = vsel %vm2837, %v2505, %v2836
    %vm2839 = vcmp.eq.f32.partialorder %v2505, 0.0
    %v2840 = vand.u32 %v2505, 2147483648
    %v2841 = vsel %vm2839, %v2840, %v2838
    %v2842 = vmax.f32 %v2512, 1e-08
    %v2843 = vmax.f32 %v2519, 1e-08
    %v2844 = vmax.f32 %v2526, 1e-08
    %v2845 = vmax.f32 %v2533, 1e-08
    %v2846 = vmax.f32 %v2540, 1e-08
    %v2847 = vmax.f32 %v2547, 1e-08
    %v2848 = vmax.f32 %v2554, 1e-08
    %v2849 = vmax.f32 %v2561, 1e-08
    %v2850 = vmax.f32 %v2568, 1e-08
    %v2851 = vmax.f32 %v2575, 1e-08
    %v2852 = vmax.f32 %v2582, 1e-08
    %v2853 = vmax.f32 %v2589, 1e-08
    %v2854 = vmax.f32 %v2596, 1e-08
    %v2855 = vmax.f32 %v2603, 1e-08
    %v2856 = vmax.f32 %v2610, 1e-08
    %v2857 = vmax.f32 %v2617, 1e-08
    %v2858 = vmax.f32 %v2624, 1e-08
    %v2859 = vmax.f32 %v2631, 1e-08
    %v2860 = vmax.f32 %v2638, 1e-08
    %v2861 = vmax.f32 %v2645, 1e-08
    %v2862 = vmax.f32 %v2652, 1e-08
    %v2863 = vmax.f32 %v2659, 1e-08
    %v2864 = vmax.f32 %v2666, 1e-08
    %v2865 = vmax.f32 %v2673, 1e-08
    %v2866 = vmax.f32 %v2680, 1e-08
    %v2867 = vmax.f32 %v2687, 1e-08
    %v2868 = vmax.f32 %v2694, 1e-08
    %v2869 = vmax.f32 %v2701, 1e-08
    %v2870 = vmax.f32 %v2708, 1e-08
    %v2871 = vmax.f32 %v2715, 1e-08
    %v2872 = vmax.f32 %v2722, 1e-08
    %v2873 = vmax.f32 %v2729, 1e-08
    %v2874 = vmax.f32 %v2736, 1e-08
    %v2875 = vmax.f32 %v2743, 1e-08
    %v2876 = vmax.f32 %v2750, 1e-08
    %v2877 = vmax.f32 %v2757, 1e-08
    %v2878 = vmax.f32 %v2764, 1e-08
    %v2879 = vmax.f32 %v2771, 1e-08
    %v2880 = vmax.f32 %v2778, 1e-08
    %v2881 = vmax.f32 %v2785, 1e-08
    %v2882 = vmax.f32 %v2792, 1e-08
    %v2883 = vmax.f32 %v2799, 1e-08
    %v2884 = vmax.f32 %v2806, 1e-08
    %v2885 = vmax.f32 %v2813, 1e-08
    %v2886 = vmax.f32 %v2820, 1e-08
    %v2887 = vmax.f32 %v2827, 1e-08
    %v2888 = vmax.f32 %v2834, 1e-08
    %v2889 = vmax.f32 %v2841, 1e-08
    %v2890 = vmul.f32 %v2074, %v2074
    %v2891 = vmul.f32 %v2075, %v2075
    %v2892 = vmul.f32 %v2076, %v2076
    %v2893 = vmul.f32 %v2077, %v2077
    %v2894 = vmul.f32 %v2078, %v2078
    %v2895 = vmul.f32 %v2079, %v2079
    %v2896 = vmul.f32 %v2080, %v2080
    %v2897 = vmul.f32 %v2081, %v2081
    %v2898 = vmul.f32 %v2082, %v2082
    %v2899 = vmul.f32 %v2083, %v2083
    %v2900 = vmul.f32 %v2084, %v2084
    %v2901 = vmul.f32 %v2085, %v2085
    %v2902 = vmul.f32 %v2086, %v2086
    %v2903 = vmul.f32 %v2087, %v2087
    %v2904 = vmul.f32 %v2088, %v2088
    %v2905 = vmul.f32 %v2089, %v2089
    %v2906 = vmul.f32 %v2090, %v2090
    %v2907 = vmul.f32 %v2091, %v2091
    %v2908 = vmul.f32 %v2092, %v2092
    %v2909 = vmul.f32 %v2093, %v2093
    %v2910 = vmul.f32 %v2094, %v2094
    %v2911 = vmul.f32 %v2095, %v2095
    %v2912 = vmul.f32 %v2096, %v2096
    %v2913 = vmul.f32 %v2097, %v2097
    %v2914 = vmul.f32 %v2098, %v2098
    %v2915 = vmul.f32 %v2099, %v2099
    %v2916 = vmul.f32 %v2100, %v2100
    %v2917 = vmul.f32 %v2101, %v2101
    %v2918 = vmul.f32 %v2102, %v2102
    %v2919 = vmul.f32 %v2103, %v2103
    %v2920 = vmul.f32 %v2104, %v2104
    %v2921 = vmul.f32 %v2105, %v2105
    %v2922 = vmul.f32 %v2106, %v2106
    %v2923 = vmul.f32 %v2107, %v2107
    %v2924 = vmul.f32 %v2108, %v2108
    %v2925 = vmul.f32 %v2109, %v2109
    %v2926 = vmul.f32 %v2110, %v2110
    %v2927 = vmul.f32 %v2111, %v2111
    %v2928 = vmul.f32 %v2112, %v2112
    %v2929 = vmul.f32 %v2113, %v2113
    %v2930 = vmul.f32 %v2114, %v2114
    %v2931 = vmul.f32 %v2115, %v2115
    %v2932 = vmul.f32 %v2116, %v2116
    %v2933 = vmul.f32 %v2117, %v2117
    %v2934 = vmul.f32 %v2118, %v2118
    %v2935 = vmul.f32 %v2119, %v2119
    %v2936 = vmul.f32 %v2120, %v2120
    %v2937 = vmul.f32 %v2121, %v2121
    %v2938 = vsel %vm57, %v2890, 0.0
    %2939 = vadd.xlane.f32.xlu0 %v2938
    %v2940 = vpop.xlane.xlu0 %2939
    %v2941 = vsel %vm57, %v2891, 0.0
    %2942 = vadd.xlane.f32.xlu0 %v2941
    %v2943 = vpop.xlane.xlu0 %2942
    %v2944 = vsel %vm57, %v2892, 0.0
    %2945 = vadd.xlane.f32.xlu0 %v2944
    %v2946 = vpop.xlane.xlu0 %2945
    %v2947 = vsel %vm57, %v2893, 0.0
    %2948 = vadd.xlane.f32.xlu0 %v2947
    %v2949 = vpop.xlane.xlu0 %2948
    %v2950 = vsel %vm57, %v2894, 0.0
    %2951 = vadd.xlane.f32.xlu0 %v2950
    %v2952 = vpop.xlane.xlu0 %2951
    %v2953 = vsel %vm57, %v2895, 0.0
    %2954 = vadd.xlane.f32.xlu0 %v2953
    %v2955 = vpop.xlane.xlu0 %2954
    %v2956 = vsel %vm57, %v2896, 0.0
    %2957 = vadd.xlane.f32.xlu0 %v2956
    %v2958 = vpop.xlane.xlu0 %2957
    %v2959 = vsel %vm57, %v2897, 0.0
    %2960 = vadd.xlane.f32.xlu0 %v2959
    %v2961 = vpop.xlane.xlu0 %2960
    %v2962 = vsel %vm57, %v2898, 0.0
    %2963 = vadd.xlane.f32.xlu0 %v2962
    %v2964 = vpop.xlane.xlu0 %2963
    %v2965 = vsel %vm57, %v2899, 0.0
    %2966 = vadd.xlane.f32.xlu0 %v2965
    %v2967 = vpop.xlane.xlu0 %2966
    %v2968 = vsel %vm57, %v2900, 0.0
    %2969 = vadd.xlane.f32.xlu0 %v2968
    %v2970 = vpop.xlane.xlu0 %2969
    %v2971 = vsel %vm57, %v2901, 0.0
    %2972 = vadd.xlane.f32.xlu0 %v2971
    %v2973 = vpop.xlane.xlu0 %2972
    %v2974 = vsel %vm57, %v2902, 0.0
    %2975 = vadd.xlane.f32.xlu0 %v2974
    %v2976 = vpop.xlane.xlu0 %2975
    %v2977 = vsel %vm57, %v2903, 0.0
    %2978 = vadd.xlane.f32.xlu0 %v2977
    %v2979 = vpop.xlane.xlu0 %2978
    %v2980 = vsel %vm57, %v2904, 0.0
    %2981 = vadd.xlane.f32.xlu0 %v2980
    %v2982 = vpop.xlane.xlu0 %2981
    %v2983 = vsel %vm57, %v2905, 0.0
    %2984 = vadd.xlane.f32.xlu0 %v2983
    %v2985 = vpop.xlane.xlu0 %2984
    %v2986 = vsel %vm57, %v2906, 0.0
    %2987 = vadd.xlane.f32.xlu0 %v2986
    %v2988 = vpop.xlane.xlu0 %2987
    %v2989 = vsel %vm57, %v2907, 0.0
    %2990 = vadd.xlane.f32.xlu0 %v2989
    %v2991 = vpop.xlane.xlu0 %2990
    %v2992 = vsel %vm57, %v2908, 0.0
    %2993 = vadd.xlane.f32.xlu0 %v2992
    %v2994 = vpop.xlane.xlu0 %2993
    %v2995 = vsel %vm57, %v2909, 0.0
    %2996 = vadd.xlane.f32.xlu0 %v2995
    %v2997 = vpop.xlane.xlu0 %2996
    %v2998 = vsel %vm57, %v2910, 0.0
    %2999 = vadd.xlane.f32.xlu0 %v2998
    %v3000 = vpop.xlane.xlu0 %2999
    %v3001 = vsel %vm57, %v2911, 0.0
    %3002 = vadd.xlane.f32.xlu0 %v3001
    %v3003 = vpop.xlane.xlu0 %3002
    %v3004 = vsel %vm57, %v2912, 0.0
    %3005 = vadd.xlane.f32.xlu0 %v3004
    %v3006 = vpop.xlane.xlu0 %3005
    %v3007 = vsel %vm57, %v2913, 0.0
    %3008 = vadd.xlane.f32.xlu0 %v3007
    %v3009 = vpop.xlane.xlu0 %3008
    %v3010 = vsel %vm57, %v2914, 0.0
    %3011 = vadd.xlane.f32.xlu0 %v3010
    %v3012 = vpop.xlane.xlu0 %3011
    %v3013 = vsel %vm57, %v2915, 0.0
    %3014 = vadd.xlane.f32.xlu0 %v3013
    %v3015 = vpop.xlane.xlu0 %3014
    %v3016 = vsel %vm57, %v2916, 0.0
    %3017 = vadd.xlane.f32.xlu0 %v3016
    %v3018 = vpop.xlane.xlu0 %3017
    %v3019 = vsel %vm57, %v2917, 0.0
    %3020 = vadd.xlane.f32.xlu0 %v3019
    %v3021 = vpop.xlane.xlu0 %3020
    %v3022 = vsel %vm57, %v2918, 0.0
    %3023 = vadd.xlane.f32.xlu0 %v3022
    %v3024 = vpop.xlane.xlu0 %3023
    %v3025 = vsel %vm57, %v2919, 0.0
    %3026 = vadd.xlane.f32.xlu0 %v3025
    %v3027 = vpop.xlane.xlu0 %3026
    %v3028 = vsel %vm57, %v2920, 0.0
    %3029 = vadd.xlane.f32.xlu0 %v3028
    %v3030 = vpop.xlane.xlu0 %3029
    %v3031 = vsel %vm57, %v2921, 0.0
    %3032 = vadd.xlane.f32.xlu0 %v3031
    %v3033 = vpop.xlane.xlu0 %3032
    %v3034 = vsel %vm57, %v2922, 0.0
    %3035 = vadd.xlane.f32.xlu0 %v3034
    %v3036 = vpop.xlane.xlu0 %3035
    %v3037 = vsel %vm57, %v2923, 0.0
    %3038 = vadd.xlane.f32.xlu0 %v3037
    %v3039 = vpop.xlane.xlu0 %3038
    %v3040 = vsel %vm57, %v2924, 0.0
    %3041 = vadd.xlane.f32.xlu0 %v3040
    %v3042 = vpop.xlane.xlu0 %3041
    %v3043 = vsel %vm57, %v2925, 0.0
    %3044 = vadd.xlane.f32.xlu0 %v3043
    %v3045 = vpop.xlane.xlu0 %3044
    %v3046 = vsel %vm57, %v2926, 0.0
    %3047 = vadd.xlane.f32.xlu0 %v3046
    %v3048 = vpop.xlane.xlu0 %3047
    %v3049 = vsel %vm57, %v2927, 0.0
    %3050 = vadd.xlane.f32.xlu0 %v3049
    %v3051 = vpop.xlane.xlu0 %3050
    %v3052 = vsel %vm57, %v2928, 0.0
    %3053 = vadd.xlane.f32.xlu0 %v3052
    %v3054 = vpop.xlane.xlu0 %3053
    %v3055 = vsel %vm57, %v2929, 0.0
    %3056 = vadd.xlane.f32.xlu0 %v3055
    %v3057 = vpop.xlane.xlu0 %3056
    %v3058 = vsel %vm57, %v2930, 0.0
    %3059 = vadd.xlane.f32.xlu0 %v3058
    %v3060 = vpop.xlane.xlu0 %3059
    %v3061 = vsel %vm57, %v2931, 0.0
    %3062 = vadd.xlane.f32.xlu0 %v3061
    %v3063 = vpop.xlane.xlu0 %3062
    %v3064 = vsel %vm57, %v2932, 0.0
    %3065 = vadd.xlane.f32.xlu0 %v3064
    %v3066 = vpop.xlane.xlu0 %3065
    %v3067 = vsel %vm57, %v2933, 0.0
    %3068 = vadd.xlane.f32.xlu0 %v3067
    %v3069 = vpop.xlane.xlu0 %3068
    %v3070 = vsel %vm57, %v2934, 0.0
    %3071 = vadd.xlane.f32.xlu0 %v3070
    %v3072 = vpop.xlane.xlu0 %3071
    %v3073 = vsel %vm57, %v2935, 0.0
    %3074 = vadd.xlane.f32.xlu0 %v3073
    %v3075 = vpop.xlane.xlu0 %3074
    %v3076 = vsel %vm57, %v2936, 0.0
    %3077 = vadd.xlane.f32.xlu0 %v3076
    %v3078 = vpop.xlane.xlu0 %3077
    %v3079 = vsel %vm57, %v2937, 0.0
    %3080 = vadd.xlane.f32.xlu0 %v3079
    %v3081 = vpop.xlane.xlu0 %3080
    %v3082 = vrsqrt.pop %v2940
    %v3083 = vmul.f32 %v2940, %v3082
    %vm3084 = vcmp.eq.f32.partialorder %v2940, inf
    %v3085 = vsel %vm3084, %v2940, %v3083
    %vm3086 = vcmp.eq.f32.partialorder %v2940, 0.0
    %v3087 = vand.u32 %v2940, 2147483648
    %v3088 = vsel %vm3086, %v3087, %v3085
    %v3089 = vrsqrt.pop %v2943
    %v3090 = vmul.f32 %v2943, %v3089
    %vm3091 = vcmp.eq.f32.partialorder %v2943, inf
    %v3092 = vsel %vm3091, %v2943, %v3090
    %vm3093 = vcmp.eq.f32.partialorder %v2943, 0.0
    %v3094 = vand.u32 %v2943, 2147483648
    %v3095 = vsel %vm3093, %v3094, %v3092
    %v3096 = vrsqrt.pop %v2946
    %v3097 = vmul.f32 %v2946, %v3096
    %vm3098 = vcmp.eq.f32.partialorder %v2946, inf
    %v3099 = vsel %vm3098, %v2946, %v3097
    %vm3100 = vcmp.eq.f32.partialorder %v2946, 0.0
    %v3101 = vand.u32 %v2946, 2147483648
    %v3102 = vsel %vm3100, %v3101, %v3099
    %v3103 = vrsqrt.pop %v2949
    %v3104 = vmul.f32 %v2949, %v3103
    %vm3105 = vcmp.eq.f32.partialorder %v2949, inf
    %v3106 = vsel %vm3105, %v2949, %v3104
    %vm3107 = vcmp.eq.f32.partialorder %v2949, 0.0
    %v3108 = vand.u32 %v2949, 2147483648
    %v3109 = vsel %vm3107, %v3108, %v3106
    %v3110 = vrsqrt.pop %v2952
    %v3111 = vmul.f32 %v2952, %v3110
    %vm3112 = vcmp.eq.f32.partialorder %v2952, inf
    %v3113 = vsel %vm3112, %v2952, %v3111
    %vm3114 = vcmp.eq.f32.partialorder %v2952, 0.0
    %v3115 = vand.u32 %v2952, 2147483648
    %v3116 = vsel %vm3114, %v3115, %v3113
    %v3117 = vrsqrt.pop %v2955
    %v3118 = vmul.f32 %v2955, %v3117
    %vm3119 = vcmp.eq.f32.partialorder %v2955, inf
    %v3120 = vsel %vm3119, %v2955, %v3118
    %vm3121 = vcmp.eq.f32.partialorder %v2955, 0.0
    %v3122 = vand.u32 %v2955, 2147483648
    %v3123 = vsel %vm3121, %v3122, %v3120
    %v3124 = vrsqrt.pop %v2958
    %v3125 = vmul.f32 %v2958, %v3124
    %vm3126 = vcmp.eq.f32.partialorder %v2958, inf
    %v3127 = vsel %vm3126, %v2958, %v3125
    %vm3128 = vcmp.eq.f32.partialorder %v2958, 0.0
    %v3129 = vand.u32 %v2958, 2147483648
    %v3130 = vsel %vm3128, %v3129, %v3127
    %v3131 = vrsqrt.pop %v2961
    %v3132 = vmul.f32 %v2961, %v3131
    %vm3133 = vcmp.eq.f32.partialorder %v2961, inf
    %v3134 = vsel %vm3133, %v2961, %v3132
    %vm3135 = vcmp.eq.f32.partialorder %v2961, 0.0
    %v3136 = vand.u32 %v2961, 2147483648
    %v3137 = vsel %vm3135, %v3136, %v3134
    %v3138 = vrsqrt.pop %v2964
    %v3139 = vmul.f32 %v2964, %v3138
    %vm3140 = vcmp.eq.f32.partialorder %v2964, inf
    %v3141 = vsel %vm3140, %v2964, %v3139
    %vm3142 = vcmp.eq.f32.partialorder %v2964, 0.0
    %v3143 = vand.u32 %v2964, 2147483648
    %v3144 = vsel %vm3142, %v3143, %v3141
    %v3145 = vrsqrt.pop %v2967
    %v3146 = vmul.f32 %v2967, %v3145
    %vm3147 = vcmp.eq.f32.partialorder %v2967, inf
    %v3148 = vsel %vm3147, %v2967, %v3146
    %vm3149 = vcmp.eq.f32.partialorder %v2967, 0.0
    %v3150 = vand.u32 %v2967, 2147483648
    %v3151 = vsel %vm3149, %v3150, %v3148
    %v3152 = vrsqrt.pop %v2970
    %v3153 = vmul.f32 %v2970, %v3152
    %vm3154 = vcmp.eq.f32.partialorder %v2970, inf
    %v3155 = vsel %vm3154, %v2970, %v3153
    %vm3156 = vcmp.eq.f32.partialorder %v2970, 0.0
    %v3157 = vand.u32 %v2970, 2147483648
    %v3158 = vsel %vm3156, %v3157, %v3155
    %v3159 = vrsqrt.pop %v2973
    %v3160 = vmul.f32 %v2973, %v3159
    %vm3161 = vcmp.eq.f32.partialorder %v2973, inf
    %v3162 = vsel %vm3161, %v2973, %v3160
    %vm3163 = vcmp.eq.f32.partialorder %v2973, 0.0
    %v3164 = vand.u32 %v2973, 2147483648
    %v3165 = vsel %vm3163, %v3164, %v3162
    %v3166 = vrsqrt.pop %v2976
    %v3167 = vmul.f32 %v2976, %v3166
    %vm3168 = vcmp.eq.f32.partialorder %v2976, inf
    %v3169 = vsel %vm3168, %v2976, %v3167
    %vm3170 = vcmp.eq.f32.partialorder %v2976, 0.0
    %v3171 = vand.u32 %v2976, 2147483648
    %v3172 = vsel %vm3170, %v3171, %v3169
    %v3173 = vrsqrt.pop %v2979
    %v3174 = vmul.f32 %v2979, %v3173
    %vm3175 = vcmp.eq.f32.partialorder %v2979, inf
    %v3176 = vsel %vm3175, %v2979, %v3174
    %vm3177 = vcmp.eq.f32.partialorder %v2979, 0.0
    %v3178 = vand.u32 %v2979, 2147483648
    %v3179 = vsel %vm3177, %v3178, %v3176
    %v3180 = vrsqrt.pop %v2982
    %v3181 = vmul.f32 %v2982, %v3180
    %vm3182 = vcmp.eq.f32.partialorder %v2982, inf
    %v3183 = vsel %vm3182, %v2982, %v3181
    %vm3184 = vcmp.eq.f32.partialorder %v2982, 0.0
    %v3185 = vand.u32 %v2982, 2147483648
    %v3186 = vsel %vm3184, %v3185, %v3183
    %v3187 = vrsqrt.pop %v2985
    %v3188 = vmul.f32 %v2985, %v3187
    %vm3189 = vcmp.eq.f32.partialorder %v2985, inf
    %v3190 = vsel %vm3189, %v2985, %v3188
    %vm3191 = vcmp.eq.f32.partialorder %v2985, 0.0
    %v3192 = vand.u32 %v2985, 2147483648
    %v3193 = vsel %vm3191, %v3192, %v3190
    %v3194 = vrsqrt.pop %v2988
    %v3195 = vmul.f32 %v2988, %v3194
    %vm3196 = vcmp.eq.f32.partialorder %v2988, inf
    %v3197 = vsel %vm3196, %v2988, %v3195
    %vm3198 = vcmp.eq.f32.partialorder %v2988, 0.0
    %v3199 = vand.u32 %v2988, 2147483648
    %v3200 = vsel %vm3198, %v3199, %v3197
    %v3201 = vrsqrt.pop %v2991
    %v3202 = vmul.f32 %v2991, %v3201
    %vm3203 = vcmp.eq.f32.partialorder %v2991, inf
    %v3204 = vsel %vm3203, %v2991, %v3202
    %vm3205 = vcmp.eq.f32.partialorder %v2991, 0.0
    %v3206 = vand.u32 %v2991, 2147483648
    %v3207 = vsel %vm3205, %v3206, %v3204
    %v3208 = vrsqrt.pop %v2994
    %v3209 = vmul.f32 %v2994, %v3208
    %vm3210 = vcmp.eq.f32.partialorder %v2994, inf
    %v3211 = vsel %vm3210, %v2994, %v3209
    %vm3212 = vcmp.eq.f32.partialorder %v2994, 0.0
    %v3213 = vand.u32 %v2994, 2147483648
    %v3214 = vsel %vm3212, %v3213, %v3211
    %v3215 = vrsqrt.pop %v2997
    %v3216 = vmul.f32 %v2997, %v3215
    %vm3217 = vcmp.eq.f32.partialorder %v2997, inf
    %v3218 = vsel %vm3217, %v2997, %v3216
    %vm3219 = vcmp.eq.f32.partialorder %v2997, 0.0
    %v3220 = vand.u32 %v2997, 2147483648
    %v3221 = vsel %vm3219, %v3220, %v3218
    %v3222 = vrsqrt.pop %v3000
    %v3223 = vmul.f32 %v3000, %v3222
    %vm3224 = vcmp.eq.f32.partialorder %v3000, inf
    %v3225 = vsel %vm3224, %v3000, %v3223
    %vm3226 = vcmp.eq.f32.partialorder %v3000, 0.0
    %v3227 = vand.u32 %v3000, 2147483648
    %v3228 = vsel %vm3226, %v3227, %v3225
    %v3229 = vrsqrt.pop %v3003
    %v3230 = vmul.f32 %v3003, %v3229
    %vm3231 = vcmp.eq.f32.partialorder %v3003, inf
    %v3232 = vsel %vm3231, %v3003, %v3230
    %vm3233 = vcmp.eq.f32.partialorder %v3003, 0.0
    %v3234 = vand.u32 %v3003, 2147483648
    %v3235 = vsel %vm3233, %v3234, %v3232
    %v3236 = vrsqrt.pop %v3006
    %v3237 = vmul.f32 %v3006, %v3236
    %vm3238 = vcmp.eq.f32.partialorder %v3006, inf
    %v3239 = vsel %vm3238, %v3006, %v3237
    %vm3240 = vcmp.eq.f32.partialorder %v3006, 0.0
    %v3241 = vand.u32 %v3006, 2147483648
    %v3242 = vsel %vm3240, %v3241, %v3239
    %v3243 = vrsqrt.pop %v3009
    %v3244 = vmul.f32 %v3009, %v3243
    %vm3245 = vcmp.eq.f32.partialorder %v3009, inf
    %v3246 = vsel %vm3245, %v3009, %v3244
    %vm3247 = vcmp.eq.f32.partialorder %v3009, 0.0
    %v3248 = vand.u32 %v3009, 2147483648
    %v3249 = vsel %vm3247, %v3248, %v3246
    %v3250 = vrsqrt.pop %v3012
    %v3251 = vmul.f32 %v3012, %v3250
    %vm3252 = vcmp.eq.f32.partialorder %v3012, inf
    %v3253 = vsel %vm3252, %v3012, %v3251
    %vm3254 = vcmp.eq.f32.partialorder %v3012, 0.0
    %v3255 = vand.u32 %v3012, 2147483648
    %v3256 = vsel %vm3254, %v3255, %v3253
    %v3257 = vrsqrt.pop %v3015
    %v3258 = vmul.f32 %v3015, %v3257
    %vm3259 = vcmp.eq.f32.partialorder %v3015, inf
    %v3260 = vsel %vm3259, %v3015, %v3258
    %vm3261 = vcmp.eq.f32.partialorder %v3015, 0.0
    %v3262 = vand.u32 %v3015, 2147483648
    %v3263 = vsel %vm3261, %v3262, %v3260
    %v3264 = vrsqrt.pop %v3018
    %v3265 = vmul.f32 %v3018, %v3264
    %vm3266 = vcmp.eq.f32.partialorder %v3018, inf
    %v3267 = vsel %vm3266, %v3018, %v3265
    %vm3268 = vcmp.eq.f32.partialorder %v3018, 0.0
    %v3269 = vand.u32 %v3018, 2147483648
    %v3270 = vsel %vm3268, %v3269, %v3267
    %v3271 = vrsqrt.pop %v3021
    %v3272 = vmul.f32 %v3021, %v3271
    %vm3273 = vcmp.eq.f32.partialorder %v3021, inf
    %v3274 = vsel %vm3273, %v3021, %v3272
    %vm3275 = vcmp.eq.f32.partialorder %v3021, 0.0
    %v3276 = vand.u32 %v3021, 2147483648
    %v3277 = vsel %vm3275, %v3276, %v3274
    %v3278 = vrsqrt.pop %v3024
    %v3279 = vmul.f32 %v3024, %v3278
    %vm3280 = vcmp.eq.f32.partialorder %v3024, inf
    %v3281 = vsel %vm3280, %v3024, %v3279
    %vm3282 = vcmp.eq.f32.partialorder %v3024, 0.0
    %v3283 = vand.u32 %v3024, 2147483648
    %v3284 = vsel %vm3282, %v3283, %v3281
    %v3285 = vrsqrt.pop %v3027
    %v3286 = vmul.f32 %v3027, %v3285
    %vm3287 = vcmp.eq.f32.partialorder %v3027, inf
    %v3288 = vsel %vm3287, %v3027, %v3286
    %vm3289 = vcmp.eq.f32.partialorder %v3027, 0.0
    %v3290 = vand.u32 %v3027, 2147483648
    %v3291 = vsel %vm3289, %v3290, %v3288
    %v3292 = vrsqrt.pop %v3030
    %v3293 = vmul.f32 %v3030, %v3292
    %vm3294 = vcmp.eq.f32.partialorder %v3030, inf
    %v3295 = vsel %vm3294, %v3030, %v3293
    %vm3296 = vcmp.eq.f32.partialorder %v3030, 0.0
    %v3297 = vand.u32 %v3030, 2147483648
    %v3298 = vsel %vm3296, %v3297, %v3295
    %v3299 = vrsqrt.pop %v3033
    %v3300 = vmul.f32 %v3033, %v3299
    %vm3301 = vcmp.eq.f32.partialorder %v3033, inf
    %v3302 = vsel %vm3301, %v3033, %v3300
    %vm3303 = vcmp.eq.f32.partialorder %v3033, 0.0
    %v3304 = vand.u32 %v3033, 2147483648
    %v3305 = vsel %vm3303, %v3304, %v3302
    %v3306 = vrsqrt.pop %v3036
    %v3307 = vmul.f32 %v3036, %v3306
    %vm3308 = vcmp.eq.f32.partialorder %v3036, inf
    %v3309 = vsel %vm3308, %v3036, %v3307
    %vm3310 = vcmp.eq.f32.partialorder %v3036, 0.0
    %v3311 = vand.u32 %v3036, 2147483648
    %v3312 = vsel %vm3310, %v3311, %v3309
    %v3313 = vrsqrt.pop %v3039
    %v3314 = vmul.f32 %v3039, %v3313
    %vm3315 = vcmp.eq.f32.partialorder %v3039, inf
    %v3316 = vsel %vm3315, %v3039, %v3314
    %vm3317 = vcmp.eq.f32.partialorder %v3039, 0.0
    %v3318 = vand.u32 %v3039, 2147483648
    %v3319 = vsel %vm3317, %v3318, %v3316
    %v3320 = vrsqrt.pop %v3042
    %v3321 = vmul.f32 %v3042, %v3320
    %vm3322 = vcmp.eq.f32.partialorder %v3042, inf
    %v3323 = vsel %vm3322, %v3042, %v3321
    %vm3324 = vcmp.eq.f32.partialorder %v3042, 0.0
    %v3325 = vand.u32 %v3042, 2147483648
    %v3326 = vsel %vm3324, %v3325, %v3323
    %v3327 = vrsqrt.pop %v3045
    %v3328 = vmul.f32 %v3045, %v3327
    %vm3329 = vcmp.eq.f32.partialorder %v3045, inf
    %v3330 = vsel %vm3329, %v3045, %v3328
    %vm3331 = vcmp.eq.f32.partialorder %v3045, 0.0
    %v3332 = vand.u32 %v3045, 2147483648
    %v3333 = vsel %vm3331, %v3332, %v3330
    %v3334 = vrsqrt.pop %v3048
    %v3335 = vmul.f32 %v3048, %v3334
    %vm3336 = vcmp.eq.f32.partialorder %v3048, inf
    %v3337 = vsel %vm3336, %v3048, %v3335
    %vm3338 = vcmp.eq.f32.partialorder %v3048, 0.0
    %v3339 = vand.u32 %v3048, 2147483648
    %v3340 = vsel %vm3338, %v3339, %v3337
    %v3341 = vrsqrt.pop %v3051
    %v3342 = vmul.f32 %v3051, %v3341
    %vm3343 = vcmp.eq.f32.partialorder %v3051, inf
    %v3344 = vsel %vm3343, %v3051, %v3342
    %vm3345 = vcmp.eq.f32.partialorder %v3051, 0.0
    %v3346 = vand.u32 %v3051, 2147483648
    %v3347 = vsel %vm3345, %v3346, %v3344
    %v3348 = vrsqrt.pop %v3054
    %v3349 = vmul.f32 %v3054, %v3348
    %vm3350 = vcmp.eq.f32.partialorder %v3054, inf
    %v3351 = vsel %vm3350, %v3054, %v3349
    %vm3352 = vcmp.eq.f32.partialorder %v3054, 0.0
    %v3353 = vand.u32 %v3054, 2147483648
    %v3354 = vsel %vm3352, %v3353, %v3351
    %v3355 = vrsqrt.pop %v3057
    %v3356 = vmul.f32 %v3057, %v3355
    %vm3357 = vcmp.eq.f32.partialorder %v3057, inf
    %v3358 = vsel %vm3357, %v3057, %v3356
    %vm3359 = vcmp.eq.f32.partialorder %v3057, 0.0
    %v3360 = vand.u32 %v3057, 2147483648
    %v3361 = vsel %vm3359, %v3360, %v3358
    %v3362 = vrsqrt.pop %v3060
    %v3363 = vmul.f32 %v3060, %v3362
    %vm3364 = vcmp.eq.f32.partialorder %v3060, inf
    %v3365 = vsel %vm3364, %v3060, %v3363
    %vm3366 = vcmp.eq.f32.partialorder %v3060, 0.0
    %v3367 = vand.u32 %v3060, 2147483648
    %v3368 = vsel %vm3366, %v3367, %v3365
    %v3369 = vrsqrt.pop %v3063
    %v3370 = vmul.f32 %v3063, %v3369
    %vm3371 = vcmp.eq.f32.partialorder %v3063, inf
    %v3372 = vsel %vm3371, %v3063, %v3370
    %vm3373 = vcmp.eq.f32.partialorder %v3063, 0.0
    %v3374 = vand.u32 %v3063, 2147483648
    %v3375 = vsel %vm3373, %v3374, %v3372
    %v3376 = vrsqrt.pop %v3066
    %v3377 = vmul.f32 %v3066, %v3376
    %vm3378 = vcmp.eq.f32.partialorder %v3066, inf
    %v3379 = vsel %vm3378, %v3066, %v3377
    %vm3380 = vcmp.eq.f32.partialorder %v3066, 0.0
    %v3381 = vand.u32 %v3066, 2147483648
    %v3382 = vsel %vm3380, %v3381, %v3379
    %v3383 = vrsqrt.pop %v3069
    %v3384 = vmul.f32 %v3069, %v3383
    %vm3385 = vcmp.eq.f32.partialorder %v3069, inf
    %v3386 = vsel %vm3385, %v3069, %v3384
    %vm3387 = vcmp.eq.f32.partialorder %v3069, 0.0
    %v3388 = vand.u32 %v3069, 2147483648
    %v3389 = vsel %vm3387, %v3388, %v3386
    %v3390 = vrsqrt.pop %v3072
    %v3391 = vmul.f32 %v3072, %v3390
    %vm3392 = vcmp.eq.f32.partialorder %v3072, inf
    %v3393 = vsel %vm3392, %v3072, %v3391
    %vm3394 = vcmp.eq.f32.partialorder %v3072, 0.0
    %v3395 = vand.u32 %v3072, 2147483648
    %v3396 = vsel %vm3394, %v3395, %v3393
    %v3397 = vrsqrt.pop %v3075
    %v3398 = vmul.f32 %v3075, %v3397
    %vm3399 = vcmp.eq.f32.partialorder %v3075, inf
    %v3400 = vsel %vm3399, %v3075, %v3398
    %vm3401 = vcmp.eq.f32.partialorder %v3075, 0.0
    %v3402 = vand.u32 %v3075, 2147483648
    %v3403 = vsel %vm3401, %v3402, %v3400
    %v3404 = vrsqrt.pop %v3078
    %v3405 = vmul.f32 %v3078, %v3404
    %vm3406 = vcmp.eq.f32.partialorder %v3078, inf
    %v3407 = vsel %vm3406, %v3078, %v3405
    %vm3408 = vcmp.eq.f32.partialorder %v3078, 0.0
    %v3409 = vand.u32 %v3078, 2147483648
    %v3410 = vsel %vm3408, %v3409, %v3407
    %v3411 = vrsqrt.pop %v3081
    %v3412 = vmul.f32 %v3081, %v3411
    %vm3413 = vcmp.eq.f32.partialorder %v3081, inf
    %v3414 = vsel %vm3413, %v3081, %v3412
    %vm3415 = vcmp.eq.f32.partialorder %v3081, 0.0
    %v3416 = vand.u32 %v3081, 2147483648
    %v3417 = vsel %vm3415, %v3416, %v3414
    %v3418 = vmax.f32 %v3088, 1e-08
    %v3419 = vmax.f32 %v3095, 1e-08
    %v3420 = vmax.f32 %v3102, 1e-08
    %v3421 = vmax.f32 %v3109, 1e-08
    %v3422 = vmax.f32 %v3116, 1e-08
    %v3423 = vmax.f32 %v3123, 1e-08
    %v3424 = vmax.f32 %v3130, 1e-08
    %v3425 = vmax.f32 %v3137, 1e-08
    %v3426 = vmax.f32 %v3144, 1e-08
    %v3427 = vmax.f32 %v3151, 1e-08
    %v3428 = vmax.f32 %v3158, 1e-08
    %v3429 = vmax.f32 %v3165, 1e-08
    %v3430 = vmax.f32 %v3172, 1e-08
    %v3431 = vmax.f32 %v3179, 1e-08
    %v3432 = vmax.f32 %v3186, 1e-08
    %v3433 = vmax.f32 %v3193, 1e-08
    %v3434 = vmax.f32 %v3200, 1e-08
    %v3435 = vmax.f32 %v3207, 1e-08
    %v3436 = vmax.f32 %v3214, 1e-08
    %v3437 = vmax.f32 %v3221, 1e-08
    %v3438 = vmax.f32 %v3228, 1e-08
    %v3439 = vmax.f32 %v3235, 1e-08
    %v3440 = vmax.f32 %v3242, 1e-08
    %v3441 = vmax.f32 %v3249, 1e-08
    %v3442 = vmax.f32 %v3256, 1e-08
    %v3443 = vmax.f32 %v3263, 1e-08
    %v3444 = vmax.f32 %v3270, 1e-08
    %v3445 = vmax.f32 %v3277, 1e-08
    %v3446 = vmax.f32 %v3284, 1e-08
    %v3447 = vmax.f32 %v3291, 1e-08
    %v3448 = vmax.f32 %v3298, 1e-08
    %v3449 = vmax.f32 %v3305, 1e-08
    %v3450 = vmax.f32 %v3312, 1e-08
    %v3451 = vmax.f32 %v3319, 1e-08
    %v3452 = vmax.f32 %v3326, 1e-08
    %v3453 = vmax.f32 %v3333, 1e-08
    %v3454 = vmax.f32 %v3340, 1e-08
    %v3455 = vmax.f32 %v3347, 1e-08
    %v3456 = vmax.f32 %v3354, 1e-08
    %v3457 = vmax.f32 %v3361, 1e-08
    %v3458 = vmax.f32 %v3368, 1e-08
    %v3459 = vmax.f32 %v3375, 1e-08
    %v3460 = vmax.f32 %v3382, 1e-08
    %v3461 = vmax.f32 %v3389, 1e-08
    %v3462 = vmax.f32 %v3396, 1e-08
    %v3463 = vmax.f32 %v3403, 1e-08
    %v3464 = vmax.f32 %v3410, 1e-08
    %v3465 = vmax.f32 %v3417, 1e-08
    %v3466 = vmul.f32 %v2842, %v3418
    %v3467 = vmul.f32 %v2843, %v3419
    %v3468 = vmul.f32 %v2844, %v3420
    %v3469 = vmul.f32 %v2845, %v3421
    %v3470 = vmul.f32 %v2846, %v3422
    %v3471 = vmul.f32 %v2847, %v3423
    %v3472 = vmul.f32 %v2848, %v3424
    %v3473 = vmul.f32 %v2849, %v3425
    %v3474 = vmul.f32 %v2850, %v3426
    %v3475 = vmul.f32 %v2851, %v3427
    %v3476 = vmul.f32 %v2852, %v3428
    %v3477 = vmul.f32 %v2853, %v3429
    %v3478 = vmul.f32 %v2854, %v3430
    %v3479 = vmul.f32 %v2855, %v3431
    %v3480 = vmul.f32 %v2856, %v3432
    %v3481 = vmul.f32 %v2857, %v3433
    %v3482 = vmul.f32 %v2858, %v3434
    %v3483 = vmul.f32 %v2859, %v3435
    %v3484 = vmul.f32 %v2860, %v3436
    %v3485 = vmul.f32 %v2861, %v3437
    %v3486 = vmul.f32 %v2862, %v3438
    %v3487 = vmul.f32 %v2863, %v3439
    %v3488 = vmul.f32 %v2864, %v3440
    %v3489 = vmul.f32 %v2865, %v3441
    %v3490 = vmul.f32 %v2866, %v3442
    %v3491 = vmul.f32 %v2867, %v3443
    %v3492 = vmul.f32 %v2868, %v3444
    %v3493 = vmul.f32 %v2869, %v3445
    %v3494 = vmul.f32 %v2870, %v3446
    %v3495 = vmul.f32 %v2871, %v3447
    %v3496 = vmul.f32 %v2872, %v3448
    %v3497 = vmul.f32 %v2873, %v3449
    %v3498 = vmul.f32 %v2874, %v3450
    %v3499 = vmul.f32 %v2875, %v3451
    %v3500 = vmul.f32 %v2876, %v3452
    %v3501 = vmul.f32 %v2877, %v3453
    %v3502 = vmul.f32 %v2878, %v3454
    %v3503 = vmul.f32 %v2879, %v3455
    %v3504 = vmul.f32 %v2880, %v3456
    %v3505 = vmul.f32 %v2881, %v3457
    %v3506 = vmul.f32 %v2882, %v3458
    %v3507 = vmul.f32 %v2883, %v3459
    %v3508 = vmul.f32 %v2884, %v3460
    %v3509 = vmul.f32 %v2885, %v3461
    %v3510 = vmul.f32 %v2886, %v3462
    %v3511 = vmul.f32 %v2887, %v3463
    %v3512 = vmul.f32 %v2888, %v3464
    %v3513 = vmul.f32 %v2889, %v3465
    %v3514 = vrcp.pop %v3466
    %v3515 = vmul.f32 %v2172, %v3514
    %v3516 = vrcp.pop %v3467
    %v3517 = vmul.f32 %v2175, %v3516
    %v3518 = vrcp.pop %v3468
    %v3519 = vmul.f32 %v2178, %v3518
    %v3520 = vrcp.pop %v3469
    %v3521 = vmul.f32 %v2181, %v3520
    %v3522 = vrcp.pop %v3470
    %v3523 = vmul.f32 %v2184, %v3522
    %v3524 = vrcp.pop %v3471
    %v3525 = vmul.f32 %v2187, %v3524
    %v3526 = vrcp.pop %v3472
    %v3527 = vmul.f32 %v2190, %v3526
    %v3528 = vrcp.pop %v3473
    %v3529 = vmul.f32 %v2193, %v3528
    %v3530 = vrcp.pop %v3474
    %v3531 = vmul.f32 %v2196, %v3530
    %v3532 = vrcp.pop %v3475
    %v3533 = vmul.f32 %v2199, %v3532
    %v3534 = vrcp.pop %v3476
    %v3535 = vmul.f32 %v2202, %v3534
    %v3536 = vrcp.pop %v3477
    %v3537 = vmul.f32 %v2205, %v3536
    %v3538 = vrcp.pop %v3478
    %v3539 = vmul.f32 %v2208, %v3538
    %v3540 = vrcp.pop %v3479
    %v3541 = vmul.f32 %v2211, %v3540
    %v3542 = vrcp.pop %v3480
    %v3543 = vmul.f32 %v2214, %v3542
    %v3544 = vrcp.pop %v3481
    %v3545 = vmul.f32 %v2217, %v3544
    %v3546 = vrcp.pop %v3482
    %v3547 = vmul.f32 %v2220, %v3546
    %v3548 = vrcp.pop %v3483
    %v3549 = vmul.f32 %v2223, %v3548
    %v3550 = vrcp.pop %v3484
    %v3551 = vmul.f32 %v2226, %v3550
    %v3552 = vrcp.pop %v3485
    %v3553 = vmul.f32 %v2229, %v3552
    %v3554 = vrcp.pop %v3486
    %v3555 = vmul.f32 %v2232, %v3554
    %v3556 = vrcp.pop %v3487
    %v3557 = vmul.f32 %v2235, %v3556
    %v3558 = vrcp.pop %v3488
    %v3559 = vmul.f32 %v2238, %v3558
    %v3560 = vrcp.pop %v3489
    %v3561 = vmul.f32 %v2241, %v3560
    %v3562 = vrcp.pop %v3490
    %v3563 = vmul.f32 %v2244, %v3562
    %v3564 = vrcp.pop %v3491
    %v3565 = vmul.f32 %v2247, %v3564
    %v3566 = vrcp.pop %v3492
    %v3567 = vmul.f32 %v2250, %v3566
    %v3568 = vrcp.pop %v3493
    %v3569 = vmul.f32 %v2253, %v3568
    %v3570 = vrcp.pop %v3494
    %v3571 = vmul.f32 %v2256, %v3570
    %v3572 = vrcp.pop %v3495
    %v3573 = vmul.f32 %v2259, %v3572
    %v3574 = vrcp.pop %v3496
    %v3575 = vmul.f32 %v2262, %v3574
    %v3576 = vrcp.pop %v3497
    %v3577 = vmul.f32 %v2265, %v3576
    %v3578 = vrcp.pop %v3498
    %v3579 = vmul.f32 %v2268, %v3578
    %v3580 = vrcp.pop %v3499
    %v3581 = vmul.f32 %v2271, %v3580
    %v3582 = vrcp.pop %v3500
    %v3583 = vmul.f32 %v2274, %v3582
    %v3584 = vrcp.pop %v3501
    %v3585 = vmul.f32 %v2277, %v3584
    %v3586 = vrcp.pop %v3502
    %v3587 = vmul.f32 %v2280, %v3586
    %v3588 = vrcp.pop %v3503
    %v3589 = vmul.f32 %v2283, %v3588
    %v3590 = vrcp.pop %v3504
    %v3591 = vmul.f32 %v2286, %v3590
    %v3592 = vrcp.pop %v3505
    %v3593 = vmul.f32 %v2289, %v3592
    %v3594 = vrcp.pop %v3506
    %v3595 = vmul.f32 %v2292, %v3594
    %v3596 = vrcp.pop %v3507
    %v3597 = vmul.f32 %v2295, %v3596
    %v3598 = vrcp.pop %v3508
    %v3599 = vmul.f32 %v2298, %v3598
    %v3600 = vrcp.pop %v3509
    %v3601 = vmul.f32 %v2301, %v3600
    %v3602 = vrcp.pop %v3510
    %v3603 = vmul.f32 %v2304, %v3602
    %v3604 = vrcp.pop %v3511
    %v3605 = vmul.f32 %v2307, %v3604
    %v3606 = vrcp.pop %v3512
    %v3607 = vmul.f32 %v2310, %v3606
    %v3608 = vrcp.pop %v3513
    %v3609 = vmul.f32 %v2313, %v3608
    %v3610 = vadd.f32 %v3515, %v3517
    %v3611 = vadd.f32 %v3610, %v3519
    %v3612 = vadd.f32 %v3611, %v3521
    %v3613 = vadd.f32 %v3612, %v3523
    %v3614 = vadd.f32 %v3613, %v3525
    %v3615 = vadd.f32 %v3614, %v3527
    %v3616 = vadd.f32 %v3615, %v3529
    %v3617 = vadd.f32 %v3616, %v3531
    %v3618 = vadd.f32 %v3617, %v3533
    %v3619 = vadd.f32 %v3618, %v3535
    %v3620 = vadd.f32 %v3619, %v3537
    %v3621 = vadd.f32 %v3620, %v3539
    %v3622 = vadd.f32 %v3621, %v3541
    %v3623 = vadd.f32 %v3622, %v3543
    %v3624 = vadd.f32 %v3623, %v3545
    %v3625 = vadd.f32 %v3624, %v3547
    %v3626 = vadd.f32 %v3625, %v3549
    %v3627 = vadd.f32 %v3626, %v3551
    %v3628 = vadd.f32 %v3627, %v3553
    %v3629 = vadd.f32 %v3628, %v3555
    %v3630 = vadd.f32 %v3629, %v3557
    %v3631 = vadd.f32 %v3630, %v3559
    %v3632 = vadd.f32 %v3631, %v3561
    %v3633 = vadd.f32 %v3632, %v3563
    %v3634 = vadd.f32 %v3633, %v3565
    %v3635 = vadd.f32 %v3634, %v3567
    %v3636 = vadd.f32 %v3635, %v3569
    %v3637 = vadd.f32 %v3636, %v3571
    %v3638 = vadd.f32 %v3637, %v3573
    %v3639 = vadd.f32 %v3638, %v3575
    %v3640 = vadd.f32 %v3639, %v3577
    %v3641 = vadd.f32 %v3640, %v3579
    %v3642 = vadd.f32 %v3641, %v3581
    %v3643 = vadd.f32 %v3642, %v3583
    %v3644 = vadd.f32 %v3643, %v3585
    %v3645 = vadd.f32 %v3644, %v3587
    %v3646 = vadd.f32 %v3645, %v3589
    %v3647 = vadd.f32 %v3646, %v3591
    %v3648 = vadd.f32 %v3647, %v3593
    %v3649 = vadd.f32 %v3648, %v3595
    %v3650 = vadd.f32 %v3649, %v3597
    %v3651 = vadd.f32 %v3650, %v3599
    %v3652 = vadd.f32 %v3651, %v3601
    %v3653 = vadd.f32 %v3652, %v3603
    %v3654 = vadd.f32 %v3653, %v3605
    %v3655 = vadd.f32 %v3654, %v3607
    %v3656 = vadd.f32 %v3655, %v3609
    %v3657 = vrot.slane %v3656, 4
    %v3658 = vadd.f32 %v3656, %v3657
    %v3659 = vrot.slane %v3658, 2
    %v3660 = vadd.f32 %v3658, %v3659
    %v3661 = vrot.slane %v3660, 1
    %v3662 = vadd.f32 %v3660, %v3661
    %v3663 = vsub.f32 0.0, %v3662
    %v3664 = vrcp.pop 384.0
    %v3665 = vmul.f32 %v3663, %v3664
    %vm3666 = vcmask 0
    %3667 = vst.msk [vmem:[#allocation2] sm:$0x1] %vm3666, %v3665
    // Predicated region
    $region58: #{forward.5} parent=1 // pred_check
      _
    $region59: #{forward.5} parent=1 // pred_check_branch
      %3669 = sbr.rel (0) target = $region61
    $region60: #{forward.5} parent=1 // pred_region
      %s3671 = ssub.s32 16, 16
      %3672 = vsyncadd [#allocation3], %s3671
      %s3674 = sshll.u32 [#allocation2], 4
      %s3675 = int_to_ptr.vmem [resolvable:$true] %s3674
      %3677 = dma.vmem_to_hbm [thread:$0]  %s3675, 16, %s14, [#allocation3]
    $region61: #{forward.5} parent=1 // pred_fallthru
      _
    // Predicated region
    $region62: #{forward.5} parent=1 // pred_check
      _
    $region63: #{forward.5} parent=1 // pred_check_branch
      %3679 = sbr.rel (0) target = $region65
    $region64: #{forward.5} parent=1 // pred_region
      %3680 = dma.done [#allocation3], 16
    $region65: #{forward.5} parent=1 // pred_fallthru
      _
    %3681 = vsyncpa [#allocation3], 1

</llo_original>
